<compile_context>
chip_gen: v7x
topology: tpu7x:2x2x1
jax: 0.10.0
libtpu: 0.0.40
codegen_flags: <defaults>
</compile_context>

<pallas_src>
import math
from functools import partial

import jax
import jax.numpy as jnp
from jax.experimental import pallas as pl
from jax.experimental.pallas import tpu as pltpu

# Exact f32 matmuls everywhere (reference and in-kernel dots).
jax.config.update("jax_default_matmul_precision", "highest")


# ----------------------------------------------------------------------------
# Sinusoidal positional table — identical construction to the PyTorch __init__.
# ----------------------------------------------------------------------------
def make_positional_encoding_table(d_model: int, max_len: int = 5000) -> jnp.ndarray:
    position = jnp.arange(max_len, dtype=jnp.float32)[:, None]
    div_term = jnp.exp(
        jnp.arange(0, d_model, 2, dtype=jnp.float32) * (-math.log(10000.0) / d_model)
    )
    angles = position * div_term
    pe = jnp.zeros((max_len, 1, d_model), dtype=jnp.float32)
    pe = pe.at[:, 0, 0::2].set(jnp.sin(angles))
    pe = pe.at[:, 0, 1::2].set(jnp.cos(angles)[:, : d_model // 2])
    return pe


# ----------------------------------------------------------------------------
# Single fully-fused kernel: positional add + input projection + num_layers
# mixer layers (LayerNorm, two matmuls, SE gate, residual — twice per layer)
# + final-token linear head + softmax.  Everything for one batch element stays
# in VMEM/vregs for the whole network.
# ----------------------------------------------------------------------------
def _fused_mlp_mixer_kernel(x_ref, pe_ref, wc_ref, bc_ref, g_ref, bta_ref,
                            w1_ref, b1_ref, w4_ref, b4_ref, w6_ref, b6_ref,
                            wse1_ref, wse2_ref, w2_ref, b2_ref, o_ref, *,
                            num_layers: int):
    # Positional add fused with the input-projection matmul.
    x = x_ref[0] + pe_ref[0]                                            # (S,E) + (1,E)
    h = jnp.dot(x, wc_ref[...], preferred_element_type=jnp.float32) + bc_ref[...]  # (S,H)

    gamma = g_ref[...]          # (1,H) — hoisted out of the layer loop
    beta = bta_ref[...]

    def layer_norm(z):
        # PyTorch LayerNorm: biased variance, eps=1e-5, affine.
        mu = jnp.mean(z, axis=-1, keepdims=True)
        zc = z - mu
        var = jnp.mean(zc * zc, axis=-1, keepdims=True)
        return zc * jax.lax.rsqrt(var + 1e-5) * gamma + beta

    def se_gate(z):
        # Squeeze-and-Excitation over the sequence axis (max-pool variant).
        m = jnp.max(z, axis=-1, keepdims=True)                          # (S,1)
        e = jnp.dot(wse1_ref[...], m, preferred_element_type=jnp.float32)   # (S/4,1)
        e = jnp.maximum(e, 0.0)
        e = jnp.dot(wse2_ref[...], e, preferred_element_type=jnp.float32)   # (S,1)
        return z * jax.nn.sigmoid(e)

    # num_layers is a static Python int -> loop is unrolled at trace time.
    for _ in range(num_layers):
        # --- mlp branch: lin_one -> ReLU -> lin_four -> ReLU (dropouts = id) ---
        y = layer_norm(h)
        y = jnp.dot(y, w1_ref[...], preferred_element_type=jnp.float32) + b1_ref[...]
        y = jnp.maximum(y, 0.0)
        y = jnp.dot(y, w4_ref[...], preferred_element_type=jnp.float32) + b4_ref[...]
        y = jnp.maximum(y, 0.0)
        h = h + se_gate(y)

        # --- mlp_exit branch: lin_six -> ReLU -> lin_four (no second ReLU) ---
        y = layer_norm(h)
        y = jnp.dot(y, w6_ref[...], preferred_element_type=jnp.float32) + b6_ref[...]
        y = jnp.maximum(y, 0.0)
        y = jnp.dot(y, w4_ref[...], preferred_element_type=jnp.float32) + b4_ref[...]
        h = h + se_gate(y)

    # Head: last token -> Linear(H, out_dim) -> softmax over classes.
    x_last = h[-1:, :]                                                  # (1,H), static slice
    logits = jnp.dot(x_last, w2_ref[...], preferred_element_type=jnp.float32) + b2_ref[...]
    m = jnp.max(logits, axis=-1, keepdims=True)
    e = jnp.exp(logits - m)
    o_ref[0] = (e / jnp.sum(e, axis=-1, keepdims=True)).astype(o_ref.dtype)


def mlp_mixer_forward(x, pe, params, *, num_layers: int):
    B, S, E = x.shape
    H = params["conv_w"].shape[0]       # hidden_dim == embed_dim
    dff = params["w1"].shape[0]
    OUT = params["w2"].shape[0]

    pe_b = pe[:B]                       # same quirk as `x + self.pe[:x.size(0)]`

    # Pre-transpose weights once on the host side of the call (XLA-fused, cheap).
    wc_t = params["conv_w"].T           # (E, H)
    bc = params["conv_b"].reshape(1, -1)
    gamma = params["gamma"].reshape(1, -1)
    beta = params["beta"].reshape(1, -1)
    w1_t, b1 = params["w1"].T, params["b1"].reshape(1, -1)   # (H, dff)
    w4_t, b4 = params["w4"].T, params["b4"].reshape(1, -1)   # (dff, H)
    w6_t, b6 = params["w6"].T, params["b6"].reshape(1, -1)   # (H, dff)
    w2_t, b2 = params["w2"].T, params["b2"].reshape(1, -1)   # (H, OUT)
    wse1, wse2 = params["wse1"], params["wse2"]               # (S/4,S), (S,S/4)

    const = lambda shape: pl.BlockSpec(shape, lambda b: tuple(0 for _ in shape))

    out = pl.pallas_call(
        partial(_fused_mlp_mixer_kernel, num_layers=num_layers),
        out_shape=jax.ShapeDtypeStruct((B, 1, OUT), x.dtype),
        grid=(B,),
        in_specs=[
            pl.BlockSpec((1, S, E), lambda b: (b, 0, 0)),   # x: streamed per batch element
            pl.BlockSpec((1, 1, E), lambda b: (b, 0, 0)),   # pe[:B]
            const((E, H)),                                  # conv weight (resident)
            const((1, H)),                                  # conv bias
            const((1, H)),                                  # LN gamma
            const((1, H)),                                  # LN beta
            const((H, dff)),                                # lin_one
            const((1, dff)),
            const((dff, H)),                                # lin_four
            const((1, H)),
            const((H, dff)),                                # lin_six
            const((1, dff)),
            const((S // 4, S)),                             # SE excitation 1
            const((S, S // 4)),                             # SE excitation 2
            const((H, OUT)),                                # lin_two
            const((1, OUT)),
        ],
        out_specs=pl.BlockSpec((1, 1, OUT), lambda b: (b, 0, 0)),
        compiler_params=pltpu.CompilerParams(dimension_semantics=("parallel",)),
    )(x, pe_b, wc_t, bc, gamma, beta, w1_t, b1, w4_t, b4, w6_t, b6,
      wse1, wse2, w2_t, b2)

    return out.reshape(B, OUT)


# ----------------------------------------------------------------------------
# Pure-JAX reference (mirrors the PyTorch module in eval mode).
# ----------------------------------------------------------------------------
def ref_forward(x, pe, params, *, num_layers: int):
    B = x.shape[0]
    h = x + pe[:B]
    h = jnp.einsum("bse,oe->bso", h, params["conv_w"]) + params["conv_b"]

    def layer_norm(z):
        mu = z.mean(-1, keepdims=True)
        var = ((z - mu) ** 2).mean(-1, keepdims=True)
        return (z - mu) / jnp.sqrt(var + 1e-5) * params["gamma"] + params["beta"]

    def se(z):
        m = z.max(-1)                                   # (B,S)
        e = jnp.maximum(m @ params["wse1"].T, 0.0)
        e = jax.nn.sigmoid(e @ params["wse2"].T)
        return z * e[..., None]

    def mlp(z):
        z = jnp.maximum(z @ params["w1"].T + params["b1"], 0.0)
        return jnp.maximum(z @ params["w4"].T + params["b4"], 0.0)

    def mlp_exit(z):
        z = jnp.maximum(z @ params["w6"].T + params["b6"], 0.0)
        return z @ params["w4"].T + params["b4"]

    for _ in range(num_layers):
        h = h + se(mlp(layer_norm(h)))
        h = h + se(mlp_exit(layer_norm(h)))
    logits = h[:, -1, :] @ params["w2"].T + params["b2"]
    return jax.nn.softmax(logits, axis=1)


def init_params(key, *, seq_len, embed_dim, dff, out_dim):
    ks = jax.random.split(key, 14)
    s = 0.05
    return {
        # Conv2d(1, hidden, (1, E)) weight reshaped to (hidden=E, E), plus bias.
        "conv_w": jax.random.normal(ks[0], (embed_dim, embed_dim), jnp.float32) * s,
        "conv_b": jax.random.normal(ks[1], (embed_dim,), jnp.float32) * s,
        "w1": jax.random.normal(ks[2], (dff, embed_dim), jnp.float32) * s,      # lin_one
        "b1": jax.random.normal(ks[3], (dff,), jnp.float32) * s,
        "w4": jax.random.normal(ks[4], (embed_dim, dff), jnp.float32) * s,      # lin_four
        "b4": jax.random.normal(ks[5], (embed_dim,), jnp.float32) * s,
        "w6": jax.random.normal(ks[6], (dff, embed_dim), jnp.float32) * s,      # lin_six
        "b6": jax.random.normal(ks[7], (dff,), jnp.float32) * s,
        "w2": jax.random.normal(ks[8], (out_dim, embed_dim), jnp.float32) * s,  # lin_two
        "b2": jax.random.normal(ks[9], (out_dim,), jnp.float32) * s,
        "wse1": jax.random.normal(ks[10], (seq_len // 4, seq_len), jnp.float32) * s,
        "wse2": jax.random.normal(ks[11], (seq_len, seq_len // 4), jnp.float32) * s,
        "gamma": 1.0 + 0.1 * jax.random.normal(ks[12], (embed_dim,), jnp.float32),
        "beta": 0.1 * jax.random.normal(ks[13], (embed_dim,), jnp.float32),
    }


if __name__ == "__main__":
    # Small shapes consistent with the module (module hard-codes seq_len=300,
    # dff=2048, output_dim=2; scaled down for the test).
    B, S, E, DFF, OUT, NUM_LAYERS = 2, 16, 32, 64, 2, 2
    MAX_LEN = 64

    key = jax.random.PRNGKey(0)
    kx, kp = jax.random.split(key)
    x = jax.random.normal(kx, (B, S, E), dtype=jnp.float32)
    params = init_params(kp, seq_len=S, embed_dim=E, dff=DFF, out_dim=OUT)
    pe = make_positional_encoding_table(E, MAX_LEN)

    # TODO(synk): nn.Dropout layers are treated as identity (eval-mode inference).
    fwd = jax.jit(partial(mlp_mixer_forward, num_layers=NUM_LAYERS))
    out = jax.block_until_ready(fwd(x, pe, params))

    ref = jax.block_until_ready(ref_forward(x, pe, params, num_layers=NUM_LAYERS))
    assert out.shape == (B, OUT)
    err = float(jnp.max(jnp.abs(out - ref)))
    assert jnp.allclose(out, ref, atol=1e-4, rtol=1e-4), f"mismatch vs reference: {err}"

    print("KERNEL_OK")
</pallas_src>

<mosaic_0001>
module attributes {stable_mosaic.version = 11 : i64} {
  func.func @_fused_mlp_mixer_kernel(%arg0: i32, %arg1: memref<1x16x32xf32, #tpu.memory_space<vmem>>, %arg2: memref<1x1x32xf32, #tpu.memory_space<vmem>>, %arg3: memref<32x32xf32, #tpu.memory_space<vmem>>, %arg4: memref<1x32xf32, #tpu.memory_space<vmem>>, %arg5: memref<1x32xf32, #tpu.memory_space<vmem>>, %arg6: memref<1x32xf32, #tpu.memory_space<vmem>>, %arg7: memref<32x64xf32, #tpu.memory_space<vmem>>, %arg8: memref<1x64xf32, #tpu.memory_space<vmem>>, %arg9: memref<64x32xf32, #tpu.memory_space<vmem>>, %arg10: memref<1x32xf32, #tpu.memory_space<vmem>>, %arg11: memref<32x64xf32, #tpu.memory_space<vmem>>, %arg12: memref<1x64xf32, #tpu.memory_space<vmem>>, %arg13: memref<4x16xf32, #tpu.memory_space<vmem>>, %arg14: memref<16x4xf32, #tpu.memory_space<vmem>>, %arg15: memref<32x2xf32, #tpu.memory_space<vmem>>, %arg16: memref<1x2xf32, #tpu.memory_space<vmem>>, %arg17: memref<1x1x2xf32, #tpu.memory_space<vmem>>) attributes {dimension_semantics = [#tpu.dimension_semantics<parallel>], iteration_bounds = array<i64: 2>, scalar_prefetch = 0 : i64, scratch_operands = 0 : i64, tpu.core_type = #tpu.core_type<tc>, window_params = [{transform_indices = @transform_0, window_bounds = array<i64: 1, 16, 32>}, {transform_indices = @transform_1, window_bounds = array<i64: 1, 1, 32>}, {pipeline_mode = #tpu.pipeline_mode<synchronous>, transform_indices = @transform_2, window_bounds = array<i64: 32, 32>}, {pipeline_mode = #tpu.pipeline_mode<synchronous>, transform_indices = @transform_3, window_bounds = array<i64: 1, 32>}, {pipeline_mode = #tpu.pipeline_mode<synchronous>, transform_indices = @transform_4, window_bounds = array<i64: 1, 32>}, {pipeline_mode = #tpu.pipeline_mode<synchronous>, transform_indices = @transform_5, window_bounds = array<i64: 1, 32>}, {pipeline_mode = #tpu.pipeline_mode<synchronous>, transform_indices = @transform_6, window_bounds = array<i64: 32, 64>}, {pipeline_mode = #tpu.pipeline_mode<synchronous>, transform_indices = @transform_7, window_bounds = array<i64: 1, 64>}, {pipeline_mode = #tpu.pipeline_mode<synchronous>, transform_indices = @transform_8, window_bounds = array<i64: 64, 32>}, {pipeline_mode = #tpu.pipeline_mode<synchronous>, transform_indices = @transform_9, window_bounds = array<i64: 1, 32>}, {pipeline_mode = #tpu.pipeline_mode<synchronous>, transform_indices = @transform_10, window_bounds = array<i64: 32, 64>}, {pipeline_mode = #tpu.pipeline_mode<synchronous>, transform_indices = @transform_11, window_bounds = array<i64: 1, 64>}, {pipeline_mode = #tpu.pipeline_mode<synchronous>, transform_indices = @transform_12, window_bounds = array<i64: 4, 16>}, {pipeline_mode = #tpu.pipeline_mode<synchronous>, transform_indices = @transform_13, window_bounds = array<i64: 16, 4>}, {pipeline_mode = #tpu.pipeline_mode<synchronous>, transform_indices = @transform_14, window_bounds = array<i64: 32, 2>}, {pipeline_mode = #tpu.pipeline_mode<synchronous>, transform_indices = @transform_15, window_bounds = array<i64: 1, 2>}, {transform_indices = @transform_16, window_bounds = array<i64: 1, 1, 2>}]} {
    %c0 = arith.constant 0 : index
    %c0_0 = arith.constant 0 : index
    %c0_1 = arith.constant 0 : index
    %0 = vector.load %arg1[%c0, %c0_0, %c0_1] : memref<1x16x32xf32, #tpu.memory_space<vmem>>, vector<1x16x32xf32>
    %1 = vector.shape_cast %0 : vector<1x16x32xf32> to vector<16x32xf32>
    %c0_2 = arith.constant 0 : index
    %c0_3 = arith.constant 0 : index
    %c0_4 = arith.constant 0 : index
    %2 = vector.load %arg2[%c0_2, %c0_3, %c0_4] : memref<1x1x32xf32, #tpu.memory_space<vmem>>, vector<1x1x32xf32>
    %3 = vector.shape_cast %2 : vector<1x1x32xf32> to vector<1x32xf32>
    %4 = vector.broadcast %3 : vector<1x32xf32> to vector<16x32xf32>
    %5 = arith.addf %1, %4 : vector<16x32xf32>
    %c0_5 = arith.constant 0 : index
    %c0_6 = arith.constant 0 : index
    %6 = vector.load %arg3[%c0_5, %c0_6] : memref<32x32xf32, #tpu.memory_space<vmem>>, vector<32x32xf32>
    %cst = arith.constant dense<0.000000e+00> : vector<16x32xf32>
    %7 = tpu.matmul %5, %6, %cst {dimension_numbers = #tpu.dot_dimension_numbers<[1], [0], [0], [1], [0, 0, 1, 1], [], []>, precision = #tpu.contract_precision<fp32>} : vector<16x32xf32>, vector<32x32xf32>, vector<16x32xf32> -> vector<16x32xf32>
    %c0_7 = arith.constant 0 : index
    %c0_8 = arith.constant 0 : index
    %8 = vector.load %arg4[%c0_7, %c0_8] : memref<1x32xf32, #tpu.memory_space<vmem>>, vector<1x32xf32>
    %9 = vector.broadcast %8 : vector<1x32xf32> to vector<16x32xf32>
    %10 = arith.addf %7, %9 : vector<16x32xf32>
    %c0_9 = arith.constant 0 : index
    %c0_10 = arith.constant 0 : index
    %11 = vector.load %arg5[%c0_9, %c0_10] : memref<1x32xf32, #tpu.memory_space<vmem>>, vector<1x32xf32>
    %c0_11 = arith.constant 0 : index
    %c0_12 = arith.constant 0 : index
    %12 = vector.load %arg6[%c0_11, %c0_12] : memref<1x32xf32, #tpu.memory_space<vmem>>, vector<1x32xf32>
    %cst_13 = arith.constant dense<0.000000e+00> : vector<16xf32>
    %13 = vector.multi_reduction <add>, %10, %cst_13 [1] : vector<16x32xf32> to vector<16xf32>
    %14 = vector.shape_cast %13 : vector<16xf32> to vector<16x1xf32>
    %cst_14 = arith.constant 3.200000e+01 : f32
    %15 = vector.broadcast %cst_14 : f32 to vector<16x1xf32>
    %16 = arith.divf %14, %15 : vector<16x1xf32>
    %17 = vector.broadcast %16 : vector<16x1xf32> to vector<16x32xf32>
    %18 = arith.subf %10, %17 : vector<16x32xf32>
    %19 = arith.mulf %18, %18 : vector<16x32xf32>
    %cst_15 = arith.constant dense<0.000000e+00> : vector<16xf32>
    %20 = vector.multi_reduction <add>, %19, %cst_15 [1] : vector<16x32xf32> to vector<16xf32>
    %21 = vector.shape_cast %20 : vector<16xf32> to vector<16x1xf32>
    %cst_16 = arith.constant 3.200000e+01 : f32
    %22 = vector.broadcast %cst_16 : f32 to vector<16x1xf32>
    %23 = arith.divf %21, %22 : vector<16x1xf32>
    %cst_17 = arith.constant 9.99999974E-6 : f32
    %24 = vector.broadcast %cst_17 : f32 to vector<16x1xf32>
    %25 = arith.addf %23, %24 : vector<16x1xf32>
    %26 = math.rsqrt %25 : vector<16x1xf32>
    %27 = vector.broadcast %26 : vector<16x1xf32> to vector<16x32xf32>
    %28 = arith.mulf %18, %27 : vector<16x32xf32>
    %29 = vector.broadcast %11 : vector<1x32xf32> to vector<16x32xf32>
    %30 = arith.mulf %28, %29 : vector<16x32xf32>
    %31 = vector.broadcast %12 : vector<1x32xf32> to vector<16x32xf32>
    %32 = arith.addf %30, %31 : vector<16x32xf32>
    %c0_18 = arith.constant 0 : index
    %c0_19 = arith.constant 0 : index
    %33 = vector.load %arg7[%c0_18, %c0_19] : memref<32x64xf32, #tpu.memory_space<vmem>>, vector<32x64xf32>
    %cst_20 = arith.constant dense<0.000000e+00> : vector<16x64xf32>
    %34 = tpu.matmul %32, %33, %cst_20 {dimension_numbers = #tpu.dot_dimension_numbers<[1], [0], [0], [1], [0, 0, 1, 1], [], []>, precision = #tpu.contract_precision<fp32>} : vector<16x32xf32>, vector<32x64xf32>, vector<16x64xf32> -> vector<16x64xf32>
    %c0_21 = arith.constant 0 : index
    %c0_22 = arith.constant 0 : index
    %35 = vector.load %arg8[%c0_21, %c0_22] : memref<1x64xf32, #tpu.memory_space<vmem>>, vector<1x64xf32>
    %36 = vector.broadcast %35 : vector<1x64xf32> to vector<16x64xf32>
    %37 = arith.addf %34, %36 : vector<16x64xf32>
    %cst_23 = arith.constant 0.000000e+00 : f32
    %38 = vector.broadcast %cst_23 : f32 to vector<16x64xf32>
    %39 = arith.maximumf %37, %38 : vector<16x64xf32>
    %c0_24 = arith.constant 0 : index
    %c0_25 = arith.constant 0 : index
    %40 = vector.load %arg9[%c0_24, %c0_25] : memref<64x32xf32, #tpu.memory_space<vmem>>, vector<64x32xf32>
    %cst_26 = arith.constant dense<0.000000e+00> : vector<16x32xf32>
    %41 = tpu.matmul %39, %40, %cst_26 {dimension_numbers = #tpu.dot_dimension_numbers<[1], [0], [0], [1], [0, 0, 1, 1], [], []>, precision = #tpu.contract_precision<fp32>} : vector<16x64xf32>, vector<64x32xf32>, vector<16x32xf32> -> vector<16x32xf32>
    %c0_27 = arith.constant 0 : index
    %c0_28 = arith.constant 0 : index
    %42 = vector.load %arg10[%c0_27, %c0_28] : memref<1x32xf32, #tpu.memory_space<vmem>>, vector<1x32xf32>
    %43 = vector.broadcast %42 : vector<1x32xf32> to vector<16x32xf32>
    %44 = arith.addf %41, %43 : vector<16x32xf32>
    %cst_29 = arith.constant 0.000000e+00 : f32
    %45 = vector.broadcast %cst_29 : f32 to vector<16x32xf32>
    %46 = arith.maximumf %44, %45 : vector<16x32xf32>
    %cst_30 = arith.constant dense<0xFF800000> : vector<16xf32>
    %47 = vector.multi_reduction <maximumf>, %46, %cst_30 [1] : vector<16x32xf32> to vector<16xf32>
    %48 = vector.shape_cast %47 : vector<16xf32> to vector<16x1xf32>
    %c0_31 = arith.constant 0 : index
    %c0_32 = arith.constant 0 : index
    %49 = vector.load %arg13[%c0_31, %c0_32] : memref<4x16xf32, #tpu.memory_space<vmem>>, vector<4x16xf32>
    %cst_33 = arith.constant dense<0.000000e+00> : vector<4x1xf32>
    %50 = tpu.matmul %49, %48, %cst_33 {dimension_numbers = #tpu.dot_dimension_numbers<[1], [0], [0], [1], [0, 0, 1, 1], [], []>, precision = #tpu.contract_precision<fp32>} : vector<4x16xf32>, vector<16x1xf32>, vector<4x1xf32> -> vector<4x1xf32>
    %cst_34 = arith.constant 0.000000e+00 : f32
    %51 = vector.broadcast %cst_34 : f32 to vector<4x1xf32>
    %52 = arith.maximumf %50, %51 : vector<4x1xf32>
    %c0_35 = arith.constant 0 : index
    %c0_36 = arith.constant 0 : index
    %53 = vector.load %arg14[%c0_35, %c0_36] : memref<16x4xf32, #tpu.memory_space<vmem>>, vector<16x4xf32>
    %cst_37 = arith.constant dense<0.000000e+00> : vector<16x1xf32>
    %54 = tpu.matmul %53, %52, %cst_37 {dimension_numbers = #tpu.dot_dimension_numbers<[1], [0], [0], [1], [0, 0, 1, 1], [], []>, precision = #tpu.contract_precision<fp32>} : vector<16x4xf32>, vector<4x1xf32>, vector<16x1xf32> -> vector<16x1xf32>
    %55 = arith.negf %54 : vector<16x1xf32>
    %56 = math.exp %55 : vector<16x1xf32>
    %cst_38 = arith.constant 1.000000e+00 : f32
    %57 = vector.broadcast %cst_38 : f32 to vector<16x1xf32>
    %58 = arith.addf %57, %56 : vector<16x1xf32>
    %59 = arith.divf %57, %58 : vector<16x1xf32>
    %60 = vector.broadcast %59 : vector<16x1xf32> to vector<16x32xf32>
    %61 = arith.mulf %46, %60 : vector<16x32xf32>
    %62 = arith.addf %10, %61 : vector<16x32xf32>
    %cst_39 = arith.constant dense<0.000000e+00> : vector<16xf32>
    %63 = vector.multi_reduction <add>, %62, %cst_39 [1] : vector<16x32xf32> to vector<16xf32>
    %64 = vector.shape_cast %63 : vector<16xf32> to vector<16x1xf32>
    %cst_40 = arith.constant 3.200000e+01 : f32
    %65 = vector.broadcast %cst_40 : f32 to vector<16x1xf32>
    %66 = arith.divf %64, %65 : vector<16x1xf32>
    %67 = vector.broadcast %66 : vector<16x1xf32> to vector<16x32xf32>
    %68 = arith.subf %62, %67 : vector<16x32xf32>
    %69 = arith.mulf %68, %68 : vector<16x32xf32>
    %cst_41 = arith.constant dense<0.000000e+00> : vector<16xf32>
    %70 = vector.multi_reduction <add>, %69, %cst_41 [1] : vector<16x32xf32> to vector<16xf32>
    %71 = vector.shape_cast %70 : vector<16xf32> to vector<16x1xf32>
    %cst_42 = arith.constant 3.200000e+01 : f32
    %72 = vector.broadcast %cst_42 : f32 to vector<16x1xf32>
    %73 = arith.divf %71, %72 : vector<16x1xf32>
    %cst_43 = arith.constant 9.99999974E-6 : f32
    %74 = vector.broadcast %cst_43 : f32 to vector<16x1xf32>
    %75 = arith.addf %73, %74 : vector<16x1xf32>
    %76 = math.rsqrt %75 : vector<16x1xf32>
    %77 = vector.broadcast %76 : vector<16x1xf32> to vector<16x32xf32>
    %78 = arith.mulf %68, %77 : vector<16x32xf32>
    %79 = vector.broadcast %11 : vector<1x32xf32> to vector<16x32xf32>
    %80 = arith.mulf %78, %79 : vector<16x32xf32>
    %81 = vector.broadcast %12 : vector<1x32xf32> to vector<16x32xf32>
    %82 = arith.addf %80, %81 : vector<16x32xf32>
    %c0_44 = arith.constant 0 : index
    %c0_45 = arith.constant 0 : index
    %83 = vector.load %arg11[%c0_44, %c0_45] : memref<32x64xf32, #tpu.memory_space<vmem>>, vector<32x64xf32>
    %cst_46 = arith.constant dense<0.000000e+00> : vector<16x64xf32>
    %84 = tpu.matmul %82, %83, %cst_46 {dimension_numbers = #tpu.dot_dimension_numbers<[1], [0], [0], [1], [0, 0, 1, 1], [], []>, precision = #tpu.contract_precision<fp32>} : vector<16x32xf32>, vector<32x64xf32>, vector<16x64xf32> -> vector<16x64xf32>
    %c0_47 = arith.constant 0 : index
    %c0_48 = arith.constant 0 : index
    %85 = vector.load %arg12[%c0_47, %c0_48] : memref<1x64xf32, #tpu.memory_space<vmem>>, vector<1x64xf32>
    %86 = vector.broadcast %85 : vector<1x64xf32> to vector<16x64xf32>
    %87 = arith.addf %84, %86 : vector<16x64xf32>
    %cst_49 = arith.constant 0.000000e+00 : f32
    %88 = vector.broadcast %cst_49 : f32 to vector<16x64xf32>
    %89 = arith.maximumf %87, %88 : vector<16x64xf32>
    %c0_50 = arith.constant 0 : index
    %c0_51 = arith.constant 0 : index
    %90 = vector.load %arg9[%c0_50, %c0_51] : memref<64x32xf32, #tpu.memory_space<vmem>>, vector<64x32xf32>
    %cst_52 = arith.constant dense<0.000000e+00> : vector<16x32xf32>
    %91 = tpu.matmul %89, %90, %cst_52 {dimension_numbers = #tpu.dot_dimension_numbers<[1], [0], [0], [1], [0, 0, 1, 1], [], []>, precision = #tpu.contract_precision<fp32>} : vector<16x64xf32>, vector<64x32xf32>, vector<16x32xf32> -> vector<16x32xf32>
    %c0_53 = arith.constant 0 : index
    %c0_54 = arith.constant 0 : index
    %92 = vector.load %arg10[%c0_53, %c0_54] : memref<1x32xf32, #tpu.memory_space<vmem>>, vector<1x32xf32>
    %93 = vector.broadcast %92 : vector<1x32xf32> to vector<16x32xf32>
    %94 = arith.addf %91, %93 : vector<16x32xf32>
    %cst_55 = arith.constant dense<0xFF800000> : vector<16xf32>
    %95 = vector.multi_reduction <maximumf>, %94, %cst_55 [1] : vector<16x32xf32> to vector<16xf32>
    %96 = vector.shape_cast %95 : vector<16xf32> to vector<16x1xf32>
    %c0_56 = arith.constant 0 : index
    %c0_57 = arith.constant 0 : index
    %97 = vector.load %arg13[%c0_56, %c0_57] : memref<4x16xf32, #tpu.memory_space<vmem>>, vector<4x16xf32>
    %cst_58 = arith.constant dense<0.000000e+00> : vector<4x1xf32>
    %98 = tpu.matmul %97, %96, %cst_58 {dimension_numbers = #tpu.dot_dimension_numbers<[1], [0], [0], [1], [0, 0, 1, 1], [], []>, precision = #tpu.contract_precision<fp32>} : vector<4x16xf32>, vector<16x1xf32>, vector<4x1xf32> -> vector<4x1xf32>
    %cst_59 = arith.constant 0.000000e+00 : f32
    %99 = vector.broadcast %cst_59 : f32 to vector<4x1xf32>
    %100 = arith.maximumf %98, %99 : vector<4x1xf32>
    %c0_60 = arith.constant 0 : index
    %c0_61 = arith.constant 0 : index
    %101 = vector.load %arg14[%c0_60, %c0_61] : memref<16x4xf32, #tpu.memory_space<vmem>>, vector<16x4xf32>
    %cst_62 = arith.constant dense<0.000000e+00> : vector<16x1xf32>
    %102 = tpu.matmul %101, %100, %cst_62 {dimension_numbers = #tpu.dot_dimension_numbers<[1], [0], [0], [1], [0, 0, 1, 1], [], []>, precision = #tpu.contract_precision<fp32>} : vector<16x4xf32>, vector<4x1xf32>, vector<16x1xf32> -> vector<16x1xf32>
    %103 = arith.negf %102 : vector<16x1xf32>
    %104 = math.exp %103 : vector<16x1xf32>
    %cst_63 = arith.constant 1.000000e+00 : f32
    %105 = vector.broadcast %cst_63 : f32 to vector<16x1xf32>
    %106 = arith.addf %105, %104 : vector<16x1xf32>
    %107 = arith.divf %105, %106 : vector<16x1xf32>
    %108 = vector.broadcast %107 : vector<16x1xf32> to vector<16x32xf32>
    %109 = arith.mulf %94, %108 : vector<16x32xf32>
    %110 = arith.addf %62, %109 : vector<16x32xf32>
    %cst_64 = arith.constant dense<0.000000e+00> : vector<16xf32>
    %111 = vector.multi_reduction <add>, %110, %cst_64 [1] : vector<16x32xf32> to vector<16xf32>
    %112 = vector.shape_cast %111 : vector<16xf32> to vector<16x1xf32>
    %cst_65 = arith.constant 3.200000e+01 : f32
    %113 = vector.broadcast %cst_65 : f32 to vector<16x1xf32>
    %114 = arith.divf %112, %113 : vector<16x1xf32>
    %115 = vector.broadcast %114 : vector<16x1xf32> to vector<16x32xf32>
    %116 = arith.subf %110, %115 : vector<16x32xf32>
    %117 = arith.mulf %116, %116 : vector<16x32xf32>
    %cst_66 = arith.constant dense<0.000000e+00> : vector<16xf32>
    %118 = vector.multi_reduction <add>, %117, %cst_66 [1] : vector<16x32xf32> to vector<16xf32>
    %119 = vector.shape_cast %118 : vector<16xf32> to vector<16x1xf32>
    %cst_67 = arith.constant 3.200000e+01 : f32
    %120 = vector.broadcast %cst_67 : f32 to vector<16x1xf32>
    %121 = arith.divf %119, %120 : vector<16x1xf32>
    %cst_68 = arith.constant 9.99999974E-6 : f32
    %122 = vector.broadcast %cst_68 : f32 to vector<16x1xf32>
    %123 = arith.addf %121, %122 : vector<16x1xf32>
    %124 = math.rsqrt %123 : vector<16x1xf32>
    %125 = vector.broadcast %124 : vector<16x1xf32> to vector<16x32xf32>
    %126 = arith.mulf %116, %125 : vector<16x32xf32>
    %127 = vector.broadcast %11 : vector<1x32xf32> to vector<16x32xf32>
    %128 = arith.mulf %126, %127 : vector<16x32xf32>
    %129 = vector.broadcast %12 : vector<1x32xf32> to vector<16x32xf32>
    %130 = arith.addf %128, %129 : vector<16x32xf32>
    %c0_69 = arith.constant 0 : index
    %c0_70 = arith.constant 0 : index
    %131 = vector.load %arg7[%c0_69, %c0_70] : memref<32x64xf32, #tpu.memory_space<vmem>>, vector<32x64xf32>
    %cst_71 = arith.constant dense<0.000000e+00> : vector<16x64xf32>
    %132 = tpu.matmul %130, %131, %cst_71 {dimension_numbers = #tpu.dot_dimension_numbers<[1], [0], [0], [1], [0, 0, 1, 1], [], []>, precision = #tpu.contract_precision<fp32>} : vector<16x32xf32>, vector<32x64xf32>, vector<16x64xf32> -> vector<16x64xf32>
    %c0_72 = arith.constant 0 : index
    %c0_73 = arith.constant 0 : index
    %133 = vector.load %arg8[%c0_72, %c0_73] : memref<1x64xf32, #tpu.memory_space<vmem>>, vector<1x64xf32>
    %134 = vector.broadcast %133 : vector<1x64xf32> to vector<16x64xf32>
    %135 = arith.addf %132, %134 : vector<16x64xf32>
    %cst_74 = arith.constant 0.000000e+00 : f32
    %136 = vector.broadcast %cst_74 : f32 to vector<16x64xf32>
    %137 = arith.maximumf %135, %136 : vector<16x64xf32>
    %c0_75 = arith.constant 0 : index
    %c0_76 = arith.constant 0 : index
    %138 = vector.load %arg9[%c0_75, %c0_76] : memref<64x32xf32, #tpu.memory_space<vmem>>, vector<64x32xf32>
    %cst_77 = arith.constant dense<0.000000e+00> : vector<16x32xf32>
    %139 = tpu.matmul %137, %138, %cst_77 {dimension_numbers = #tpu.dot_dimension_numbers<[1], [0], [0], [1], [0, 0, 1, 1], [], []>, precision = #tpu.contract_precision<fp32>} : vector<16x64xf32>, vector<64x32xf32>, vector<16x32xf32> -> vector<16x32xf32>
    %c0_78 = arith.constant 0 : index
    %c0_79 = arith.constant 0 : index
    %140 = vector.load %arg10[%c0_78, %c0_79] : memref<1x32xf32, #tpu.memory_space<vmem>>, vector<1x32xf32>
    %141 = vector.broadcast %140 : vector<1x32xf32> to vector<16x32xf32>
    %142 = arith.addf %139, %141 : vector<16x32xf32>
    %cst_80 = arith.constant 0.000000e+00 : f32
    %143 = vector.broadcast %cst_80 : f32 to vector<16x32xf32>
    %144 = arith.maximumf %142, %143 : vector<16x32xf32>
    %cst_81 = arith.constant dense<0xFF800000> : vector<16xf32>
    %145 = vector.multi_reduction <maximumf>, %144, %cst_81 [1] : vector<16x32xf32> to vector<16xf32>
    %146 = vector.shape_cast %145 : vector<16xf32> to vector<16x1xf32>
    %c0_82 = arith.constant 0 : index
    %c0_83 = arith.constant 0 : index
    %147 = vector.load %arg13[%c0_82, %c0_83] : memref<4x16xf32, #tpu.memory_space<vmem>>, vector<4x16xf32>
    %cst_84 = arith.constant dense<0.000000e+00> : vector<4x1xf32>
    %148 = tpu.matmul %147, %146, %cst_84 {dimension_numbers = #tpu.dot_dimension_numbers<[1], [0], [0], [1], [0, 0, 1, 1], [], []>, precision = #tpu.contract_precision<fp32>} : vector<4x16xf32>, vector<16x1xf32>, vector<4x1xf32> -> vector<4x1xf32>
    %cst_85 = arith.constant 0.000000e+00 : f32
    %149 = vector.broadcast %cst_85 : f32 to vector<4x1xf32>
    %150 = arith.maximumf %148, %149 : vector<4x1xf32>
    %c0_86 = arith.constant 0 : index
    %c0_87 = arith.constant 0 : index
    %151 = vector.load %arg14[%c0_86, %c0_87] : memref<16x4xf32, #tpu.memory_space<vmem>>, vector<16x4xf32>
    %cst_88 = arith.constant dense<0.000000e+00> : vector<16x1xf32>
    %152 = tpu.matmul %151, %150, %cst_88 {dimension_numbers = #tpu.dot_dimension_numbers<[1], [0], [0], [1], [0, 0, 1, 1], [], []>, precision = #tpu.contract_precision<fp32>} : vector<16x4xf32>, vector<4x1xf32>, vector<16x1xf32> -> vector<16x1xf32>
    %153 = arith.negf %152 : vector<16x1xf32>
    %154 = math.exp %153 : vector<16x1xf32>
    %cst_89 = arith.constant 1.000000e+00 : f32
    %155 = vector.broadcast %cst_89 : f32 to vector<16x1xf32>
    %156 = arith.addf %155, %154 : vector<16x1xf32>
    %157 = arith.divf %155, %156 : vector<16x1xf32>
    %158 = vector.broadcast %157 : vector<16x1xf32> to vector<16x32xf32>
    %159 = arith.mulf %144, %158 : vector<16x32xf32>
    %160 = arith.addf %110, %159 : vector<16x32xf32>
    %cst_90 = arith.constant dense<0.000000e+00> : vector<16xf32>
    %161 = vector.multi_reduction <add>, %160, %cst_90 [1] : vector<16x32xf32> to vector<16xf32>
    %162 = vector.shape_cast %161 : vector<16xf32> to vector<16x1xf32>
    %cst_91 = arith.constant 3.200000e+01 : f32
    %163 = vector.broadcast %cst_91 : f32 to vector<16x1xf32>
    %164 = arith.divf %162, %163 : vector<16x1xf32>
    %165 = vector.broadcast %164 : vector<16x1xf32> to vector<16x32xf32>
    %166 = arith.subf %160, %165 : vector<16x32xf32>
    %167 = arith.mulf %166, %166 : vector<16x32xf32>
    %cst_92 = arith.constant dense<0.000000e+00> : vector<16xf32>
    %168 = vector.multi_reduction <add>, %167, %cst_92 [1] : vector<16x32xf32> to vector<16xf32>
    %169 = vector.shape_cast %168 : vector<16xf32> to vector<16x1xf32>
    %cst_93 = arith.constant 3.200000e+01 : f32
    %170 = vector.broadcast %cst_93 : f32 to vector<16x1xf32>
    %171 = arith.divf %169, %170 : vector<16x1xf32>
    %cst_94 = arith.constant 9.99999974E-6 : f32
    %172 = vector.broadcast %cst_94 : f32 to vector<16x1xf32>
    %173 = arith.addf %171, %172 : vector<16x1xf32>
    %174 = math.rsqrt %173 : vector<16x1xf32>
    %175 = vector.broadcast %174 : vector<16x1xf32> to vector<16x32xf32>
    %176 = arith.mulf %166, %175 : vector<16x32xf32>
    %177 = vector.broadcast %11 : vector<1x32xf32> to vector<16x32xf32>
    %178 = arith.mulf %176, %177 : vector<16x32xf32>
    %179 = vector.broadcast %12 : vector<1x32xf32> to vector<16x32xf32>
    %180 = arith.addf %178, %179 : vector<16x32xf32>
    %c0_95 = arith.constant 0 : index
    %c0_96 = arith.constant 0 : index
    %181 = vector.load %arg11[%c0_95, %c0_96] : memref<32x64xf32, #tpu.memory_space<vmem>>, vector<32x64xf32>
    %cst_97 = arith.constant dense<0.000000e+00> : vector<16x64xf32>
    %182 = tpu.matmul %180, %181, %cst_97 {dimension_numbers = #tpu.dot_dimension_numbers<[1], [0], [0], [1], [0, 0, 1, 1], [], []>, precision = #tpu.contract_precision<fp32>} : vector<16x32xf32>, vector<32x64xf32>, vector<16x64xf32> -> vector<16x64xf32>
    %c0_98 = arith.constant 0 : index
    %c0_99 = arith.constant 0 : index
    %183 = vector.load %arg12[%c0_98, %c0_99] : memref<1x64xf32, #tpu.memory_space<vmem>>, vector<1x64xf32>
    %184 = vector.broadcast %183 : vector<1x64xf32> to vector<16x64xf32>
    %185 = arith.addf %182, %184 : vector<16x64xf32>
    %cst_100 = arith.constant 0.000000e+00 : f32
    %186 = vector.broadcast %cst_100 : f32 to vector<16x64xf32>
    %187 = arith.maximumf %185, %186 : vector<16x64xf32>
    %c0_101 = arith.constant 0 : index
    %c0_102 = arith.constant 0 : index
    %188 = vector.load %arg9[%c0_101, %c0_102] : memref<64x32xf32, #tpu.memory_space<vmem>>, vector<64x32xf32>
    %cst_103 = arith.constant dense<0.000000e+00> : vector<16x32xf32>
    %189 = tpu.matmul %187, %188, %cst_103 {dimension_numbers = #tpu.dot_dimension_numbers<[1], [0], [0], [1], [0, 0, 1, 1], [], []>, precision = #tpu.contract_precision<fp32>} : vector<16x64xf32>, vector<64x32xf32>, vector<16x32xf32> -> vector<16x32xf32>
    %c0_104 = arith.constant 0 : index
    %c0_105 = arith.constant 0 : index
    %190 = vector.load %arg10[%c0_104, %c0_105] : memref<1x32xf32, #tpu.memory_space<vmem>>, vector<1x32xf32>
    %191 = vector.broadcast %190 : vector<1x32xf32> to vector<16x32xf32>
    %192 = arith.addf %189, %191 : vector<16x32xf32>
    %cst_106 = arith.constant dense<0xFF800000> : vector<16xf32>
    %193 = vector.multi_reduction <maximumf>, %192, %cst_106 [1] : vector<16x32xf32> to vector<16xf32>
    %194 = vector.shape_cast %193 : vector<16xf32> to vector<16x1xf32>
    %c0_107 = arith.constant 0 : index
    %c0_108 = arith.constant 0 : index
    %195 = vector.load %arg13[%c0_107, %c0_108] : memref<4x16xf32, #tpu.memory_space<vmem>>, vector<4x16xf32>
    %cst_109 = arith.constant dense<0.000000e+00> : vector<4x1xf32>
    %196 = tpu.matmul %195, %194, %cst_109 {dimension_numbers = #tpu.dot_dimension_numbers<[1], [0], [0], [1], [0, 0, 1, 1], [], []>, precision = #tpu.contract_precision<fp32>} : vector<4x16xf32>, vector<16x1xf32>, vector<4x1xf32> -> vector<4x1xf32>
    %cst_110 = arith.constant 0.000000e+00 : f32
    %197 = vector.broadcast %cst_110 : f32 to vector<4x1xf32>
    %198 = arith.maximumf %196, %197 : vector<4x1xf32>
    %c0_111 = arith.constant 0 : index
    %c0_112 = arith.constant 0 : index
    %199 = vector.load %arg14[%c0_111, %c0_112] : memref<16x4xf32, #tpu.memory_space<vmem>>, vector<16x4xf32>
    %cst_113 = arith.constant dense<0.000000e+00> : vector<16x1xf32>
    %200 = tpu.matmul %199, %198, %cst_113 {dimension_numbers = #tpu.dot_dimension_numbers<[1], [0], [0], [1], [0, 0, 1, 1], [], []>, precision = #tpu.contract_precision<fp32>} : vector<16x4xf32>, vector<4x1xf32>, vector<16x1xf32> -> vector<16x1xf32>
    %201 = arith.negf %200 : vector<16x1xf32>
    %202 = math.exp %201 : vector<16x1xf32>
    %cst_114 = arith.constant 1.000000e+00 : f32
    %203 = vector.broadcast %cst_114 : f32 to vector<16x1xf32>
    %204 = arith.addf %203, %202 : vector<16x1xf32>
    %205 = arith.divf %203, %204 : vector<16x1xf32>
    %206 = vector.broadcast %205 : vector<16x1xf32> to vector<16x32xf32>
    %207 = arith.mulf %192, %206 : vector<16x32xf32>
    %208 = arith.addf %160, %207 : vector<16x32xf32>
    %209 = vector.extract_strided_slice %208 {offsets = [15, 0], sizes = [1, 32], strides = [1, 1]} : vector<16x32xf32> to vector<1x32xf32>
    %c0_115 = arith.constant 0 : index
    %c0_116 = arith.constant 0 : index
    %210 = vector.load %arg15[%c0_115, %c0_116] : memref<32x2xf32, #tpu.memory_space<vmem>>, vector<32x2xf32>
    %cst_117 = arith.constant dense<0.000000e+00> : vector<1x2xf32>
    %211 = tpu.matmul %209, %210, %cst_117 {dimension_numbers = #tpu.dot_dimension_numbers<[1], [0], [0], [1], [0, 0, 1, 1], [], []>, precision = #tpu.contract_precision<fp32>} : vector<1x32xf32>, vector<32x2xf32>, vector<1x2xf32> -> vector<1x2xf32>
    %c0_118 = arith.constant 0 : index
    %c0_119 = arith.constant 0 : index
    %212 = vector.load %arg16[%c0_118, %c0_119] : memref<1x2xf32, #tpu.memory_space<vmem>>, vector<1x2xf32>
    %213 = arith.addf %211, %212 : vector<1x2xf32>
    %cst_120 = arith.constant dense<0xFF800000> : vector<1xf32>
    %214 = vector.multi_reduction <maximumf>, %213, %cst_120 [1] : vector<1x2xf32> to vector<1xf32>
    %215 = vector.shape_cast %214 : vector<1xf32> to vector<1x1xf32>
    %216 = vector.broadcast %215 : vector<1x1xf32> to vector<1x2xf32>
    %217 = arith.subf %213, %216 : vector<1x2xf32>
    %218 = math.exp %217 : vector<1x2xf32>
    %cst_121 = arith.constant dense<0.000000e+00> : vector<1xf32>
    %219 = vector.multi_reduction <add>, %218, %cst_121 [1] : vector<1x2xf32> to vector<1xf32>
    %220 = vector.shape_cast %219 : vector<1xf32> to vector<1x1xf32>
    %221 = vector.broadcast %220 : vector<1x1xf32> to vector<1x2xf32>
    %222 = arith.divf %218, %221 : vector<1x2xf32>
    %c0_122 = arith.constant 0 : index
    %c0_123 = arith.constant 0 : index
    %c0_124 = arith.constant 0 : index
    %223 = vector.load %arg17[%c0_122, %c0_123, %c0_124] : memref<1x1x2xf32, #tpu.memory_space<vmem>>, vector<1x1x2xf32>
    %224 = vector.shape_cast %223 : vector<1x1x2xf32> to vector<1x2xf32>
    %225 = vector.shape_cast %222 : vector<1x2xf32> to vector<1x1x2xf32>
    tpu.vector_store %arg17[%c0_122, %c0_123, %c0_124], %225 {strides = array<i32>} : memref<1x1x2xf32, #tpu.memory_space<vmem>>, vector<1x1x2xf32>,
    return
  }
  func.func @transform_0(%arg0: i32) -> (i32, i32, i32) {
    %c0_i32 = arith.constant 0 : i32
    %c0_i32_0 = arith.constant 0 : i32
    %c0_i32_1 = arith.constant 0 : i32
    return %arg0, %c0_i32, %c0_i32_0 : i32, i32, i32
  }
  func.func @transform_1(%arg0: i32) -> (i32, i32, i32) {
    %c0_i32 = arith.constant 0 : i32
    %c0_i32_0 = arith.constant 0 : i32
    %c0_i32_1 = arith.constant 0 : i32
    return %arg0, %c0_i32, %c0_i32_0 : i32, i32, i32
  }
  func.func @transform_2(%arg0: i32) -> (i32, i32) {
    %c0_i32 = arith.constant 0 : i32
    %c0_i32_0 = arith.constant 0 : i32
    %c0_i32_1 = arith.constant 0 : i32
    return %c0_i32, %c0_i32_0 : i32, i32
  }
  func.func @transform_3(%arg0: i32) -> (i32, i32) {
    %c0_i32 = arith.constant 0 : i32
    %c0_i32_0 = arith.constant 0 : i32
    %c0_i32_1 = arith.constant 0 : i32
    return %c0_i32, %c0_i32_0 : i32, i32
  }
  func.func @transform_4(%arg0: i32) -> (i32, i32) {
    %c0_i32 = arith.constant 0 : i32
    %c0_i32_0 = arith.constant 0 : i32
    %c0_i32_1 = arith.constant 0 : i32
    return %c0_i32, %c0_i32_0 : i32, i32
  }
  func.func @transform_5(%arg0: i32) -> (i32, i32) {
    %c0_i32 = arith.constant 0 : i32
    %c0_i32_0 = arith.constant 0 : i32
    %c0_i32_1 = arith.constant 0 : i32
    return %c0_i32, %c0_i32_0 : i32, i32
  }
  func.func @transform_6(%arg0: i32) -> (i32, i32) {
    %c0_i32 = arith.constant 0 : i32
    %c0_i32_0 = arith.constant 0 : i32
    %c0_i32_1 = arith.constant 0 : i32
    return %c0_i32, %c0_i32_0 : i32, i32
  }
  func.func @transform_7(%arg0: i32) -> (i32, i32) {
    %c0_i32 = arith.constant 0 : i32
    %c0_i32_0 = arith.constant 0 : i32
    %c0_i32_1 = arith.constant 0 : i32
    return %c0_i32, %c0_i32_0 : i32, i32
  }
  func.func @transform_8(%arg0: i32) -> (i32, i32) {
    %c0_i32 = arith.constant 0 : i32
    %c0_i32_0 = arith.constant 0 : i32
    %c0_i32_1 = arith.constant 0 : i32
    return %c0_i32, %c0_i32_0 : i32, i32
  }
  func.func @transform_9(%arg0: i32) -> (i32, i32) {
    %c0_i32 = arith.constant 0 : i32
    %c0_i32_0 = arith.constant 0 : i32
    %c0_i32_1 = arith.constant 0 : i32
    return %c0_i32, %c0_i32_0 : i32, i32
  }
  func.func @transform_10(%arg0: i32) -> (i32, i32) {
    %c0_i32 = arith.constant 0 : i32
    %c0_i32_0 = arith.constant 0 : i32
    %c0_i32_1 = arith.constant 0 : i32
    return %c0_i32, %c0_i32_0 : i32, i32
  }
  func.func @transform_11(%arg0: i32) -> (i32, i32) {
    %c0_i32 = arith.constant 0 : i32
    %c0_i32_0 = arith.constant 0 : i32
    %c0_i32_1 = arith.constant 0 : i32
    return %c0_i32, %c0_i32_0 : i32, i32
  }
  func.func @transform_12(%arg0: i32) -> (i32, i32) {
    %c0_i32 = arith.constant 0 : i32
    %c0_i32_0 = arith.constant 0 : i32
    %c0_i32_1 = arith.constant 0 : i32
    return %c0_i32, %c0_i32_0 : i32, i32
  }
  func.func @transform_13(%arg0: i32) -> (i32, i32) {
    %c0_i32 = arith.constant 0 : i32
    %c0_i32_0 = arith.constant 0 : i32
    %c0_i32_1 = arith.constant 0 : i32
    return %c0_i32, %c0_i32_0 : i32, i32
  }
  func.func @transform_14(%arg0: i32) -> (i32, i32) {
    %c0_i32 = arith.constant 0 : i32
    %c0_i32_0 = arith.constant 0 : i32
    %c0_i32_1 = arith.constant 0 : i32
    return %c0_i32, %c0_i32_0 : i32, i32
  }
  func.func @transform_15(%arg0: i32) -> (i32, i32) {
    %c0_i32 = arith.constant 0 : i32
    %c0_i32_0 = arith.constant 0 : i32
    %c0_i32_1 = arith.constant 0 : i32
    return %c0_i32, %c0_i32_0 : i32, i32
  }
  func.func @transform_16(%arg0: i32) -> (i32, i32, i32) {
    %c0_i32 = arith.constant 0 : i32
    %c0_i32_0 = arith.constant 0 : i32
    %c0_i32_1 = arith.constant 0 : i32
    return %arg0, %c0_i32, %c0_i32_0 : i32, i32, i32
  }
}

</mosaic_0001>

<llo_original>
// kernel: mlp_mixer_forward.1
$region0: #{mlp_mixer_forward.1}
  #allocation0 [shape = 'u32[]', space=smem, size = 0x4, offset = 0x4, fixed_abs, tag = 'smem constant byte address 0x4 - core index']
  #allocation1 [shape = 'u32[144,128]{1,0:T(1,128)}', space=vmem, size = 0x12000, scoped, tag = 'internal scratch']
  %s0 = inlined_call_operand.vmem [shape: f32[2,16,32], index: 0, kind: input, shape index: {}]
  %s1 = inlined_call_operand.vmem [shape: f32[2,1,32], index: 1, kind: input, shape index: {}]
  %s2 = inlined_call_operand.vmem [shape: f32[32,32], index: 2, kind: input, shape index: {}]
  %s3 = inlined_call_operand.vmem [shape: f32[1,32], index: 3, kind: input, shape index: {}]
  %s4 = inlined_call_operand.vmem [shape: f32[1,32], index: 4, kind: input, shape index: {}]
  %s5 = inlined_call_operand.vmem [shape: f32[1,32], index: 5, kind: input, shape index: {}]
  %s6 = inlined_call_operand.vmem [shape: f32[32,64], index: 6, kind: input, shape index: {}]
  %s7 = inlined_call_operand.vmem [shape: f32[1,64], index: 7, kind: input, shape index: {}]
  %s8 = inlined_call_operand.vmem [shape: f32[64,32], index: 8, kind: input, shape index: {}]
  %s9 = inlined_call_operand.vmem [shape: f32[1,32], index: 9, kind: input, shape index: {}]
  %s10 = inlined_call_operand.vmem [shape: f32[32,64], index: 10, kind: input, shape index: {}]
  %s11 = inlined_call_operand.vmem [shape: f32[1,64], index: 11, kind: input, shape index: {}]
  %s12 = inlined_call_operand.vmem [shape: f32[4,16], index: 12, kind: input, shape index: {}]
  %s13 = inlined_call_operand.vmem [shape: f32[16,4], index: 13, kind: input, shape index: {}]
  %s14 = inlined_call_operand.vmem [shape: f32[32,2], index: 14, kind: input, shape index: {}]
  %s15 = inlined_call_operand.vmem [shape: f32[1,2], index: 15, kind: input, shape index: {}]
  %s16 = inlined_call_operand.hbm [shape: f32[2,1,2], index: 16, kind: output, shape index: {}]
  %s17 = sld [smem:[#allocation0]]
  $region97: #{mlp_mixer_forward.1} parent=0
    _
  %s19 = ssub.s32 1, %s17
  %s20 = scalar_select 0, %s19, %s17
  $region1: #{mlp_mixer_forward.1} parent=0
    #allocation2 [shape = 'u8[1024]{0}', space=vmem, size = 0x400, scoped, tag = 'output window, operand 0']
    #allocation3 [shape = 's32[2]{0}', space=sflag, size = 0x8, scoped, tag = 'scoped memory for mlp_mixer_forward.1']
    %21 = vsyncpa [#allocation3], 0
    %s22 = scalar_lea.sflag [#allocation3], 1
    %23 = vsyncpa %s22, 0
    loop: start=0, step=1, limit=4
    $region2: #{mlp_mixer_forward.1} parent=1 // loop_pre_header
      _
    $region3: #{mlp_mixer_forward.1} parent=1 // loop_header
      %s25 = sphi 0, %s29
      %p26 = scmp.ge.s32.totalorder %s25, 4
      %s35 = sphi 0, %s37
      %s38 = sphi 0, %s35
      %s39 = sphi 0, %s38
      %s55 = sphi 0, %s39
      %s61 = sphi 0, %s63
      %s64 = sphi 0, %s61
      %s65 = sphi 0, %s64
      %s81 = sphi 0, %s65
      %s85 = sphi 0, %s85
      %s87 = sphi 0, %s85
      %s88 = sphi 0, %s87
      %s102 = sphi 0, %s88
      %s106 = sphi 0, %s106
      %s108 = sphi 0, %s106
      %s109 = sphi 0, %s108
      %s123 = sphi 0, %s109
      %s127 = sphi 0, %s127
      %s129 = sphi 0, %s127
      %s130 = sphi 0, %s129
      %s144 = sphi 0, %s130
      %s148 = sphi 0, %s148
      %s150 = sphi 0, %s148
      %s151 = sphi 0, %s150
      %s165 = sphi 0, %s151
      %s169 = sphi 0, %s169
      %s171 = sphi 0, %s169
      %s172 = sphi 0, %s171
      %s186 = sphi 0, %s172
      %s190 = sphi 0, %s190
      %s192 = sphi 0, %s190
      %s193 = sphi 0, %s192
      %s207 = sphi 0, %s193
      %s211 = sphi 0, %s211
      %s213 = sphi 0, %s211
      %s214 = sphi 0, %s213
      %s228 = sphi 0, %s214
      %s232 = sphi 0, %s232
      %s234 = sphi 0, %s232
      %s235 = sphi 0, %s234
      %s249 = sphi 0, %s235
      %s253 = sphi 0, %s253
      %s255 = sphi 0, %s253
      %s256 = sphi 0, %s255
      %s270 = sphi 0, %s256
      %s274 = sphi 0, %s274
      %s276 = sphi 0, %s274
      %s277 = sphi 0, %s276
      %s291 = sphi 0, %s277
      %s295 = sphi 0, %s295
      %s297 = sphi 0, %s295
      %s298 = sphi 0, %s297
      %s312 = sphi 0, %s298
      %s316 = sphi 0, %s316
      %s318 = sphi 0, %s316
      %s319 = sphi 0, %s318
      %s333 = sphi 0, %s319
      %s337 = sphi 0, %s337
      %s339 = sphi 0, %s337
      %s340 = sphi 0, %s339
      %s354 = sphi 0, %s340
      %s358 = sphi 0, %s358
      %s360 = sphi 0, %s358
      %s361 = sphi 0, %s360
      %s375 = sphi 0, %s361
      %s381 = sphi 0, %s383
      %s384 = sphi 0, %s381
      %s385 = sphi 0, %s384
      %s401 = sphi 0, %s385
    $region4: #{mlp_mixer_forward.1} parent=1 // loop_header_branch
      %28 = sbr.rel (%p26) target = $region8
    $region5: #{mlp_mixer_forward.1} parent=1 // loop_body
      %s30 = ssub.s32 %s25, 1
      %s31 = ssub.s32 %s25, 2
      %s32 = sadd.s32 %s25, 1
      %s33 = ssub.s32 %s25, %s32
      %p34 = scmp.eq.s32.totalorder %s33, 0
      %s36 = sadd.s32 %s35, 1
      %s37 = scalar_select %p34, %s35, %s36
      %p40 = pneg %p34
      %p41 = scmp.eq.s32.totalorder %s25, 1
      %p42 = por %p40, %p41
      %p43 = scmp.ne.s32.totalorder %s35, %s38
      %p44 = scmp.eq.s32.totalorder %s25, 0
      %p45 = por %p43, %p44
      %p46 = scmp.ne.s32.totalorder %s35, %s38
      %p47 = scmp.eq.s32.totalorder %s30, 1
      %p48 = por %p46, %p47
      %p49 = scmp.ne.s32.totalorder %s38, %s39
      %p50 = scmp.eq.s32.totalorder %s30, 0
      %p51 = por %p49, %p50
      %p52 = scmp.ne.s32.totalorder %s38, %s39
      %p53 = scmp.eq.s32.totalorder %s31, 1
      %p54 = por %p52, %p53
      %p56 = scmp.ne.s32.totalorder %s39, %s55
      %p57 = scmp.eq.s32.totalorder %s31, 0
      %p58 = por %p56, %p57
      %s59 = ssub.s32 %s25, %s32
      %p60 = scmp.eq.s32.totalorder %s59, 0
      %s62 = sadd.s32 %s61, 1
      %s63 = scalar_select %p60, %s61, %s62
      %p66 = pneg %p60
      %p67 = scmp.eq.s32.totalorder %s25, 1
      %p68 = por %p66, %p67
      %p69 = scmp.ne.s32.totalorder %s61, %s64
      %p70 = scmp.eq.s32.totalorder %s25, 0
      %p71 = por %p69, %p70
      %p72 = scmp.ne.s32.totalorder %s61, %s64
      %p73 = scmp.eq.s32.totalorder %s30, 1
      %p74 = por %p72, %p73
      %p75 = scmp.ne.s32.totalorder %s64, %s65
      %p76 = scmp.eq.s32.totalorder %s30, 0
      %p77 = por %p75, %p76
      %p78 = scmp.ne.s32.totalorder %s64, %s65
      %p79 = scmp.eq.s32.totalorder %s31, 1
      %p80 = por %p78, %p79
      %p82 = scmp.ne.s32.totalorder %s65, %s81
      %p83 = scmp.eq.s32.totalorder %s31, 0
      %p84 = por %p82, %p83
      %s86 = sadd.s32 %s85, 1
      %p89 = scmp.eq.s32.totalorder %s25, 1
      %p90 = scmp.ne.s32.totalorder %s85, %s87
      %p91 = scmp.eq.s32.totalorder %s25, 0
      %p92 = por %p90, %p91
      %p93 = scmp.ne.s32.totalorder %s85, %s87
      %p94 = scmp.eq.s32.totalorder %s30, 1
      %p95 = por %p93, %p94
      %p96 = scmp.ne.s32.totalorder %s87, %s88
      %p97 = scmp.eq.s32.totalorder %s30, 0
      %p98 = por %p96, %p97
      %p99 = scmp.ne.s32.totalorder %s87, %s88
      %p100 = scmp.eq.s32.totalorder %s31, 1
      %p101 = por %p99, %p100
      %p103 = scmp.ne.s32.totalorder %s88, %s102
      %p104 = scmp.eq.s32.totalorder %s31, 0
      %p105 = por %p103, %p104
      %s107 = sadd.s32 %s106, 1
      %p110 = scmp.eq.s32.totalorder %s25, 1
      %p111 = scmp.ne.s32.totalorder %s106, %s108
      %p112 = scmp.eq.s32.totalorder %s25, 0
      %p113 = por %p111, %p112
      %p114 = scmp.ne.s32.totalorder %s106, %s108
      %p115 = scmp.eq.s32.totalorder %s30, 1
      %p116 = por %p114, %p115
      %p117 = scmp.ne.s32.totalorder %s108, %s109
      %p118 = scmp.eq.s32.totalorder %s30, 0
      %p119 = por %p117, %p118
      %p120 = scmp.ne.s32.totalorder %s108, %s109
      %p121 = scmp.eq.s32.totalorder %s31, 1
      %p122 = por %p120, %p121
      %p124 = scmp.ne.s32.totalorder %s109, %s123
      %p125 = scmp.eq.s32.totalorder %s31, 0
      %p126 = por %p124, %p125
      %s128 = sadd.s32 %s127, 1
      %p131 = scmp.eq.s32.totalorder %s25, 1
      %p132 = scmp.ne.s32.totalorder %s127, %s129
      %p133 = scmp.eq.s32.totalorder %s25, 0
      %p134 = por %p132, %p133
      %p135 = scmp.ne.s32.totalorder %s127, %s129
      %p136 = scmp.eq.s32.totalorder %s30, 1
      %p137 = por %p135, %p136
      %p138 = scmp.ne.s32.totalorder %s129, %s130
      %p139 = scmp.eq.s32.totalorder %s30, 0
      %p140 = por %p138, %p139
      %p141 = scmp.ne.s32.totalorder %s129, %s130
      %p142 = scmp.eq.s32.totalorder %s31, 1
      %p143 = por %p141, %p142
      %p145 = scmp.ne.s32.totalorder %s130, %s144
      %p146 = scmp.eq.s32.totalorder %s31, 0
      %p147 = por %p145, %p146
      %s149 = sadd.s32 %s148, 1
      %p152 = scmp.eq.s32.totalorder %s25, 1
      %p153 = scmp.ne.s32.totalorder %s148, %s150
      %p154 = scmp.eq.s32.totalorder %s25, 0
      %p155 = por %p153, %p154
      %p156 = scmp.ne.s32.totalorder %s148, %s150
      %p157 = scmp.eq.s32.totalorder %s30, 1
      %p158 = por %p156, %p157
      %p159 = scmp.ne.s32.totalorder %s150, %s151
      %p160 = scmp.eq.s32.totalorder %s30, 0
      %p161 = por %p159, %p160
      %p162 = scmp.ne.s32.totalorder %s150, %s151
      %p163 = scmp.eq.s32.totalorder %s31, 1
      %p164 = por %p162, %p163
      %p166 = scmp.ne.s32.totalorder %s151, %s165
      %p167 = scmp.eq.s32.totalorder %s31, 0
      %p168 = por %p166, %p167
      %s170 = sadd.s32 %s169, 1
      %p173 = scmp.eq.s32.totalorder %s25, 1
      %p174 = scmp.ne.s32.totalorder %s169, %s171
      %p175 = scmp.eq.s32.totalorder %s25, 0
      %p176 = por %p174, %p175
      %p177 = scmp.ne.s32.totalorder %s169, %s171
      %p178 = scmp.eq.s32.totalorder %s30, 1
      %p179 = por %p177, %p178
      %p180 = scmp.ne.s32.totalorder %s171, %s172
      %p181 = scmp.eq.s32.totalorder %s30, 0
      %p182 = por %p180, %p181
      %p183 = scmp.ne.s32.totalorder %s171, %s172
      %p184 = scmp.eq.s32.totalorder %s31, 1
      %p185 = por %p183, %p184
      %p187 = scmp.ne.s32.totalorder %s172, %s186
      %p188 = scmp.eq.s32.totalorder %s31, 0
      %p189 = por %p187, %p188
      %s191 = sadd.s32 %s190, 1
      %p194 = scmp.eq.s32.totalorder %s25, 1
      %p195 = scmp.ne.s32.totalorder %s190, %s192
      %p196 = scmp.eq.s32.totalorder %s25, 0
      %p197 = por %p195, %p196
      %p198 = scmp.ne.s32.totalorder %s190, %s192
      %p199 = scmp.eq.s32.totalorder %s30, 1
      %p200 = por %p198, %p199
      %p201 = scmp.ne.s32.totalorder %s192, %s193
      %p202 = scmp.eq.s32.totalorder %s30, 0
      %p203 = por %p201, %p202
      %p204 = scmp.ne.s32.totalorder %s192, %s193
      %p205 = scmp.eq.s32.totalorder %s31, 1
      %p206 = por %p204, %p205
      %p208 = scmp.ne.s32.totalorder %s193, %s207
      %p209 = scmp.eq.s32.totalorder %s31, 0
      %p210 = por %p208, %p209
      %s212 = sadd.s32 %s211, 1
      %p215 = scmp.eq.s32.totalorder %s25, 1
      %p216 = scmp.ne.s32.totalorder %s211, %s213
      %p217 = scmp.eq.s32.totalorder %s25, 0
      %p218 = por %p216, %p217
      %p219 = scmp.ne.s32.totalorder %s211, %s213
      %p220 = scmp.eq.s32.totalorder %s30, 1
      %p221 = por %p219, %p220
      %p222 = scmp.ne.s32.totalorder %s213, %s214
      %p223 = scmp.eq.s32.totalorder %s30, 0
      %p224 = por %p222, %p223
      %p225 = scmp.ne.s32.totalorder %s213, %s214
      %p226 = scmp.eq.s32.totalorder %s31, 1
      %p227 = por %p225, %p226
      %p229 = scmp.ne.s32.totalorder %s214, %s228
      %p230 = scmp.eq.s32.totalorder %s31, 0
      %p231 = por %p229, %p230
      %s233 = sadd.s32 %s232, 1
      %p236 = scmp.eq.s32.totalorder %s25, 1
      %p237 = scmp.ne.s32.totalorder %s232, %s234
      %p238 = scmp.eq.s32.totalorder %s25, 0
      %p239 = por %p237, %p238
      %p240 = scmp.ne.s32.totalorder %s232, %s234
      %p241 = scmp.eq.s32.totalorder %s30, 1
      %p242 = por %p240, %p241
      %p243 = scmp.ne.s32.totalorder %s234, %s235
      %p244 = scmp.eq.s32.totalorder %s30, 0
      %p245 = por %p243, %p244
      %p246 = scmp.ne.s32.totalorder %s234, %s235
      %p247 = scmp.eq.s32.totalorder %s31, 1
      %p248 = por %p246, %p247
      %p250 = scmp.ne.s32.totalorder %s235, %s249
      %p251 = scmp.eq.s32.totalorder %s31, 0
      %p252 = por %p250, %p251
      %s254 = sadd.s32 %s253, 1
      %p257 = scmp.eq.s32.totalorder %s25, 1
      %p258 = scmp.ne.s32.totalorder %s253, %s255
      %p259 = scmp.eq.s32.totalorder %s25, 0
      %p260 = por %p258, %p259
      %p261 = scmp.ne.s32.totalorder %s253, %s255
      %p262 = scmp.eq.s32.totalorder %s30, 1
      %p263 = por %p261, %p262
      %p264 = scmp.ne.s32.totalorder %s255, %s256
      %p265 = scmp.eq.s32.totalorder %s30, 0
      %p266 = por %p264, %p265
      %p267 = scmp.ne.s32.totalorder %s255, %s256
      %p268 = scmp.eq.s32.totalorder %s31, 1
      %p269 = por %p267, %p268
      %p271 = scmp.ne.s32.totalorder %s256, %s270
      %p272 = scmp.eq.s32.totalorder %s31, 0
      %p273 = por %p271, %p272
      %s275 = sadd.s32 %s274, 1
      %p278 = scmp.eq.s32.totalorder %s25, 1
      %p279 = scmp.ne.s32.totalorder %s274, %s276
      %p280 = scmp.eq.s32.totalorder %s25, 0
      %p281 = por %p279, %p280
      %p282 = scmp.ne.s32.totalorder %s274, %s276
      %p283 = scmp.eq.s32.totalorder %s30, 1
      %p284 = por %p282, %p283
      %p285 = scmp.ne.s32.totalorder %s276, %s277
      %p286 = scmp.eq.s32.totalorder %s30, 0
      %p287 = por %p285, %p286
      %p288 = scmp.ne.s32.totalorder %s276, %s277
      %p289 = scmp.eq.s32.totalorder %s31, 1
      %p290 = por %p288, %p289
      %p292 = scmp.ne.s32.totalorder %s277, %s291
      %p293 = scmp.eq.s32.totalorder %s31, 0
      %p294 = por %p292, %p293
      %s296 = sadd.s32 %s295, 1
      %p299 = scmp.eq.s32.totalorder %s25, 1
      %p300 = scmp.ne.s32.totalorder %s295, %s297
      %p301 = scmp.eq.s32.totalorder %s25, 0
      %p302 = por %p300, %p301
      %p303 = scmp.ne.s32.totalorder %s295, %s297
      %p304 = scmp.eq.s32.totalorder %s30, 1
      %p305 = por %p303, %p304
      %p306 = scmp.ne.s32.totalorder %s297, %s298
      %p307 = scmp.eq.s32.totalorder %s30, 0
      %p308 = por %p306, %p307
      %p309 = scmp.ne.s32.totalorder %s297, %s298
      %p310 = scmp.eq.s32.totalorder %s31, 1
      %p311 = por %p309, %p310
      %p313 = scmp.ne.s32.totalorder %s298, %s312
      %p314 = scmp.eq.s32.totalorder %s31, 0
      %p315 = por %p313, %p314
      %s317 = sadd.s32 %s316, 1
      %p320 = scmp.eq.s32.totalorder %s25, 1
      %p321 = scmp.ne.s32.totalorder %s316, %s318
      %p322 = scmp.eq.s32.totalorder %s25, 0
      %p323 = por %p321, %p322
      %p324 = scmp.ne.s32.totalorder %s316, %s318
      %p325 = scmp.eq.s32.totalorder %s30, 1
      %p326 = por %p324, %p325
      %p327 = scmp.ne.s32.totalorder %s318, %s319
      %p328 = scmp.eq.s32.totalorder %s30, 0
      %p329 = por %p327, %p328
      %p330 = scmp.ne.s32.totalorder %s318, %s319
      %p331 = scmp.eq.s32.totalorder %s31, 1
      %p332 = por %p330, %p331
      %p334 = scmp.ne.s32.totalorder %s319, %s333
      %p335 = scmp.eq.s32.totalorder %s31, 0
      %p336 = por %p334, %p335
      %s338 = sadd.s32 %s337, 1
      %p341 = scmp.eq.s32.totalorder %s25, 1
      %p342 = scmp.ne.s32.totalorder %s337, %s339
      %p343 = scmp.eq.s32.totalorder %s25, 0
      %p344 = por %p342, %p343
      %p345 = scmp.ne.s32.totalorder %s337, %s339
      %p346 = scmp.eq.s32.totalorder %s30, 1
      %p347 = por %p345, %p346
      %p348 = scmp.ne.s32.totalorder %s339, %s340
      %p349 = scmp.eq.s32.totalorder %s30, 0
      %p350 = por %p348, %p349
      %p351 = scmp.ne.s32.totalorder %s339, %s340
      %p352 = scmp.eq.s32.totalorder %s31, 1
      %p353 = por %p351, %p352
      %p355 = scmp.ne.s32.totalorder %s340, %s354
      %p356 = scmp.eq.s32.totalorder %s31, 0
      %p357 = por %p355, %p356
      %s359 = sadd.s32 %s358, 1
      %p362 = scmp.eq.s32.totalorder %s25, 1
      %p363 = scmp.ne.s32.totalorder %s358, %s360
      %p364 = scmp.eq.s32.totalorder %s25, 0
      %p365 = por %p363, %p364
      %p366 = scmp.ne.s32.totalorder %s358, %s360
      %p367 = scmp.eq.s32.totalorder %s30, 1
      %p368 = por %p366, %p367
      %p369 = scmp.ne.s32.totalorder %s360, %s361
      %p370 = scmp.eq.s32.totalorder %s30, 0
      %p371 = por %p369, %p370
      %p372 = scmp.ne.s32.totalorder %s360, %s361
      %p373 = scmp.eq.s32.totalorder %s31, 1
      %p374 = por %p372, %p373
      %p376 = scmp.ne.s32.totalorder %s361, %s375
      %p377 = scmp.eq.s32.totalorder %s31, 0
      %p378 = por %p376, %p377
      %s379 = ssub.s32 %s25, %s32
      %p380 = scmp.eq.s32.totalorder %s379, 0
      %s382 = sadd.s32 %s381, 1
      %s383 = scalar_select %p380, %s381, %s382
      %p386 = pneg %p380
      %p387 = scmp.eq.s32.totalorder %s25, 1
      %p388 = por %p386, %p387
      %p389 = scmp.ne.s32.totalorder %s381, %s384
      %p390 = scmp.eq.s32.totalorder %s25, 0
      %p391 = por %p389, %p390
      %p392 = scmp.ne.s32.totalorder %s381, %s384
      %p393 = scmp.eq.s32.totalorder %s30, 1
      %p394 = por %p392, %p393
      %p395 = scmp.ne.s32.totalorder %s384, %s385
      %p396 = scmp.eq.s32.totalorder %s30, 0
      %p397 = por %p395, %p396
      %p398 = scmp.ne.s32.totalorder %s384, %s385
      %p399 = scmp.eq.s32.totalorder %s31, 1
      %p400 = por %p398, %p399
      %p402 = scmp.ne.s32.totalorder %s385, %s401
      %p403 = scmp.eq.s32.totalorder %s31, 0
      %p404 = por %p402, %p403
      %p405 = scmp.le.s32.totalorder 1, %s25
      %p406 = scmp.lt.s32.totalorder %s25, 3
      %p407 = pnand %p405, %p406
      %p408 = pneg %p407
      // Predicated region
      $region9: #{mlp_mixer_forward.1} parent=5 // pred_check
        _
      $region10: #{mlp_mixer_forward.1} parent=5 // pred_check_branch
        %410 = sbr.rel (%p407) target = $region12
      $region11: #{mlp_mixer_forward.1} parent=5 // pred_region
        %s411 = ssub.s32 %s25, 1
        // Predicated region
        $region13: #{mlp_mixer_forward.1} parent=11 // pred_check
          %p412 = pneg %p98
        $region14: #{mlp_mixer_forward.1} parent=11 // pred_check_branch
          %414 = sbr.rel (%p412) target = $region16
        $region15: #{mlp_mixer_forward.1} parent=11 // pred_region
          _
        $region16: #{mlp_mixer_forward.1} parent=11 // pred_fallthru
          _
        // Predicated region
        $region17: #{mlp_mixer_forward.1} parent=11 // pred_check
          %p415 = pneg %p119
        $region18: #{mlp_mixer_forward.1} parent=11 // pred_check_branch
          %417 = sbr.rel (%p415) target = $region20
        $region19: #{mlp_mixer_forward.1} parent=11 // pred_region
          _
        $region20: #{mlp_mixer_forward.1} parent=11 // pred_fallthru
          _
        // Predicated region
        $region21: #{mlp_mixer_forward.1} parent=11 // pred_check
          %p418 = pneg %p140
        $region22: #{mlp_mixer_forward.1} parent=11 // pred_check_branch
          %420 = sbr.rel (%p418) target = $region24
        $region23: #{mlp_mixer_forward.1} parent=11 // pred_region
          _
        $region24: #{mlp_mixer_forward.1} parent=11 // pred_fallthru
          _
        // Predicated region
        $region25: #{mlp_mixer_forward.1} parent=11 // pred_check
          %p421 = pneg %p161
        $region26: #{mlp_mixer_forward.1} parent=11 // pred_check_branch
          %423 = sbr.rel (%p421) target = $region28
        $region27: #{mlp_mixer_forward.1} parent=11 // pred_region
          _
        $region28: #{mlp_mixer_forward.1} parent=11 // pred_fallthru
          _
        // Predicated region
        $region29: #{mlp_mixer_forward.1} parent=11 // pred_check
          %p424 = pneg %p182
        $region30: #{mlp_mixer_forward.1} parent=11 // pred_check_branch
          %426 = sbr.rel (%p424) target = $region32
        $region31: #{mlp_mixer_forward.1} parent=11 // pred_region
          _
        $region32: #{mlp_mixer_forward.1} parent=11 // pred_fallthru
          _
        // Predicated region
        $region33: #{mlp_mixer_forward.1} parent=11 // pred_check
          %p427 = pneg %p203
        $region34: #{mlp_mixer_forward.1} parent=11 // pred_check_branch
          %429 = sbr.rel (%p427) target = $region36
        $region35: #{mlp_mixer_forward.1} parent=11 // pred_region
          _
        $region36: #{mlp_mixer_forward.1} parent=11 // pred_fallthru
          _
        // Predicated region
        $region37: #{mlp_mixer_forward.1} parent=11 // pred_check
          %p430 = pneg %p224
        $region38: #{mlp_mixer_forward.1} parent=11 // pred_check_branch
          %432 = sbr.rel (%p430) target = $region40
        $region39: #{mlp_mixer_forward.1} parent=11 // pred_region
          _
        $region40: #{mlp_mixer_forward.1} parent=11 // pred_fallthru
          _
        // Predicated region
        $region41: #{mlp_mixer_forward.1} parent=11 // pred_check
          %p433 = pneg %p245
        $region42: #{mlp_mixer_forward.1} parent=11 // pred_check_branch
          %435 = sbr.rel (%p433) target = $region44
        $region43: #{mlp_mixer_forward.1} parent=11 // pred_region
          _
        $region44: #{mlp_mixer_forward.1} parent=11 // pred_fallthru
          _
        // Predicated region
        $region45: #{mlp_mixer_forward.1} parent=11 // pred_check
          %p436 = pneg %p266
        $region46: #{mlp_mixer_forward.1} parent=11 // pred_check_branch
          %438 = sbr.rel (%p436) target = $region48
        $region47: #{mlp_mixer_forward.1} parent=11 // pred_region
          _
        $region48: #{mlp_mixer_forward.1} parent=11 // pred_fallthru
          _
        // Predicated region
        $region49: #{mlp_mixer_forward.1} parent=11 // pred_check
          %p439 = pneg %p287
        $region50: #{mlp_mixer_forward.1} parent=11 // pred_check_branch
          %441 = sbr.rel (%p439) target = $region52
        $region51: #{mlp_mixer_forward.1} parent=11 // pred_region
          _
        $region52: #{mlp_mixer_forward.1} parent=11 // pred_fallthru
          _
        // Predicated region
        $region53: #{mlp_mixer_forward.1} parent=11 // pred_check
          %p442 = pneg %p308
        $region54: #{mlp_mixer_forward.1} parent=11 // pred_check_branch
          %444 = sbr.rel (%p442) target = $region56
        $region55: #{mlp_mixer_forward.1} parent=11 // pred_region
          _
        $region56: #{mlp_mixer_forward.1} parent=11 // pred_fallthru
          _
        // Predicated region
        $region57: #{mlp_mixer_forward.1} parent=11 // pred_check
          %p445 = pneg %p329
        $region58: #{mlp_mixer_forward.1} parent=11 // pred_check_branch
          %447 = sbr.rel (%p445) target = $region60
        $region59: #{mlp_mixer_forward.1} parent=11 // pred_region
          _
        $region60: #{mlp_mixer_forward.1} parent=11 // pred_fallthru
          _
        // Predicated region
        $region61: #{mlp_mixer_forward.1} parent=11 // pred_check
          %p448 = pneg %p350
        $region62: #{mlp_mixer_forward.1} parent=11 // pred_check_branch
          %450 = sbr.rel (%p448) target = $region64
        $region63: #{mlp_mixer_forward.1} parent=11 // pred_region
          _
        $region64: #{mlp_mixer_forward.1} parent=11 // pred_fallthru
          _
        // Predicated region
        $region65: #{mlp_mixer_forward.1} parent=11 // pred_check
          %p451 = pneg %p371
        $region66: #{mlp_mixer_forward.1} parent=11 // pred_check_branch
          %453 = sbr.rel (%p451) target = $region68
        $region67: #{mlp_mixer_forward.1} parent=11 // pred_region
          _
        $region68: #{mlp_mixer_forward.1} parent=11 // pred_fallthru
          _
      $region12: #{mlp_mixer_forward.1} parent=5 // pred_fallthru
        _
      %p454 = scmp.lt.s32.totalorder %s25, 2
      // Predicated region
      $region69: #{mlp_mixer_forward.1} parent=5 // pred_check
        %p455 = pneg %p454
      $region70: #{mlp_mixer_forward.1} parent=5 // pred_check_branch
        %457 = sbr.rel (%p455) target = $region72
      $region71: #{mlp_mixer_forward.1} parent=5 // pred_region
        // Predicated region
        $region73: #{mlp_mixer_forward.1} parent=71 // pred_check
          %p458 = pneg %p45
        $region74: #{mlp_mixer_forward.1} parent=71 // pred_check_branch
          %460 = sbr.rel (%p458) target = $region76
        $region75: #{mlp_mixer_forward.1} parent=71 // pred_region
          %p461 = scmp.lt.s32.totalorder %s25, 1
          %s462 = scalar_select %p461, %s25, 1
          %s463 = smul.addr %s462, 2
          %s464 = smul.addr %s463, 8
          %s465 = scalar_lea.vmem %s0, %s464
        $region76: #{mlp_mixer_forward.1} parent=71 // pred_fallthru
          _
        // Predicated region
        $region77: #{mlp_mixer_forward.1} parent=71 // pred_check
          %p466 = pneg %p71
        $region78: #{mlp_mixer_forward.1} parent=71 // pred_check_branch
          %468 = sbr.rel (%p466) target = $region80
        $region79: #{mlp_mixer_forward.1} parent=71 // pred_region
          %p469 = scmp.lt.s32.totalorder %s25, 1
          %s470 = scalar_select %p469, %s25, 1
          %s471 = scalar_lea.vmem %s1, %s470
        $region80: #{mlp_mixer_forward.1} parent=71 // pred_fallthru
          _
      $region72: #{mlp_mixer_forward.1} parent=5 // pred_fallthru
        _
      %p472 = scmp.le.s32.totalorder 1, %s25
      %p473 = scmp.lt.s32.totalorder %s25, 3
      %p474 = pnand %p472, %p473
      %p475 = pneg %p474
      // Predicated region
      $region81: #{mlp_mixer_forward.1} parent=5 // pred_check
        _
      $region82: #{mlp_mixer_forward.1} parent=5 // pred_check_branch
        %477 = sbr.rel (%p474) target = $region84
      $region83: #{mlp_mixer_forward.1} parent=5 // pred_region
        %s478 = ssub.s32 %s25, 1
        %p479 = scmp.lt.s32.totalorder %s30, 1
        %s480 = scalar_select %p479, %s30, 1
        %s481 = smul.addr %s480, 2
        %s482 = smul.addr %s481, 8
        %s483 = scalar_lea.vmem %s0, %s482
        %p484 = pneg %p51
        %p485 = pneg %p48
        %p486 = scmp.lt.s32.totalorder %s30, 1
        %s487 = scalar_select %p486, %s30, 1
        %s488 = scalar_lea.vmem %s1, %s487
        %p489 = pneg %p77
        %p490 = pneg %p74
        %p491 = pneg %p98
        %p492 = pneg %p95
        %p493 = pneg %p119
        %p494 = pneg %p116
        %p495 = pneg %p140
        %p496 = pneg %p137
        %p497 = pneg %p161
        %p498 = pneg %p158
        %p499 = pneg %p182
        %p500 = pneg %p179
        %p501 = pneg %p203
        %p502 = pneg %p200
        %p503 = pneg %p224
        %p504 = pneg %p221
        %p505 = pneg %p245
        %p506 = pneg %p242
        %p507 = pneg %p266
        %p508 = pneg %p263
        %p509 = pneg %p287
        %p510 = pneg %p284
        %p511 = pneg %p308
        %p512 = pneg %p305
        %p513 = pneg %p329
        %p514 = pneg %p326
        %p515 = pneg %p350
        %p516 = pneg %p347
        %p517 = pneg %p371
        %p518 = pneg %p368
        %p519 = pneg %p397
        %p520 = pneg %p394
        %s521 = sand.u32 %s384, 1
        %s522 = scalar_lea.sflag [#allocation3], %s521
        %s523 = sand.u32 %s384, 1
        %s524 = scalar_lea.vmem [#allocation2], %s523
        %p525 = scmp.lt.s32.totalorder %s30, 1
        %s526 = scalar_select %p525, %s30, 1
        %s527 = smul.addr %s526, 2
        %s528 = smul.addr %s527, 8
        %s529 = scalar_lea.vmem %s0, %s528
        %p530 = scmp.lt.s32.totalorder %s30, 1
        %s531 = scalar_select %p530, %s30, 1
        %s532 = scalar_lea.vmem %s1, %s531
        %v533 = vld [vmem:[%s529] sm:$0xff]
        %v534 = vld [vmem:[%s529 + $0x8] sm:$0xff]
        %v535 = vld [vmem:[%s532] sm:$0x1]
        %v537 = vlaneseq
        %v538 = vshrl.u32 %v537, 7
        %v539 = vsub.s32 0, %v538
        %v540 = vrot.slane %v535, %v539
        %v542 = vadd.f32 %v533, %v540
        %v543 = vadd.f32 %v534, %v540
        %v544 = vld [vmem:[%s2] sm:$0xff]
        %v545 = vld [vmem:[%s2 + $0x8] sm:$0xff]
        %v546 = vld [vmem:[%s2 + $0x10] sm:$0xff]
        %v547 = vld [vmem:[%s2 + $0x18] sm:$0xff]
        %v548 = vld [vmem:[%s3] sm:$0x1]
        %v550 = vlaneseq
        %v551 = vshrl.u32 %v550, 7
        %v552 = vsub.s32 0, %v551
        %v553 = vrot.slane %v548, %v552
        %vm555 = vcmask 261120
        %v557 = vsel %vm555, %v542, 0
        %v560 = vsel %vm555, %v543, 0
        %562 = vmatprep.subr.mxu0 0.0
        %v563 = vand.u32 %v544, 4294901760
        %564 = vmatpush1.msra.mxu0 %v563
        %565 = vmatprep.subr.mxu0 0.0
        %v566 = vand.u32 %v545, 4294901760
        %567 = vmatpush1.msra.mxu0 %v566
        %568 = vmatprep.subr.mxu0 0.0
        %v569 = vand.u32 %v546, 4294901760
        %570 = vmatpush1.msra.mxu0 %v569
        %571 = vmatprep.subr.mxu0 0.0
        %v572 = vand.u32 %v547, 4294901760
        %573 = vmatpush1.msra.mxu0 %v572
        %574 = vmatprep.subr.mxu0 0.0
        %575 = vmatpush1.msra.mxu0 0.0
        %576 = vmatprep.subr.mxu0 0.0
        %577 = vmatpush1.msra.mxu0 0.0
        %578 = vmatprep.subr.mxu0 0.0
        %579 = vmatpush1.msra.mxu0 0.0
        %580 = vmatprep.subr.mxu0 0.0
        %581 = vmatpush1.msra.mxu0 0.0
        %582 = vmatprep.subr.mxu0 0.0
        %583 = vmatpush1.msra.mxu0 0.0
        %584 = vmatprep.subr.mxu0 0.0
        %585 = vmatpush1.msra.mxu0 0.0
        %586 = vmatprep.subr.mxu0 0.0
        %587 = vmatpush1.msra.mxu0 0.0
        %588 = vmatprep.subr.mxu0 0.0
        %589 = vmatpush1.msra.mxu0 0.0
        %590 = vmatprep.subr.mxu0 0.0
        %591 = vmatpush1.msra.mxu0 0.0
        %592 = vmatprep.subr.mxu0 0.0
        %593 = vmatpush1.msra.mxu0 0.0
        %594 = vmatprep.subr.mxu0 0.0
        %595 = vmatpush1.msra.mxu0 0.0
        %596 = vmatprep.subr.mxu0 0.0
        %597 = vmatpush1.msra.mxu0 0.0
        %598 = vmatprep.subr.mxu0 0.0
        %599 = vmatpush1.msra.mxu0 0.0
        %600 = vmatprep.subr.mxu0 0.0
        %601 = vmatpush1.msra.mxu0 0.0
        %602 = vmatprep.subr.mxu0 0.0
        %603 = vmatpush1.msra.mxu0 0.0
        %604 = vmatprep.subr.mxu0 0.0
        %605 = vmatpush1.msra.mxu0 0.0
        %606 = vmatprep.subr.mxu0 0.0
        %607 = vmatpush1.msra.mxu0 0.0
        %608 = vmatprep.subr.mxu0 0.0
        %609 = vmatpush1.msra.mxu0 0.0
        %610 = vmatprep.subr.mxu0 0.0
        %611 = vmatpush1.msra.mxu0 0.0
        %612 = vmatprep.subr.mxu0 0.0
        %613 = vmatpush1.msra.mxu0 0.0
        %614 = vmatprep.subr.mxu0 0.0
        %615 = vmatpush1.msra.mxu0 0.0
        %616 = vmatprep.subr.mxu0 0.0
        %617 = vmatpush1.msra.mxu0 0.0
        %618 = vmatprep.subr.mxu0 0.0
        %619 = vmatpush1.msra.mxu0 0.0
        %620 = vmatprep.subr.mxu0 0.0
        %621 = vmatpush1.msra.mxu0 0.0
        %622 = vmatprep.subr.mxu0 0.0
        %623 = vmatpush1.msra.mxu0 0.0
        %624 = vmatprep.subr.mxu0 0.0
        %625 = vmatpush1.msra.mxu0 0.0
        %626 = vmatprep.subr.mxu0 0.0
        %627 = vmatpush1.msra.mxu0 0.0
        %628 = vmatprep.subr.mxu0 0.0
        %629 = vmatpush1.msra.mxu0 0.0
        %630 = vmatprep.mubr.f32.mxu0 0.0
        %v631 = vand.u32 %v557, 4294901760
        %v632 = vsub.f32 %v557, %v631
        %v633 = vand.u32 %v632, 4294901760
        %v634 = vsub.f32 %v632, %v633
        %v635 = vand.u32 %v634, 4294901760
        %636 = vmatmul.mubr.f32.gmra.mrb[0].mxu0 %v635
        %v637 = vpop.f32.mrb[0].mxu0
        %v638 = vadd.f32 %v553, %v637
        %v639 = vpop.f32.mrb[0].mxu0
        %640 = vmatprep.mubr.f32.mxu0 0.0
        %v641 = vand.u32 %v560, 4294901760
        %v642 = vsub.f32 %v560, %v641
        %v643 = vand.u32 %v642, 4294901760
        %v644 = vsub.f32 %v642, %v643
        %v645 = vand.u32 %v644, 4294901760
        %646 = vmatmul.mubr.f32.gmra.mrb[0].mxu0 %v645
        %v647 = vpop.f32.mrb[0].mxu0
        %v648 = vadd.f32 %v553, %v647
        %v649 = vpop.f32.mrb[0].mxu0
        %650 = vdwg.mxu0
        %651 = vmatprep.subr.mxu0 0.0
        %v652 = vand.u32 %v544, 4294901760
        %v653 = vsub.f32 %v544, %v652
        %v654 = vand.u32 %v653, 4294901760
        %v655 = vsub.f32 %v653, %v654
        %v656 = vand.u32 %v655, 4294901760
        %657 = vmatpush1.msra.mxu0 %v656
        %658 = vmatprep.subr.mxu0 0.0
        %v659 = vand.u32 %v545, 4294901760
        %v660 = vsub.f32 %v545, %v659
        %v661 = vand.u32 %v660, 4294901760
        %v662 = vsub.f32 %v660, %v661
        %v663 = vand.u32 %v662, 4294901760
        %664 = vmatpush1.msra.mxu0 %v663
        %665 = vmatprep.subr.mxu0 0.0
        %v666 = vand.u32 %v546, 4294901760
        %v667 = vsub.f32 %v546, %v666
        %v668 = vand.u32 %v667, 4294901760
        %v669 = vsub.f32 %v667, %v668
        %v670 = vand.u32 %v669, 4294901760
        %671 = vmatpush1.msra.mxu0 %v670
        %672 = vmatprep.subr.mxu0 0.0
        %v673 = vand.u32 %v547, 4294901760
        %v674 = vsub.f32 %v547, %v673
        %v675 = vand.u32 %v674, 4294901760
        %v676 = vsub.f32 %v674, %v675
        %v677 = vand.u32 %v676, 4294901760
        %678 = vmatpush1.msra.mxu0 %v677
        %679 = vmatprep.subr.mxu0 0.0
        %680 = vmatpush1.msra.mxu0 0.0
        %681 = vmatprep.subr.mxu0 0.0
        %682 = vmatpush1.msra.mxu0 0.0
        %683 = vmatprep.subr.mxu0 0.0
        %684 = vmatpush1.msra.mxu0 0.0
        %685 = vmatprep.subr.mxu0 0.0
        %686 = vmatpush1.msra.mxu0 0.0
        %687 = vmatprep.subr.mxu0 0.0
        %688 = vmatpush1.msra.mxu0 0.0
        %689 = vmatprep.subr.mxu0 0.0
        %690 = vmatpush1.msra.mxu0 0.0
        %691 = vmatprep.subr.mxu0 0.0
        %692 = vmatpush1.msra.mxu0 0.0
        %693 = vmatprep.subr.mxu0 0.0
        %694 = vmatpush1.msra.mxu0 0.0
        %695 = vmatprep.subr.mxu0 0.0
        %696 = vmatpush1.msra.mxu0 0.0
        %697 = vmatprep.subr.mxu0 0.0
        %698 = vmatpush1.msra.mxu0 0.0
        %699 = vmatprep.subr.mxu0 0.0
        %700 = vmatpush1.msra.mxu0 0.0
        %701 = vmatprep.subr.mxu0 0.0
        %702 = vmatpush1.msra.mxu0 0.0
        %703 = vmatprep.subr.mxu0 0.0
        %704 = vmatpush1.msra.mxu0 0.0
        %705 = vmatprep.subr.mxu0 0.0
        %706 = vmatpush1.msra.mxu0 0.0
        %707 = vmatprep.subr.mxu0 0.0
        %708 = vmatpush1.msra.mxu0 0.0
        %709 = vmatprep.subr.mxu0 0.0
        %710 = vmatpush1.msra.mxu0 0.0
        %711 = vmatprep.subr.mxu0 0.0
        %712 = vmatpush1.msra.mxu0 0.0
        %713 = vmatprep.subr.mxu0 0.0
        %714 = vmatpush1.msra.mxu0 0.0
        %715 = vmatprep.subr.mxu0 0.0
        %716 = vmatpush1.msra.mxu0 0.0
        %717 = vmatprep.subr.mxu0 0.0
        %718 = vmatpush1.msra.mxu0 0.0
        %719 = vmatprep.subr.mxu0 0.0
        %720 = vmatpush1.msra.mxu0 0.0
        %721 = vmatprep.subr.mxu0 0.0
        %722 = vmatpush1.msra.mxu0 0.0
        %723 = vmatprep.subr.mxu0 0.0
        %724 = vmatpush1.msra.mxu0 0.0
        %725 = vmatprep.subr.mxu0 0.0
        %726 = vmatpush1.msra.mxu0 0.0
        %727 = vmatprep.subr.mxu0 0.0
        %728 = vmatpush1.msra.mxu0 0.0
        %729 = vmatprep.subr.mxu0 0.0
        %730 = vmatpush1.msra.mxu0 0.0
        %731 = vmatprep.subr.mxu0 0.0
        %732 = vmatpush1.msra.mxu0 0.0
        %733 = vmatprep.subr.mxu0 0.0
        %734 = vmatpush1.msra.mxu0 0.0
        %735 = vmatprep.mubr.f32.mxu0 0.0
        %v736 = vand.u32 %v557, 4294901760
        %737 = vmatmul.mubr.f32.gmra.mrb[0].mxu0 %v736
        %v738 = vpop.f32.mrb[0].mxu0
        %v739 = vadd.f32 %v638, %v738
        %v740 = vpop.f32.mrb[0].mxu0
        %741 = vmatprep.mubr.f32.mxu0 0.0
        %v742 = vand.u32 %v560, 4294901760
        %743 = vmatmul.mubr.f32.gmra.mrb[0].mxu0 %v742
        %v744 = vpop.f32.mrb[0].mxu0
        %v745 = vadd.f32 %v648, %v744
        %v746 = vpop.f32.mrb[0].mxu0
        %747 = vdwg.mxu0
        %748 = vmatprep.subr.mxu0 0.0
        %v749 = vand.u32 %v544, 4294901760
        %v750 = vsub.f32 %v544, %v749
        %751 = vmatpush1.msra.mxu0 %v750
        %752 = vmatprep.subr.mxu0 0.0
        %v753 = vand.u32 %v545, 4294901760
        %v754 = vsub.f32 %v545, %v753
        %755 = vmatpush1.msra.mxu0 %v754
        %756 = vmatprep.subr.mxu0 0.0
        %v757 = vand.u32 %v546, 4294901760
        %v758 = vsub.f32 %v546, %v757
        %759 = vmatpush1.msra.mxu0 %v758
        %760 = vmatprep.subr.mxu0 0.0
        %v761 = vand.u32 %v547, 4294901760
        %v762 = vsub.f32 %v547, %v761
        %763 = vmatpush1.msra.mxu0 %v762
        %764 = vmatprep.subr.mxu0 0.0
        %765 = vmatpush1.msra.mxu0 0.0
        %766 = vmatprep.subr.mxu0 0.0
        %767 = vmatpush1.msra.mxu0 0.0
        %768 = vmatprep.subr.mxu0 0.0
        %769 = vmatpush1.msra.mxu0 0.0
        %770 = vmatprep.subr.mxu0 0.0
        %771 = vmatpush1.msra.mxu0 0.0
        %772 = vmatprep.subr.mxu0 0.0
        %773 = vmatpush1.msra.mxu0 0.0
        %774 = vmatprep.subr.mxu0 0.0
        %775 = vmatpush1.msra.mxu0 0.0
        %776 = vmatprep.subr.mxu0 0.0
        %777 = vmatpush1.msra.mxu0 0.0
        %778 = vmatprep.subr.mxu0 0.0
        %779 = vmatpush1.msra.mxu0 0.0
        %780 = vmatprep.subr.mxu0 0.0
        %781 = vmatpush1.msra.mxu0 0.0
        %782 = vmatprep.subr.mxu0 0.0
        %783 = vmatpush1.msra.mxu0 0.0
        %784 = vmatprep.subr.mxu0 0.0
        %785 = vmatpush1.msra.mxu0 0.0
        %786 = vmatprep.subr.mxu0 0.0
        %787 = vmatpush1.msra.mxu0 0.0
        %788 = vmatprep.subr.mxu0 0.0
        %789 = vmatpush1.msra.mxu0 0.0
        %790 = vmatprep.subr.mxu0 0.0
        %791 = vmatpush1.msra.mxu0 0.0
        %792 = vmatprep.subr.mxu0 0.0
        %793 = vmatpush1.msra.mxu0 0.0
        %794 = vmatprep.subr.mxu0 0.0
        %795 = vmatpush1.msra.mxu0 0.0
        %796 = vmatprep.subr.mxu0 0.0
        %797 = vmatpush1.msra.mxu0 0.0
        %798 = vmatprep.subr.mxu0 0.0
        %799 = vmatpush1.msra.mxu0 0.0
        %800 = vmatprep.subr.mxu0 0.0
        %801 = vmatpush1.msra.mxu0 0.0
        %802 = vmatprep.subr.mxu0 0.0
        %803 = vmatpush1.msra.mxu0 0.0
        %804 = vmatprep.subr.mxu0 0.0
        %805 = vmatpush1.msra.mxu0 0.0
        %806 = vmatprep.subr.mxu0 0.0
        %807 = vmatpush1.msra.mxu0 0.0
        %808 = vmatprep.subr.mxu0 0.0
        %809 = vmatpush1.msra.mxu0 0.0
        %810 = vmatprep.subr.mxu0 0.0
        %811 = vmatpush1.msra.mxu0 0.0
        %812 = vmatprep.subr.mxu0 0.0
        %813 = vmatpush1.msra.mxu0 0.0
        %814 = vmatprep.subr.mxu0 0.0
        %815 = vmatpush1.msra.mxu0 0.0
        %816 = vmatprep.subr.mxu0 0.0
        %817 = vmatpush1.msra.mxu0 0.0
        %818 = vmatprep.subr.mxu0 0.0
        %819 = vmatpush1.msra.mxu0 0.0
        %820 = vmatprep.mubr.f32.mxu0 0.0
        %v821 = vand.u32 %v557, 4294901760
        %v822 = vsub.f32 %v557, %v821
        %823 = vmatmul.mubr.f32.gmra.mrb[0].mxu0 %v822
        %v824 = vpop.f32.mrb[0].mxu0
        %v825 = vadd.f32 %v739, %v824
        %v826 = vpop.f32.mrb[0].mxu0
        %827 = vmatprep.mubr.f32.mxu0 0.0
        %v828 = vand.u32 %v560, 4294901760
        %v829 = vsub.f32 %v560, %v828
        %830 = vmatmul.mubr.f32.gmra.mrb[0].mxu0 %v829
        %v831 = vpop.f32.mrb[0].mxu0
        %v832 = vadd.f32 %v745, %v831
        %v833 = vpop.f32.mrb[0].mxu0
        %834 = vdwg.mxu0
        %835 = vmatprep.subr.mxu0 0.0
        %v836 = vand.u32 %v544, 4294901760
        %837 = vmatpush1.msra.mxu0 %v836
        %838 = vmatprep.subr.mxu0 0.0
        %v839 = vand.u32 %v545, 4294901760
        %840 = vmatpush1.msra.mxu0 %v839
        %841 = vmatprep.subr.mxu0 0.0
        %v842 = vand.u32 %v546, 4294901760
        %843 = vmatpush1.msra.mxu0 %v842
        %844 = vmatprep.subr.mxu0 0.0
        %v845 = vand.u32 %v547, 4294901760
        %846 = vmatpush1.msra.mxu0 %v845
        %847 = vmatprep.subr.mxu0 0.0
        %848 = vmatpush1.msra.mxu0 0.0
        %849 = vmatprep.subr.mxu0 0.0
        %850 = vmatpush1.msra.mxu0 0.0
        %851 = vmatprep.subr.mxu0 0.0
        %852 = vmatpush1.msra.mxu0 0.0
        %853 = vmatprep.subr.mxu0 0.0
        %854 = vmatpush1.msra.mxu0 0.0
        %855 = vmatprep.subr.mxu0 0.0
        %856 = vmatpush1.msra.mxu0 0.0
        %857 = vmatprep.subr.mxu0 0.0
        %858 = vmatpush1.msra.mxu0 0.0
        %859 = vmatprep.subr.mxu0 0.0
        %860 = vmatpush1.msra.mxu0 0.0
        %861 = vmatprep.subr.mxu0 0.0
        %862 = vmatpush1.msra.mxu0 0.0
        %863 = vmatprep.subr.mxu0 0.0
        %864 = vmatpush1.msra.mxu0 0.0
        %865 = vmatprep.subr.mxu0 0.0
        %866 = vmatpush1.msra.mxu0 0.0
        %867 = vmatprep.subr.mxu0 0.0
        %868 = vmatpush1.msra.mxu0 0.0
        %869 = vmatprep.subr.mxu0 0.0
        %870 = vmatpush1.msra.mxu0 0.0
        %871 = vmatprep.subr.mxu0 0.0
        %872 = vmatpush1.msra.mxu0 0.0
        %873 = vmatprep.subr.mxu0 0.0
        %874 = vmatpush1.msra.mxu0 0.0
        %875 = vmatprep.subr.mxu0 0.0
        %876 = vmatpush1.msra.mxu0 0.0
        %877 = vmatprep.subr.mxu0 0.0
        %878 = vmatpush1.msra.mxu0 0.0
        %879 = vmatprep.subr.mxu0 0.0
        %880 = vmatpush1.msra.mxu0 0.0
        %881 = vmatprep.subr.mxu0 0.0
        %882 = vmatpush1.msra.mxu0 0.0
        %883 = vmatprep.subr.mxu0 0.0
        %884 = vmatpush1.msra.mxu0 0.0
        %885 = vmatprep.subr.mxu0 0.0
        %886 = vmatpush1.msra.mxu0 0.0
        %887 = vmatprep.subr.mxu0 0.0
        %888 = vmatpush1.msra.mxu0 0.0
        %889 = vmatprep.subr.mxu0 0.0
        %890 = vmatpush1.msra.mxu0 0.0
        %891 = vmatprep.subr.mxu0 0.0
        %892 = vmatpush1.msra.mxu0 0.0
        %893 = vmatprep.subr.mxu0 0.0
        %894 = vmatpush1.msra.mxu0 0.0
        %895 = vmatprep.subr.mxu0 0.0
        %896 = vmatpush1.msra.mxu0 0.0
        %897 = vmatprep.subr.mxu0 0.0
        %898 = vmatpush1.msra.mxu0 0.0
        %899 = vmatprep.subr.mxu0 0.0
        %900 = vmatpush1.msra.mxu0 0.0
        %901 = vmatprep.subr.mxu0 0.0
        %902 = vmatpush1.msra.mxu0 0.0
        %903 = vmatprep.mubr.f32.mxu0 0.0
        %v904 = vand.u32 %v557, 4294901760
        %v905 = vsub.f32 %v557, %v904
        %v906 = vand.u32 %v905, 4294901760
        %907 = vmatmul.mubr.f32.gmra.mrb[0].mxu0 %v906
        %v908 = vpop.f32.mrb[0].mxu0
        %v909 = vadd.f32 %v825, %v908
        %v910 = vpop.f32.mrb[0].mxu0
        %911 = vmatprep.mubr.f32.mxu0 0.0
        %v912 = vand.u32 %v560, 4294901760
        %v913 = vsub.f32 %v560, %v912
        %v914 = vand.u32 %v913, 4294901760
        %915 = vmatmul.mubr.f32.gmra.mrb[0].mxu0 %v914
        %v916 = vpop.f32.mrb[0].mxu0
        %v917 = vadd.f32 %v832, %v916
        %v918 = vpop.f32.mrb[0].mxu0
        %919 = vdwg.mxu0
        %920 = vmatprep.subr.mxu0 0.0
        %v921 = vand.u32 %v544, 4294901760
        %v922 = vsub.f32 %v544, %v921
        %v923 = vand.u32 %v922, 4294901760
        %924 = vmatpush1.msra.mxu0 %v923
        %925 = vmatprep.subr.mxu0 0.0
        %v926 = vand.u32 %v545, 4294901760
        %v927 = vsub.f32 %v545, %v926
        %v928 = vand.u32 %v927, 4294901760
        %929 = vmatpush1.msra.mxu0 %v928
        %930 = vmatprep.subr.mxu0 0.0
        %v931 = vand.u32 %v546, 4294901760
        %v932 = vsub.f32 %v546, %v931
        %v933 = vand.u32 %v932, 4294901760
        %934 = vmatpush1.msra.mxu0 %v933
        %935 = vmatprep.subr.mxu0 0.0
        %v936 = vand.u32 %v547, 4294901760
        %v937 = vsub.f32 %v547, %v936
        %v938 = vand.u32 %v937, 4294901760
        %939 = vmatpush1.msra.mxu0 %v938
        %940 = vmatprep.subr.mxu0 0.0
        %941 = vmatpush1.msra.mxu0 0.0
        %942 = vmatprep.subr.mxu0 0.0
        %943 = vmatpush1.msra.mxu0 0.0
        %944 = vmatprep.subr.mxu0 0.0
        %945 = vmatpush1.msra.mxu0 0.0
        %946 = vmatprep.subr.mxu0 0.0
        %947 = vmatpush1.msra.mxu0 0.0
        %948 = vmatprep.subr.mxu0 0.0
        %949 = vmatpush1.msra.mxu0 0.0
        %950 = vmatprep.subr.mxu0 0.0
        %951 = vmatpush1.msra.mxu0 0.0
        %952 = vmatprep.subr.mxu0 0.0
        %953 = vmatpush1.msra.mxu0 0.0
        %954 = vmatprep.subr.mxu0 0.0
        %955 = vmatpush1.msra.mxu0 0.0
        %956 = vmatprep.subr.mxu0 0.0
        %957 = vmatpush1.msra.mxu0 0.0
        %958 = vmatprep.subr.mxu0 0.0
        %959 = vmatpush1.msra.mxu0 0.0
        %960 = vmatprep.subr.mxu0 0.0
        %961 = vmatpush1.msra.mxu0 0.0
        %962 = vmatprep.subr.mxu0 0.0
        %963 = vmatpush1.msra.mxu0 0.0
        %964 = vmatprep.subr.mxu0 0.0
        %965 = vmatpush1.msra.mxu0 0.0
        %966 = vmatprep.subr.mxu0 0.0
        %967 = vmatpush1.msra.mxu0 0.0
        %968 = vmatprep.subr.mxu0 0.0
        %969 = vmatpush1.msra.mxu0 0.0
        %970 = vmatprep.subr.mxu0 0.0
        %971 = vmatpush1.msra.mxu0 0.0
        %972 = vmatprep.subr.mxu0 0.0
        %973 = vmatpush1.msra.mxu0 0.0
        %974 = vmatprep.subr.mxu0 0.0
        %975 = vmatpush1.msra.mxu0 0.0
        %976 = vmatprep.subr.mxu0 0.0
        %977 = vmatpush1.msra.mxu0 0.0
        %978 = vmatprep.subr.mxu0 0.0
        %979 = vmatpush1.msra.mxu0 0.0
        %980 = vmatprep.subr.mxu0 0.0
        %981 = vmatpush1.msra.mxu0 0.0
        %982 = vmatprep.subr.mxu0 0.0
        %983 = vmatpush1.msra.mxu0 0.0
        %984 = vmatprep.subr.mxu0 0.0
        %985 = vmatpush1.msra.mxu0 0.0
        %986 = vmatprep.subr.mxu0 0.0
        %987 = vmatpush1.msra.mxu0 0.0
        %988 = vmatprep.subr.mxu0 0.0
        %989 = vmatpush1.msra.mxu0 0.0
        %990 = vmatprep.subr.mxu0 0.0
        %991 = vmatpush1.msra.mxu0 0.0
        %992 = vmatprep.subr.mxu0 0.0
        %993 = vmatpush1.msra.mxu0 0.0
        %994 = vmatprep.subr.mxu0 0.0
        %995 = vmatpush1.msra.mxu0 0.0
        %996 = vmatprep.mubr.f32.mxu0 0.0
        %v997 = vand.u32 %v557, 4294901760
        %998 = vmatmul.mubr.f32.gmra.mrb[0].mxu0 %v997
        %v999 = vpop.f32.mrb[0].mxu0
        %v1000 = vadd.f32 %v909, %v999
        %v1001 = vpop.f32.mrb[0].mxu0
        %1002 = vmatprep.mubr.f32.mxu0 0.0
        %v1003 = vand.u32 %v560, 4294901760
        %1004 = vmatmul.mubr.f32.gmra.mrb[0].mxu0 %v1003
        %v1005 = vpop.f32.mrb[0].mxu0
        %v1006 = vadd.f32 %v917, %v1005
        %v1007 = vpop.f32.mrb[0].mxu0
        %1008 = vdwg.mxu0
        %1009 = vmatprep.subr.mxu0 0.0
        %v1010 = vand.u32 %v544, 4294901760
        %1011 = vmatpush1.msra.mxu0 %v1010
        %1012 = vmatprep.subr.mxu0 0.0
        %v1013 = vand.u32 %v545, 4294901760
        %1014 = vmatpush1.msra.mxu0 %v1013
        %1015 = vmatprep.subr.mxu0 0.0
        %v1016 = vand.u32 %v546, 4294901760
        %1017 = vmatpush1.msra.mxu0 %v1016
        %1018 = vmatprep.subr.mxu0 0.0
        %v1019 = vand.u32 %v547, 4294901760
        %1020 = vmatpush1.msra.mxu0 %v1019
        %1021 = vmatprep.subr.mxu0 0.0
        %1022 = vmatpush1.msra.mxu0 0.0
        %1023 = vmatprep.subr.mxu0 0.0
        %1024 = vmatpush1.msra.mxu0 0.0
        %1025 = vmatprep.subr.mxu0 0.0
        %1026 = vmatpush1.msra.mxu0 0.0
        %1027 = vmatprep.subr.mxu0 0.0
        %1028 = vmatpush1.msra.mxu0 0.0
        %1029 = vmatprep.subr.mxu0 0.0
        %1030 = vmatpush1.msra.mxu0 0.0
        %1031 = vmatprep.subr.mxu0 0.0
        %1032 = vmatpush1.msra.mxu0 0.0
        %1033 = vmatprep.subr.mxu0 0.0
        %1034 = vmatpush1.msra.mxu0 0.0
        %1035 = vmatprep.subr.mxu0 0.0
        %1036 = vmatpush1.msra.mxu0 0.0
        %1037 = vmatprep.subr.mxu0 0.0
        %1038 = vmatpush1.msra.mxu0 0.0
        %1039 = vmatprep.subr.mxu0 0.0
        %1040 = vmatpush1.msra.mxu0 0.0
        %1041 = vmatprep.subr.mxu0 0.0
        %1042 = vmatpush1.msra.mxu0 0.0
        %1043 = vmatprep.subr.mxu0 0.0
        %1044 = vmatpush1.msra.mxu0 0.0
        %1045 = vmatprep.subr.mxu0 0.0
        %1046 = vmatpush1.msra.mxu0 0.0
        %1047 = vmatprep.subr.mxu0 0.0
        %1048 = vmatpush1.msra.mxu0 0.0
        %1049 = vmatprep.subr.mxu0 0.0
        %1050 = vmatpush1.msra.mxu0 0.0
        %1051 = vmatprep.subr.mxu0 0.0
        %1052 = vmatpush1.msra.mxu0 0.0
        %1053 = vmatprep.subr.mxu0 0.0
        %1054 = vmatpush1.msra.mxu0 0.0
        %1055 = vmatprep.subr.mxu0 0.0
        %1056 = vmatpush1.msra.mxu0 0.0
        %1057 = vmatprep.subr.mxu0 0.0
        %1058 = vmatpush1.msra.mxu0 0.0
        %1059 = vmatprep.subr.mxu0 0.0
        %1060 = vmatpush1.msra.mxu0 0.0
        %1061 = vmatprep.subr.mxu0 0.0
        %1062 = vmatpush1.msra.mxu0 0.0
        %1063 = vmatprep.subr.mxu0 0.0
        %1064 = vmatpush1.msra.mxu0 0.0
        %1065 = vmatprep.subr.mxu0 0.0
        %1066 = vmatpush1.msra.mxu0 0.0
        %1067 = vmatprep.subr.mxu0 0.0
        %1068 = vmatpush1.msra.mxu0 0.0
        %1069 = vmatprep.subr.mxu0 0.0
        %1070 = vmatpush1.msra.mxu0 0.0
        %1071 = vmatprep.subr.mxu0 0.0
        %1072 = vmatpush1.msra.mxu0 0.0
        %1073 = vmatprep.subr.mxu0 0.0
        %1074 = vmatpush1.msra.mxu0 0.0
        %1075 = vmatprep.subr.mxu0 0.0
        %1076 = vmatpush1.msra.mxu0 0.0
        %1077 = vmatprep.mubr.f32.mxu0 0.0
        %v1078 = vand.u32 %v557, 4294901760
        %1079 = vmatmul.mubr.f32.gmra.mrb[0].mxu0 %v1078
        %v1080 = vpop.f32.mrb[0].mxu0
        %v1081 = vadd.f32 %v1000, %v1080
        %v1082 = vpop.f32.mrb[0].mxu0
        %1083 = vmatprep.mubr.f32.mxu0 0.0
        %v1084 = vand.u32 %v560, 4294901760
        %1085 = vmatmul.mubr.f32.gmra.mrb[0].mxu0 %v1084
        %v1086 = vpop.f32.mrb[0].mxu0
        %v1087 = vadd.f32 %v1006, %v1086
        %v1088 = vpop.f32.mrb[0].mxu0
        %1089 = vdwg.mxu0
        %v1090 = vld [vmem:[%s4] sm:$0x1]
        %v1091 = vld [vmem:[%s5] sm:$0x1]
        %v1092 = vsel %vm555, %v1081, 0.0
        %1093 = vadd.xlane.f32.xlu0 %v1092
        %v1094 = vpop.xlane.xlu0 %1093
        %v1095 = vsel %vm555, %v1087, 0.0
        %1096 = vadd.xlane.f32.xlu0 %v1095
        %v1097 = vpop.xlane.xlu0 %1096
        %v1098 = vrcp.pop 32.0
        %v1099 = vmul.f32 %v1094, %v1098
        %v1100 = vmul.f32 %v1097, %v1098
        %v1101 = vsub.f32 %v1081, %v1099
        %v1102 = vsub.f32 %v1087, %v1100
        %v1103 = vmul.f32 %v1101, %v1101
        %v1104 = vmul.f32 %v1102, %v1102
        %v1105 = vsel %vm555, %v1103, 0.0
        %1106 = vadd.xlane.f32.xlu0 %v1105
        %v1107 = vpop.xlane.xlu0 %1106
        %v1108 = vsel %vm555, %v1104, 0.0
        %1109 = vadd.xlane.f32.xlu0 %v1108
        %v1110 = vpop.xlane.xlu0 %1109
        %v1111 = vmul.f32 %v1107, %v1098
        %v1112 = vmul.f32 %v1110, %v1098
        %v1113 = vadd.f32 %v1111, 1e-05
        %v1114 = vadd.f32 %v1112, 1e-05
        %v1115 = vrsqrt.pop %v1113
        %v1116 = vrsqrt.pop %v1114
        %v1117 = vmul.f32 %v1101, %v1115
        %v1118 = vmul.f32 %v1102, %v1116
        %v1120 = vlaneseq
        %v1121 = vshrl.u32 %v1120, 7
        %v1122 = vsub.s32 0, %v1121
        %v1123 = vrot.slane %v1090, %v1122
        %v1125 = vmul.f32 %v1117, %v1123
        %v1126 = vmul.f32 %v1118, %v1123
        %v1128 = vlaneseq
        %v1129 = vshrl.u32 %v1128, 7
        %v1130 = vsub.s32 0, %v1129
        %v1131 = vrot.slane %v1091, %v1130
        %v1133 = vadd.f32 %v1125, %v1131
        %v1134 = vadd.f32 %v1126, %v1131
        %v1135 = vld [vmem:[%s6] sm:$0xff]
        %v1136 = vld [vmem:[%s6 + $0x8] sm:$0xff]
        %v1137 = vld [vmem:[%s6 + $0x10] sm:$0xff]
        %v1138 = vld [vmem:[%s6 + $0x18] sm:$0xff]
        %v1139 = vld [vmem:[%s7] sm:$0x1]
        %v1141 = vlaneseq
        %v1142 = vshrl.u32 %v1141, 7
        %v1143 = vsub.s32 0, %v1142
        %v1144 = vrot.slane %v1139, %v1143
        %v1147 = vsel %vm555, %v1133, 0
        %v1150 = vsel %vm555, %v1134, 0
        %1152 = vmatprep.subr.mxu0 0.0
        %v1153 = vand.u32 %v1135, 4294901760
        %1154 = vmatpush1.msra.mxu0 %v1153
        %1155 = vmatprep.subr.mxu0 0.0
        %v1156 = vand.u32 %v1136, 4294901760
        %1157 = vmatpush1.msra.mxu0 %v1156
        %1158 = vmatprep.subr.mxu0 0.0
        %v1159 = vand.u32 %v1137, 4294901760
        %1160 = vmatpush1.msra.mxu0 %v1159
        %1161 = vmatprep.subr.mxu0 0.0
        %v1162 = vand.u32 %v1138, 4294901760
        %1163 = vmatpush1.msra.mxu0 %v1162
        %1164 = vmatprep.subr.mxu0 0.0
        %1165 = vmatpush1.msra.mxu0 0.0
        %1166 = vmatprep.subr.mxu0 0.0
        %1167 = vmatpush1.msra.mxu0 0.0
        %1168 = vmatprep.subr.mxu0 0.0
        %1169 = vmatpush1.msra.mxu0 0.0
        %1170 = vmatprep.subr.mxu0 0.0
        %1171 = vmatpush1.msra.mxu0 0.0
        %1172 = vmatprep.subr.mxu0 0.0
        %1173 = vmatpush1.msra.mxu0 0.0
        %1174 = vmatprep.subr.mxu0 0.0
        %1175 = vmatpush1.msra.mxu0 0.0
        %1176 = vmatprep.subr.mxu0 0.0
        %1177 = vmatpush1.msra.mxu0 0.0
        %1178 = vmatprep.subr.mxu0 0.0
        %1179 = vmatpush1.msra.mxu0 0.0
        %1180 = vmatprep.subr.mxu0 0.0
        %1181 = vmatpush1.msra.mxu0 0.0
        %1182 = vmatprep.subr.mxu0 0.0
        %1183 = vmatpush1.msra.mxu0 0.0
        %1184 = vmatprep.subr.mxu0 0.0
        %1185 = vmatpush1.msra.mxu0 0.0
        %1186 = vmatprep.subr.mxu0 0.0
        %1187 = vmatpush1.msra.mxu0 0.0
        %1188 = vmatprep.subr.mxu0 0.0
        %1189 = vmatpush1.msra.mxu0 0.0
        %1190 = vmatprep.subr.mxu0 0.0
        %1191 = vmatpush1.msra.mxu0 0.0
        %1192 = vmatprep.subr.mxu0 0.0
        %1193 = vmatpush1.msra.mxu0 0.0
        %1194 = vmatprep.subr.mxu0 0.0
        %1195 = vmatpush1.msra.mxu0 0.0
        %1196 = vmatprep.subr.mxu0 0.0
        %1197 = vmatpush1.msra.mxu0 0.0
        %1198 = vmatprep.subr.mxu0 0.0
        %1199 = vmatpush1.msra.mxu0 0.0
        %1200 = vmatprep.subr.mxu0 0.0
        %1201 = vmatpush1.msra.mxu0 0.0
        %1202 = vmatprep.subr.mxu0 0.0
        %1203 = vmatpush1.msra.mxu0 0.0
        %1204 = vmatprep.subr.mxu0 0.0
        %1205 = vmatpush1.msra.mxu0 0.0
        %1206 = vmatprep.subr.mxu0 0.0
        %1207 = vmatpush1.msra.mxu0 0.0
        %1208 = vmatprep.subr.mxu0 0.0
        %1209 = vmatpush1.msra.mxu0 0.0
        %1210 = vmatprep.subr.mxu0 0.0
        %1211 = vmatpush1.msra.mxu0 0.0
        %1212 = vmatprep.subr.mxu0 0.0
        %1213 = vmatpush1.msra.mxu0 0.0
        %1214 = vmatprep.subr.mxu0 0.0
        %1215 = vmatpush1.msra.mxu0 0.0
        %1216 = vmatprep.subr.mxu0 0.0
        %1217 = vmatpush1.msra.mxu0 0.0
        %1218 = vmatprep.subr.mxu0 0.0
        %1219 = vmatpush1.msra.mxu0 0.0
        %1220 = vmatprep.mubr.f32.mxu0 0.0
        %v1221 = vand.u32 %v1147, 4294901760
        %v1222 = vsub.f32 %v1147, %v1221
        %v1223 = vand.u32 %v1222, 4294901760
        %v1224 = vsub.f32 %v1222, %v1223
        %v1225 = vand.u32 %v1224, 4294901760
        %1226 = vmatmul.mubr.f32.gmra.mrb[0].mxu0 %v1225
        %v1227 = vpop.f32.mrb[0].mxu0
        %v1228 = vadd.f32 %v1144, %v1227
        %v1229 = vpop.f32.mrb[0].mxu0
        %1230 = vmatprep.mubr.f32.mxu0 0.0
        %v1231 = vand.u32 %v1150, 4294901760
        %v1232 = vsub.f32 %v1150, %v1231
        %v1233 = vand.u32 %v1232, 4294901760
        %v1234 = vsub.f32 %v1232, %v1233
        %v1235 = vand.u32 %v1234, 4294901760
        %1236 = vmatmul.mubr.f32.gmra.mrb[0].mxu0 %v1235
        %v1237 = vpop.f32.mrb[0].mxu0
        %v1238 = vadd.f32 %v1144, %v1237
        %v1239 = vpop.f32.mrb[0].mxu0
        %1240 = vdwg.mxu0
        %1241 = vmatprep.subr.mxu0 0.0
        %v1242 = vand.u32 %v1135, 4294901760
        %v1243 = vsub.f32 %v1135, %v1242
        %v1244 = vand.u32 %v1243, 4294901760
        %v1245 = vsub.f32 %v1243, %v1244
        %v1246 = vand.u32 %v1245, 4294901760
        %1247 = vmatpush1.msra.mxu0 %v1246
        %1248 = vmatprep.subr.mxu0 0.0
        %v1249 = vand.u32 %v1136, 4294901760
        %v1250 = vsub.f32 %v1136, %v1249
        %v1251 = vand.u32 %v1250, 4294901760
        %v1252 = vsub.f32 %v1250, %v1251
        %v1253 = vand.u32 %v1252, 4294901760
        %1254 = vmatpush1.msra.mxu0 %v1253
        %1255 = vmatprep.subr.mxu0 0.0
        %v1256 = vand.u32 %v1137, 4294901760
        %v1257 = vsub.f32 %v1137, %v1256
        %v1258 = vand.u32 %v1257, 4294901760
        %v1259 = vsub.f32 %v1257, %v1258
        %v1260 = vand.u32 %v1259, 4294901760
        %1261 = vmatpush1.msra.mxu0 %v1260
        %1262 = vmatprep.subr.mxu0 0.0
        %v1263 = vand.u32 %v1138, 4294901760
        %v1264 = vsub.f32 %v1138, %v1263
        %v1265 = vand.u32 %v1264, 4294901760
        %v1266 = vsub.f32 %v1264, %v1265
        %v1267 = vand.u32 %v1266, 4294901760
        %1268 = vmatpush1.msra.mxu0 %v1267
        %1269 = vmatprep.subr.mxu0 0.0
        %1270 = vmatpush1.msra.mxu0 0.0
        %1271 = vmatprep.subr.mxu0 0.0
        %1272 = vmatpush1.msra.mxu0 0.0
        %1273 = vmatprep.subr.mxu0 0.0
        %1274 = vmatpush1.msra.mxu0 0.0
        %1275 = vmatprep.subr.mxu0 0.0
        %1276 = vmatpush1.msra.mxu0 0.0
        %1277 = vmatprep.subr.mxu0 0.0
        %1278 = vmatpush1.msra.mxu0 0.0
        %1279 = vmatprep.subr.mxu0 0.0
        %1280 = vmatpush1.msra.mxu0 0.0
        %1281 = vmatprep.subr.mxu0 0.0
        %1282 = vmatpush1.msra.mxu0 0.0
        %1283 = vmatprep.subr.mxu0 0.0
        %1284 = vmatpush1.msra.mxu0 0.0
        %1285 = vmatprep.subr.mxu0 0.0
        %1286 = vmatpush1.msra.mxu0 0.0
        %1287 = vmatprep.subr.mxu0 0.0
        %1288 = vmatpush1.msra.mxu0 0.0
        %1289 = vmatprep.subr.mxu0 0.0
        %1290 = vmatpush1.msra.mxu0 0.0
        %1291 = vmatprep.subr.mxu0 0.0
        %1292 = vmatpush1.msra.mxu0 0.0
        %1293 = vmatprep.subr.mxu0 0.0
        %1294 = vmatpush1.msra.mxu0 0.0
        %1295 = vmatprep.subr.mxu0 0.0
        %1296 = vmatpush1.msra.mxu0 0.0
        %1297 = vmatprep.subr.mxu0 0.0
        %1298 = vmatpush1.msra.mxu0 0.0
        %1299 = vmatprep.subr.mxu0 0.0
        %1300 = vmatpush1.msra.mxu0 0.0
        %1301 = vmatprep.subr.mxu0 0.0
        %1302 = vmatpush1.msra.mxu0 0.0
        %1303 = vmatprep.subr.mxu0 0.0
        %1304 = vmatpush1.msra.mxu0 0.0
        %1305 = vmatprep.subr.mxu0 0.0
        %1306 = vmatpush1.msra.mxu0 0.0
        %1307 = vmatprep.subr.mxu0 0.0
        %1308 = vmatpush1.msra.mxu0 0.0
        %1309 = vmatprep.subr.mxu0 0.0
        %1310 = vmatpush1.msra.mxu0 0.0
        %1311 = vmatprep.subr.mxu0 0.0
        %1312 = vmatpush1.msra.mxu0 0.0
        %1313 = vmatprep.subr.mxu0 0.0
        %1314 = vmatpush1.msra.mxu0 0.0
        %1315 = vmatprep.subr.mxu0 0.0
        %1316 = vmatpush1.msra.mxu0 0.0
        %1317 = vmatprep.subr.mxu0 0.0
        %1318 = vmatpush1.msra.mxu0 0.0
        %1319 = vmatprep.subr.mxu0 0.0
        %1320 = vmatpush1.msra.mxu0 0.0
        %1321 = vmatprep.subr.mxu0 0.0
        %1322 = vmatpush1.msra.mxu0 0.0
        %1323 = vmatprep.subr.mxu0 0.0
        %1324 = vmatpush1.msra.mxu0 0.0
        %1325 = vmatprep.mubr.f32.mxu0 0.0
        %v1326 = vand.u32 %v1147, 4294901760
        %1327 = vmatmul.mubr.f32.gmra.mrb[0].mxu0 %v1326
        %v1328 = vpop.f32.mrb[0].mxu0
        %v1329 = vadd.f32 %v1228, %v1328
        %v1330 = vpop.f32.mrb[0].mxu0
        %1331 = vmatprep.mubr.f32.mxu0 0.0
        %v1332 = vand.u32 %v1150, 4294901760
        %1333 = vmatmul.mubr.f32.gmra.mrb[0].mxu0 %v1332
        %v1334 = vpop.f32.mrb[0].mxu0
        %v1335 = vadd.f32 %v1238, %v1334
        %v1336 = vpop.f32.mrb[0].mxu0
        %1337 = vdwg.mxu0
        %1338 = vmatprep.subr.mxu0 0.0
        %v1339 = vand.u32 %v1135, 4294901760
        %v1340 = vsub.f32 %v1135, %v1339
        %1341 = vmatpush1.msra.mxu0 %v1340
        %1342 = vmatprep.subr.mxu0 0.0
        %v1343 = vand.u32 %v1136, 4294901760
        %v1344 = vsub.f32 %v1136, %v1343
        %1345 = vmatpush1.msra.mxu0 %v1344
        %1346 = vmatprep.subr.mxu0 0.0
        %v1347 = vand.u32 %v1137, 4294901760
        %v1348 = vsub.f32 %v1137, %v1347
        %1349 = vmatpush1.msra.mxu0 %v1348
        %1350 = vmatprep.subr.mxu0 0.0
        %v1351 = vand.u32 %v1138, 4294901760
        %v1352 = vsub.f32 %v1138, %v1351
        %1353 = vmatpush1.msra.mxu0 %v1352
        %1354 = vmatprep.subr.mxu0 0.0
        %1355 = vmatpush1.msra.mxu0 0.0
        %1356 = vmatprep.subr.mxu0 0.0
        %1357 = vmatpush1.msra.mxu0 0.0
        %1358 = vmatprep.subr.mxu0 0.0
        %1359 = vmatpush1.msra.mxu0 0.0
        %1360 = vmatprep.subr.mxu0 0.0
        %1361 = vmatpush1.msra.mxu0 0.0
        %1362 = vmatprep.subr.mxu0 0.0
        %1363 = vmatpush1.msra.mxu0 0.0
        %1364 = vmatprep.subr.mxu0 0.0
        %1365 = vmatpush1.msra.mxu0 0.0
        %1366 = vmatprep.subr.mxu0 0.0
        %1367 = vmatpush1.msra.mxu0 0.0
        %1368 = vmatprep.subr.mxu0 0.0
        %1369 = vmatpush1.msra.mxu0 0.0
        %1370 = vmatprep.subr.mxu0 0.0
        %1371 = vmatpush1.msra.mxu0 0.0
        %1372 = vmatprep.subr.mxu0 0.0
        %1373 = vmatpush1.msra.mxu0 0.0
        %1374 = vmatprep.subr.mxu0 0.0
        %1375 = vmatpush1.msra.mxu0 0.0
        %1376 = vmatprep.subr.mxu0 0.0
        %1377 = vmatpush1.msra.mxu0 0.0
        %1378 = vmatprep.subr.mxu0 0.0
        %1379 = vmatpush1.msra.mxu0 0.0
        %1380 = vmatprep.subr.mxu0 0.0
        %1381 = vmatpush1.msra.mxu0 0.0
        %1382 = vmatprep.subr.mxu0 0.0
        %1383 = vmatpush1.msra.mxu0 0.0
        %1384 = vmatprep.subr.mxu0 0.0
        %1385 = vmatpush1.msra.mxu0 0.0
        %1386 = vmatprep.subr.mxu0 0.0
        %1387 = vmatpush1.msra.mxu0 0.0
        %1388 = vmatprep.subr.mxu0 0.0
        %1389 = vmatpush1.msra.mxu0 0.0
        %1390 = vmatprep.subr.mxu0 0.0
        %1391 = vmatpush1.msra.mxu0 0.0
        %1392 = vmatprep.subr.mxu0 0.0
        %1393 = vmatpush1.msra.mxu0 0.0
        %1394 = vmatprep.subr.mxu0 0.0
        %1395 = vmatpush1.msra.mxu0 0.0
        %1396 = vmatprep.subr.mxu0 0.0
        %1397 = vmatpush1.msra.mxu0 0.0
        %1398 = vmatprep.subr.mxu0 0.0
        %1399 = vmatpush1.msra.mxu0 0.0
        %1400 = vmatprep.subr.mxu0 0.0
        %1401 = vmatpush1.msra.mxu0 0.0
        %1402 = vmatprep.subr.mxu0 0.0
        %1403 = vmatpush1.msra.mxu0 0.0
        %1404 = vmatprep.subr.mxu0 0.0
        %1405 = vmatpush1.msra.mxu0 0.0
        %1406 = vmatprep.subr.mxu0 0.0
        %1407 = vmatpush1.msra.mxu0 0.0
        %1408 = vmatprep.subr.mxu0 0.0
        %1409 = vmatpush1.msra.mxu0 0.0
        %1410 = vmatprep.mubr.f32.mxu0 0.0
        %v1411 = vand.u32 %v1147, 4294901760
        %v1412 = vsub.f32 %v1147, %v1411
        %1413 = vmatmul.mubr.f32.gmra.mrb[0].mxu0 %v1412
        %v1414 = vpop.f32.mrb[0].mxu0
        %v1415 = vadd.f32 %v1329, %v1414
        %v1416 = vpop.f32.mrb[0].mxu0
        %1417 = vmatprep.mubr.f32.mxu0 0.0
        %v1418 = vand.u32 %v1150, 4294901760
        %v1419 = vsub.f32 %v1150, %v1418
        %1420 = vmatmul.mubr.f32.gmra.mrb[0].mxu0 %v1419
        %v1421 = vpop.f32.mrb[0].mxu0
        %v1422 = vadd.f32 %v1335, %v1421
        %v1423 = vpop.f32.mrb[0].mxu0
        %1424 = vdwg.mxu0
        %1425 = vmatprep.subr.mxu0 0.0
        %v1426 = vand.u32 %v1135, 4294901760
        %1427 = vmatpush1.msra.mxu0 %v1426
        %1428 = vmatprep.subr.mxu0 0.0
        %v1429 = vand.u32 %v1136, 4294901760
        %1430 = vmatpush1.msra.mxu0 %v1429
        %1431 = vmatprep.subr.mxu0 0.0
        %v1432 = vand.u32 %v1137, 4294901760
        %1433 = vmatpush1.msra.mxu0 %v1432
        %1434 = vmatprep.subr.mxu0 0.0
        %v1435 = vand.u32 %v1138, 4294901760
        %1436 = vmatpush1.msra.mxu0 %v1435
        %1437 = vmatprep.subr.mxu0 0.0
        %1438 = vmatpush1.msra.mxu0 0.0
        %1439 = vmatprep.subr.mxu0 0.0
        %1440 = vmatpush1.msra.mxu0 0.0
        %1441 = vmatprep.subr.mxu0 0.0
        %1442 = vmatpush1.msra.mxu0 0.0
        %1443 = vmatprep.subr.mxu0 0.0
        %1444 = vmatpush1.msra.mxu0 0.0
        %1445 = vmatprep.subr.mxu0 0.0
        %1446 = vmatpush1.msra.mxu0 0.0
        %1447 = vmatprep.subr.mxu0 0.0
        %1448 = vmatpush1.msra.mxu0 0.0
        %1449 = vmatprep.subr.mxu0 0.0
        %1450 = vmatpush1.msra.mxu0 0.0
        %1451 = vmatprep.subr.mxu0 0.0
        %1452 = vmatpush1.msra.mxu0 0.0
        %1453 = vmatprep.subr.mxu0 0.0
        %1454 = vmatpush1.msra.mxu0 0.0
        %1455 = vmatprep.subr.mxu0 0.0
        %1456 = vmatpush1.msra.mxu0 0.0
        %1457 = vmatprep.subr.mxu0 0.0
        %1458 = vmatpush1.msra.mxu0 0.0
        %1459 = vmatprep.subr.mxu0 0.0
        %1460 = vmatpush1.msra.mxu0 0.0
        %1461 = vmatprep.subr.mxu0 0.0
        %1462 = vmatpush1.msra.mxu0 0.0
        %1463 = vmatprep.subr.mxu0 0.0
        %1464 = vmatpush1.msra.mxu0 0.0
        %1465 = vmatprep.subr.mxu0 0.0
        %1466 = vmatpush1.msra.mxu0 0.0
        %1467 = vmatprep.subr.mxu0 0.0
        %1468 = vmatpush1.msra.mxu0 0.0
        %1469 = vmatprep.subr.mxu0 0.0
        %1470 = vmatpush1.msra.mxu0 0.0
        %1471 = vmatprep.subr.mxu0 0.0
        %1472 = vmatpush1.msra.mxu0 0.0
        %1473 = vmatprep.subr.mxu0 0.0
        %1474 = vmatpush1.msra.mxu0 0.0
        %1475 = vmatprep.subr.mxu0 0.0
        %1476 = vmatpush1.msra.mxu0 0.0
        %1477 = vmatprep.subr.mxu0 0.0
        %1478 = vmatpush1.msra.mxu0 0.0
        %1479 = vmatprep.subr.mxu0 0.0
        %1480 = vmatpush1.msra.mxu0 0.0
        %1481 = vmatprep.subr.mxu0 0.0
        %1482 = vmatpush1.msra.mxu0 0.0
        %1483 = vmatprep.subr.mxu0 0.0
        %1484 = vmatpush1.msra.mxu0 0.0
        %1485 = vmatprep.subr.mxu0 0.0
        %1486 = vmatpush1.msra.mxu0 0.0
        %1487 = vmatprep.subr.mxu0 0.0
        %1488 = vmatpush1.msra.mxu0 0.0
        %1489 = vmatprep.subr.mxu0 0.0
        %1490 = vmatpush1.msra.mxu0 0.0
        %1491 = vmatprep.subr.mxu0 0.0
        %1492 = vmatpush1.msra.mxu0 0.0
        %1493 = vmatprep.mubr.f32.mxu0 0.0
        %v1494 = vand.u32 %v1147, 4294901760
        %v1495 = vsub.f32 %v1147, %v1494
        %v1496 = vand.u32 %v1495, 4294901760
        %1497 = vmatmul.mubr.f32.gmra.mrb[0].mxu0 %v1496
        %v1498 = vpop.f32.mrb[0].mxu0
        %v1499 = vadd.f32 %v1415, %v1498
        %v1500 = vpop.f32.mrb[0].mxu0
        %1501 = vmatprep.mubr.f32.mxu0 0.0
        %v1502 = vand.u32 %v1150, 4294901760
        %v1503 = vsub.f32 %v1150, %v1502
        %v1504 = vand.u32 %v1503, 4294901760
        %1505 = vmatmul.mubr.f32.gmra.mrb[0].mxu0 %v1504
        %v1506 = vpop.f32.mrb[0].mxu0
        %v1507 = vadd.f32 %v1422, %v1506
        %v1508 = vpop.f32.mrb[0].mxu0
        %1509 = vdwg.mxu0
        %1510 = vmatprep.subr.mxu0 0.0
        %v1511 = vand.u32 %v1135, 4294901760
        %v1512 = vsub.f32 %v1135, %v1511
        %v1513 = vand.u32 %v1512, 4294901760
        %1514 = vmatpush1.msra.mxu0 %v1513
        %1515 = vmatprep.subr.mxu0 0.0
        %v1516 = vand.u32 %v1136, 4294901760
        %v1517 = vsub.f32 %v1136, %v1516
        %v1518 = vand.u32 %v1517, 4294901760
        %1519 = vmatpush1.msra.mxu0 %v1518
        %1520 = vmatprep.subr.mxu0 0.0
        %v1521 = vand.u32 %v1137, 4294901760
        %v1522 = vsub.f32 %v1137, %v1521
        %v1523 = vand.u32 %v1522, 4294901760
        %1524 = vmatpush1.msra.mxu0 %v1523
        %1525 = vmatprep.subr.mxu0 0.0
        %v1526 = vand.u32 %v1138, 4294901760
        %v1527 = vsub.f32 %v1138, %v1526
        %v1528 = vand.u32 %v1527, 4294901760
        %1529 = vmatpush1.msra.mxu0 %v1528
        %1530 = vmatprep.subr.mxu0 0.0
        %1531 = vmatpush1.msra.mxu0 0.0
        %1532 = vmatprep.subr.mxu0 0.0
        %1533 = vmatpush1.msra.mxu0 0.0
        %1534 = vmatprep.subr.mxu0 0.0
        %1535 = vmatpush1.msra.mxu0 0.0
        %1536 = vmatprep.subr.mxu0 0.0
        %1537 = vmatpush1.msra.mxu0 0.0
        %1538 = vmatprep.subr.mxu0 0.0
        %1539 = vmatpush1.msra.mxu0 0.0
        %1540 = vmatprep.subr.mxu0 0.0
        %1541 = vmatpush1.msra.mxu0 0.0
        %1542 = vmatprep.subr.mxu0 0.0
        %1543 = vmatpush1.msra.mxu0 0.0
        %1544 = vmatprep.subr.mxu0 0.0
        %1545 = vmatpush1.msra.mxu0 0.0
        %1546 = vmatprep.subr.mxu0 0.0
        %1547 = vmatpush1.msra.mxu0 0.0
        %1548 = vmatprep.subr.mxu0 0.0
        %1549 = vmatpush1.msra.mxu0 0.0
        %1550 = vmatprep.subr.mxu0 0.0
        %1551 = vmatpush1.msra.mxu0 0.0
        %1552 = vmatprep.subr.mxu0 0.0
        %1553 = vmatpush1.msra.mxu0 0.0
        %1554 = vmatprep.subr.mxu0 0.0
        %1555 = vmatpush1.msra.mxu0 0.0
        %1556 = vmatprep.subr.mxu0 0.0
        %1557 = vmatpush1.msra.mxu0 0.0
        %1558 = vmatprep.subr.mxu0 0.0
        %1559 = vmatpush1.msra.mxu0 0.0
        %1560 = vmatprep.subr.mxu0 0.0
        %1561 = vmatpush1.msra.mxu0 0.0
        %1562 = vmatprep.subr.mxu0 0.0
        %1563 = vmatpush1.msra.mxu0 0.0
        %1564 = vmatprep.subr.mxu0 0.0
        %1565 = vmatpush1.msra.mxu0 0.0
        %1566 = vmatprep.subr.mxu0 0.0
        %1567 = vmatpush1.msra.mxu0 0.0
        %1568 = vmatprep.subr.mxu0 0.0
        %1569 = vmatpush1.msra.mxu0 0.0
        %1570 = vmatprep.subr.mxu0 0.0
        %1571 = vmatpush1.msra.mxu0 0.0
        %1572 = vmatprep.subr.mxu0 0.0
        %1573 = vmatpush1.msra.mxu0 0.0
        %1574 = vmatprep.subr.mxu0 0.0
        %1575 = vmatpush1.msra.mxu0 0.0
        %1576 = vmatprep.subr.mxu0 0.0
        %1577 = vmatpush1.msra.mxu0 0.0
        %1578 = vmatprep.subr.mxu0 0.0
        %1579 = vmatpush1.msra.mxu0 0.0
        %1580 = vmatprep.subr.mxu0 0.0
        %1581 = vmatpush1.msra.mxu0 0.0
        %1582 = vmatprep.subr.mxu0 0.0
        %1583 = vmatpush1.msra.mxu0 0.0
        %1584 = vmatprep.subr.mxu0 0.0
        %1585 = vmatpush1.msra.mxu0 0.0
        %1586 = vmatprep.mubr.f32.mxu0 0.0
        %v1587 = vand.u32 %v1147, 4294901760
        %1588 = vmatmul.mubr.f32.gmra.mrb[0].mxu0 %v1587
        %v1589 = vpop.f32.mrb[0].mxu0
        %v1590 = vadd.f32 %v1499, %v1589
        %v1591 = vpop.f32.mrb[0].mxu0
        %1592 = vmatprep.mubr.f32.mxu0 0.0
        %v1593 = vand.u32 %v1150, 4294901760
        %1594 = vmatmul.mubr.f32.gmra.mrb[0].mxu0 %v1593
        %v1595 = vpop.f32.mrb[0].mxu0
        %v1596 = vadd.f32 %v1507, %v1595
        %v1597 = vpop.f32.mrb[0].mxu0
        %1598 = vdwg.mxu0
        %1599 = vmatprep.subr.mxu0 0.0
        %v1600 = vand.u32 %v1135, 4294901760
        %1601 = vmatpush1.msra.mxu0 %v1600
        %1602 = vmatprep.subr.mxu0 0.0
        %v1603 = vand.u32 %v1136, 4294901760
        %1604 = vmatpush1.msra.mxu0 %v1603
        %1605 = vmatprep.subr.mxu0 0.0
        %v1606 = vand.u32 %v1137, 4294901760
        %1607 = vmatpush1.msra.mxu0 %v1606
        %1608 = vmatprep.subr.mxu0 0.0
        %v1609 = vand.u32 %v1138, 4294901760
        %1610 = vmatpush1.msra.mxu0 %v1609
        %1611 = vmatprep.subr.mxu0 0.0
        %1612 = vmatpush1.msra.mxu0 0.0
        %1613 = vmatprep.subr.mxu0 0.0
        %1614 = vmatpush1.msra.mxu0 0.0
        %1615 = vmatprep.subr.mxu0 0.0
        %1616 = vmatpush1.msra.mxu0 0.0
        %1617 = vmatprep.subr.mxu0 0.0
        %1618 = vmatpush1.msra.mxu0 0.0
        %1619 = vmatprep.subr.mxu0 0.0
        %1620 = vmatpush1.msra.mxu0 0.0
        %1621 = vmatprep.subr.mxu0 0.0
        %1622 = vmatpush1.msra.mxu0 0.0
        %1623 = vmatprep.subr.mxu0 0.0
        %1624 = vmatpush1.msra.mxu0 0.0
        %1625 = vmatprep.subr.mxu0 0.0
        %1626 = vmatpush1.msra.mxu0 0.0
        %1627 = vmatprep.subr.mxu0 0.0
        %1628 = vmatpush1.msra.mxu0 0.0
        %1629 = vmatprep.subr.mxu0 0.0
        %1630 = vmatpush1.msra.mxu0 0.0
        %1631 = vmatprep.subr.mxu0 0.0
        %1632 = vmatpush1.msra.mxu0 0.0
        %1633 = vmatprep.subr.mxu0 0.0
        %1634 = vmatpush1.msra.mxu0 0.0
        %1635 = vmatprep.subr.mxu0 0.0
        %1636 = vmatpush1.msra.mxu0 0.0
        %1637 = vmatprep.subr.mxu0 0.0
        %1638 = vmatpush1.msra.mxu0 0.0
        %1639 = vmatprep.subr.mxu0 0.0
        %1640 = vmatpush1.msra.mxu0 0.0
        %1641 = vmatprep.subr.mxu0 0.0
        %1642 = vmatpush1.msra.mxu0 0.0
        %1643 = vmatprep.subr.mxu0 0.0
        %1644 = vmatpush1.msra.mxu0 0.0
        %1645 = vmatprep.subr.mxu0 0.0
        %1646 = vmatpush1.msra.mxu0 0.0
        %1647 = vmatprep.subr.mxu0 0.0
        %1648 = vmatpush1.msra.mxu0 0.0
        %1649 = vmatprep.subr.mxu0 0.0
        %1650 = vmatpush1.msra.mxu0 0.0
        %1651 = vmatprep.subr.mxu0 0.0
        %1652 = vmatpush1.msra.mxu0 0.0
        %1653 = vmatprep.subr.mxu0 0.0
        %1654 = vmatpush1.msra.mxu0 0.0
        %1655 = vmatprep.subr.mxu0 0.0
        %1656 = vmatpush1.msra.mxu0 0.0
        %1657 = vmatprep.subr.mxu0 0.0
        %1658 = vmatpush1.msra.mxu0 0.0
        %1659 = vmatprep.subr.mxu0 0.0
        %1660 = vmatpush1.msra.mxu0 0.0
        %1661 = vmatprep.subr.mxu0 0.0
        %1662 = vmatpush1.msra.mxu0 0.0
        %1663 = vmatprep.subr.mxu0 0.0
        %1664 = vmatpush1.msra.mxu0 0.0
        %1665 = vmatprep.subr.mxu0 0.0
        %1666 = vmatpush1.msra.mxu0 0.0
        %1667 = vmatprep.mubr.f32.mxu0 0.0
        %v1668 = vand.u32 %v1147, 4294901760
        %1669 = vmatmul.mubr.f32.gmra.mrb[0].mxu0 %v1668
        %v1670 = vpop.f32.mrb[0].mxu0
        %v1671 = vadd.f32 %v1590, %v1670
        %v1672 = vpop.f32.mrb[0].mxu0
        %1673 = vmatprep.mubr.f32.mxu0 0.0
        %v1674 = vand.u32 %v1150, 4294901760
        %1675 = vmatmul.mubr.f32.gmra.mrb[0].mxu0 %v1674
        %v1676 = vpop.f32.mrb[0].mxu0
        %v1677 = vadd.f32 %v1596, %v1676
        %v1678 = vpop.f32.mrb[0].mxu0
        %1679 = vdwg.mxu0
        %v1680 = vmax.f32 %v1671, 0.0
        %v1681 = vmax.f32 %v1677, 0.0
        %v1682 = vld [vmem:[%s8] sm:$0xff]
        %v1683 = vld [vmem:[%s8 + $0x8] sm:$0xff]
        %v1684 = vld [vmem:[%s8 + $0x10] sm:$0xff]
        %v1685 = vld [vmem:[%s8 + $0x18] sm:$0xff]
        %v1686 = vld [vmem:[%s8 + $0x20] sm:$0xff]
        %v1687 = vld [vmem:[%s8 + $0x28] sm:$0xff]
        %v1688 = vld [vmem:[%s8 + $0x30] sm:$0xff]
        %v1689 = vld [vmem:[%s8 + $0x38] sm:$0xff]
        %v1690 = vld [vmem:[%s9] sm:$0x1]
        %v1692 = vlaneseq
        %v1693 = vshrl.u32 %v1692, 7
        %v1694 = vsub.s32 0, %v1693
        %v1695 = vrot.slane %v1690, %v1694
        %vm1697 = vcmask 523264
        %v1699 = vsel %vm1697, %v1680, 0
        %v1702 = vsel %vm1697, %v1681, 0
        %1704 = vmatprep.subr.mxu0 0.0
        %v1705 = vand.u32 %v1682, 4294901760
        %1706 = vmatpush1.msra.mxu0 %v1705
        %1707 = vmatprep.subr.mxu0 0.0
        %v1708 = vand.u32 %v1683, 4294901760
        %1709 = vmatpush1.msra.mxu0 %v1708
        %1710 = vmatprep.subr.mxu0 0.0
        %v1711 = vand.u32 %v1684, 4294901760
        %1712 = vmatpush1.msra.mxu0 %v1711
        %1713 = vmatprep.subr.mxu0 0.0
        %v1714 = vand.u32 %v1685, 4294901760
        %1715 = vmatpush1.msra.mxu0 %v1714
        %1716 = vmatprep.subr.mxu0 0.0
        %v1717 = vand.u32 %v1686, 4294901760
        %1718 = vmatpush1.msra.mxu0 %v1717
        %1719 = vmatprep.subr.mxu0 0.0
        %v1720 = vand.u32 %v1687, 4294901760
        %1721 = vmatpush1.msra.mxu0 %v1720
        %1722 = vmatprep.subr.mxu0 0.0
        %v1723 = vand.u32 %v1688, 4294901760
        %1724 = vmatpush1.msra.mxu0 %v1723
        %1725 = vmatprep.subr.mxu0 0.0
        %v1726 = vand.u32 %v1689, 4294901760
        %1727 = vmatpush1.msra.mxu0 %v1726
        %1728 = vmatprep.subr.mxu0 0.0
        %1729 = vmatpush1.msra.mxu0 0.0
        %1730 = vmatprep.subr.mxu0 0.0
        %1731 = vmatpush1.msra.mxu0 0.0
        %1732 = vmatprep.subr.mxu0 0.0
        %1733 = vmatpush1.msra.mxu0 0.0
        %1734 = vmatprep.subr.mxu0 0.0
        %1735 = vmatpush1.msra.mxu0 0.0
        %1736 = vmatprep.subr.mxu0 0.0
        %1737 = vmatpush1.msra.mxu0 0.0
        %1738 = vmatprep.subr.mxu0 0.0
        %1739 = vmatpush1.msra.mxu0 0.0
        %1740 = vmatprep.subr.mxu0 0.0
        %1741 = vmatpush1.msra.mxu0 0.0
        %1742 = vmatprep.subr.mxu0 0.0
        %1743 = vmatpush1.msra.mxu0 0.0
        %1744 = vmatprep.subr.mxu0 0.0
        %1745 = vmatpush1.msra.mxu0 0.0
        %1746 = vmatprep.subr.mxu0 0.0
        %1747 = vmatpush1.msra.mxu0 0.0
        %1748 = vmatprep.subr.mxu0 0.0
        %1749 = vmatpush1.msra.mxu0 0.0
        %1750 = vmatprep.subr.mxu0 0.0
        %1751 = vmatpush1.msra.mxu0 0.0
        %1752 = vmatprep.subr.mxu0 0.0
        %1753 = vmatpush1.msra.mxu0 0.0
        %1754 = vmatprep.subr.mxu0 0.0
        %1755 = vmatpush1.msra.mxu0 0.0
        %1756 = vmatprep.subr.mxu0 0.0
        %1757 = vmatpush1.msra.mxu0 0.0
        %1758 = vmatprep.subr.mxu0 0.0
        %1759 = vmatpush1.msra.mxu0 0.0
        %1760 = vmatprep.subr.mxu0 0.0
        %1761 = vmatpush1.msra.mxu0 0.0
        %1762 = vmatprep.subr.mxu0 0.0
        %1763 = vmatpush1.msra.mxu0 0.0
        %1764 = vmatprep.subr.mxu0 0.0
        %1765 = vmatpush1.msra.mxu0 0.0
        %1766 = vmatprep.subr.mxu0 0.0
        %1767 = vmatpush1.msra.mxu0 0.0
        %1768 = vmatprep.subr.mxu0 0.0
        %1769 = vmatpush1.msra.mxu0 0.0
        %1770 = vmatprep.subr.mxu0 0.0
        %1771 = vmatpush1.msra.mxu0 0.0
        %1772 = vmatprep.subr.mxu0 0.0
        %1773 = vmatpush1.msra.mxu0 0.0
        %1774 = vmatprep.subr.mxu0 0.0
        %1775 = vmatpush1.msra.mxu0 0.0
        %1776 = vmatprep.mubr.f32.mxu0 0.0
        %v1777 = vand.u32 %v1699, 4294901760
        %v1778 = vsub.f32 %v1699, %v1777
        %v1779 = vand.u32 %v1778, 4294901760
        %v1780 = vsub.f32 %v1778, %v1779
        %v1781 = vand.u32 %v1780, 4294901760
        %1782 = vmatmul.mubr.f32.gmra.mrb[0].mxu0 %v1781
        %v1783 = vpop.f32.mrb[0].mxu0
        %v1784 = vadd.f32 %v1695, %v1783
        %v1785 = vpop.f32.mrb[0].mxu0
        %1786 = vmatprep.mubr.f32.mxu0 0.0
        %v1787 = vand.u32 %v1702, 4294901760
        %v1788 = vsub.f32 %v1702, %v1787
        %v1789 = vand.u32 %v1788, 4294901760
        %v1790 = vsub.f32 %v1788, %v1789
        %v1791 = vand.u32 %v1790, 4294901760
        %1792 = vmatmul.mubr.f32.gmra.mrb[0].mxu0 %v1791
        %v1793 = vpop.f32.mrb[0].mxu0
        %v1794 = vadd.f32 %v1695, %v1793
        %v1795 = vpop.f32.mrb[0].mxu0
        %1796 = vdwg.mxu0
        %1797 = vmatprep.subr.mxu0 0.0
        %v1798 = vand.u32 %v1682, 4294901760
        %v1799 = vsub.f32 %v1682, %v1798
        %v1800 = vand.u32 %v1799, 4294901760
        %v1801 = vsub.f32 %v1799, %v1800
        %v1802 = vand.u32 %v1801, 4294901760
        %1803 = vmatpush1.msra.mxu0 %v1802
        %1804 = vmatprep.subr.mxu0 0.0
        %v1805 = vand.u32 %v1683, 4294901760
        %v1806 = vsub.f32 %v1683, %v1805
        %v1807 = vand.u32 %v1806, 4294901760
        %v1808 = vsub.f32 %v1806, %v1807
        %v1809 = vand.u32 %v1808, 4294901760
        %1810 = vmatpush1.msra.mxu0 %v1809
        %1811 = vmatprep.subr.mxu0 0.0
        %v1812 = vand.u32 %v1684, 4294901760
        %v1813 = vsub.f32 %v1684, %v1812
        %v1814 = vand.u32 %v1813, 4294901760
        %v1815 = vsub.f32 %v1813, %v1814
        %v1816 = vand.u32 %v1815, 4294901760
        %1817 = vmatpush1.msra.mxu0 %v1816
        %1818 = vmatprep.subr.mxu0 0.0
        %v1819 = vand.u32 %v1685, 4294901760
        %v1820 = vsub.f32 %v1685, %v1819
        %v1821 = vand.u32 %v1820, 4294901760
        %v1822 = vsub.f32 %v1820, %v1821
        %v1823 = vand.u32 %v1822, 4294901760
        %1824 = vmatpush1.msra.mxu0 %v1823
        %1825 = vmatprep.subr.mxu0 0.0
        %v1826 = vand.u32 %v1686, 4294901760
        %v1827 = vsub.f32 %v1686, %v1826
        %v1828 = vand.u32 %v1827, 4294901760
        %v1829 = vsub.f32 %v1827, %v1828
        %v1830 = vand.u32 %v1829, 4294901760
        %1831 = vmatpush1.msra.mxu0 %v1830
        %1832 = vmatprep.subr.mxu0 0.0
        %v1833 = vand.u32 %v1687, 4294901760
        %v1834 = vsub.f32 %v1687, %v1833
        %v1835 = vand.u32 %v1834, 4294901760
        %v1836 = vsub.f32 %v1834, %v1835
        %v1837 = vand.u32 %v1836, 4294901760
        %1838 = vmatpush1.msra.mxu0 %v1837
        %1839 = vmatprep.subr.mxu0 0.0
        %v1840 = vand.u32 %v1688, 4294901760
        %v1841 = vsub.f32 %v1688, %v1840
        %v1842 = vand.u32 %v1841, 4294901760
        %v1843 = vsub.f32 %v1841, %v1842
        %v1844 = vand.u32 %v1843, 4294901760
        %1845 = vmatpush1.msra.mxu0 %v1844
        %1846 = vmatprep.subr.mxu0 0.0
        %v1847 = vand.u32 %v1689, 4294901760
        %v1848 = vsub.f32 %v1689, %v1847
        %v1849 = vand.u32 %v1848, 4294901760
        %v1850 = vsub.f32 %v1848, %v1849
        %v1851 = vand.u32 %v1850, 4294901760
        %1852 = vmatpush1.msra.mxu0 %v1851
        %1853 = vmatprep.subr.mxu0 0.0
        %1854 = vmatpush1.msra.mxu0 0.0
        %1855 = vmatprep.subr.mxu0 0.0
        %1856 = vmatpush1.msra.mxu0 0.0
        %1857 = vmatprep.subr.mxu0 0.0
        %1858 = vmatpush1.msra.mxu0 0.0
        %1859 = vmatprep.subr.mxu0 0.0
        %1860 = vmatpush1.msra.mxu0 0.0
        %1861 = vmatprep.subr.mxu0 0.0
        %1862 = vmatpush1.msra.mxu0 0.0
        %1863 = vmatprep.subr.mxu0 0.0
        %1864 = vmatpush1.msra.mxu0 0.0
        %1865 = vmatprep.subr.mxu0 0.0
        %1866 = vmatpush1.msra.mxu0 0.0
        %1867 = vmatprep.subr.mxu0 0.0
        %1868 = vmatpush1.msra.mxu0 0.0
        %1869 = vmatprep.subr.mxu0 0.0
        %1870 = vmatpush1.msra.mxu0 0.0
        %1871 = vmatprep.subr.mxu0 0.0
        %1872 = vmatpush1.msra.mxu0 0.0
        %1873 = vmatprep.subr.mxu0 0.0
        %1874 = vmatpush1.msra.mxu0 0.0
        %1875 = vmatprep.subr.mxu0 0.0
        %1876 = vmatpush1.msra.mxu0 0.0
        %1877 = vmatprep.subr.mxu0 0.0
        %1878 = vmatpush1.msra.mxu0 0.0
        %1879 = vmatprep.subr.mxu0 0.0
        %1880 = vmatpush1.msra.mxu0 0.0
        %1881 = vmatprep.subr.mxu0 0.0
        %1882 = vmatpush1.msra.mxu0 0.0
        %1883 = vmatprep.subr.mxu0 0.0
        %1884 = vmatpush1.msra.mxu0 0.0
        %1885 = vmatprep.subr.mxu0 0.0
        %1886 = vmatpush1.msra.mxu0 0.0
        %1887 = vmatprep.subr.mxu0 0.0
        %1888 = vmatpush1.msra.mxu0 0.0
        %1889 = vmatprep.subr.mxu0 0.0
        %1890 = vmatpush1.msra.mxu0 0.0
        %1891 = vmatprep.subr.mxu0 0.0
        %1892 = vmatpush1.msra.mxu0 0.0
        %1893 = vmatprep.subr.mxu0 0.0
        %1894 = vmatpush1.msra.mxu0 0.0
        %1895 = vmatprep.subr.mxu0 0.0
        %1896 = vmatpush1.msra.mxu0 0.0
        %1897 = vmatprep.subr.mxu0 0.0
        %1898 = vmatpush1.msra.mxu0 0.0
        %1899 = vmatprep.subr.mxu0 0.0
        %1900 = vmatpush1.msra.mxu0 0.0
        %1901 = vmatprep.mubr.f32.mxu0 0.0
        %v1902 = vand.u32 %v1699, 4294901760
        %1903 = vmatmul.mubr.f32.gmra.mrb[0].mxu0 %v1902
        %v1904 = vpop.f32.mrb[0].mxu0
        %v1905 = vadd.f32 %v1784, %v1904
        %v1906 = vpop.f32.mrb[0].mxu0
        %1907 = vmatprep.mubr.f32.mxu0 0.0
        %v1908 = vand.u32 %v1702, 4294901760
        %1909 = vmatmul.mubr.f32.gmra.mrb[0].mxu0 %v1908
        %v1910 = vpop.f32.mrb[0].mxu0
        %v1911 = vadd.f32 %v1794, %v1910
        %v1912 = vpop.f32.mrb[0].mxu0
        %1913 = vdwg.mxu0
        %1914 = vmatprep.subr.mxu0 0.0
        %v1915 = vand.u32 %v1682, 4294901760
        %v1916 = vsub.f32 %v1682, %v1915
        %1917 = vmatpush1.msra.mxu0 %v1916
        %1918 = vmatprep.subr.mxu0 0.0
        %v1919 = vand.u32 %v1683, 4294901760
        %v1920 = vsub.f32 %v1683, %v1919
        %1921 = vmatpush1.msra.mxu0 %v1920
        %1922 = vmatprep.subr.mxu0 0.0
        %v1923 = vand.u32 %v1684, 4294901760
        %v1924 = vsub.f32 %v1684, %v1923
        %1925 = vmatpush1.msra.mxu0 %v1924
        %1926 = vmatprep.subr.mxu0 0.0
        %v1927 = vand.u32 %v1685, 4294901760
        %v1928 = vsub.f32 %v1685, %v1927
        %1929 = vmatpush1.msra.mxu0 %v1928
        %1930 = vmatprep.subr.mxu0 0.0
        %v1931 = vand.u32 %v1686, 4294901760
        %v1932 = vsub.f32 %v1686, %v1931
        %1933 = vmatpush1.msra.mxu0 %v1932
        %1934 = vmatprep.subr.mxu0 0.0
        %v1935 = vand.u32 %v1687, 4294901760
        %v1936 = vsub.f32 %v1687, %v1935
        %1937 = vmatpush1.msra.mxu0 %v1936
        %1938 = vmatprep.subr.mxu0 0.0
        %v1939 = vand.u32 %v1688, 4294901760
        %v1940 = vsub.f32 %v1688, %v1939
        %1941 = vmatpush1.msra.mxu0 %v1940
        %1942 = vmatprep.subr.mxu0 0.0
        %v1943 = vand.u32 %v1689, 4294901760
        %v1944 = vsub.f32 %v1689, %v1943
        %1945 = vmatpush1.msra.mxu0 %v1944
        %1946 = vmatprep.subr.mxu0 0.0
        %1947 = vmatpush1.msra.mxu0 0.0
        %1948 = vmatprep.subr.mxu0 0.0
        %1949 = vmatpush1.msra.mxu0 0.0
        %1950 = vmatprep.subr.mxu0 0.0
        %1951 = vmatpush1.msra.mxu0 0.0
        %1952 = vmatprep.subr.mxu0 0.0
        %1953 = vmatpush1.msra.mxu0 0.0
        %1954 = vmatprep.subr.mxu0 0.0
        %1955 = vmatpush1.msra.mxu0 0.0
        %1956 = vmatprep.subr.mxu0 0.0
        %1957 = vmatpush1.msra.mxu0 0.0
        %1958 = vmatprep.subr.mxu0 0.0
        %1959 = vmatpush1.msra.mxu0 0.0
        %1960 = vmatprep.subr.mxu0 0.0
        %1961 = vmatpush1.msra.mxu0 0.0
        %1962 = vmatprep.subr.mxu0 0.0
        %1963 = vmatpush1.msra.mxu0 0.0
        %1964 = vmatprep.subr.mxu0 0.0
        %1965 = vmatpush1.msra.mxu0 0.0
        %1966 = vmatprep.subr.mxu0 0.0
        %1967 = vmatpush1.msra.mxu0 0.0
        %1968 = vmatprep.subr.mxu0 0.0
        %1969 = vmatpush1.msra.mxu0 0.0
        %1970 = vmatprep.subr.mxu0 0.0
        %1971 = vmatpush1.msra.mxu0 0.0
        %1972 = vmatprep.subr.mxu0 0.0
        %1973 = vmatpush1.msra.mxu0 0.0
        %1974 = vmatprep.subr.mxu0 0.0
        %1975 = vmatpush1.msra.mxu0 0.0
        %1976 = vmatprep.subr.mxu0 0.0
        %1977 = vmatpush1.msra.mxu0 0.0
        %1978 = vmatprep.subr.mxu0 0.0
        %1979 = vmatpush1.msra.mxu0 0.0
        %1980 = vmatprep.subr.mxu0 0.0
        %1981 = vmatpush1.msra.mxu0 0.0
        %1982 = vmatprep.subr.mxu0 0.0
        %1983 = vmatpush1.msra.mxu0 0.0
        %1984 = vmatprep.subr.mxu0 0.0
        %1985 = vmatpush1.msra.mxu0 0.0
        %1986 = vmatprep.subr.mxu0 0.0
        %1987 = vmatpush1.msra.mxu0 0.0
        %1988 = vmatprep.subr.mxu0 0.0
        %1989 = vmatpush1.msra.mxu0 0.0
        %1990 = vmatprep.subr.mxu0 0.0
        %1991 = vmatpush1.msra.mxu0 0.0
        %1992 = vmatprep.subr.mxu0 0.0
        %1993 = vmatpush1.msra.mxu0 0.0
        %1994 = vmatprep.mubr.f32.mxu0 0.0
        %v1995 = vand.u32 %v1699, 4294901760
        %v1996 = vsub.f32 %v1699, %v1995
        %1997 = vmatmul.mubr.f32.gmra.mrb[0].mxu0 %v1996
        %v1998 = vpop.f32.mrb[0].mxu0
        %v1999 = vadd.f32 %v1905, %v1998
        %v2000 = vpop.f32.mrb[0].mxu0
        %2001 = vmatprep.mubr.f32.mxu0 0.0
        %v2002 = vand.u32 %v1702, 4294901760
        %v2003 = vsub.f32 %v1702, %v2002
        %2004 = vmatmul.mubr.f32.gmra.mrb[0].mxu0 %v2003
        %v2005 = vpop.f32.mrb[0].mxu0
        %v2006 = vadd.f32 %v1911, %v2005
        %v2007 = vpop.f32.mrb[0].mxu0
        %2008 = vdwg.mxu0
        %2009 = vmatprep.subr.mxu0 0.0
        %v2010 = vand.u32 %v1682, 4294901760
        %2011 = vmatpush1.msra.mxu0 %v2010
        %2012 = vmatprep.subr.mxu0 0.0
        %v2013 = vand.u32 %v1683, 4294901760
        %2014 = vmatpush1.msra.mxu0 %v2013
        %2015 = vmatprep.subr.mxu0 0.0
        %v2016 = vand.u32 %v1684, 4294901760
        %2017 = vmatpush1.msra.mxu0 %v2016
        %2018 = vmatprep.subr.mxu0 0.0
        %v2019 = vand.u32 %v1685, 4294901760
        %2020 = vmatpush1.msra.mxu0 %v2019
        %2021 = vmatprep.subr.mxu0 0.0
        %v2022 = vand.u32 %v1686, 4294901760
        %2023 = vmatpush1.msra.mxu0 %v2022
        %2024 = vmatprep.subr.mxu0 0.0
        %v2025 = vand.u32 %v1687, 4294901760
        %2026 = vmatpush1.msra.mxu0 %v2025
        %2027 = vmatprep.subr.mxu0 0.0
        %v2028 = vand.u32 %v1688, 4294901760
        %2029 = vmatpush1.msra.mxu0 %v2028
        %2030 = vmatprep.subr.mxu0 0.0
        %v2031 = vand.u32 %v1689, 4294901760
        %2032 = vmatpush1.msra.mxu0 %v2031
        %2033 = vmatprep.subr.mxu0 0.0
        %2034 = vmatpush1.msra.mxu0 0.0
        %2035 = vmatprep.subr.mxu0 0.0
        %2036 = vmatpush1.msra.mxu0 0.0
        %2037 = vmatprep.subr.mxu0 0.0
        %2038 = vmatpush1.msra.mxu0 0.0
        %2039 = vmatprep.subr.mxu0 0.0
        %2040 = vmatpush1.msra.mxu0 0.0
        %2041 = vmatprep.subr.mxu0 0.0
        %2042 = vmatpush1.msra.mxu0 0.0
        %2043 = vmatprep.subr.mxu0 0.0
        %2044 = vmatpush1.msra.mxu0 0.0
        %2045 = vmatprep.subr.mxu0 0.0
        %2046 = vmatpush1.msra.mxu0 0.0
        %2047 = vmatprep.subr.mxu0 0.0
        %2048 = vmatpush1.msra.mxu0 0.0
        %2049 = vmatprep.subr.mxu0 0.0
        %2050 = vmatpush1.msra.mxu0 0.0
        %2051 = vmatprep.subr.mxu0 0.0
        %2052 = vmatpush1.msra.mxu0 0.0
        %2053 = vmatprep.subr.mxu0 0.0
        %2054 = vmatpush1.msra.mxu0 0.0
        %2055 = vmatprep.subr.mxu0 0.0
        %2056 = vmatpush1.msra.mxu0 0.0
        %2057 = vmatprep.subr.mxu0 0.0
        %2058 = vmatpush1.msra.mxu0 0.0
        %2059 = vmatprep.subr.mxu0 0.0
        %2060 = vmatpush1.msra.mxu0 0.0
        %2061 = vmatprep.subr.mxu0 0.0
        %2062 = vmatpush1.msra.mxu0 0.0
        %2063 = vmatprep.subr.mxu0 0.0
        %2064 = vmatpush1.msra.mxu0 0.0
        %2065 = vmatprep.subr.mxu0 0.0
        %2066 = vmatpush1.msra.mxu0 0.0
        %2067 = vmatprep.subr.mxu0 0.0
        %2068 = vmatpush1.msra.mxu0 0.0
        %2069 = vmatprep.subr.mxu0 0.0
        %2070 = vmatpush1.msra.mxu0 0.0
        %2071 = vmatprep.subr.mxu0 0.0
        %2072 = vmatpush1.msra.mxu0 0.0
        %2073 = vmatprep.subr.mxu0 0.0
        %2074 = vmatpush1.msra.mxu0 0.0
        %2075 = vmatprep.subr.mxu0 0.0
        %2076 = vmatpush1.msra.mxu0 0.0
        %2077 = vmatprep.subr.mxu0 0.0
        %2078 = vmatpush1.msra.mxu0 0.0
        %2079 = vmatprep.subr.mxu0 0.0
        %2080 = vmatpush1.msra.mxu0 0.0
        %2081 = vmatprep.mubr.f32.mxu0 0.0
        %v2082 = vand.u32 %v1699, 4294901760
        %v2083 = vsub.f32 %v1699, %v2082
        %v2084 = vand.u32 %v2083, 4294901760
        %2085 = vmatmul.mubr.f32.gmra.mrb[0].mxu0 %v2084
        %v2086 = vpop.f32.mrb[0].mxu0
        %v2087 = vadd.f32 %v1999, %v2086
        %v2088 = vpop.f32.mrb[0].mxu0
        %2089 = vmatprep.mubr.f32.mxu0 0.0
        %v2090 = vand.u32 %v1702, 4294901760
        %v2091 = vsub.f32 %v1702, %v2090
        %v2092 = vand.u32 %v2091, 4294901760
        %2093 = vmatmul.mubr.f32.gmra.mrb[0].mxu0 %v2092
        %v2094 = vpop.f32.mrb[0].mxu0
        %v2095 = vadd.f32 %v2006, %v2094
        %v2096 = vpop.f32.mrb[0].mxu0
        %2097 = vdwg.mxu0
        %2098 = vmatprep.subr.mxu0 0.0
        %v2099 = vand.u32 %v1682, 4294901760
        %v2100 = vsub.f32 %v1682, %v2099
        %v2101 = vand.u32 %v2100, 4294901760
        %2102 = vmatpush1.msra.mxu0 %v2101
        %2103 = vmatprep.subr.mxu0 0.0
        %v2104 = vand.u32 %v1683, 4294901760
        %v2105 = vsub.f32 %v1683, %v2104
        %v2106 = vand.u32 %v2105, 4294901760
        %2107 = vmatpush1.msra.mxu0 %v2106
        %2108 = vmatprep.subr.mxu0 0.0
        %v2109 = vand.u32 %v1684, 4294901760
        %v2110 = vsub.f32 %v1684, %v2109
        %v2111 = vand.u32 %v2110, 4294901760
        %2112 = vmatpush1.msra.mxu0 %v2111
        %2113 = vmatprep.subr.mxu0 0.0
        %v2114 = vand.u32 %v1685, 4294901760
        %v2115 = vsub.f32 %v1685, %v2114
        %v2116 = vand.u32 %v2115, 4294901760
        %2117 = vmatpush1.msra.mxu0 %v2116
        %2118 = vmatprep.subr.mxu0 0.0
        %v2119 = vand.u32 %v1686, 4294901760
        %v2120 = vsub.f32 %v1686, %v2119
        %v2121 = vand.u32 %v2120, 4294901760
        %2122 = vmatpush1.msra.mxu0 %v2121
        %2123 = vmatprep.subr.mxu0 0.0
        %v2124 = vand.u32 %v1687, 4294901760
        %v2125 = vsub.f32 %v1687, %v2124
        %v2126 = vand.u32 %v2125, 4294901760
        %2127 = vmatpush1.msra.mxu0 %v2126
        %2128 = vmatprep.subr.mxu0 0.0
        %v2129 = vand.u32 %v1688, 4294901760
        %v2130 = vsub.f32 %v1688, %v2129
        %v2131 = vand.u32 %v2130, 4294901760
        %2132 = vmatpush1.msra.mxu0 %v2131
        %2133 = vmatprep.subr.mxu0 0.0
        %v2134 = vand.u32 %v1689, 4294901760
        %v2135 = vsub.f32 %v1689, %v2134
        %v2136 = vand.u32 %v2135, 4294901760
        %2137 = vmatpush1.msra.mxu0 %v2136
        %2138 = vmatprep.subr.mxu0 0.0
        %2139 = vmatpush1.msra.mxu0 0.0
        %2140 = vmatprep.subr.mxu0 0.0
        %2141 = vmatpush1.msra.mxu0 0.0
        %2142 = vmatprep.subr.mxu0 0.0
        %2143 = vmatpush1.msra.mxu0 0.0
        %2144 = vmatprep.subr.mxu0 0.0
        %2145 = vmatpush1.msra.mxu0 0.0
        %2146 = vmatprep.subr.mxu0 0.0
        %2147 = vmatpush1.msra.mxu0 0.0
        %2148 = vmatprep.subr.mxu0 0.0
        %2149 = vmatpush1.msra.mxu0 0.0
        %2150 = vmatprep.subr.mxu0 0.0
        %2151 = vmatpush1.msra.mxu0 0.0
        %2152 = vmatprep.subr.mxu0 0.0
        %2153 = vmatpush1.msra.mxu0 0.0
        %2154 = vmatprep.subr.mxu0 0.0
        %2155 = vmatpush1.msra.mxu0 0.0
        %2156 = vmatprep.subr.mxu0 0.0
        %2157 = vmatpush1.msra.mxu0 0.0
        %2158 = vmatprep.subr.mxu0 0.0
        %2159 = vmatpush1.msra.mxu0 0.0
        %2160 = vmatprep.subr.mxu0 0.0
        %2161 = vmatpush1.msra.mxu0 0.0
        %2162 = vmatprep.subr.mxu0 0.0
        %2163 = vmatpush1.msra.mxu0 0.0
        %2164 = vmatprep.subr.mxu0 0.0
        %2165 = vmatpush1.msra.mxu0 0.0
        %2166 = vmatprep.subr.mxu0 0.0
        %2167 = vmatpush1.msra.mxu0 0.0
        %2168 = vmatprep.subr.mxu0 0.0
        %2169 = vmatpush1.msra.mxu0 0.0
        %2170 = vmatprep.subr.mxu0 0.0
        %2171 = vmatpush1.msra.mxu0 0.0
        %2172 = vmatprep.subr.mxu0 0.0
        %2173 = vmatpush1.msra.mxu0 0.0
        %2174 = vmatprep.subr.mxu0 0.0
        %2175 = vmatpush1.msra.mxu0 0.0
        %2176 = vmatprep.subr.mxu0 0.0
        %2177 = vmatpush1.msra.mxu0 0.0
        %2178 = vmatprep.subr.mxu0 0.0
        %2179 = vmatpush1.msra.mxu0 0.0
        %2180 = vmatprep.subr.mxu0 0.0
        %2181 = vmatpush1.msra.mxu0 0.0
        %2182 = vmatprep.subr.mxu0 0.0
        %2183 = vmatpush1.msra.mxu0 0.0
        %2184 = vmatprep.subr.mxu0 0.0
        %2185 = vmatpush1.msra.mxu0 0.0
        %2186 = vmatprep.mubr.f32.mxu0 0.0
        %v2187 = vand.u32 %v1699, 4294901760
        %2188 = vmatmul.mubr.f32.gmra.mrb[0].mxu0 %v2187
        %v2189 = vpop.f32.mrb[0].mxu0
        %v2190 = vadd.f32 %v2087, %v2189
        %v2191 = vpop.f32.mrb[0].mxu0
        %2192 = vmatprep.mubr.f32.mxu0 0.0
        %v2193 = vand.u32 %v1702, 4294901760
        %2194 = vmatmul.mubr.f32.gmra.mrb[0].mxu0 %v2193
        %v2195 = vpop.f32.mrb[0].mxu0
        %v2196 = vadd.f32 %v2095, %v2195
        %v2197 = vpop.f32.mrb[0].mxu0
        %2198 = vdwg.mxu0
        %2199 = vmatprep.subr.mxu0 0.0
        %v2200 = vand.u32 %v1682, 4294901760
        %2201 = vmatpush1.msra.mxu0 %v2200
        %2202 = vmatprep.subr.mxu0 0.0
        %v2203 = vand.u32 %v1683, 4294901760
        %2204 = vmatpush1.msra.mxu0 %v2203
        %2205 = vmatprep.subr.mxu0 0.0
        %v2206 = vand.u32 %v1684, 4294901760
        %2207 = vmatpush1.msra.mxu0 %v2206
        %2208 = vmatprep.subr.mxu0 0.0
        %v2209 = vand.u32 %v1685, 4294901760
        %2210 = vmatpush1.msra.mxu0 %v2209
        %2211 = vmatprep.subr.mxu0 0.0
        %v2212 = vand.u32 %v1686, 4294901760
        %2213 = vmatpush1.msra.mxu0 %v2212
        %2214 = vmatprep.subr.mxu0 0.0
        %v2215 = vand.u32 %v1687, 4294901760
        %2216 = vmatpush1.msra.mxu0 %v2215
        %2217 = vmatprep.subr.mxu0 0.0
        %v2218 = vand.u32 %v1688, 4294901760
        %2219 = vmatpush1.msra.mxu0 %v2218
        %2220 = vmatprep.subr.mxu0 0.0
        %v2221 = vand.u32 %v1689, 4294901760
        %2222 = vmatpush1.msra.mxu0 %v2221
        %2223 = vmatprep.subr.mxu0 0.0
        %2224 = vmatpush1.msra.mxu0 0.0
        %2225 = vmatprep.subr.mxu0 0.0
        %2226 = vmatpush1.msra.mxu0 0.0
        %2227 = vmatprep.subr.mxu0 0.0
        %2228 = vmatpush1.msra.mxu0 0.0
        %2229 = vmatprep.subr.mxu0 0.0
        %2230 = vmatpush1.msra.mxu0 0.0
        %2231 = vmatprep.subr.mxu0 0.0
        %2232 = vmatpush1.msra.mxu0 0.0
        %2233 = vmatprep.subr.mxu0 0.0
        %2234 = vmatpush1.msra.mxu0 0.0
        %2235 = vmatprep.subr.mxu0 0.0
        %2236 = vmatpush1.msra.mxu0 0.0
        %2237 = vmatprep.subr.mxu0 0.0
        %2238 = vmatpush1.msra.mxu0 0.0
        %2239 = vmatprep.subr.mxu0 0.0
        %2240 = vmatpush1.msra.mxu0 0.0
        %2241 = vmatprep.subr.mxu0 0.0
        %2242 = vmatpush1.msra.mxu0 0.0
        %2243 = vmatprep.subr.mxu0 0.0
        %2244 = vmatpush1.msra.mxu0 0.0
        %2245 = vmatprep.subr.mxu0 0.0
        %2246 = vmatpush1.msra.mxu0 0.0
        %2247 = vmatprep.subr.mxu0 0.0
        %2248 = vmatpush1.msra.mxu0 0.0
        %2249 = vmatprep.subr.mxu0 0.0
        %2250 = vmatpush1.msra.mxu0 0.0
        %2251 = vmatprep.subr.mxu0 0.0
        %2252 = vmatpush1.msra.mxu0 0.0
        %2253 = vmatprep.subr.mxu0 0.0
        %2254 = vmatpush1.msra.mxu0 0.0
        %2255 = vmatprep.subr.mxu0 0.0
        %2256 = vmatpush1.msra.mxu0 0.0
        %2257 = vmatprep.subr.mxu0 0.0
        %2258 = vmatpush1.msra.mxu0 0.0
        %2259 = vmatprep.subr.mxu0 0.0
        %2260 = vmatpush1.msra.mxu0 0.0
        %2261 = vmatprep.subr.mxu0 0.0
        %2262 = vmatpush1.msra.mxu0 0.0
        %2263 = vmatprep.subr.mxu0 0.0
        %2264 = vmatpush1.msra.mxu0 0.0
        %2265 = vmatprep.subr.mxu0 0.0
        %2266 = vmatpush1.msra.mxu0 0.0
        %2267 = vmatprep.subr.mxu0 0.0
        %2268 = vmatpush1.msra.mxu0 0.0
        %2269 = vmatprep.subr.mxu0 0.0
        %2270 = vmatpush1.msra.mxu0 0.0
        %2271 = vmatprep.mubr.f32.mxu0 0.0
        %v2272 = vand.u32 %v1699, 4294901760
        %2273 = vmatmul.mubr.f32.gmra.mrb[0].mxu0 %v2272
        %v2274 = vpop.f32.mrb[0].mxu0
        %v2275 = vadd.f32 %v2190, %v2274
        %v2276 = vpop.f32.mrb[0].mxu0
        %2277 = vmatprep.mubr.f32.mxu0 0.0
        %v2278 = vand.u32 %v1702, 4294901760
        %2279 = vmatmul.mubr.f32.gmra.mrb[0].mxu0 %v2278
        %v2280 = vpop.f32.mrb[0].mxu0
        %v2281 = vadd.f32 %v2196, %v2280
        %v2282 = vpop.f32.mrb[0].mxu0
        %2283 = vdwg.mxu0
        %v2284 = vmax.f32 %v2275, 0.0
        %v2285 = vmax.f32 %v2281, 0.0
        %v2286 = vsel %vm555, %v2284, -inf
        %2287 = vmax.xlane.f32.xlu0 %v2286
        %v2288 = vpop.xlane.xlu0 %2287
        %v2289 = vsel %vm555, %v2285, -inf
        %2290 = vmax.xlane.f32.xlu0 %v2289
        %v2291 = vpop.xlane.xlu0 %2290
        %v2292 = vld [vmem:[%s12] sm:$0xf]
        %vm2293 = vcmask 130048
        %v2295 = vsel %vm2293, %v2292, 0
        %2297 = vmatprep.subr.mxu0 0.0
        %v2298 = vand.u32 %v2288, 4294901760
        %2299 = vmatpush1.msra.mxu0 %v2298
        %2300 = vmatprep.subr.mxu0 0.0
        %v2301 = vand.u32 %v2291, 4294901760
        %2302 = vmatpush1.msra.mxu0 %v2301
        %2303 = vmatprep.subr.mxu0 0.0
        %2304 = vmatpush1.msra.mxu0 0.0
        %2305 = vmatprep.subr.mxu0 0.0
        %2306 = vmatpush1.msra.mxu0 0.0
        %2307 = vmatprep.subr.mxu0 0.0
        %2308 = vmatpush1.msra.mxu0 0.0
        %2309 = vmatprep.subr.mxu0 0.0
        %2310 = vmatpush1.msra.mxu0 0.0
        %2311 = vmatprep.subr.mxu0 0.0
        %2312 = vmatpush1.msra.mxu0 0.0
        %2313 = vmatprep.subr.mxu0 0.0
        %2314 = vmatpush1.msra.mxu0 0.0
        %2315 = vmatprep.subr.mxu0 0.0
        %2316 = vmatpush1.msra.mxu0 0.0
        %2317 = vmatprep.subr.mxu0 0.0
        %2318 = vmatpush1.msra.mxu0 0.0
        %2319 = vmatprep.subr.mxu0 0.0
        %2320 = vmatpush1.msra.mxu0 0.0
        %2321 = vmatprep.subr.mxu0 0.0
        %2322 = vmatpush1.msra.mxu0 0.0
        %2323 = vmatprep.subr.mxu0 0.0
        %2324 = vmatpush1.msra.mxu0 0.0
        %2325 = vmatprep.subr.mxu0 0.0
        %2326 = vmatpush1.msra.mxu0 0.0
        %2327 = vmatprep.subr.mxu0 0.0
        %2328 = vmatpush1.msra.mxu0 0.0
        %2329 = vmatprep.subr.mxu0 0.0
        %2330 = vmatpush1.msra.mxu0 0.0
        %2331 = vmatprep.subr.mxu0 0.0
        %2332 = vmatpush1.msra.mxu0 0.0
        %2333 = vmatprep.subr.mxu0 0.0
        %2334 = vmatpush1.msra.mxu0 0.0
        %2335 = vmatprep.subr.mxu0 0.0
        %2336 = vmatpush1.msra.mxu0 0.0
        %2337 = vmatprep.subr.mxu0 0.0
        %2338 = vmatpush1.msra.mxu0 0.0
        %2339 = vmatprep.subr.mxu0 0.0
        %2340 = vmatpush1.msra.mxu0 0.0
        %2341 = vmatprep.subr.mxu0 0.0
        %2342 = vmatpush1.msra.mxu0 0.0
        %2343 = vmatprep.subr.mxu0 0.0
        %2344 = vmatpush1.msra.mxu0 0.0
        %2345 = vmatprep.subr.mxu0 0.0
        %2346 = vmatpush1.msra.mxu0 0.0
        %2347 = vmatprep.subr.mxu0 0.0
        %2348 = vmatpush1.msra.mxu0 0.0
        %2349 = vmatprep.subr.mxu0 0.0
        %2350 = vmatpush1.msra.mxu0 0.0
        %2351 = vmatprep.subr.mxu0 0.0
        %2352 = vmatpush1.msra.mxu0 0.0
        %2353 = vmatprep.subr.mxu0 0.0
        %2354 = vmatpush1.msra.mxu0 0.0
        %2355 = vmatprep.subr.mxu0 0.0
        %2356 = vmatpush1.msra.mxu0 0.0
        %2357 = vmatprep.subr.mxu0 0.0
        %2358 = vmatpush1.msra.mxu0 0.0
        %2359 = vmatprep.subr.mxu0 0.0
        %2360 = vmatpush1.msra.mxu0 0.0
        %2361 = vmatprep.subr.mxu0 0.0
        %2362 = vmatpush1.msra.mxu0 0.0
        %2363 = vmatprep.mubr.f32.mxu0 0.0
        %v2364 = vand.u32 %v2295, 4294901760
        %v2365 = vsub.f32 %v2295, %v2364
        %v2366 = vand.u32 %v2365, 4294901760
        %v2367 = vsub.f32 %v2365, %v2366
        %v2368 = vand.u32 %v2367, 4294901760
        %2369 = vmatmul.mubr.f32.gmra.mrb[0].mxu0 %v2368
        %v2370 = vpop.f32.mrb[0].mxu0
        %v2371 = vadd.f32 0.0, %v2370
        %v2372 = vpop.f32.mrb[0].mxu0
        %2373 = vdwg.mxu0
        %2374 = vmatprep.subr.mxu0 0.0
        %v2375 = vand.u32 %v2288, 4294901760
        %v2376 = vsub.f32 %v2288, %v2375
        %v2377 = vand.u32 %v2376, 4294901760
        %v2378 = vsub.f32 %v2376, %v2377
        %v2379 = vand.u32 %v2378, 4294901760
        %2380 = vmatpush1.msra.mxu0 %v2379
        %2381 = vmatprep.subr.mxu0 0.0
        %v2382 = vand.u32 %v2291, 4294901760
        %v2383 = vsub.f32 %v2291, %v2382
        %v2384 = vand.u32 %v2383, 4294901760
        %v2385 = vsub.f32 %v2383, %v2384
        %v2386 = vand.u32 %v2385, 4294901760
        %2387 = vmatpush1.msra.mxu0 %v2386
        %2388 = vmatprep.subr.mxu0 0.0
        %2389 = vmatpush1.msra.mxu0 0.0
        %2390 = vmatprep.subr.mxu0 0.0
        %2391 = vmatpush1.msra.mxu0 0.0
        %2392 = vmatprep.subr.mxu0 0.0
        %2393 = vmatpush1.msra.mxu0 0.0
        %2394 = vmatprep.subr.mxu0 0.0
        %2395 = vmatpush1.msra.mxu0 0.0
        %2396 = vmatprep.subr.mxu0 0.0
        %2397 = vmatpush1.msra.mxu0 0.0
        %2398 = vmatprep.subr.mxu0 0.0
        %2399 = vmatpush1.msra.mxu0 0.0
        %2400 = vmatprep.subr.mxu0 0.0
        %2401 = vmatpush1.msra.mxu0 0.0
        %2402 = vmatprep.subr.mxu0 0.0
        %2403 = vmatpush1.msra.mxu0 0.0
        %2404 = vmatprep.subr.mxu0 0.0
        %2405 = vmatpush1.msra.mxu0 0.0
        %2406 = vmatprep.subr.mxu0 0.0
        %2407 = vmatpush1.msra.mxu0 0.0
        %2408 = vmatprep.subr.mxu0 0.0
        %2409 = vmatpush1.msra.mxu0 0.0
        %2410 = vmatprep.subr.mxu0 0.0
        %2411 = vmatpush1.msra.mxu0 0.0
        %2412 = vmatprep.subr.mxu0 0.0
        %2413 = vmatpush1.msra.mxu0 0.0
        %2414 = vmatprep.subr.mxu0 0.0
        %2415 = vmatpush1.msra.mxu0 0.0
        %2416 = vmatprep.subr.mxu0 0.0
        %2417 = vmatpush1.msra.mxu0 0.0
        %2418 = vmatprep.subr.mxu0 0.0
        %2419 = vmatpush1.msra.mxu0 0.0
        %2420 = vmatprep.subr.mxu0 0.0
        %2421 = vmatpush1.msra.mxu0 0.0
        %2422 = vmatprep.subr.mxu0 0.0
        %2423 = vmatpush1.msra.mxu0 0.0
        %2424 = vmatprep.subr.mxu0 0.0
        %2425 = vmatpush1.msra.mxu0 0.0
        %2426 = vmatprep.subr.mxu0 0.0
        %2427 = vmatpush1.msra.mxu0 0.0
        %2428 = vmatprep.subr.mxu0 0.0
        %2429 = vmatpush1.msra.mxu0 0.0
        %2430 = vmatprep.subr.mxu0 0.0
        %2431 = vmatpush1.msra.mxu0 0.0
        %2432 = vmatprep.subr.mxu0 0.0
        %2433 = vmatpush1.msra.mxu0 0.0
        %2434 = vmatprep.subr.mxu0 0.0
        %2435 = vmatpush1.msra.mxu0 0.0
        %2436 = vmatprep.subr.mxu0 0.0
        %2437 = vmatpush1.msra.mxu0 0.0
        %2438 = vmatprep.subr.mxu0 0.0
        %2439 = vmatpush1.msra.mxu0 0.0
        %2440 = vmatprep.subr.mxu0 0.0
        %2441 = vmatpush1.msra.mxu0 0.0
        %2442 = vmatprep.subr.mxu0 0.0
        %2443 = vmatpush1.msra.mxu0 0.0
        %2444 = vmatprep.subr.mxu0 0.0
        %2445 = vmatpush1.msra.mxu0 0.0
        %2446 = vmatprep.subr.mxu0 0.0
        %2447 = vmatpush1.msra.mxu0 0.0
        %2448 = vmatprep.mubr.f32.mxu0 0.0
        %v2449 = vand.u32 %v2295, 4294901760
        %2450 = vmatmul.mubr.f32.gmra.mrb[0].mxu0 %v2449
        %v2451 = vpop.f32.mrb[0].mxu0
        %v2452 = vadd.f32 %v2371, %v2451
        %v2453 = vpop.f32.mrb[0].mxu0
        %2454 = vdwg.mxu0
        %2455 = vmatprep.subr.mxu0 0.0
        %v2456 = vand.u32 %v2288, 4294901760
        %v2457 = vsub.f32 %v2288, %v2456
        %2458 = vmatpush1.msra.mxu0 %v2457
        %2459 = vmatprep.subr.mxu0 0.0
        %v2460 = vand.u32 %v2291, 4294901760
        %v2461 = vsub.f32 %v2291, %v2460
        %2462 = vmatpush1.msra.mxu0 %v2461
        %2463 = vmatprep.subr.mxu0 0.0
        %2464 = vmatpush1.msra.mxu0 0.0
        %2465 = vmatprep.subr.mxu0 0.0
        %2466 = vmatpush1.msra.mxu0 0.0
        %2467 = vmatprep.subr.mxu0 0.0
        %2468 = vmatpush1.msra.mxu0 0.0
        %2469 = vmatprep.subr.mxu0 0.0
        %2470 = vmatpush1.msra.mxu0 0.0
        %2471 = vmatprep.subr.mxu0 0.0
        %2472 = vmatpush1.msra.mxu0 0.0
        %2473 = vmatprep.subr.mxu0 0.0
        %2474 = vmatpush1.msra.mxu0 0.0
        %2475 = vmatprep.subr.mxu0 0.0
        %2476 = vmatpush1.msra.mxu0 0.0
        %2477 = vmatprep.subr.mxu0 0.0
        %2478 = vmatpush1.msra.mxu0 0.0
        %2479 = vmatprep.subr.mxu0 0.0
        %2480 = vmatpush1.msra.mxu0 0.0
        %2481 = vmatprep.subr.mxu0 0.0
        %2482 = vmatpush1.msra.mxu0 0.0
        %2483 = vmatprep.subr.mxu0 0.0
        %2484 = vmatpush1.msra.mxu0 0.0
        %2485 = vmatprep.subr.mxu0 0.0
        %2486 = vmatpush1.msra.mxu0 0.0
        %2487 = vmatprep.subr.mxu0 0.0
        %2488 = vmatpush1.msra.mxu0 0.0
        %2489 = vmatprep.subr.mxu0 0.0
        %2490 = vmatpush1.msra.mxu0 0.0
        %2491 = vmatprep.subr.mxu0 0.0
        %2492 = vmatpush1.msra.mxu0 0.0
        %2493 = vmatprep.subr.mxu0 0.0
        %2494 = vmatpush1.msra.mxu0 0.0
        %2495 = vmatprep.subr.mxu0 0.0
        %2496 = vmatpush1.msra.mxu0 0.0
        %2497 = vmatprep.subr.mxu0 0.0
        %2498 = vmatpush1.msra.mxu0 0.0
        %2499 = vmatprep.subr.mxu0 0.0
        %2500 = vmatpush1.msra.mxu0 0.0
        %2501 = vmatprep.subr.mxu0 0.0
        %2502 = vmatpush1.msra.mxu0 0.0
        %2503 = vmatprep.subr.mxu0 0.0
        %2504 = vmatpush1.msra.mxu0 0.0
        %2505 = vmatprep.subr.mxu0 0.0
        %2506 = vmatpush1.msra.mxu0 0.0
        %2507 = vmatprep.subr.mxu0 0.0
        %2508 = vmatpush1.msra.mxu0 0.0
        %2509 = vmatprep.subr.mxu0 0.0
        %2510 = vmatpush1.msra.mxu0 0.0
        %2511 = vmatprep.subr.mxu0 0.0
        %2512 = vmatpush1.msra.mxu0 0.0
        %2513 = vmatprep.subr.mxu0 0.0
        %2514 = vmatpush1.msra.mxu0 0.0
        %2515 = vmatprep.subr.mxu0 0.0
        %2516 = vmatpush1.msra.mxu0 0.0
        %2517 = vmatprep.subr.mxu0 0.0
        %2518 = vmatpush1.msra.mxu0 0.0
        %2519 = vmatprep.subr.mxu0 0.0
        %2520 = vmatpush1.msra.mxu0 0.0
        %2521 = vmatprep.subr.mxu0 0.0
        %2522 = vmatpush1.msra.mxu0 0.0
        %2523 = vmatprep.mubr.f32.mxu0 0.0
        %v2524 = vand.u32 %v2295, 4294901760
        %v2525 = vsub.f32 %v2295, %v2524
        %2526 = vmatmul.mubr.f32.gmra.mrb[0].mxu0 %v2525
        %v2527 = vpop.f32.mrb[0].mxu0
        %v2528 = vadd.f32 %v2452, %v2527
        %v2529 = vpop.f32.mrb[0].mxu0
        %2530 = vdwg.mxu0
        %2531 = vmatprep.subr.mxu0 0.0
        %v2532 = vand.u32 %v2288, 4294901760
        %2533 = vmatpush1.msra.mxu0 %v2532
        %2534 = vmatprep.subr.mxu0 0.0
        %v2535 = vand.u32 %v2291, 4294901760
        %2536 = vmatpush1.msra.mxu0 %v2535
        %2537 = vmatprep.subr.mxu0 0.0
        %2538 = vmatpush1.msra.mxu0 0.0
        %2539 = vmatprep.subr.mxu0 0.0
        %2540 = vmatpush1.msra.mxu0 0.0
        %2541 = vmatprep.subr.mxu0 0.0
        %2542 = vmatpush1.msra.mxu0 0.0
        %2543 = vmatprep.subr.mxu0 0.0
        %2544 = vmatpush1.msra.mxu0 0.0
        %2545 = vmatprep.subr.mxu0 0.0
        %2546 = vmatpush1.msra.mxu0 0.0
        %2547 = vmatprep.subr.mxu0 0.0
        %2548 = vmatpush1.msra.mxu0 0.0
        %2549 = vmatprep.subr.mxu0 0.0
        %2550 = vmatpush1.msra.mxu0 0.0
        %2551 = vmatprep.subr.mxu0 0.0
        %2552 = vmatpush1.msra.mxu0 0.0
        %2553 = vmatprep.subr.mxu0 0.0
        %2554 = vmatpush1.msra.mxu0 0.0
        %2555 = vmatprep.subr.mxu0 0.0
        %2556 = vmatpush1.msra.mxu0 0.0
        %2557 = vmatprep.subr.mxu0 0.0
        %2558 = vmatpush1.msra.mxu0 0.0
        %2559 = vmatprep.subr.mxu0 0.0
        %2560 = vmatpush1.msra.mxu0 0.0
        %2561 = vmatprep.subr.mxu0 0.0
        %2562 = vmatpush1.msra.mxu0 0.0
        %2563 = vmatprep.subr.mxu0 0.0
        %2564 = vmatpush1.msra.mxu0 0.0
        %2565 = vmatprep.subr.mxu0 0.0
        %2566 = vmatpush1.msra.mxu0 0.0
        %2567 = vmatprep.subr.mxu0 0.0
        %2568 = vmatpush1.msra.mxu0 0.0
        %2569 = vmatprep.subr.mxu0 0.0
        %2570 = vmatpush1.msra.mxu0 0.0
        %2571 = vmatprep.subr.mxu0 0.0
        %2572 = vmatpush1.msra.mxu0 0.0
        %2573 = vmatprep.subr.mxu0 0.0
        %2574 = vmatpush1.msra.mxu0 0.0
        %2575 = vmatprep.subr.mxu0 0.0
        %2576 = vmatpush1.msra.mxu0 0.0
        %2577 = vmatprep.subr.mxu0 0.0
        %2578 = vmatpush1.msra.mxu0 0.0
        %2579 = vmatprep.subr.mxu0 0.0
        %2580 = vmatpush1.msra.mxu0 0.0
        %2581 = vmatprep.subr.mxu0 0.0
        %2582 = vmatpush1.msra.mxu0 0.0
        %2583 = vmatprep.subr.mxu0 0.0
        %2584 = vmatpush1.msra.mxu0 0.0
        %2585 = vmatprep.subr.mxu0 0.0
        %2586 = vmatpush1.msra.mxu0 0.0
        %2587 = vmatprep.subr.mxu0 0.0
        %2588 = vmatpush1.msra.mxu0 0.0
        %2589 = vmatprep.subr.mxu0 0.0
        %2590 = vmatpush1.msra.mxu0 0.0
        %2591 = vmatprep.subr.mxu0 0.0
        %2592 = vmatpush1.msra.mxu0 0.0
        %2593 = vmatprep.subr.mxu0 0.0
        %2594 = vmatpush1.msra.mxu0 0.0
        %2595 = vmatprep.subr.mxu0 0.0
        %2596 = vmatpush1.msra.mxu0 0.0
        %2597 = vmatprep.mubr.f32.mxu0 0.0
        %v2598 = vand.u32 %v2295, 4294901760
        %v2599 = vsub.f32 %v2295, %v2598
        %v2600 = vand.u32 %v2599, 4294901760
        %2601 = vmatmul.mubr.f32.gmra.mrb[0].mxu0 %v2600
        %v2602 = vpop.f32.mrb[0].mxu0
        %v2603 = vadd.f32 %v2528, %v2602
        %v2604 = vpop.f32.mrb[0].mxu0
        %2605 = vdwg.mxu0
        %2606 = vmatprep.subr.mxu0 0.0
        %v2607 = vand.u32 %v2288, 4294901760
        %v2608 = vsub.f32 %v2288, %v2607
        %v2609 = vand.u32 %v2608, 4294901760
        %2610 = vmatpush1.msra.mxu0 %v2609
        %2611 = vmatprep.subr.mxu0 0.0
        %v2612 = vand.u32 %v2291, 4294901760
        %v2613 = vsub.f32 %v2291, %v2612
        %v2614 = vand.u32 %v2613, 4294901760
        %2615 = vmatpush1.msra.mxu0 %v2614
        %2616 = vmatprep.subr.mxu0 0.0
        %2617 = vmatpush1.msra.mxu0 0.0
        %2618 = vmatprep.subr.mxu0 0.0
        %2619 = vmatpush1.msra.mxu0 0.0
        %2620 = vmatprep.subr.mxu0 0.0
        %2621 = vmatpush1.msra.mxu0 0.0
        %2622 = vmatprep.subr.mxu0 0.0
        %2623 = vmatpush1.msra.mxu0 0.0
        %2624 = vmatprep.subr.mxu0 0.0
        %2625 = vmatpush1.msra.mxu0 0.0
        %2626 = vmatprep.subr.mxu0 0.0
        %2627 = vmatpush1.msra.mxu0 0.0
        %2628 = vmatprep.subr.mxu0 0.0
        %2629 = vmatpush1.msra.mxu0 0.0
        %2630 = vmatprep.subr.mxu0 0.0
        %2631 = vmatpush1.msra.mxu0 0.0
        %2632 = vmatprep.subr.mxu0 0.0
        %2633 = vmatpush1.msra.mxu0 0.0
        %2634 = vmatprep.subr.mxu0 0.0
        %2635 = vmatpush1.msra.mxu0 0.0
        %2636 = vmatprep.subr.mxu0 0.0
        %2637 = vmatpush1.msra.mxu0 0.0
        %2638 = vmatprep.subr.mxu0 0.0
        %2639 = vmatpush1.msra.mxu0 0.0
        %2640 = vmatprep.subr.mxu0 0.0
        %2641 = vmatpush1.msra.mxu0 0.0
        %2642 = vmatprep.subr.mxu0 0.0
        %2643 = vmatpush1.msra.mxu0 0.0
        %2644 = vmatprep.subr.mxu0 0.0
        %2645 = vmatpush1.msra.mxu0 0.0
        %2646 = vmatprep.subr.mxu0 0.0
        %2647 = vmatpush1.msra.mxu0 0.0
        %2648 = vmatprep.subr.mxu0 0.0
        %2649 = vmatpush1.msra.mxu0 0.0
        %2650 = vmatprep.subr.mxu0 0.0
        %2651 = vmatpush1.msra.mxu0 0.0
        %2652 = vmatprep.subr.mxu0 0.0
        %2653 = vmatpush1.msra.mxu0 0.0
        %2654 = vmatprep.subr.mxu0 0.0
        %2655 = vmatpush1.msra.mxu0 0.0
        %2656 = vmatprep.subr.mxu0 0.0
        %2657 = vmatpush1.msra.mxu0 0.0
        %2658 = vmatprep.subr.mxu0 0.0
        %2659 = vmatpush1.msra.mxu0 0.0
        %2660 = vmatprep.subr.mxu0 0.0
        %2661 = vmatpush1.msra.mxu0 0.0
        %2662 = vmatprep.subr.mxu0 0.0
        %2663 = vmatpush1.msra.mxu0 0.0
        %2664 = vmatprep.subr.mxu0 0.0
        %2665 = vmatpush1.msra.mxu0 0.0
        %2666 = vmatprep.subr.mxu0 0.0
        %2667 = vmatpush1.msra.mxu0 0.0
        %2668 = vmatprep.subr.mxu0 0.0
        %2669 = vmatpush1.msra.mxu0 0.0
        %2670 = vmatprep.subr.mxu0 0.0
        %2671 = vmatpush1.msra.mxu0 0.0
        %2672 = vmatprep.subr.mxu0 0.0
        %2673 = vmatpush1.msra.mxu0 0.0
        %2674 = vmatprep.subr.mxu0 0.0
        %2675 = vmatpush1.msra.mxu0 0.0
        %2676 = vmatprep.mubr.f32.mxu0 0.0
        %v2677 = vand.u32 %v2295, 4294901760
        %2678 = vmatmul.mubr.f32.gmra.mrb[0].mxu0 %v2677
        %v2679 = vpop.f32.mrb[0].mxu0
        %v2680 = vadd.f32 %v2603, %v2679
        %v2681 = vpop.f32.mrb[0].mxu0
        %2682 = vdwg.mxu0
        %2683 = vmatprep.subr.mxu0 0.0
        %v2684 = vand.u32 %v2288, 4294901760
        %2685 = vmatpush1.msra.mxu0 %v2684
        %2686 = vmatprep.subr.mxu0 0.0
        %v2687 = vand.u32 %v2291, 4294901760
        %2688 = vmatpush1.msra.mxu0 %v2687
        %2689 = vmatprep.subr.mxu0 0.0
        %2690 = vmatpush1.msra.mxu0 0.0
        %2691 = vmatprep.subr.mxu0 0.0
        %2692 = vmatpush1.msra.mxu0 0.0
        %2693 = vmatprep.subr.mxu0 0.0
        %2694 = vmatpush1.msra.mxu0 0.0
        %2695 = vmatprep.subr.mxu0 0.0
        %2696 = vmatpush1.msra.mxu0 0.0
        %2697 = vmatprep.subr.mxu0 0.0
        %2698 = vmatpush1.msra.mxu0 0.0
        %2699 = vmatprep.subr.mxu0 0.0
        %2700 = vmatpush1.msra.mxu0 0.0
        %2701 = vmatprep.subr.mxu0 0.0
        %2702 = vmatpush1.msra.mxu0 0.0
        %2703 = vmatprep.subr.mxu0 0.0
        %2704 = vmatpush1.msra.mxu0 0.0
        %2705 = vmatprep.subr.mxu0 0.0
        %2706 = vmatpush1.msra.mxu0 0.0
        %2707 = vmatprep.subr.mxu0 0.0
        %2708 = vmatpush1.msra.mxu0 0.0
        %2709 = vmatprep.subr.mxu0 0.0
        %2710 = vmatpush1.msra.mxu0 0.0
        %2711 = vmatprep.subr.mxu0 0.0
        %2712 = vmatpush1.msra.mxu0 0.0
        %2713 = vmatprep.subr.mxu0 0.0
        %2714 = vmatpush1.msra.mxu0 0.0
        %2715 = vmatprep.subr.mxu0 0.0
        %2716 = vmatpush1.msra.mxu0 0.0
        %2717 = vmatprep.subr.mxu0 0.0
        %2718 = vmatpush1.msra.mxu0 0.0
        %2719 = vmatprep.subr.mxu0 0.0
        %2720 = vmatpush1.msra.mxu0 0.0
        %2721 = vmatprep.subr.mxu0 0.0
        %2722 = vmatpush1.msra.mxu0 0.0
        %2723 = vmatprep.subr.mxu0 0.0
        %2724 = vmatpush1.msra.mxu0 0.0
        %2725 = vmatprep.subr.mxu0 0.0
        %2726 = vmatpush1.msra.mxu0 0.0
        %2727 = vmatprep.subr.mxu0 0.0
        %2728 = vmatpush1.msra.mxu0 0.0
        %2729 = vmatprep.subr.mxu0 0.0
        %2730 = vmatpush1.msra.mxu0 0.0
        %2731 = vmatprep.subr.mxu0 0.0
        %2732 = vmatpush1.msra.mxu0 0.0
        %2733 = vmatprep.subr.mxu0 0.0
        %2734 = vmatpush1.msra.mxu0 0.0
        %2735 = vmatprep.subr.mxu0 0.0
        %2736 = vmatpush1.msra.mxu0 0.0
        %2737 = vmatprep.subr.mxu0 0.0
        %2738 = vmatpush1.msra.mxu0 0.0
        %2739 = vmatprep.subr.mxu0 0.0
        %2740 = vmatpush1.msra.mxu0 0.0
        %2741 = vmatprep.subr.mxu0 0.0
        %2742 = vmatpush1.msra.mxu0 0.0
        %2743 = vmatprep.subr.mxu0 0.0
        %2744 = vmatpush1.msra.mxu0 0.0
        %2745 = vmatprep.subr.mxu0 0.0
        %2746 = vmatpush1.msra.mxu0 0.0
        %2747 = vmatprep.subr.mxu0 0.0
        %2748 = vmatpush1.msra.mxu0 0.0
        %2749 = vmatprep.mubr.f32.mxu0 0.0
        %v2750 = vand.u32 %v2295, 4294901760
        %2751 = vmatmul.mubr.f32.gmra.mrb[0].mxu0 %v2750
        %v2752 = vpop.f32.mrb[0].mxu0
        %v2753 = vadd.f32 %v2680, %v2752
        %v2754 = vpop.f32.mrb[0].mxu0
        %2755 = vdwg.mxu0
        %v2756 = vmax.f32 %v2753, 0.0
        %v2757 = vld [vmem:[%s13] sm:$0xff]
        %v2758 = vld [vmem:[%s13 + $0x8] sm:$0xff]
        %vm2759 = vcmask 31744
        %v2761 = vsel %vm2759, %v2757, 0
        %v2764 = vsel %vm2759, %v2758, 0
        %vm2766 = vcmask 1043456
        %v2768 = vsel %vm2766, %v2756, 0
        %2770 = vmatprep.subr.mxu0 0.0
        %v2771 = vand.u32 %v2768, 4294901760
        %2772 = vmatpush1.msra.mxu0 %v2771
        %2773 = vmatprep.subr.mxu0 0.0
        %2774 = vmatpush1.msra.mxu0 0.0
        %2775 = vmatprep.subr.mxu0 0.0
        %2776 = vmatpush1.msra.mxu0 0.0
        %2777 = vmatprep.subr.mxu0 0.0
        %2778 = vmatpush1.msra.mxu0 0.0
        %2779 = vmatprep.subr.mxu0 0.0
        %2780 = vmatpush1.msra.mxu0 0.0
        %2781 = vmatprep.subr.mxu0 0.0
        %2782 = vmatpush1.msra.mxu0 0.0
        %2783 = vmatprep.subr.mxu0 0.0
        %2784 = vmatpush1.msra.mxu0 0.0
        %2785 = vmatprep.subr.mxu0 0.0
        %2786 = vmatpush1.msra.mxu0 0.0
        %2787 = vmatprep.subr.mxu0 0.0
        %2788 = vmatpush1.msra.mxu0 0.0
        %2789 = vmatprep.subr.mxu0 0.0
        %2790 = vmatpush1.msra.mxu0 0.0
        %2791 = vmatprep.subr.mxu0 0.0
        %2792 = vmatpush1.msra.mxu0 0.0
        %2793 = vmatprep.subr.mxu0 0.0
        %2794 = vmatpush1.msra.mxu0 0.0
        %2795 = vmatprep.subr.mxu0 0.0
        %2796 = vmatpush1.msra.mxu0 0.0
        %2797 = vmatprep.subr.mxu0 0.0
        %2798 = vmatpush1.msra.mxu0 0.0
        %2799 = vmatprep.subr.mxu0 0.0
        %2800 = vmatpush1.msra.mxu0 0.0
        %2801 = vmatprep.subr.mxu0 0.0
        %2802 = vmatpush1.msra.mxu0 0.0
        %2803 = vmatprep.subr.mxu0 0.0
        %2804 = vmatpush1.msra.mxu0 0.0
        %2805 = vmatprep.subr.mxu0 0.0
        %2806 = vmatpush1.msra.mxu0 0.0
        %2807 = vmatprep.subr.mxu0 0.0
        %2808 = vmatpush1.msra.mxu0 0.0
        %2809 = vmatprep.subr.mxu0 0.0
        %2810 = vmatpush1.msra.mxu0 0.0
        %2811 = vmatprep.subr.mxu0 0.0
        %2812 = vmatpush1.msra.mxu0 0.0
        %2813 = vmatprep.subr.mxu0 0.0
        %2814 = vmatpush1.msra.mxu0 0.0
        %2815 = vmatprep.subr.mxu0 0.0
        %2816 = vmatpush1.msra.mxu0 0.0
        %2817 = vmatprep.subr.mxu0 0.0
        %2818 = vmatpush1.msra.mxu0 0.0
        %2819 = vmatprep.subr.mxu0 0.0
        %2820 = vmatpush1.msra.mxu0 0.0
        %2821 = vmatprep.subr.mxu0 0.0
        %2822 = vmatpush1.msra.mxu0 0.0
        %2823 = vmatprep.subr.mxu0 0.0
        %2824 = vmatpush1.msra.mxu0 0.0
        %2825 = vmatprep.subr.mxu0 0.0
        %2826 = vmatpush1.msra.mxu0 0.0
        %2827 = vmatprep.subr.mxu0 0.0
        %2828 = vmatpush1.msra.mxu0 0.0
        %2829 = vmatprep.subr.mxu0 0.0
        %2830 = vmatpush1.msra.mxu0 0.0
        %2831 = vmatprep.subr.mxu0 0.0
        %2832 = vmatpush1.msra.mxu0 0.0
        %2833 = vmatprep.subr.mxu0 0.0
        %2834 = vmatpush1.msra.mxu0 0.0
        %2835 = vmatprep.mubr.f32.mxu0 0.0
        %v2836 = vand.u32 %v2761, 4294901760
        %v2837 = vsub.f32 %v2761, %v2836
        %v2838 = vand.u32 %v2837, 4294901760
        %v2839 = vsub.f32 %v2837, %v2838
        %v2840 = vand.u32 %v2839, 4294901760
        %2841 = vmatmul.mubr.f32.gmra.mrb[0].mxu0 %v2840
        %v2842 = vpop.f32.mrb[0].mxu0
        %v2843 = vadd.f32 0.0, %v2842
        %v2844 = vpop.f32.mrb[0].mxu0
        %2845 = vmatprep.mubr.f32.mxu0 0.0
        %v2846 = vand.u32 %v2764, 4294901760
        %v2847 = vsub.f32 %v2764, %v2846
        %v2848 = vand.u32 %v2847, 4294901760
        %v2849 = vsub.f32 %v2847, %v2848
        %v2850 = vand.u32 %v2849, 4294901760
        %2851 = vmatmul.mubr.f32.gmra.mrb[0].mxu0 %v2850
        %v2852 = vpop.f32.mrb[0].mxu0
        %v2853 = vadd.f32 0.0, %v2852
        %v2854 = vpop.f32.mrb[0].mxu0
        %2855 = vdwg.mxu0
        %2856 = vmatprep.subr.mxu0 0.0
        %v2857 = vand.u32 %v2768, 4294901760
        %v2858 = vsub.f32 %v2768, %v2857
        %v2859 = vand.u32 %v2858, 4294901760
        %v2860 = vsub.f32 %v2858, %v2859
        %v2861 = vand.u32 %v2860, 4294901760
        %2862 = vmatpush1.msra.mxu0 %v2861
        %2863 = vmatprep.subr.mxu0 0.0
        %2864 = vmatpush1.msra.mxu0 0.0
        %2865 = vmatprep.subr.mxu0 0.0
        %2866 = vmatpush1.msra.mxu0 0.0
        %2867 = vmatprep.subr.mxu0 0.0
        %2868 = vmatpush1.msra.mxu0 0.0
        %2869 = vmatprep.subr.mxu0 0.0
        %2870 = vmatpush1.msra.mxu0 0.0
        %2871 = vmatprep.subr.mxu0 0.0
        %2872 = vmatpush1.msra.mxu0 0.0
        %2873 = vmatprep.subr.mxu0 0.0
        %2874 = vmatpush1.msra.mxu0 0.0
        %2875 = vmatprep.subr.mxu0 0.0
        %2876 = vmatpush1.msra.mxu0 0.0
        %2877 = vmatprep.subr.mxu0 0.0
        %2878 = vmatpush1.msra.mxu0 0.0
        %2879 = vmatprep.subr.mxu0 0.0
        %2880 = vmatpush1.msra.mxu0 0.0
        %2881 = vmatprep.subr.mxu0 0.0
        %2882 = vmatpush1.msra.mxu0 0.0
        %2883 = vmatprep.subr.mxu0 0.0
        %2884 = vmatpush1.msra.mxu0 0.0
        %2885 = vmatprep.subr.mxu0 0.0
        %2886 = vmatpush1.msra.mxu0 0.0
        %2887 = vmatprep.subr.mxu0 0.0
        %2888 = vmatpush1.msra.mxu0 0.0
        %2889 = vmatprep.subr.mxu0 0.0
        %2890 = vmatpush1.msra.mxu0 0.0
        %2891 = vmatprep.subr.mxu0 0.0
        %2892 = vmatpush1.msra.mxu0 0.0
        %2893 = vmatprep.subr.mxu0 0.0
        %2894 = vmatpush1.msra.mxu0 0.0
        %2895 = vmatprep.subr.mxu0 0.0
        %2896 = vmatpush1.msra.mxu0 0.0
        %2897 = vmatprep.subr.mxu0 0.0
        %2898 = vmatpush1.msra.mxu0 0.0
        %2899 = vmatprep.subr.mxu0 0.0
        %2900 = vmatpush1.msra.mxu0 0.0
        %2901 = vmatprep.subr.mxu0 0.0
        %2902 = vmatpush1.msra.mxu0 0.0
        %2903 = vmatprep.subr.mxu0 0.0
        %2904 = vmatpush1.msra.mxu0 0.0
        %2905 = vmatprep.subr.mxu0 0.0
        %2906 = vmatpush1.msra.mxu0 0.0
        %2907 = vmatprep.subr.mxu0 0.0
        %2908 = vmatpush1.msra.mxu0 0.0
        %2909 = vmatprep.subr.mxu0 0.0
        %2910 = vmatpush1.msra.mxu0 0.0
        %2911 = vmatprep.subr.mxu0 0.0
        %2912 = vmatpush1.msra.mxu0 0.0
        %2913 = vmatprep.subr.mxu0 0.0
        %2914 = vmatpush1.msra.mxu0 0.0
        %2915 = vmatprep.subr.mxu0 0.0
        %2916 = vmatpush1.msra.mxu0 0.0
        %2917 = vmatprep.subr.mxu0 0.0
        %2918 = vmatpush1.msra.mxu0 0.0
        %2919 = vmatprep.subr.mxu0 0.0
        %2920 = vmatpush1.msra.mxu0 0.0
        %2921 = vmatprep.subr.mxu0 0.0
        %2922 = vmatpush1.msra.mxu0 0.0
        %2923 = vmatprep.subr.mxu0 0.0
        %2924 = vmatpush1.msra.mxu0 0.0
        %2925 = vmatprep.mubr.f32.mxu0 0.0
        %v2926 = vand.u32 %v2761, 4294901760
        %2927 = vmatmul.mubr.f32.gmra.mrb[0].mxu0 %v2926
        %v2928 = vpop.f32.mrb[0].mxu0
        %v2929 = vadd.f32 %v2843, %v2928
        %v2930 = vpop.f32.mrb[0].mxu0
        %2931 = vmatprep.mubr.f32.mxu0 0.0
        %v2932 = vand.u32 %v2764, 4294901760
        %2933 = vmatmul.mubr.f32.gmra.mrb[0].mxu0 %v2932
        %v2934 = vpop.f32.mrb[0].mxu0
        %v2935 = vadd.f32 %v2853, %v2934
        %v2936 = vpop.f32.mrb[0].mxu0
        %2937 = vdwg.mxu0
        %2938 = vmatprep.subr.mxu0 0.0
        %v2939 = vand.u32 %v2768, 4294901760
        %v2940 = vsub.f32 %v2768, %v2939
        %2941 = vmatpush1.msra.mxu0 %v2940
        %2942 = vmatprep.subr.mxu0 0.0
        %2943 = vmatpush1.msra.mxu0 0.0
        %2944 = vmatprep.subr.mxu0 0.0
        %2945 = vmatpush1.msra.mxu0 0.0
        %2946 = vmatprep.subr.mxu0 0.0
        %2947 = vmatpush1.msra.mxu0 0.0
        %2948 = vmatprep.subr.mxu0 0.0
        %2949 = vmatpush1.msra.mxu0 0.0
        %2950 = vmatprep.subr.mxu0 0.0
        %2951 = vmatpush1.msra.mxu0 0.0
        %2952 = vmatprep.subr.mxu0 0.0
        %2953 = vmatpush1.msra.mxu0 0.0
        %2954 = vmatprep.subr.mxu0 0.0
        %2955 = vmatpush1.msra.mxu0 0.0
        %2956 = vmatprep.subr.mxu0 0.0
        %2957 = vmatpush1.msra.mxu0 0.0
        %2958 = vmatprep.subr.mxu0 0.0
        %2959 = vmatpush1.msra.mxu0 0.0
        %2960 = vmatprep.subr.mxu0 0.0
        %2961 = vmatpush1.msra.mxu0 0.0
        %2962 = vmatprep.subr.mxu0 0.0
        %2963 = vmatpush1.msra.mxu0 0.0
        %2964 = vmatprep.subr.mxu0 0.0
        %2965 = vmatpush1.msra.mxu0 0.0
        %2966 = vmatprep.subr.mxu0 0.0
        %2967 = vmatpush1.msra.mxu0 0.0
        %2968 = vmatprep.subr.mxu0 0.0
        %2969 = vmatpush1.msra.mxu0 0.0
        %2970 = vmatprep.subr.mxu0 0.0
        %2971 = vmatpush1.msra.mxu0 0.0
        %2972 = vmatprep.subr.mxu0 0.0
        %2973 = vmatpush1.msra.mxu0 0.0
        %2974 = vmatprep.subr.mxu0 0.0
        %2975 = vmatpush1.msra.mxu0 0.0
        %2976 = vmatprep.subr.mxu0 0.0
        %2977 = vmatpush1.msra.mxu0 0.0
        %2978 = vmatprep.subr.mxu0 0.0
        %2979 = vmatpush1.msra.mxu0 0.0
        %2980 = vmatprep.subr.mxu0 0.0
        %2981 = vmatpush1.msra.mxu0 0.0
        %2982 = vmatprep.subr.mxu0 0.0
        %2983 = vmatpush1.msra.mxu0 0.0
        %2984 = vmatprep.subr.mxu0 0.0
        %2985 = vmatpush1.msra.mxu0 0.0
        %2986 = vmatprep.subr.mxu0 0.0
        %2987 = vmatpush1.msra.mxu0 0.0
        %2988 = vmatprep.subr.mxu0 0.0
        %2989 = vmatpush1.msra.mxu0 0.0
        %2990 = vmatprep.subr.mxu0 0.0
        %2991 = vmatpush1.msra.mxu0 0.0
        %2992 = vmatprep.subr.mxu0 0.0
        %2993 = vmatpush1.msra.mxu0 0.0
        %2994 = vmatprep.subr.mxu0 0.0
        %2995 = vmatpush1.msra.mxu0 0.0
        %2996 = vmatprep.subr.mxu0 0.0
        %2997 = vmatpush1.msra.mxu0 0.0
        %2998 = vmatprep.subr.mxu0 0.0
        %2999 = vmatpush1.msra.mxu0 0.0
        %3000 = vmatprep.subr.mxu0 0.0
        %3001 = vmatpush1.msra.mxu0 0.0
        %3002 = vmatprep.subr.mxu0 0.0
        %3003 = vmatpush1.msra.mxu0 0.0
        %3004 = vmatprep.mubr.f32.mxu0 0.0
        %v3005 = vand.u32 %v2761, 4294901760
        %v3006 = vsub.f32 %v2761, %v3005
        %3007 = vmatmul.mubr.f32.gmra.mrb[0].mxu0 %v3006
        %v3008 = vpop.f32.mrb[0].mxu0
        %v3009 = vadd.f32 %v2929, %v3008
        %v3010 = vpop.f32.mrb[0].mxu0
        %3011 = vmatprep.mubr.f32.mxu0 0.0
        %v3012 = vand.u32 %v2764, 4294901760
        %v3013 = vsub.f32 %v2764, %v3012
        %3014 = vmatmul.mubr.f32.gmra.mrb[0].mxu0 %v3013
        %v3015 = vpop.f32.mrb[0].mxu0
        %v3016 = vadd.f32 %v2935, %v3015
        %v3017 = vpop.f32.mrb[0].mxu0
        %3018 = vdwg.mxu0
        %3019 = vmatprep.subr.mxu0 0.0
        %v3020 = vand.u32 %v2768, 4294901760
        %3021 = vmatpush1.msra.mxu0 %v3020
        %3022 = vmatprep.subr.mxu0 0.0
        %3023 = vmatpush1.msra.mxu0 0.0
        %3024 = vmatprep.subr.mxu0 0.0
        %3025 = vmatpush1.msra.mxu0 0.0
        %3026 = vmatprep.subr.mxu0 0.0
        %3027 = vmatpush1.msra.mxu0 0.0
        %3028 = vmatprep.subr.mxu0 0.0
        %3029 = vmatpush1.msra.mxu0 0.0
        %3030 = vmatprep.subr.mxu0 0.0
        %3031 = vmatpush1.msra.mxu0 0.0
        %3032 = vmatprep.subr.mxu0 0.0
        %3033 = vmatpush1.msra.mxu0 0.0
        %3034 = vmatprep.subr.mxu0 0.0
        %3035 = vmatpush1.msra.mxu0 0.0
        %3036 = vmatprep.subr.mxu0 0.0
        %3037 = vmatpush1.msra.mxu0 0.0
        %3038 = vmatprep.subr.mxu0 0.0
        %3039 = vmatpush1.msra.mxu0 0.0
        %3040 = vmatprep.subr.mxu0 0.0
        %3041 = vmatpush1.msra.mxu0 0.0
        %3042 = vmatprep.subr.mxu0 0.0
        %3043 = vmatpush1.msra.mxu0 0.0
        %3044 = vmatprep.subr.mxu0 0.0
        %3045 = vmatpush1.msra.mxu0 0.0
        %3046 = vmatprep.subr.mxu0 0.0
        %3047 = vmatpush1.msra.mxu0 0.0
        %3048 = vmatprep.subr.mxu0 0.0
        %3049 = vmatpush1.msra.mxu0 0.0
        %3050 = vmatprep.subr.mxu0 0.0
        %3051 = vmatpush1.msra.mxu0 0.0
        %3052 = vmatprep.subr.mxu0 0.0
        %3053 = vmatpush1.msra.mxu0 0.0
        %3054 = vmatprep.subr.mxu0 0.0
        %3055 = vmatpush1.msra.mxu0 0.0
        %3056 = vmatprep.subr.mxu0 0.0
        %3057 = vmatpush1.msra.mxu0 0.0
        %3058 = vmatprep.subr.mxu0 0.0
        %3059 = vmatpush1.msra.mxu0 0.0
        %3060 = vmatprep.subr.mxu0 0.0
        %3061 = vmatpush1.msra.mxu0 0.0
        %3062 = vmatprep.subr.mxu0 0.0
        %3063 = vmatpush1.msra.mxu0 0.0
        %3064 = vmatprep.subr.mxu0 0.0
        %3065 = vmatpush1.msra.mxu0 0.0
        %3066 = vmatprep.subr.mxu0 0.0
        %3067 = vmatpush1.msra.mxu0 0.0
        %3068 = vmatprep.subr.mxu0 0.0
        %3069 = vmatpush1.msra.mxu0 0.0
        %3070 = vmatprep.subr.mxu0 0.0
        %3071 = vmatpush1.msra.mxu0 0.0
        %3072 = vmatprep.subr.mxu0 0.0
        %3073 = vmatpush1.msra.mxu0 0.0
        %3074 = vmatprep.subr.mxu0 0.0
        %3075 = vmatpush1.msra.mxu0 0.0
        %3076 = vmatprep.subr.mxu0 0.0
        %3077 = vmatpush1.msra.mxu0 0.0
        %3078 = vmatprep.subr.mxu0 0.0
        %3079 = vmatpush1.msra.mxu0 0.0
        %3080 = vmatprep.subr.mxu0 0.0
        %3081 = vmatpush1.msra.mxu0 0.0
        %3082 = vmatprep.subr.mxu0 0.0
        %3083 = vmatpush1.msra.mxu0 0.0
        %3084 = vmatprep.mubr.f32.mxu0 0.0
        %v3085 = vand.u32 %v2761, 4294901760
        %v3086 = vsub.f32 %v2761, %v3085
        %v3087 = vand.u32 %v3086, 4294901760
        %3088 = vmatmul.mubr.f32.gmra.mrb[0].mxu0 %v3087
        %v3089 = vpop.f32.mrb[0].mxu0
        %v3090 = vadd.f32 %v3009, %v3089
        %v3091 = vpop.f32.mrb[0].mxu0
        %3092 = vmatprep.mubr.f32.mxu0 0.0
        %v3093 = vand.u32 %v2764, 4294901760
        %v3094 = vsub.f32 %v2764, %v3093
        %v3095 = vand.u32 %v3094, 4294901760
        %3096 = vmatmul.mubr.f32.gmra.mrb[0].mxu0 %v3095
        %v3097 = vpop.f32.mrb[0].mxu0
        %v3098 = vadd.f32 %v3016, %v3097
        %v3099 = vpop.f32.mrb[0].mxu0
        %3100 = vdwg.mxu0
        %3101 = vmatprep.subr.mxu0 0.0
        %v3102 = vand.u32 %v2768, 4294901760
        %v3103 = vsub.f32 %v2768, %v3102
        %v3104 = vand.u32 %v3103, 4294901760
        %3105 = vmatpush1.msra.mxu0 %v3104
        %3106 = vmatprep.subr.mxu0 0.0
        %3107 = vmatpush1.msra.mxu0 0.0
        %3108 = vmatprep.subr.mxu0 0.0
        %3109 = vmatpush1.msra.mxu0 0.0
        %3110 = vmatprep.subr.mxu0 0.0
        %3111 = vmatpush1.msra.mxu0 0.0
        %3112 = vmatprep.subr.mxu0 0.0
        %3113 = vmatpush1.msra.mxu0 0.0
        %3114 = vmatprep.subr.mxu0 0.0
        %3115 = vmatpush1.msra.mxu0 0.0
        %3116 = vmatprep.subr.mxu0 0.0
        %3117 = vmatpush1.msra.mxu0 0.0
        %3118 = vmatprep.subr.mxu0 0.0
        %3119 = vmatpush1.msra.mxu0 0.0
        %3120 = vmatprep.subr.mxu0 0.0
        %3121 = vmatpush1.msra.mxu0 0.0
        %3122 = vmatprep.subr.mxu0 0.0
        %3123 = vmatpush1.msra.mxu0 0.0
        %3124 = vmatprep.subr.mxu0 0.0
        %3125 = vmatpush1.msra.mxu0 0.0
        %3126 = vmatprep.subr.mxu0 0.0
        %3127 = vmatpush1.msra.mxu0 0.0
        %3128 = vmatprep.subr.mxu0 0.0
        %3129 = vmatpush1.msra.mxu0 0.0
        %3130 = vmatprep.subr.mxu0 0.0
        %3131 = vmatpush1.msra.mxu0 0.0
        %3132 = vmatprep.subr.mxu0 0.0
        %3133 = vmatpush1.msra.mxu0 0.0
        %3134 = vmatprep.subr.mxu0 0.0
        %3135 = vmatpush1.msra.mxu0 0.0
        %3136 = vmatprep.subr.mxu0 0.0
        %3137 = vmatpush1.msra.mxu0 0.0
        %3138 = vmatprep.subr.mxu0 0.0
        %3139 = vmatpush1.msra.mxu0 0.0
        %3140 = vmatprep.subr.mxu0 0.0
        %3141 = vmatpush1.msra.mxu0 0.0
        %3142 = vmatprep.subr.mxu0 0.0
        %3143 = vmatpush1.msra.mxu0 0.0
        %3144 = vmatprep.subr.mxu0 0.0
        %3145 = vmatpush1.msra.mxu0 0.0
        %3146 = vmatprep.subr.mxu0 0.0
        %3147 = vmatpush1.msra.mxu0 0.0
        %3148 = vmatprep.subr.mxu0 0.0
        %3149 = vmatpush1.msra.mxu0 0.0
        %3150 = vmatprep.subr.mxu0 0.0
        %3151 = vmatpush1.msra.mxu0 0.0
        %3152 = vmatprep.subr.mxu0 0.0
        %3153 = vmatpush1.msra.mxu0 0.0
        %3154 = vmatprep.subr.mxu0 0.0
        %3155 = vmatpush1.msra.mxu0 0.0
        %3156 = vmatprep.subr.mxu0 0.0
        %3157 = vmatpush1.msra.mxu0 0.0
        %3158 = vmatprep.subr.mxu0 0.0
        %3159 = vmatpush1.msra.mxu0 0.0
        %3160 = vmatprep.subr.mxu0 0.0
        %3161 = vmatpush1.msra.mxu0 0.0
        %3162 = vmatprep.subr.mxu0 0.0
        %3163 = vmatpush1.msra.mxu0 0.0
        %3164 = vmatprep.subr.mxu0 0.0
        %3165 = vmatpush1.msra.mxu0 0.0
        %3166 = vmatprep.subr.mxu0 0.0
        %3167 = vmatpush1.msra.mxu0 0.0
        %3168 = vmatprep.mubr.f32.mxu0 0.0
        %v3169 = vand.u32 %v2761, 4294901760
        %3170 = vmatmul.mubr.f32.gmra.mrb[0].mxu0 %v3169
        %v3171 = vpop.f32.mrb[0].mxu0
        %v3172 = vadd.f32 %v3090, %v3171
        %v3173 = vpop.f32.mrb[0].mxu0
        %3174 = vmatprep.mubr.f32.mxu0 0.0
        %v3175 = vand.u32 %v2764, 4294901760
        %3176 = vmatmul.mubr.f32.gmra.mrb[0].mxu0 %v3175
        %v3177 = vpop.f32.mrb[0].mxu0
        %v3178 = vadd.f32 %v3098, %v3177
        %v3179 = vpop.f32.mrb[0].mxu0
        %3180 = vdwg.mxu0
        %3181 = vmatprep.subr.mxu0 0.0
        %v3182 = vand.u32 %v2768, 4294901760
        %3183 = vmatpush1.msra.mxu0 %v3182
        %3184 = vmatprep.subr.mxu0 0.0
        %3185 = vmatpush1.msra.mxu0 0.0
        %3186 = vmatprep.subr.mxu0 0.0
        %3187 = vmatpush1.msra.mxu0 0.0
        %3188 = vmatprep.subr.mxu0 0.0
        %3189 = vmatpush1.msra.mxu0 0.0
        %3190 = vmatprep.subr.mxu0 0.0
        %3191 = vmatpush1.msra.mxu0 0.0
        %3192 = vmatprep.subr.mxu0 0.0
        %3193 = vmatpush1.msra.mxu0 0.0
        %3194 = vmatprep.subr.mxu0 0.0
        %3195 = vmatpush1.msra.mxu0 0.0
        %3196 = vmatprep.subr.mxu0 0.0
        %3197 = vmatpush1.msra.mxu0 0.0
        %3198 = vmatprep.subr.mxu0 0.0
        %3199 = vmatpush1.msra.mxu0 0.0
        %3200 = vmatprep.subr.mxu0 0.0
        %3201 = vmatpush1.msra.mxu0 0.0
        %3202 = vmatprep.subr.mxu0 0.0
        %3203 = vmatpush1.msra.mxu0 0.0
        %3204 = vmatprep.subr.mxu0 0.0
        %3205 = vmatpush1.msra.mxu0 0.0
        %3206 = vmatprep.subr.mxu0 0.0
        %3207 = vmatpush1.msra.mxu0 0.0
        %3208 = vmatprep.subr.mxu0 0.0
        %3209 = vmatpush1.msra.mxu0 0.0
        %3210 = vmatprep.subr.mxu0 0.0
        %3211 = vmatpush1.msra.mxu0 0.0
        %3212 = vmatprep.subr.mxu0 0.0
        %3213 = vmatpush1.msra.mxu0 0.0
        %3214 = vmatprep.subr.mxu0 0.0
        %3215 = vmatpush1.msra.mxu0 0.0
        %3216 = vmatprep.subr.mxu0 0.0
        %3217 = vmatpush1.msra.mxu0 0.0
        %3218 = vmatprep.subr.mxu0 0.0
        %3219 = vmatpush1.msra.mxu0 0.0
        %3220 = vmatprep.subr.mxu0 0.0
        %3221 = vmatpush1.msra.mxu0 0.0
        %3222 = vmatprep.subr.mxu0 0.0
        %3223 = vmatpush1.msra.mxu0 0.0
        %3224 = vmatprep.subr.mxu0 0.0
        %3225 = vmatpush1.msra.mxu0 0.0
        %3226 = vmatprep.subr.mxu0 0.0
        %3227 = vmatpush1.msra.mxu0 0.0
        %3228 = vmatprep.subr.mxu0 0.0
        %3229 = vmatpush1.msra.mxu0 0.0
        %3230 = vmatprep.subr.mxu0 0.0
        %3231 = vmatpush1.msra.mxu0 0.0
        %3232 = vmatprep.subr.mxu0 0.0
        %3233 = vmatpush1.msra.mxu0 0.0
        %3234 = vmatprep.subr.mxu0 0.0
        %3235 = vmatpush1.msra.mxu0 0.0
        %3236 = vmatprep.subr.mxu0 0.0
        %3237 = vmatpush1.msra.mxu0 0.0
        %3238 = vmatprep.subr.mxu0 0.0
        %3239 = vmatpush1.msra.mxu0 0.0
        %3240 = vmatprep.subr.mxu0 0.0
        %3241 = vmatpush1.msra.mxu0 0.0
        %3242 = vmatprep.subr.mxu0 0.0
        %3243 = vmatpush1.msra.mxu0 0.0
        %3244 = vmatprep.subr.mxu0 0.0
        %3245 = vmatpush1.msra.mxu0 0.0
        %3246 = vmatprep.mubr.f32.mxu0 0.0
        %v3247 = vand.u32 %v2761, 4294901760
        %3248 = vmatmul.mubr.f32.gmra.mrb[0].mxu0 %v3247
        %v3249 = vpop.f32.mrb[0].mxu0
        %v3250 = vadd.f32 %v3172, %v3249
        %v3251 = vpop.f32.mrb[0].mxu0
        %3252 = vmatprep.mubr.f32.mxu0 0.0
        %v3253 = vand.u32 %v2764, 4294901760
        %3254 = vmatmul.mubr.f32.gmra.mrb[0].mxu0 %v3253
        %v3255 = vpop.f32.mrb[0].mxu0
        %v3256 = vadd.f32 %v3178, %v3255
        %v3257 = vpop.f32.mrb[0].mxu0
        %3258 = vdwg.mxu0
        %v3259 = vxor.u32 %v3250, 2147483648
        %v3260 = vxor.u32 %v3256, 2147483648
        %v3261 = vmul.f32 %v3259, 1.442695
        %v3262 = vpow.pop %v3261
        %v3263 = vmul.f32 %v3260, 1.442695
        %v3264 = vpow.pop %v3263
        %v3265 = vadd.f32 %v3262, 1.0
        %v3266 = vadd.f32 %v3264, 1.0
        %v3267 = vrcp.pop %v3265
        %v3268 = vmul.f32 1.0, %v3267
        %v3269 = vrcp.pop %v3266
        %v3270 = vmul.f32 1.0, %v3269
        %3272 = vset.pattern.permute.xlu0 0
        %3273 = vperm.xlu0 %3272, %v3268
        %v3274 = vpop.permute.xlu0 %3273
        %3277 = vset.pattern.permute.xlu0 0
        %3278 = vperm.xlu0 %3277, %v3270
        %v3279 = vpop.permute.xlu0 %3278
        %v3281 = vmul.f32 %v2284, %v3274
        %v3282 = vmul.f32 %v2285, %v3279
        %v3283 = vadd.f32 %v1081, %v3281
        %v3284 = vadd.f32 %v1087, %v3282
        %v3285 = vsel %vm555, %v3283, 0.0
        %3286 = vadd.xlane.f32.xlu0 %v3285
        %v3287 = vpop.xlane.xlu0 %3286
        %v3288 = vsel %vm555, %v3284, 0.0
        %3289 = vadd.xlane.f32.xlu0 %v3288
        %v3290 = vpop.xlane.xlu0 %3289
        %v3291 = vmul.f32 %v3287, %v1098
        %v3292 = vmul.f32 %v3290, %v1098
        %v3293 = vsub.f32 %v3283, %v3291
        %v3294 = vsub.f32 %v3284, %v3292
        %v3295 = vmul.f32 %v3293, %v3293
        %v3296 = vmul.f32 %v3294, %v3294
        %v3297 = vsel %vm555, %v3295, 0.0
        %3298 = vadd.xlane.f32.xlu0 %v3297
        %v3299 = vpop.xlane.xlu0 %3298
        %v3300 = vsel %vm555, %v3296, 0.0
        %3301 = vadd.xlane.f32.xlu0 %v3300
        %v3302 = vpop.xlane.xlu0 %3301
        %v3303 = vmul.f32 %v3299, %v1098
        %v3304 = vmul.f32 %v3302, %v1098
        %v3305 = vadd.f32 %v3303, 1e-05
        %v3306 = vadd.f32 %v3304, 1e-05
        %v3307 = vrsqrt.pop %v3305
        %v3308 = vrsqrt.pop %v3306
        %v3309 = vmul.f32 %v3293, %v3307
        %v3310 = vmul.f32 %v3294, %v3308
        %v3311 = vmul.f32 %v3309, %v1123
        %v3312 = vmul.f32 %v3310, %v1123
        %v3313 = vadd.f32 %v3311, %v1131
        %v3314 = vadd.f32 %v3312, %v1131
        %v3315 = vld [vmem:[%s10] sm:$0xff]
        %v3316 = vld [vmem:[%s10 + $0x8] sm:$0xff]
        %v3317 = vld [vmem:[%s10 + $0x10] sm:$0xff]
        %v3318 = vld [vmem:[%s10 + $0x18] sm:$0xff]
        %v3319 = vld [vmem:[%s11] sm:$0x1]
        %v3321 = vlaneseq
        %v3322 = vshrl.u32 %v3321, 7
        %v3323 = vsub.s32 0, %v3322
        %v3324 = vrot.slane %v3319, %v3323
        %v3327 = vsel %vm555, %v3313, 0
        %v3330 = vsel %vm555, %v3314, 0
        %3332 = vmatprep.subr.mxu0 0.0
        %v3333 = vand.u32 %v3315, 4294901760
        %3334 = vmatpush1.msra.mxu0 %v3333
        %3335 = vmatprep.subr.mxu0 0.0
        %v3336 = vand.u32 %v3316, 4294901760
        %3337 = vmatpush1.msra.mxu0 %v3336
        %3338 = vmatprep.subr.mxu0 0.0
        %v3339 = vand.u32 %v3317, 4294901760
        %3340 = vmatpush1.msra.mxu0 %v3339
        %3341 = vmatprep.subr.mxu0 0.0
        %v3342 = vand.u32 %v3318, 4294901760
        %3343 = vmatpush1.msra.mxu0 %v3342
        %3344 = vmatprep.subr.mxu0 0.0
        %3345 = vmatpush1.msra.mxu0 0.0
        %3346 = vmatprep.subr.mxu0 0.0
        %3347 = vmatpush1.msra.mxu0 0.0
        %3348 = vmatprep.subr.mxu0 0.0
        %3349 = vmatpush1.msra.mxu0 0.0
        %3350 = vmatprep.subr.mxu0 0.0
        %3351 = vmatpush1.msra.mxu0 0.0
        %3352 = vmatprep.subr.mxu0 0.0
        %3353 = vmatpush1.msra.mxu0 0.0
        %3354 = vmatprep.subr.mxu0 0.0
        %3355 = vmatpush1.msra.mxu0 0.0
        %3356 = vmatprep.subr.mxu0 0.0
        %3357 = vmatpush1.msra.mxu0 0.0
        %3358 = vmatprep.subr.mxu0 0.0
        %3359 = vmatpush1.msra.mxu0 0.0
        %3360 = vmatprep.subr.mxu0 0.0
        %3361 = vmatpush1.msra.mxu0 0.0
        %3362 = vmatprep.subr.mxu0 0.0
        %3363 = vmatpush1.msra.mxu0 0.0
        %3364 = vmatprep.subr.mxu0 0.0
        %3365 = vmatpush1.msra.mxu0 0.0
        %3366 = vmatprep.subr.mxu0 0.0
        %3367 = vmatpush1.msra.mxu0 0.0
        %3368 = vmatprep.subr.mxu0 0.0
        %3369 = vmatpush1.msra.mxu0 0.0
        %3370 = vmatprep.subr.mxu0 0.0
        %3371 = vmatpush1.msra.mxu0 0.0
        %3372 = vmatprep.subr.mxu0 0.0
        %3373 = vmatpush1.msra.mxu0 0.0
        %3374 = vmatprep.subr.mxu0 0.0
        %3375 = vmatpush1.msra.mxu0 0.0
        %3376 = vmatprep.subr.mxu0 0.0
        %3377 = vmatpush1.msra.mxu0 0.0
        %3378 = vmatprep.subr.mxu0 0.0
        %3379 = vmatpush1.msra.mxu0 0.0
        %3380 = vmatprep.subr.mxu0 0.0
        %3381 = vmatpush1.msra.mxu0 0.0
        %3382 = vmatprep.subr.mxu0 0.0
        %3383 = vmatpush1.msra.mxu0 0.0
        %3384 = vmatprep.subr.mxu0 0.0
        %3385 = vmatpush1.msra.mxu0 0.0
        %3386 = vmatprep.subr.mxu0 0.0
        %3387 = vmatpush1.msra.mxu0 0.0
        %3388 = vmatprep.subr.mxu0 0.0
        %3389 = vmatpush1.msra.mxu0 0.0
        %3390 = vmatprep.subr.mxu0 0.0
        %3391 = vmatpush1.msra.mxu0 0.0
        %3392 = vmatprep.subr.mxu0 0.0
        %3393 = vmatpush1.msra.mxu0 0.0
        %3394 = vmatprep.subr.mxu0 0.0
        %3395 = vmatpush1.msra.mxu0 0.0
        %3396 = vmatprep.subr.mxu0 0.0
        %3397 = vmatpush1.msra.mxu0 0.0
        %3398 = vmatprep.subr.mxu0 0.0
        %3399 = vmatpush1.msra.mxu0 0.0
        %3400 = vmatprep.mubr.f32.mxu0 0.0
        %v3401 = vand.u32 %v3327, 4294901760
        %v3402 = vsub.f32 %v3327, %v3401
        %v3403 = vand.u32 %v3402, 4294901760
        %v3404 = vsub.f32 %v3402, %v3403
        %v3405 = vand.u32 %v3404, 4294901760
        %3406 = vmatmul.mubr.f32.gmra.mrb[0].mxu0 %v3405
        %v3407 = vpop.f32.mrb[0].mxu0
        %v3408 = vadd.f32 %v3324, %v3407
        %v3409 = vpop.f32.mrb[0].mxu0
        %3410 = vmatprep.mubr.f32.mxu0 0.0
        %v3411 = vand.u32 %v3330, 4294901760
        %v3412 = vsub.f32 %v3330, %v3411
        %v3413 = vand.u32 %v3412, 4294901760
        %v3414 = vsub.f32 %v3412, %v3413
        %v3415 = vand.u32 %v3414, 4294901760
        %3416 = vmatmul.mubr.f32.gmra.mrb[0].mxu0 %v3415
        %v3417 = vpop.f32.mrb[0].mxu0
        %v3418 = vadd.f32 %v3324, %v3417
        %v3419 = vpop.f32.mrb[0].mxu0
        %3420 = vdwg.mxu0
        %3421 = vmatprep.subr.mxu0 0.0
        %v3422 = vand.u32 %v3315, 4294901760
        %v3423 = vsub.f32 %v3315, %v3422
        %v3424 = vand.u32 %v3423, 4294901760
        %v3425 = vsub.f32 %v3423, %v3424
        %v3426 = vand.u32 %v3425, 4294901760
        %3427 = vmatpush1.msra.mxu0 %v3426
        %3428 = vmatprep.subr.mxu0 0.0
        %v3429 = vand.u32 %v3316, 4294901760
        %v3430 = vsub.f32 %v3316, %v3429
        %v3431 = vand.u32 %v3430, 4294901760
        %v3432 = vsub.f32 %v3430, %v3431
        %v3433 = vand.u32 %v3432, 4294901760
        %3434 = vmatpush1.msra.mxu0 %v3433
        %3435 = vmatprep.subr.mxu0 0.0
        %v3436 = vand.u32 %v3317, 4294901760
        %v3437 = vsub.f32 %v3317, %v3436
        %v3438 = vand.u32 %v3437, 4294901760
        %v3439 = vsub.f32 %v3437, %v3438
        %v3440 = vand.u32 %v3439, 4294901760
        %3441 = vmatpush1.msra.mxu0 %v3440
        %3442 = vmatprep.subr.mxu0 0.0
        %v3443 = vand.u32 %v3318, 4294901760
        %v3444 = vsub.f32 %v3318, %v3443
        %v3445 = vand.u32 %v3444, 4294901760
        %v3446 = vsub.f32 %v3444, %v3445
        %v3447 = vand.u32 %v3446, 4294901760
        %3448 = vmatpush1.msra.mxu0 %v3447
        %3449 = vmatprep.subr.mxu0 0.0
        %3450 = vmatpush1.msra.mxu0 0.0
        %3451 = vmatprep.subr.mxu0 0.0
        %3452 = vmatpush1.msra.mxu0 0.0
        %3453 = vmatprep.subr.mxu0 0.0
        %3454 = vmatpush1.msra.mxu0 0.0
        %3455 = vmatprep.subr.mxu0 0.0
        %3456 = vmatpush1.msra.mxu0 0.0
        %3457 = vmatprep.subr.mxu0 0.0
        %3458 = vmatpush1.msra.mxu0 0.0
        %3459 = vmatprep.subr.mxu0 0.0
        %3460 = vmatpush1.msra.mxu0 0.0
        %3461 = vmatprep.subr.mxu0 0.0
        %3462 = vmatpush1.msra.mxu0 0.0
        %3463 = vmatprep.subr.mxu0 0.0
        %3464 = vmatpush1.msra.mxu0 0.0
        %3465 = vmatprep.subr.mxu0 0.0
        %3466 = vmatpush1.msra.mxu0 0.0
        %3467 = vmatprep.subr.mxu0 0.0
        %3468 = vmatpush1.msra.mxu0 0.0
        %3469 = vmatprep.subr.mxu0 0.0
        %3470 = vmatpush1.msra.mxu0 0.0
        %3471 = vmatprep.subr.mxu0 0.0
        %3472 = vmatpush1.msra.mxu0 0.0
        %3473 = vmatprep.subr.mxu0 0.0
        %3474 = vmatpush1.msra.mxu0 0.0
        %3475 = vmatprep.subr.mxu0 0.0
        %3476 = vmatpush1.msra.mxu0 0.0
        %3477 = vmatprep.subr.mxu0 0.0
        %3478 = vmatpush1.msra.mxu0 0.0
        %3479 = vmatprep.subr.mxu0 0.0
        %3480 = vmatpush1.msra.mxu0 0.0
        %3481 = vmatprep.subr.mxu0 0.0
        %3482 = vmatpush1.msra.mxu0 0.0
        %3483 = vmatprep.subr.mxu0 0.0
        %3484 = vmatpush1.msra.mxu0 0.0
        %3485 = vmatprep.subr.mxu0 0.0
        %3486 = vmatpush1.msra.mxu0 0.0
        %3487 = vmatprep.subr.mxu0 0.0
        %3488 = vmatpush1.msra.mxu0 0.0
        %3489 = vmatprep.subr.mxu0 0.0
        %3490 = vmatpush1.msra.mxu0 0.0
        %3491 = vmatprep.subr.mxu0 0.0
        %3492 = vmatpush1.msra.mxu0 0.0
        %3493 = vmatprep.subr.mxu0 0.0
        %3494 = vmatpush1.msra.mxu0 0.0
        %3495 = vmatprep.subr.mxu0 0.0
        %3496 = vmatpush1.msra.mxu0 0.0
        %3497 = vmatprep.subr.mxu0 0.0
        %3498 = vmatpush1.msra.mxu0 0.0
        %3499 = vmatprep.subr.mxu0 0.0
        %3500 = vmatpush1.msra.mxu0 0.0
        %3501 = vmatprep.subr.mxu0 0.0
        %3502 = vmatpush1.msra.mxu0 0.0
        %3503 = vmatprep.subr.mxu0 0.0
        %3504 = vmatpush1.msra.mxu0 0.0
        %3505 = vmatprep.mubr.f32.mxu0 0.0
        %v3506 = vand.u32 %v3327, 4294901760
        %3507 = vmatmul.mubr.f32.gmra.mrb[0].mxu0 %v3506
        %v3508 = vpop.f32.mrb[0].mxu0
        %v3509 = vadd.f32 %v3408, %v3508
        %v3510 = vpop.f32.mrb[0].mxu0
        %3511 = vmatprep.mubr.f32.mxu0 0.0
        %v3512 = vand.u32 %v3330, 4294901760
        %3513 = vmatmul.mubr.f32.gmra.mrb[0].mxu0 %v3512
        %v3514 = vpop.f32.mrb[0].mxu0
        %v3515 = vadd.f32 %v3418, %v3514
        %v3516 = vpop.f32.mrb[0].mxu0
        %3517 = vdwg.mxu0
        %3518 = vmatprep.subr.mxu0 0.0
        %v3519 = vand.u32 %v3315, 4294901760
        %v3520 = vsub.f32 %v3315, %v3519
        %3521 = vmatpush1.msra.mxu0 %v3520
        %3522 = vmatprep.subr.mxu0 0.0
        %v3523 = vand.u32 %v3316, 4294901760
        %v3524 = vsub.f32 %v3316, %v3523
        %3525 = vmatpush1.msra.mxu0 %v3524
        %3526 = vmatprep.subr.mxu0 0.0
        %v3527 = vand.u32 %v3317, 4294901760
        %v3528 = vsub.f32 %v3317, %v3527
        %3529 = vmatpush1.msra.mxu0 %v3528
        %3530 = vmatprep.subr.mxu0 0.0
        %v3531 = vand.u32 %v3318, 4294901760
        %v3532 = vsub.f32 %v3318, %v3531
        %3533 = vmatpush1.msra.mxu0 %v3532
        %3534 = vmatprep.subr.mxu0 0.0
        %3535 = vmatpush1.msra.mxu0 0.0
        %3536 = vmatprep.subr.mxu0 0.0
        %3537 = vmatpush1.msra.mxu0 0.0
        %3538 = vmatprep.subr.mxu0 0.0
        %3539 = vmatpush1.msra.mxu0 0.0
        %3540 = vmatprep.subr.mxu0 0.0
        %3541 = vmatpush1.msra.mxu0 0.0
        %3542 = vmatprep.subr.mxu0 0.0
        %3543 = vmatpush1.msra.mxu0 0.0
        %3544 = vmatprep.subr.mxu0 0.0
        %3545 = vmatpush1.msra.mxu0 0.0
        %3546 = vmatprep.subr.mxu0 0.0
        %3547 = vmatpush1.msra.mxu0 0.0
        %3548 = vmatprep.subr.mxu0 0.0
        %3549 = vmatpush1.msra.mxu0 0.0
        %3550 = vmatprep.subr.mxu0 0.0
        %3551 = vmatpush1.msra.mxu0 0.0
        %3552 = vmatprep.subr.mxu0 0.0
        %3553 = vmatpush1.msra.mxu0 0.0
        %3554 = vmatprep.subr.mxu0 0.0
        %3555 = vmatpush1.msra.mxu0 0.0
        %3556 = vmatprep.subr.mxu0 0.0
        %3557 = vmatpush1.msra.mxu0 0.0
        %3558 = vmatprep.subr.mxu0 0.0
        %3559 = vmatpush1.msra.mxu0 0.0
        %3560 = vmatprep.subr.mxu0 0.0
        %3561 = vmatpush1.msra.mxu0 0.0
        %3562 = vmatprep.subr.mxu0 0.0
        %3563 = vmatpush1.msra.mxu0 0.0
        %3564 = vmatprep.subr.mxu0 0.0
        %3565 = vmatpush1.msra.mxu0 0.0
        %3566 = vmatprep.subr.mxu0 0.0
        %3567 = vmatpush1.msra.mxu0 0.0
        %3568 = vmatprep.subr.mxu0 0.0
        %3569 = vmatpush1.msra.mxu0 0.0
        %3570 = vmatprep.subr.mxu0 0.0
        %3571 = vmatpush1.msra.mxu0 0.0
        %3572 = vmatprep.subr.mxu0 0.0
        %3573 = vmatpush1.msra.mxu0 0.0
        %3574 = vmatprep.subr.mxu0 0.0
        %3575 = vmatpush1.msra.mxu0 0.0
        %3576 = vmatprep.subr.mxu0 0.0
        %3577 = vmatpush1.msra.mxu0 0.0
        %3578 = vmatprep.subr.mxu0 0.0
        %3579 = vmatpush1.msra.mxu0 0.0
        %3580 = vmatprep.subr.mxu0 0.0
        %3581 = vmatpush1.msra.mxu0 0.0
        %3582 = vmatprep.subr.mxu0 0.0
        %3583 = vmatpush1.msra.mxu0 0.0
        %3584 = vmatprep.subr.mxu0 0.0
        %3585 = vmatpush1.msra.mxu0 0.0
        %3586 = vmatprep.subr.mxu0 0.0
        %3587 = vmatpush1.msra.mxu0 0.0
        %3588 = vmatprep.subr.mxu0 0.0
        %3589 = vmatpush1.msra.mxu0 0.0
        %3590 = vmatprep.mubr.f32.mxu0 0.0
        %v3591 = vand.u32 %v3327, 4294901760
        %v3592 = vsub.f32 %v3327, %v3591
        %3593 = vmatmul.mubr.f32.gmra.mrb[0].mxu0 %v3592
        %v3594 = vpop.f32.mrb[0].mxu0
        %v3595 = vadd.f32 %v3509, %v3594
        %v3596 = vpop.f32.mrb[0].mxu0
        %3597 = vmatprep.mubr.f32.mxu0 0.0
        %v3598 = vand.u32 %v3330, 4294901760
        %v3599 = vsub.f32 %v3330, %v3598
        %3600 = vmatmul.mubr.f32.gmra.mrb[0].mxu0 %v3599
        %v3601 = vpop.f32.mrb[0].mxu0
        %v3602 = vadd.f32 %v3515, %v3601
        %v3603 = vpop.f32.mrb[0].mxu0
        %3604 = vdwg.mxu0
        %3605 = vmatprep.subr.mxu0 0.0
        %v3606 = vand.u32 %v3315, 4294901760
        %3607 = vmatpush1.msra.mxu0 %v3606
        %3608 = vmatprep.subr.mxu0 0.0
        %v3609 = vand.u32 %v3316, 4294901760
        %3610 = vmatpush1.msra.mxu0 %v3609
        %3611 = vmatprep.subr.mxu0 0.0
        %v3612 = vand.u32 %v3317, 4294901760
        %3613 = vmatpush1.msra.mxu0 %v3612
        %3614 = vmatprep.subr.mxu0 0.0
        %v3615 = vand.u32 %v3318, 4294901760
        %3616 = vmatpush1.msra.mxu0 %v3615
        %3617 = vmatprep.subr.mxu0 0.0
        %3618 = vmatpush1.msra.mxu0 0.0
        %3619 = vmatprep.subr.mxu0 0.0
        %3620 = vmatpush1.msra.mxu0 0.0
        %3621 = vmatprep.subr.mxu0 0.0
        %3622 = vmatpush1.msra.mxu0 0.0
        %3623 = vmatprep.subr.mxu0 0.0
        %3624 = vmatpush1.msra.mxu0 0.0
        %3625 = vmatprep.subr.mxu0 0.0
        %3626 = vmatpush1.msra.mxu0 0.0
        %3627 = vmatprep.subr.mxu0 0.0
        %3628 = vmatpush1.msra.mxu0 0.0
        %3629 = vmatprep.subr.mxu0 0.0
        %3630 = vmatpush1.msra.mxu0 0.0
        %3631 = vmatprep.subr.mxu0 0.0
        %3632 = vmatpush1.msra.mxu0 0.0
        %3633 = vmatprep.subr.mxu0 0.0
        %3634 = vmatpush1.msra.mxu0 0.0
        %3635 = vmatprep.subr.mxu0 0.0
        %3636 = vmatpush1.msra.mxu0 0.0
        %3637 = vmatprep.subr.mxu0 0.0
        %3638 = vmatpush1.msra.mxu0 0.0
        %3639 = vmatprep.subr.mxu0 0.0
        %3640 = vmatpush1.msra.mxu0 0.0
        %3641 = vmatprep.subr.mxu0 0.0
        %3642 = vmatpush1.msra.mxu0 0.0
        %3643 = vmatprep.subr.mxu0 0.0
        %3644 = vmatpush1.msra.mxu0 0.0
        %3645 = vmatprep.subr.mxu0 0.0
        %3646 = vmatpush1.msra.mxu0 0.0
        %3647 = vmatprep.subr.mxu0 0.0
        %3648 = vmatpush1.msra.mxu0 0.0
        %3649 = vmatprep.subr.mxu0 0.0
        %3650 = vmatpush1.msra.mxu0 0.0
        %3651 = vmatprep.subr.mxu0 0.0
        %3652 = vmatpush1.msra.mxu0 0.0
        %3653 = vmatprep.subr.mxu0 0.0
        %3654 = vmatpush1.msra.mxu0 0.0
        %3655 = vmatprep.subr.mxu0 0.0
        %3656 = vmatpush1.msra.mxu0 0.0
        %3657 = vmatprep.subr.mxu0 0.0
        %3658 = vmatpush1.msra.mxu0 0.0
        %3659 = vmatprep.subr.mxu0 0.0
        %3660 = vmatpush1.msra.mxu0 0.0
        %3661 = vmatprep.subr.mxu0 0.0
        %3662 = vmatpush1.msra.mxu0 0.0
        %3663 = vmatprep.subr.mxu0 0.0
        %3664 = vmatpush1.msra.mxu0 0.0
        %3665 = vmatprep.subr.mxu0 0.0
        %3666 = vmatpush1.msra.mxu0 0.0
        %3667 = vmatprep.subr.mxu0 0.0
        %3668 = vmatpush1.msra.mxu0 0.0
        %3669 = vmatprep.subr.mxu0 0.0
        %3670 = vmatpush1.msra.mxu0 0.0
        %3671 = vmatprep.subr.mxu0 0.0
        %3672 = vmatpush1.msra.mxu0 0.0
        %3673 = vmatprep.mubr.f32.mxu0 0.0
        %v3674 = vand.u32 %v3327, 4294901760
        %v3675 = vsub.f32 %v3327, %v3674
        %v3676 = vand.u32 %v3675, 4294901760
        %3677 = vmatmul.mubr.f32.gmra.mrb[0].mxu0 %v3676
        %v3678 = vpop.f32.mrb[0].mxu0
        %v3679 = vadd.f32 %v3595, %v3678
        %v3680 = vpop.f32.mrb[0].mxu0
        %3681 = vmatprep.mubr.f32.mxu0 0.0
        %v3682 = vand.u32 %v3330, 4294901760
        %v3683 = vsub.f32 %v3330, %v3682
        %v3684 = vand.u32 %v3683, 4294901760
        %3685 = vmatmul.mubr.f32.gmra.mrb[0].mxu0 %v3684
        %v3686 = vpop.f32.mrb[0].mxu0
        %v3687 = vadd.f32 %v3602, %v3686
        %v3688 = vpop.f32.mrb[0].mxu0
        %3689 = vdwg.mxu0
        %3690 = vmatprep.subr.mxu0 0.0
        %v3691 = vand.u32 %v3315, 4294901760
        %v3692 = vsub.f32 %v3315, %v3691
        %v3693 = vand.u32 %v3692, 4294901760
        %3694 = vmatpush1.msra.mxu0 %v3693
        %3695 = vmatprep.subr.mxu0 0.0
        %v3696 = vand.u32 %v3316, 4294901760
        %v3697 = vsub.f32 %v3316, %v3696
        %v3698 = vand.u32 %v3697, 4294901760
        %3699 = vmatpush1.msra.mxu0 %v3698
        %3700 = vmatprep.subr.mxu0 0.0
        %v3701 = vand.u32 %v3317, 4294901760
        %v3702 = vsub.f32 %v3317, %v3701
        %v3703 = vand.u32 %v3702, 4294901760
        %3704 = vmatpush1.msra.mxu0 %v3703
        %3705 = vmatprep.subr.mxu0 0.0
        %v3706 = vand.u32 %v3318, 4294901760
        %v3707 = vsub.f32 %v3318, %v3706
        %v3708 = vand.u32 %v3707, 4294901760
        %3709 = vmatpush1.msra.mxu0 %v3708
        %3710 = vmatprep.subr.mxu0 0.0
        %3711 = vmatpush1.msra.mxu0 0.0
        %3712 = vmatprep.subr.mxu0 0.0
        %3713 = vmatpush1.msra.mxu0 0.0
        %3714 = vmatprep.subr.mxu0 0.0
        %3715 = vmatpush1.msra.mxu0 0.0
        %3716 = vmatprep.subr.mxu0 0.0
        %3717 = vmatpush1.msra.mxu0 0.0
        %3718 = vmatprep.subr.mxu0 0.0
        %3719 = vmatpush1.msra.mxu0 0.0
        %3720 = vmatprep.subr.mxu0 0.0
        %3721 = vmatpush1.msra.mxu0 0.0
        %3722 = vmatprep.subr.mxu0 0.0
        %3723 = vmatpush1.msra.mxu0 0.0
        %3724 = vmatprep.subr.mxu0 0.0
        %3725 = vmatpush1.msra.mxu0 0.0
        %3726 = vmatprep.subr.mxu0 0.0
        %3727 = vmatpush1.msra.mxu0 0.0
        %3728 = vmatprep.subr.mxu0 0.0
        %3729 = vmatpush1.msra.mxu0 0.0
        %3730 = vmatprep.subr.mxu0 0.0
        %3731 = vmatpush1.msra.mxu0 0.0
        %3732 = vmatprep.subr.mxu0 0.0
        %3733 = vmatpush1.msra.mxu0 0.0
        %3734 = vmatprep.subr.mxu0 0.0
        %3735 = vmatpush1.msra.mxu0 0.0
        %3736 = vmatprep.subr.mxu0 0.0
        %3737 = vmatpush1.msra.mxu0 0.0
        %3738 = vmatprep.subr.mxu0 0.0
        %3739 = vmatpush1.msra.mxu0 0.0
        %3740 = vmatprep.subr.mxu0 0.0
        %3741 = vmatpush1.msra.mxu0 0.0
        %3742 = vmatprep.subr.mxu0 0.0
        %3743 = vmatpush1.msra.mxu0 0.0
        %3744 = vmatprep.subr.mxu0 0.0
        %3745 = vmatpush1.msra.mxu0 0.0
        %3746 = vmatprep.subr.mxu0 0.0
        %3747 = vmatpush1.msra.mxu0 0.0
        %3748 = vmatprep.subr.mxu0 0.0
        %3749 = vmatpush1.msra.mxu0 0.0
        %3750 = vmatprep.subr.mxu0 0.0
        %3751 = vmatpush1.msra.mxu0 0.0
        %3752 = vmatprep.subr.mxu0 0.0
        %3753 = vmatpush1.msra.mxu0 0.0
        %3754 = vmatprep.subr.mxu0 0.0
        %3755 = vmatpush1.msra.mxu0 0.0
        %3756 = vmatprep.subr.mxu0 0.0
        %3757 = vmatpush1.msra.mxu0 0.0
        %3758 = vmatprep.subr.mxu0 0.0
        %3759 = vmatpush1.msra.mxu0 0.0
        %3760 = vmatprep.subr.mxu0 0.0
        %3761 = vmatpush1.msra.mxu0 0.0
        %3762 = vmatprep.subr.mxu0 0.0
        %3763 = vmatpush1.msra.mxu0 0.0
        %3764 = vmatprep.subr.mxu0 0.0
        %3765 = vmatpush1.msra.mxu0 0.0
        %3766 = vmatprep.mubr.f32.mxu0 0.0
        %v3767 = vand.u32 %v3327, 4294901760
        %3768 = vmatmul.mubr.f32.gmra.mrb[0].mxu0 %v3767
        %v3769 = vpop.f32.mrb[0].mxu0
        %v3770 = vadd.f32 %v3679, %v3769
        %v3771 = vpop.f32.mrb[0].mxu0
        %3772 = vmatprep.mubr.f32.mxu0 0.0
        %v3773 = vand.u32 %v3330, 4294901760
        %3774 = vmatmul.mubr.f32.gmra.mrb[0].mxu0 %v3773
        %v3775 = vpop.f32.mrb[0].mxu0
        %v3776 = vadd.f32 %v3687, %v3775
        %v3777 = vpop.f32.mrb[0].mxu0
        %3778 = vdwg.mxu0
        %3779 = vmatprep.subr.mxu0 0.0
        %v3780 = vand.u32 %v3315, 4294901760
        %3781 = vmatpush1.msra.mxu0 %v3780
        %3782 = vmatprep.subr.mxu0 0.0
        %v3783 = vand.u32 %v3316, 4294901760
        %3784 = vmatpush1.msra.mxu0 %v3783
        %3785 = vmatprep.subr.mxu0 0.0
        %v3786 = vand.u32 %v3317, 4294901760
        %3787 = vmatpush1.msra.mxu0 %v3786
        %3788 = vmatprep.subr.mxu0 0.0
        %v3789 = vand.u32 %v3318, 4294901760
        %3790 = vmatpush1.msra.mxu0 %v3789
        %3791 = vmatprep.subr.mxu0 0.0
        %3792 = vmatpush1.msra.mxu0 0.0
        %3793 = vmatprep.subr.mxu0 0.0
        %3794 = vmatpush1.msra.mxu0 0.0
        %3795 = vmatprep.subr.mxu0 0.0
        %3796 = vmatpush1.msra.mxu0 0.0
        %3797 = vmatprep.subr.mxu0 0.0
        %3798 = vmatpush1.msra.mxu0 0.0
        %3799 = vmatprep.subr.mxu0 0.0
        %3800 = vmatpush1.msra.mxu0 0.0
        %3801 = vmatprep.subr.mxu0 0.0
        %3802 = vmatpush1.msra.mxu0 0.0
        %3803 = vmatprep.subr.mxu0 0.0
        %3804 = vmatpush1.msra.mxu0 0.0
        %3805 = vmatprep.subr.mxu0 0.0
        %3806 = vmatpush1.msra.mxu0 0.0
        %3807 = vmatprep.subr.mxu0 0.0
        %3808 = vmatpush1.msra.mxu0 0.0
        %3809 = vmatprep.subr.mxu0 0.0
        %3810 = vmatpush1.msra.mxu0 0.0
        %3811 = vmatprep.subr.mxu0 0.0
        %3812 = vmatpush1.msra.mxu0 0.0
        %3813 = vmatprep.subr.mxu0 0.0
        %3814 = vmatpush1.msra.mxu0 0.0
        %3815 = vmatprep.subr.mxu0 0.0
        %3816 = vmatpush1.msra.mxu0 0.0
        %3817 = vmatprep.subr.mxu0 0.0
        %3818 = vmatpush1.msra.mxu0 0.0
        %3819 = vmatprep.subr.mxu0 0.0
        %3820 = vmatpush1.msra.mxu0 0.0
        %3821 = vmatprep.subr.mxu0 0.0
        %3822 = vmatpush1.msra.mxu0 0.0
        %3823 = vmatprep.subr.mxu0 0.0
        %3824 = vmatpush1.msra.mxu0 0.0
        %3825 = vmatprep.subr.mxu0 0.0
        %3826 = vmatpush1.msra.mxu0 0.0
        %3827 = vmatprep.subr.mxu0 0.0
        %3828 = vmatpush1.msra.mxu0 0.0
        %3829 = vmatprep.subr.mxu0 0.0
        %3830 = vmatpush1.msra.mxu0 0.0
        %3831 = vmatprep.subr.mxu0 0.0
        %3832 = vmatpush1.msra.mxu0 0.0
        %3833 = vmatprep.subr.mxu0 0.0
        %3834 = vmatpush1.msra.mxu0 0.0
        %3835 = vmatprep.subr.mxu0 0.0
        %3836 = vmatpush1.msra.mxu0 0.0
        %3837 = vmatprep.subr.mxu0 0.0
        %3838 = vmatpush1.msra.mxu0 0.0
        %3839 = vmatprep.subr.mxu0 0.0
        %3840 = vmatpush1.msra.mxu0 0.0
        %3841 = vmatprep.subr.mxu0 0.0
        %3842 = vmatpush1.msra.mxu0 0.0
        %3843 = vmatprep.subr.mxu0 0.0
        %3844 = vmatpush1.msra.mxu0 0.0
        %3845 = vmatprep.subr.mxu0 0.0
        %3846 = vmatpush1.msra.mxu0 0.0
        %3847 = vmatprep.mubr.f32.mxu0 0.0
        %v3848 = vand.u32 %v3327, 4294901760
        %3849 = vmatmul.mubr.f32.gmra.mrb[0].mxu0 %v3848
        %v3850 = vpop.f32.mrb[0].mxu0
        %v3851 = vadd.f32 %v3770, %v3850
        %v3852 = vpop.f32.mrb[0].mxu0
        %3853 = vmatprep.mubr.f32.mxu0 0.0
        %v3854 = vand.u32 %v3330, 4294901760
        %3855 = vmatmul.mubr.f32.gmra.mrb[0].mxu0 %v3854
        %v3856 = vpop.f32.mrb[0].mxu0
        %v3857 = vadd.f32 %v3776, %v3856
        %v3858 = vpop.f32.mrb[0].mxu0
        %3859 = vdwg.mxu0
        %v3860 = vmax.f32 %v3851, 0.0
        %v3861 = vmax.f32 %v3857, 0.0
        %v3863 = vsel %vm1697, %v3860, 0
        %v3866 = vsel %vm1697, %v3861, 0
        %3868 = vmatprep.subr.mxu0 0.0
        %v3869 = vand.u32 %v1682, 4294901760
        %3870 = vmatpush1.msra.mxu0 %v3869
        %3871 = vmatprep.subr.mxu0 0.0
        %v3872 = vand.u32 %v1683, 4294901760
        %3873 = vmatpush1.msra.mxu0 %v3872
        %3874 = vmatprep.subr.mxu0 0.0
        %v3875 = vand.u32 %v1684, 4294901760
        %3876 = vmatpush1.msra.mxu0 %v3875
        %3877 = vmatprep.subr.mxu0 0.0
        %v3878 = vand.u32 %v1685, 4294901760
        %3879 = vmatpush1.msra.mxu0 %v3878
        %3880 = vmatprep.subr.mxu0 0.0
        %v3881 = vand.u32 %v1686, 4294901760
        %3882 = vmatpush1.msra.mxu0 %v3881
        %3883 = vmatprep.subr.mxu0 0.0
        %v3884 = vand.u32 %v1687, 4294901760
        %3885 = vmatpush1.msra.mxu0 %v3884
        %3886 = vmatprep.subr.mxu0 0.0
        %v3887 = vand.u32 %v1688, 4294901760
        %3888 = vmatpush1.msra.mxu0 %v3887
        %3889 = vmatprep.subr.mxu0 0.0
        %v3890 = vand.u32 %v1689, 4294901760
        %3891 = vmatpush1.msra.mxu0 %v3890
        %3892 = vmatprep.subr.mxu0 0.0
        %3893 = vmatpush1.msra.mxu0 0.0
        %3894 = vmatprep.subr.mxu0 0.0
        %3895 = vmatpush1.msra.mxu0 0.0
        %3896 = vmatprep.subr.mxu0 0.0
        %3897 = vmatpush1.msra.mxu0 0.0
        %3898 = vmatprep.subr.mxu0 0.0
        %3899 = vmatpush1.msra.mxu0 0.0
        %3900 = vmatprep.subr.mxu0 0.0
        %3901 = vmatpush1.msra.mxu0 0.0
        %3902 = vmatprep.subr.mxu0 0.0
        %3903 = vmatpush1.msra.mxu0 0.0
        %3904 = vmatprep.subr.mxu0 0.0
        %3905 = vmatpush1.msra.mxu0 0.0
        %3906 = vmatprep.subr.mxu0 0.0
        %3907 = vmatpush1.msra.mxu0 0.0
        %3908 = vmatprep.subr.mxu0 0.0
        %3909 = vmatpush1.msra.mxu0 0.0
        %3910 = vmatprep.subr.mxu0 0.0
        %3911 = vmatpush1.msra.mxu0 0.0
        %3912 = vmatprep.subr.mxu0 0.0
        %3913 = vmatpush1.msra.mxu0 0.0
        %3914 = vmatprep.subr.mxu0 0.0
        %3915 = vmatpush1.msra.mxu0 0.0
        %3916 = vmatprep.subr.mxu0 0.0
        %3917 = vmatpush1.msra.mxu0 0.0
        %3918 = vmatprep.subr.mxu0 0.0
        %3919 = vmatpush1.msra.mxu0 0.0
        %3920 = vmatprep.subr.mxu0 0.0
        %3921 = vmatpush1.msra.mxu0 0.0
        %3922 = vmatprep.subr.mxu0 0.0
        %3923 = vmatpush1.msra.mxu0 0.0
        %3924 = vmatprep.subr.mxu0 0.0
        %3925 = vmatpush1.msra.mxu0 0.0
        %3926 = vmatprep.subr.mxu0 0.0
        %3927 = vmatpush1.msra.mxu0 0.0
        %3928 = vmatprep.subr.mxu0 0.0
        %3929 = vmatpush1.msra.mxu0 0.0
        %3930 = vmatprep.subr.mxu0 0.0
        %3931 = vmatpush1.msra.mxu0 0.0
        %3932 = vmatprep.subr.mxu0 0.0
        %3933 = vmatpush1.msra.mxu0 0.0
        %3934 = vmatprep.subr.mxu0 0.0
        %3935 = vmatpush1.msra.mxu0 0.0
        %3936 = vmatprep.subr.mxu0 0.0
        %3937 = vmatpush1.msra.mxu0 0.0
        %3938 = vmatprep.subr.mxu0 0.0
        %3939 = vmatpush1.msra.mxu0 0.0
        %3940 = vmatprep.mubr.f32.mxu0 0.0
        %v3941 = vand.u32 %v3863, 4294901760
        %v3942 = vsub.f32 %v3863, %v3941
        %v3943 = vand.u32 %v3942, 4294901760
        %v3944 = vsub.f32 %v3942, %v3943
        %v3945 = vand.u32 %v3944, 4294901760
        %3946 = vmatmul.mubr.f32.gmra.mrb[0].mxu0 %v3945
        %v3947 = vpop.f32.mrb[0].mxu0
        %v3948 = vadd.f32 %v1695, %v3947
        %v3949 = vpop.f32.mrb[0].mxu0
        %3950 = vmatprep.mubr.f32.mxu0 0.0
        %v3951 = vand.u32 %v3866, 4294901760
        %v3952 = vsub.f32 %v3866, %v3951
        %v3953 = vand.u32 %v3952, 4294901760
        %v3954 = vsub.f32 %v3952, %v3953
        %v3955 = vand.u32 %v3954, 4294901760
        %3956 = vmatmul.mubr.f32.gmra.mrb[0].mxu0 %v3955
        %v3957 = vpop.f32.mrb[0].mxu0
        %v3958 = vadd.f32 %v1695, %v3957
        %v3959 = vpop.f32.mrb[0].mxu0
        %3960 = vdwg.mxu0
        %3961 = vmatprep.subr.mxu0 0.0
        %v3962 = vand.u32 %v1682, 4294901760
        %v3963 = vsub.f32 %v1682, %v3962
        %v3964 = vand.u32 %v3963, 4294901760
        %v3965 = vsub.f32 %v3963, %v3964
        %v3966 = vand.u32 %v3965, 4294901760
        %3967 = vmatpush1.msra.mxu0 %v3966
        %3968 = vmatprep.subr.mxu0 0.0
        %v3969 = vand.u32 %v1683, 4294901760
        %v3970 = vsub.f32 %v1683, %v3969
        %v3971 = vand.u32 %v3970, 4294901760
        %v3972 = vsub.f32 %v3970, %v3971
        %v3973 = vand.u32 %v3972, 4294901760
        %3974 = vmatpush1.msra.mxu0 %v3973
        %3975 = vmatprep.subr.mxu0 0.0
        %v3976 = vand.u32 %v1684, 4294901760
        %v3977 = vsub.f32 %v1684, %v3976
        %v3978 = vand.u32 %v3977, 4294901760
        %v3979 = vsub.f32 %v3977, %v3978
        %v3980 = vand.u32 %v3979, 4294901760
        %3981 = vmatpush1.msra.mxu0 %v3980
        %3982 = vmatprep.subr.mxu0 0.0
        %v3983 = vand.u32 %v1685, 4294901760
        %v3984 = vsub.f32 %v1685, %v3983
        %v3985 = vand.u32 %v3984, 4294901760
        %v3986 = vsub.f32 %v3984, %v3985
        %v3987 = vand.u32 %v3986, 4294901760
        %3988 = vmatpush1.msra.mxu0 %v3987
        %3989 = vmatprep.subr.mxu0 0.0
        %v3990 = vand.u32 %v1686, 4294901760
        %v3991 = vsub.f32 %v1686, %v3990
        %v3992 = vand.u32 %v3991, 4294901760
        %v3993 = vsub.f32 %v3991, %v3992
        %v3994 = vand.u32 %v3993, 4294901760
        %3995 = vmatpush1.msra.mxu0 %v3994
        %3996 = vmatprep.subr.mxu0 0.0
        %v3997 = vand.u32 %v1687, 4294901760
        %v3998 = vsub.f32 %v1687, %v3997
        %v3999 = vand.u32 %v3998, 4294901760
        %v4000 = vsub.f32 %v3998, %v3999
        %v4001 = vand.u32 %v4000, 4294901760
        %4002 = vmatpush1.msra.mxu0 %v4001
        %4003 = vmatprep.subr.mxu0 0.0
        %v4004 = vand.u32 %v1688, 4294901760
        %v4005 = vsub.f32 %v1688, %v4004
        %v4006 = vand.u32 %v4005, 4294901760
        %v4007 = vsub.f32 %v4005, %v4006
        %v4008 = vand.u32 %v4007, 4294901760
        %4009 = vmatpush1.msra.mxu0 %v4008
        %4010 = vmatprep.subr.mxu0 0.0
        %v4011 = vand.u32 %v1689, 4294901760
        %v4012 = vsub.f32 %v1689, %v4011
        %v4013 = vand.u32 %v4012, 4294901760
        %v4014 = vsub.f32 %v4012, %v4013
        %v4015 = vand.u32 %v4014, 4294901760
        %4016 = vmatpush1.msra.mxu0 %v4015
        %4017 = vmatprep.subr.mxu0 0.0
        %4018 = vmatpush1.msra.mxu0 0.0
        %4019 = vmatprep.subr.mxu0 0.0
        %4020 = vmatpush1.msra.mxu0 0.0
        %4021 = vmatprep.subr.mxu0 0.0
        %4022 = vmatpush1.msra.mxu0 0.0
        %4023 = vmatprep.subr.mxu0 0.0
        %4024 = vmatpush1.msra.mxu0 0.0
        %4025 = vmatprep.subr.mxu0 0.0
        %4026 = vmatpush1.msra.mxu0 0.0
        %4027 = vmatprep.subr.mxu0 0.0
        %4028 = vmatpush1.msra.mxu0 0.0
        %4029 = vmatprep.subr.mxu0 0.0
        %4030 = vmatpush1.msra.mxu0 0.0
        %4031 = vmatprep.subr.mxu0 0.0
        %4032 = vmatpush1.msra.mxu0 0.0
        %4033 = vmatprep.subr.mxu0 0.0
        %4034 = vmatpush1.msra.mxu0 0.0
        %4035 = vmatprep.subr.mxu0 0.0
        %4036 = vmatpush1.msra.mxu0 0.0
        %4037 = vmatprep.subr.mxu0 0.0
        %4038 = vmatpush1.msra.mxu0 0.0
        %4039 = vmatprep.subr.mxu0 0.0
        %4040 = vmatpush1.msra.mxu0 0.0
        %4041 = vmatprep.subr.mxu0 0.0
        %4042 = vmatpush1.msra.mxu0 0.0
        %4043 = vmatprep.subr.mxu0 0.0
        %4044 = vmatpush1.msra.mxu0 0.0
        %4045 = vmatprep.subr.mxu0 0.0
        %4046 = vmatpush1.msra.mxu0 0.0
        %4047 = vmatprep.subr.mxu0 0.0
        %4048 = vmatpush1.msra.mxu0 0.0
        %4049 = vmatprep.subr.mxu0 0.0
        %4050 = vmatpush1.msra.mxu0 0.0
        %4051 = vmatprep.subr.mxu0 0.0
        %4052 = vmatpush1.msra.mxu0 0.0
        %4053 = vmatprep.subr.mxu0 0.0
        %4054 = vmatpush1.msra.mxu0 0.0
        %4055 = vmatprep.subr.mxu0 0.0
        %4056 = vmatpush1.msra.mxu0 0.0
        %4057 = vmatprep.subr.mxu0 0.0
        %4058 = vmatpush1.msra.mxu0 0.0
        %4059 = vmatprep.subr.mxu0 0.0
        %4060 = vmatpush1.msra.mxu0 0.0
        %4061 = vmatprep.subr.mxu0 0.0
        %4062 = vmatpush1.msra.mxu0 0.0
        %4063 = vmatprep.subr.mxu0 0.0
        %4064 = vmatpush1.msra.mxu0 0.0
        %4065 = vmatprep.mubr.f32.mxu0 0.0
        %v4066 = vand.u32 %v3863, 4294901760
        %4067 = vmatmul.mubr.f32.gmra.mrb[0].mxu0 %v4066
        %v4068 = vpop.f32.mrb[0].mxu0
        %v4069 = vadd.f32 %v3948, %v4068
        %v4070 = vpop.f32.mrb[0].mxu0
        %4071 = vmatprep.mubr.f32.mxu0 0.0
        %v4072 = vand.u32 %v3866, 4294901760
        %4073 = vmatmul.mubr.f32.gmra.mrb[0].mxu0 %v4072
        %v4074 = vpop.f32.mrb[0].mxu0
        %v4075 = vadd.f32 %v3958, %v4074
        %v4076 = vpop.f32.mrb[0].mxu0
        %4077 = vdwg.mxu0
        %4078 = vmatprep.subr.mxu0 0.0
        %v4079 = vand.u32 %v1682, 4294901760
        %v4080 = vsub.f32 %v1682, %v4079
        %4081 = vmatpush1.msra.mxu0 %v4080
        %4082 = vmatprep.subr.mxu0 0.0
        %v4083 = vand.u32 %v1683, 4294901760
        %v4084 = vsub.f32 %v1683, %v4083
        %4085 = vmatpush1.msra.mxu0 %v4084
        %4086 = vmatprep.subr.mxu0 0.0
        %v4087 = vand.u32 %v1684, 4294901760
        %v4088 = vsub.f32 %v1684, %v4087
        %4089 = vmatpush1.msra.mxu0 %v4088
        %4090 = vmatprep.subr.mxu0 0.0
        %v4091 = vand.u32 %v1685, 4294901760
        %v4092 = vsub.f32 %v1685, %v4091
        %4093 = vmatpush1.msra.mxu0 %v4092
        %4094 = vmatprep.subr.mxu0 0.0
        %v4095 = vand.u32 %v1686, 4294901760
        %v4096 = vsub.f32 %v1686, %v4095
        %4097 = vmatpush1.msra.mxu0 %v4096
        %4098 = vmatprep.subr.mxu0 0.0
        %v4099 = vand.u32 %v1687, 4294901760
        %v4100 = vsub.f32 %v1687, %v4099
        %4101 = vmatpush1.msra.mxu0 %v4100
        %4102 = vmatprep.subr.mxu0 0.0
        %v4103 = vand.u32 %v1688, 4294901760
        %v4104 = vsub.f32 %v1688, %v4103
        %4105 = vmatpush1.msra.mxu0 %v4104
        %4106 = vmatprep.subr.mxu0 0.0
        %v4107 = vand.u32 %v1689, 4294901760
        %v4108 = vsub.f32 %v1689, %v4107
        %4109 = vmatpush1.msra.mxu0 %v4108
        %4110 = vmatprep.subr.mxu0 0.0
        %4111 = vmatpush1.msra.mxu0 0.0
        %4112 = vmatprep.subr.mxu0 0.0
        %4113 = vmatpush1.msra.mxu0 0.0
        %4114 = vmatprep.subr.mxu0 0.0
        %4115 = vmatpush1.msra.mxu0 0.0
        %4116 = vmatprep.subr.mxu0 0.0
        %4117 = vmatpush1.msra.mxu0 0.0
        %4118 = vmatprep.subr.mxu0 0.0
        %4119 = vmatpush1.msra.mxu0 0.0
        %4120 = vmatprep.subr.mxu0 0.0
        %4121 = vmatpush1.msra.mxu0 0.0
        %4122 = vmatprep.subr.mxu0 0.0
        %4123 = vmatpush1.msra.mxu0 0.0
        %4124 = vmatprep.subr.mxu0 0.0
        %4125 = vmatpush1.msra.mxu0 0.0
        %4126 = vmatprep.subr.mxu0 0.0
        %4127 = vmatpush1.msra.mxu0 0.0
        %4128 = vmatprep.subr.mxu0 0.0
        %4129 = vmatpush1.msra.mxu0 0.0
        %4130 = vmatprep.subr.mxu0 0.0
        %4131 = vmatpush1.msra.mxu0 0.0
        %4132 = vmatprep.subr.mxu0 0.0
        %4133 = vmatpush1.msra.mxu0 0.0
        %4134 = vmatprep.subr.mxu0 0.0
        %4135 = vmatpush1.msra.mxu0 0.0
        %4136 = vmatprep.subr.mxu0 0.0
        %4137 = vmatpush1.msra.mxu0 0.0
        %4138 = vmatprep.subr.mxu0 0.0
        %4139 = vmatpush1.msra.mxu0 0.0
        %4140 = vmatprep.subr.mxu0 0.0
        %4141 = vmatpush1.msra.mxu0 0.0
        %4142 = vmatprep.subr.mxu0 0.0
        %4143 = vmatpush1.msra.mxu0 0.0
        %4144 = vmatprep.subr.mxu0 0.0
        %4145 = vmatpush1.msra.mxu0 0.0
        %4146 = vmatprep.subr.mxu0 0.0
        %4147 = vmatpush1.msra.mxu0 0.0
        %4148 = vmatprep.subr.mxu0 0.0
        %4149 = vmatpush1.msra.mxu0 0.0
        %4150 = vmatprep.subr.mxu0 0.0
        %4151 = vmatpush1.msra.mxu0 0.0
        %4152 = vmatprep.subr.mxu0 0.0
        %4153 = vmatpush1.msra.mxu0 0.0
        %4154 = vmatprep.subr.mxu0 0.0
        %4155 = vmatpush1.msra.mxu0 0.0
        %4156 = vmatprep.subr.mxu0 0.0
        %4157 = vmatpush1.msra.mxu0 0.0
        %4158 = vmatprep.mubr.f32.mxu0 0.0
        %v4159 = vand.u32 %v3863, 4294901760
        %v4160 = vsub.f32 %v3863, %v4159
        %4161 = vmatmul.mubr.f32.gmra.mrb[0].mxu0 %v4160
        %v4162 = vpop.f32.mrb[0].mxu0
        %v4163 = vadd.f32 %v4069, %v4162
        %v4164 = vpop.f32.mrb[0].mxu0
        %4165 = vmatprep.mubr.f32.mxu0 0.0
        %v4166 = vand.u32 %v3866, 4294901760
        %v4167 = vsub.f32 %v3866, %v4166
        %4168 = vmatmul.mubr.f32.gmra.mrb[0].mxu0 %v4167
        %v4169 = vpop.f32.mrb[0].mxu0
        %v4170 = vadd.f32 %v4075, %v4169
        %v4171 = vpop.f32.mrb[0].mxu0
        %4172 = vdwg.mxu0
        %4173 = vmatprep.subr.mxu0 0.0
        %v4174 = vand.u32 %v1682, 4294901760
        %4175 = vmatpush1.msra.mxu0 %v4174
        %4176 = vmatprep.subr.mxu0 0.0
        %v4177 = vand.u32 %v1683, 4294901760
        %4178 = vmatpush1.msra.mxu0 %v4177
        %4179 = vmatprep.subr.mxu0 0.0
        %v4180 = vand.u32 %v1684, 4294901760
        %4181 = vmatpush1.msra.mxu0 %v4180
        %4182 = vmatprep.subr.mxu0 0.0
        %v4183 = vand.u32 %v1685, 4294901760
        %4184 = vmatpush1.msra.mxu0 %v4183
        %4185 = vmatprep.subr.mxu0 0.0
        %v4186 = vand.u32 %v1686, 4294901760
        %4187 = vmatpush1.msra.mxu0 %v4186
        %4188 = vmatprep.subr.mxu0 0.0
        %v4189 = vand.u32 %v1687, 4294901760
        %4190 = vmatpush1.msra.mxu0 %v4189
        %4191 = vmatprep.subr.mxu0 0.0
        %v4192 = vand.u32 %v1688, 4294901760
        %4193 = vmatpush1.msra.mxu0 %v4192
        %4194 = vmatprep.subr.mxu0 0.0
        %v4195 = vand.u32 %v1689, 4294901760
        %4196 = vmatpush1.msra.mxu0 %v4195
        %4197 = vmatprep.subr.mxu0 0.0
        %4198 = vmatpush1.msra.mxu0 0.0
        %4199 = vmatprep.subr.mxu0 0.0
        %4200 = vmatpush1.msra.mxu0 0.0
        %4201 = vmatprep.subr.mxu0 0.0
        %4202 = vmatpush1.msra.mxu0 0.0
        %4203 = vmatprep.subr.mxu0 0.0
        %4204 = vmatpush1.msra.mxu0 0.0
        %4205 = vmatprep.subr.mxu0 0.0
        %4206 = vmatpush1.msra.mxu0 0.0
        %4207 = vmatprep.subr.mxu0 0.0
        %4208 = vmatpush1.msra.mxu0 0.0
        %4209 = vmatprep.subr.mxu0 0.0
        %4210 = vmatpush1.msra.mxu0 0.0
        %4211 = vmatprep.subr.mxu0 0.0
        %4212 = vmatpush1.msra.mxu0 0.0
        %4213 = vmatprep.subr.mxu0 0.0
        %4214 = vmatpush1.msra.mxu0 0.0
        %4215 = vmatprep.subr.mxu0 0.0
        %4216 = vmatpush1.msra.mxu0 0.0
        %4217 = vmatprep.subr.mxu0 0.0
        %4218 = vmatpush1.msra.mxu0 0.0
        %4219 = vmatprep.subr.mxu0 0.0
        %4220 = vmatpush1.msra.mxu0 0.0
        %4221 = vmatprep.subr.mxu0 0.0
        %4222 = vmatpush1.msra.mxu0 0.0
        %4223 = vmatprep.subr.mxu0 0.0
        %4224 = vmatpush1.msra.mxu0 0.0
        %4225 = vmatprep.subr.mxu0 0.0
        %4226 = vmatpush1.msra.mxu0 0.0
        %4227 = vmatprep.subr.mxu0 0.0
        %4228 = vmatpush1.msra.mxu0 0.0
        %4229 = vmatprep.subr.mxu0 0.0
        %4230 = vmatpush1.msra.mxu0 0.0
        %4231 = vmatprep.subr.mxu0 0.0
        %4232 = vmatpush1.msra.mxu0 0.0
        %4233 = vmatprep.subr.mxu0 0.0
        %4234 = vmatpush1.msra.mxu0 0.0
        %4235 = vmatprep.subr.mxu0 0.0
        %4236 = vmatpush1.msra.mxu0 0.0
        %4237 = vmatprep.subr.mxu0 0.0
        %4238 = vmatpush1.msra.mxu0 0.0
        %4239 = vmatprep.subr.mxu0 0.0
        %4240 = vmatpush1.msra.mxu0 0.0
        %4241 = vmatprep.subr.mxu0 0.0
        %4242 = vmatpush1.msra.mxu0 0.0
        %4243 = vmatprep.subr.mxu0 0.0
        %4244 = vmatpush1.msra.mxu0 0.0
        %4245 = vmatprep.mubr.f32.mxu0 0.0
        %v4246 = vand.u32 %v3863, 4294901760
        %v4247 = vsub.f32 %v3863, %v4246
        %v4248 = vand.u32 %v4247, 4294901760
        %4249 = vmatmul.mubr.f32.gmra.mrb[0].mxu0 %v4248
        %v4250 = vpop.f32.mrb[0].mxu0
        %v4251 = vadd.f32 %v4163, %v4250
        %v4252 = vpop.f32.mrb[0].mxu0
        %4253 = vmatprep.mubr.f32.mxu0 0.0
        %v4254 = vand.u32 %v3866, 4294901760
        %v4255 = vsub.f32 %v3866, %v4254
        %v4256 = vand.u32 %v4255, 4294901760
        %4257 = vmatmul.mubr.f32.gmra.mrb[0].mxu0 %v4256
        %v4258 = vpop.f32.mrb[0].mxu0
        %v4259 = vadd.f32 %v4170, %v4258
        %v4260 = vpop.f32.mrb[0].mxu0
        %4261 = vdwg.mxu0
        %4262 = vmatprep.subr.mxu0 0.0
        %v4263 = vand.u32 %v1682, 4294901760
        %v4264 = vsub.f32 %v1682, %v4263
        %v4265 = vand.u32 %v4264, 4294901760
        %4266 = vmatpush1.msra.mxu0 %v4265
        %4267 = vmatprep.subr.mxu0 0.0
        %v4268 = vand.u32 %v1683, 4294901760
        %v4269 = vsub.f32 %v1683, %v4268
        %v4270 = vand.u32 %v4269, 4294901760
        %4271 = vmatpush1.msra.mxu0 %v4270
        %4272 = vmatprep.subr.mxu0 0.0
        %v4273 = vand.u32 %v1684, 4294901760
        %v4274 = vsub.f32 %v1684, %v4273
        %v4275 = vand.u32 %v4274, 4294901760
        %4276 = vmatpush1.msra.mxu0 %v4275
        %4277 = vmatprep.subr.mxu0 0.0
        %v4278 = vand.u32 %v1685, 4294901760
        %v4279 = vsub.f32 %v1685, %v4278
        %v4280 = vand.u32 %v4279, 4294901760
        %4281 = vmatpush1.msra.mxu0 %v4280
        %4282 = vmatprep.subr.mxu0 0.0
        %v4283 = vand.u32 %v1686, 4294901760
        %v4284 = vsub.f32 %v1686, %v4283
        %v4285 = vand.u32 %v4284, 4294901760
        %4286 = vmatpush1.msra.mxu0 %v4285
        %4287 = vmatprep.subr.mxu0 0.0
        %v4288 = vand.u32 %v1687, 4294901760
        %v4289 = vsub.f32 %v1687, %v4288
        %v4290 = vand.u32 %v4289, 4294901760
        %4291 = vmatpush1.msra.mxu0 %v4290
        %4292 = vmatprep.subr.mxu0 0.0
        %v4293 = vand.u32 %v1688, 4294901760
        %v4294 = vsub.f32 %v1688, %v4293
        %v4295 = vand.u32 %v4294, 4294901760
        %4296 = vmatpush1.msra.mxu0 %v4295
        %4297 = vmatprep.subr.mxu0 0.0
        %v4298 = vand.u32 %v1689, 4294901760
        %v4299 = vsub.f32 %v1689, %v4298
        %v4300 = vand.u32 %v4299, 4294901760
        %4301 = vmatpush1.msra.mxu0 %v4300
        %4302 = vmatprep.subr.mxu0 0.0
        %4303 = vmatpush1.msra.mxu0 0.0
        %4304 = vmatprep.subr.mxu0 0.0
        %4305 = vmatpush1.msra.mxu0 0.0
        %4306 = vmatprep.subr.mxu0 0.0
        %4307 = vmatpush1.msra.mxu0 0.0
        %4308 = vmatprep.subr.mxu0 0.0
        %4309 = vmatpush1.msra.mxu0 0.0
        %4310 = vmatprep.subr.mxu0 0.0
        %4311 = vmatpush1.msra.mxu0 0.0
        %4312 = vmatprep.subr.mxu0 0.0
        %4313 = vmatpush1.msra.mxu0 0.0
        %4314 = vmatprep.subr.mxu0 0.0
        %4315 = vmatpush1.msra.mxu0 0.0
        %4316 = vmatprep.subr.mxu0 0.0
        %4317 = vmatpush1.msra.mxu0 0.0
        %4318 = vmatprep.subr.mxu0 0.0
        %4319 = vmatpush1.msra.mxu0 0.0
        %4320 = vmatprep.subr.mxu0 0.0
        %4321 = vmatpush1.msra.mxu0 0.0
        %4322 = vmatprep.subr.mxu0 0.0
        %4323 = vmatpush1.msra.mxu0 0.0
        %4324 = vmatprep.subr.mxu0 0.0
        %4325 = vmatpush1.msra.mxu0 0.0
        %4326 = vmatprep.subr.mxu0 0.0
        %4327 = vmatpush1.msra.mxu0 0.0
        %4328 = vmatprep.subr.mxu0 0.0
        %4329 = vmatpush1.msra.mxu0 0.0
        %4330 = vmatprep.subr.mxu0 0.0
        %4331 = vmatpush1.msra.mxu0 0.0
        %4332 = vmatprep.subr.mxu0 0.0
        %4333 = vmatpush1.msra.mxu0 0.0
        %4334 = vmatprep.subr.mxu0 0.0
        %4335 = vmatpush1.msra.mxu0 0.0
        %4336 = vmatprep.subr.mxu0 0.0
        %4337 = vmatpush1.msra.mxu0 0.0
        %4338 = vmatprep.subr.mxu0 0.0
        %4339 = vmatpush1.msra.mxu0 0.0
        %4340 = vmatprep.subr.mxu0 0.0
        %4341 = vmatpush1.msra.mxu0 0.0
        %4342 = vmatprep.subr.mxu0 0.0
        %4343 = vmatpush1.msra.mxu0 0.0
        %4344 = vmatprep.subr.mxu0 0.0
        %4345 = vmatpush1.msra.mxu0 0.0
        %4346 = vmatprep.subr.mxu0 0.0
        %4347 = vmatpush1.msra.mxu0 0.0
        %4348 = vmatprep.subr.mxu0 0.0
        %4349 = vmatpush1.msra.mxu0 0.0
        %4350 = vmatprep.mubr.f32.mxu0 0.0
        %v4351 = vand.u32 %v3863, 4294901760
        %4352 = vmatmul.mubr.f32.gmra.mrb[0].mxu0 %v4351
        %v4353 = vpop.f32.mrb[0].mxu0
        %v4354 = vadd.f32 %v4251, %v4353
        %v4355 = vpop.f32.mrb[0].mxu0
        %4356 = vmatprep.mubr.f32.mxu0 0.0
        %v4357 = vand.u32 %v3866, 4294901760
        %4358 = vmatmul.mubr.f32.gmra.mrb[0].mxu0 %v4357
        %v4359 = vpop.f32.mrb[0].mxu0
        %v4360 = vadd.f32 %v4259, %v4359
        %v4361 = vpop.f32.mrb[0].mxu0
        %4362 = vdwg.mxu0
        %4363 = vmatprep.subr.mxu0 0.0
        %v4364 = vand.u32 %v1682, 4294901760
        %4365 = vmatpush1.msra.mxu0 %v4364
        %4366 = vmatprep.subr.mxu0 0.0
        %v4367 = vand.u32 %v1683, 4294901760
        %4368 = vmatpush1.msra.mxu0 %v4367
        %4369 = vmatprep.subr.mxu0 0.0
        %v4370 = vand.u32 %v1684, 4294901760
        %4371 = vmatpush1.msra.mxu0 %v4370
        %4372 = vmatprep.subr.mxu0 0.0
        %v4373 = vand.u32 %v1685, 4294901760
        %4374 = vmatpush1.msra.mxu0 %v4373
        %4375 = vmatprep.subr.mxu0 0.0
        %v4376 = vand.u32 %v1686, 4294901760
        %4377 = vmatpush1.msra.mxu0 %v4376
        %4378 = vmatprep.subr.mxu0 0.0
        %v4379 = vand.u32 %v1687, 4294901760
        %4380 = vmatpush1.msra.mxu0 %v4379
        %4381 = vmatprep.subr.mxu0 0.0
        %v4382 = vand.u32 %v1688, 4294901760
        %4383 = vmatpush1.msra.mxu0 %v4382
        %4384 = vmatprep.subr.mxu0 0.0
        %v4385 = vand.u32 %v1689, 4294901760
        %4386 = vmatpush1.msra.mxu0 %v4385
        %4387 = vmatprep.subr.mxu0 0.0
        %4388 = vmatpush1.msra.mxu0 0.0
        %4389 = vmatprep.subr.mxu0 0.0
        %4390 = vmatpush1.msra.mxu0 0.0
        %4391 = vmatprep.subr.mxu0 0.0
        %4392 = vmatpush1.msra.mxu0 0.0
        %4393 = vmatprep.subr.mxu0 0.0
        %4394 = vmatpush1.msra.mxu0 0.0
        %4395 = vmatprep.subr.mxu0 0.0
        %4396 = vmatpush1.msra.mxu0 0.0
        %4397 = vmatprep.subr.mxu0 0.0
        %4398 = vmatpush1.msra.mxu0 0.0
        %4399 = vmatprep.subr.mxu0 0.0
        %4400 = vmatpush1.msra.mxu0 0.0
        %4401 = vmatprep.subr.mxu0 0.0
        %4402 = vmatpush1.msra.mxu0 0.0
        %4403 = vmatprep.subr.mxu0 0.0
        %4404 = vmatpush1.msra.mxu0 0.0
        %4405 = vmatprep.subr.mxu0 0.0
        %4406 = vmatpush1.msra.mxu0 0.0
        %4407 = vmatprep.subr.mxu0 0.0
        %4408 = vmatpush1.msra.mxu0 0.0
        %4409 = vmatprep.subr.mxu0 0.0
        %4410 = vmatpush1.msra.mxu0 0.0
        %4411 = vmatprep.subr.mxu0 0.0
        %4412 = vmatpush1.msra.mxu0 0.0
        %4413 = vmatprep.subr.mxu0 0.0
        %4414 = vmatpush1.msra.mxu0 0.0
        %4415 = vmatprep.subr.mxu0 0.0
        %4416 = vmatpush1.msra.mxu0 0.0
        %4417 = vmatprep.subr.mxu0 0.0
        %4418 = vmatpush1.msra.mxu0 0.0
        %4419 = vmatprep.subr.mxu0 0.0
        %4420 = vmatpush1.msra.mxu0 0.0
        %4421 = vmatprep.subr.mxu0 0.0
        %4422 = vmatpush1.msra.mxu0 0.0
        %4423 = vmatprep.subr.mxu0 0.0
        %4424 = vmatpush1.msra.mxu0 0.0
        %4425 = vmatprep.subr.mxu0 0.0
        %4426 = vmatpush1.msra.mxu0 0.0
        %4427 = vmatprep.subr.mxu0 0.0
        %4428 = vmatpush1.msra.mxu0 0.0
        %4429 = vmatprep.subr.mxu0 0.0
        %4430 = vmatpush1.msra.mxu0 0.0
        %4431 = vmatprep.subr.mxu0 0.0
        %4432 = vmatpush1.msra.mxu0 0.0
        %4433 = vmatprep.subr.mxu0 0.0
        %4434 = vmatpush1.msra.mxu0 0.0
        %4435 = vmatprep.mubr.f32.mxu0 0.0
        %v4436 = vand.u32 %v3863, 4294901760
        %4437 = vmatmul.mubr.f32.gmra.mrb[0].mxu0 %v4436
        %v4438 = vpop.f32.mrb[0].mxu0
        %v4439 = vadd.f32 %v4354, %v4438
        %v4440 = vpop.f32.mrb[0].mxu0
        %4441 = vmatprep.mubr.f32.mxu0 0.0
        %v4442 = vand.u32 %v3866, 4294901760
        %4443 = vmatmul.mubr.f32.gmra.mrb[0].mxu0 %v4442
        %v4444 = vpop.f32.mrb[0].mxu0
        %v4445 = vadd.f32 %v4360, %v4444
        %v4446 = vpop.f32.mrb[0].mxu0
        %4447 = vdwg.mxu0
        %v4448 = vsel %vm555, %v4439, -inf
        %4449 = vmax.xlane.f32.xlu0 %v4448
        %v4450 = vpop.xlane.xlu0 %4449
        %v4451 = vsel %vm555, %v4445, -inf
        %4452 = vmax.xlane.f32.xlu0 %v4451
        %v4453 = vpop.xlane.xlu0 %4452
        %4454 = vmatprep.subr.mxu0 0.0
        %v4455 = vand.u32 %v4450, 4294901760
        %4456 = vmatpush1.msra.mxu0 %v4455
        %4457 = vmatprep.subr.mxu0 0.0
        %v4458 = vand.u32 %v4453, 4294901760
        %4459 = vmatpush1.msra.mxu0 %v4458
        %4460 = vmatprep.subr.mxu0 0.0
        %4461 = vmatpush1.msra.mxu0 0.0
        %4462 = vmatprep.subr.mxu0 0.0
        %4463 = vmatpush1.msra.mxu0 0.0
        %4464 = vmatprep.subr.mxu0 0.0
        %4465 = vmatpush1.msra.mxu0 0.0
        %4466 = vmatprep.subr.mxu0 0.0
        %4467 = vmatpush1.msra.mxu0 0.0
        %4468 = vmatprep.subr.mxu0 0.0
        %4469 = vmatpush1.msra.mxu0 0.0
        %4470 = vmatprep.subr.mxu0 0.0
        %4471 = vmatpush1.msra.mxu0 0.0
        %4472 = vmatprep.subr.mxu0 0.0
        %4473 = vmatpush1.msra.mxu0 0.0
        %4474 = vmatprep.subr.mxu0 0.0
        %4475 = vmatpush1.msra.mxu0 0.0
        %4476 = vmatprep.subr.mxu0 0.0
        %4477 = vmatpush1.msra.mxu0 0.0
        %4478 = vmatprep.subr.mxu0 0.0
        %4479 = vmatpush1.msra.mxu0 0.0
        %4480 = vmatprep.subr.mxu0 0.0
        %4481 = vmatpush1.msra.mxu0 0.0
        %4482 = vmatprep.subr.mxu0 0.0
        %4483 = vmatpush1.msra.mxu0 0.0
        %4484 = vmatprep.subr.mxu0 0.0
        %4485 = vmatpush1.msra.mxu0 0.0
        %4486 = vmatprep.subr.mxu0 0.0
        %4487 = vmatpush1.msra.mxu0 0.0
        %4488 = vmatprep.subr.mxu0 0.0
        %4489 = vmatpush1.msra.mxu0 0.0
        %4490 = vmatprep.subr.mxu0 0.0
        %4491 = vmatpush1.msra.mxu0 0.0
        %4492 = vmatprep.subr.mxu0 0.0
        %4493 = vmatpush1.msra.mxu0 0.0
        %4494 = vmatprep.subr.mxu0 0.0
        %4495 = vmatpush1.msra.mxu0 0.0
        %4496 = vmatprep.subr.mxu0 0.0
        %4497 = vmatpush1.msra.mxu0 0.0
        %4498 = vmatprep.subr.mxu0 0.0
        %4499 = vmatpush1.msra.mxu0 0.0
        %4500 = vmatprep.subr.mxu0 0.0
        %4501 = vmatpush1.msra.mxu0 0.0
        %4502 = vmatprep.subr.mxu0 0.0
        %4503 = vmatpush1.msra.mxu0 0.0
        %4504 = vmatprep.subr.mxu0 0.0
        %4505 = vmatpush1.msra.mxu0 0.0
        %4506 = vmatprep.subr.mxu0 0.0
        %4507 = vmatpush1.msra.mxu0 0.0
        %4508 = vmatprep.subr.mxu0 0.0
        %4509 = vmatpush1.msra.mxu0 0.0
        %4510 = vmatprep.subr.mxu0 0.0
        %4511 = vmatpush1.msra.mxu0 0.0
        %4512 = vmatprep.subr.mxu0 0.0
        %4513 = vmatpush1.msra.mxu0 0.0
        %4514 = vmatprep.subr.mxu0 0.0
        %4515 = vmatpush1.msra.mxu0 0.0
        %4516 = vmatprep.subr.mxu0 0.0
        %4517 = vmatpush1.msra.mxu0 0.0
        %4518 = vmatprep.subr.mxu0 0.0
        %4519 = vmatpush1.msra.mxu0 0.0
        %4520 = vmatprep.mubr.f32.mxu0 0.0
        %v4521 = vand.u32 %v2295, 4294901760
        %v4522 = vsub.f32 %v2295, %v4521
        %v4523 = vand.u32 %v4522, 4294901760
        %v4524 = vsub.f32 %v4522, %v4523
        %v4525 = vand.u32 %v4524, 4294901760
        %4526 = vmatmul.mubr.f32.gmra.mrb[0].mxu0 %v4525
        %v4527 = vpop.f32.mrb[0].mxu0
        %v4528 = vadd.f32 0.0, %v4527
        %v4529 = vpop.f32.mrb[0].mxu0
        %4530 = vdwg.mxu0
        %4531 = vmatprep.subr.mxu0 0.0
        %v4532 = vand.u32 %v4450, 4294901760
        %v4533 = vsub.f32 %v4450, %v4532
        %v4534 = vand.u32 %v4533, 4294901760
        %v4535 = vsub.f32 %v4533, %v4534
        %v4536 = vand.u32 %v4535, 4294901760
        %4537 = vmatpush1.msra.mxu0 %v4536
        %4538 = vmatprep.subr.mxu0 0.0
        %v4539 = vand.u32 %v4453, 4294901760
        %v4540 = vsub.f32 %v4453, %v4539
        %v4541 = vand.u32 %v4540, 4294901760
        %v4542 = vsub.f32 %v4540, %v4541
        %v4543 = vand.u32 %v4542, 4294901760
        %4544 = vmatpush1.msra.mxu0 %v4543
        %4545 = vmatprep.subr.mxu0 0.0
        %4546 = vmatpush1.msra.mxu0 0.0
        %4547 = vmatprep.subr.mxu0 0.0
        %4548 = vmatpush1.msra.mxu0 0.0
        %4549 = vmatprep.subr.mxu0 0.0
        %4550 = vmatpush1.msra.mxu0 0.0
        %4551 = vmatprep.subr.mxu0 0.0
        %4552 = vmatpush1.msra.mxu0 0.0
        %4553 = vmatprep.subr.mxu0 0.0
        %4554 = vmatpush1.msra.mxu0 0.0
        %4555 = vmatprep.subr.mxu0 0.0
        %4556 = vmatpush1.msra.mxu0 0.0
        %4557 = vmatprep.subr.mxu0 0.0
        %4558 = vmatpush1.msra.mxu0 0.0
        %4559 = vmatprep.subr.mxu0 0.0
        %4560 = vmatpush1.msra.mxu0 0.0
        %4561 = vmatprep.subr.mxu0 0.0
        %4562 = vmatpush1.msra.mxu0 0.0
        %4563 = vmatprep.subr.mxu0 0.0
        %4564 = vmatpush1.msra.mxu0 0.0
        %4565 = vmatprep.subr.mxu0 0.0
        %4566 = vmatpush1.msra.mxu0 0.0
        %4567 = vmatprep.subr.mxu0 0.0
        %4568 = vmatpush1.msra.mxu0 0.0
        %4569 = vmatprep.subr.mxu0 0.0
        %4570 = vmatpush1.msra.mxu0 0.0
        %4571 = vmatprep.subr.mxu0 0.0
        %4572 = vmatpush1.msra.mxu0 0.0
        %4573 = vmatprep.subr.mxu0 0.0
        %4574 = vmatpush1.msra.mxu0 0.0
        %4575 = vmatprep.subr.mxu0 0.0
        %4576 = vmatpush1.msra.mxu0 0.0
        %4577 = vmatprep.subr.mxu0 0.0
        %4578 = vmatpush1.msra.mxu0 0.0
        %4579 = vmatprep.subr.mxu0 0.0
        %4580 = vmatpush1.msra.mxu0 0.0
        %4581 = vmatprep.subr.mxu0 0.0
        %4582 = vmatpush1.msra.mxu0 0.0
        %4583 = vmatprep.subr.mxu0 0.0
        %4584 = vmatpush1.msra.mxu0 0.0
        %4585 = vmatprep.subr.mxu0 0.0
        %4586 = vmatpush1.msra.mxu0 0.0
        %4587 = vmatprep.subr.mxu0 0.0
        %4588 = vmatpush1.msra.mxu0 0.0
        %4589 = vmatprep.subr.mxu0 0.0
        %4590 = vmatpush1.msra.mxu0 0.0
        %4591 = vmatprep.subr.mxu0 0.0
        %4592 = vmatpush1.msra.mxu0 0.0
        %4593 = vmatprep.subr.mxu0 0.0
        %4594 = vmatpush1.msra.mxu0 0.0
        %4595 = vmatprep.subr.mxu0 0.0
        %4596 = vmatpush1.msra.mxu0 0.0
        %4597 = vmatprep.subr.mxu0 0.0
        %4598 = vmatpush1.msra.mxu0 0.0
        %4599 = vmatprep.subr.mxu0 0.0
        %4600 = vmatpush1.msra.mxu0 0.0
        %4601 = vmatprep.subr.mxu0 0.0
        %4602 = vmatpush1.msra.mxu0 0.0
        %4603 = vmatprep.subr.mxu0 0.0
        %4604 = vmatpush1.msra.mxu0 0.0
        %4605 = vmatprep.mubr.f32.mxu0 0.0
        %v4606 = vand.u32 %v2295, 4294901760
        %4607 = vmatmul.mubr.f32.gmra.mrb[0].mxu0 %v4606
        %v4608 = vpop.f32.mrb[0].mxu0
        %v4609 = vadd.f32 %v4528, %v4608
        %v4610 = vpop.f32.mrb[0].mxu0
        %4611 = vdwg.mxu0
        %4612 = vmatprep.subr.mxu0 0.0
        %v4613 = vand.u32 %v4450, 4294901760
        %v4614 = vsub.f32 %v4450, %v4613
        %4615 = vmatpush1.msra.mxu0 %v4614
        %4616 = vmatprep.subr.mxu0 0.0
        %v4617 = vand.u32 %v4453, 4294901760
        %v4618 = vsub.f32 %v4453, %v4617
        %4619 = vmatpush1.msra.mxu0 %v4618
        %4620 = vmatprep.subr.mxu0 0.0
        %4621 = vmatpush1.msra.mxu0 0.0
        %4622 = vmatprep.subr.mxu0 0.0
        %4623 = vmatpush1.msra.mxu0 0.0
        %4624 = vmatprep.subr.mxu0 0.0
        %4625 = vmatpush1.msra.mxu0 0.0
        %4626 = vmatprep.subr.mxu0 0.0
        %4627 = vmatpush1.msra.mxu0 0.0
        %4628 = vmatprep.subr.mxu0 0.0
        %4629 = vmatpush1.msra.mxu0 0.0
        %4630 = vmatprep.subr.mxu0 0.0
        %4631 = vmatpush1.msra.mxu0 0.0
        %4632 = vmatprep.subr.mxu0 0.0
        %4633 = vmatpush1.msra.mxu0 0.0
        %4634 = vmatprep.subr.mxu0 0.0
        %4635 = vmatpush1.msra.mxu0 0.0
        %4636 = vmatprep.subr.mxu0 0.0
        %4637 = vmatpush1.msra.mxu0 0.0
        %4638 = vmatprep.subr.mxu0 0.0
        %4639 = vmatpush1.msra.mxu0 0.0
        %4640 = vmatprep.subr.mxu0 0.0
        %4641 = vmatpush1.msra.mxu0 0.0
        %4642 = vmatprep.subr.mxu0 0.0
        %4643 = vmatpush1.msra.mxu0 0.0
        %4644 = vmatprep.subr.mxu0 0.0
        %4645 = vmatpush1.msra.mxu0 0.0
        %4646 = vmatprep.subr.mxu0 0.0
        %4647 = vmatpush1.msra.mxu0 0.0
        %4648 = vmatprep.subr.mxu0 0.0
        %4649 = vmatpush1.msra.mxu0 0.0
        %4650 = vmatprep.subr.mxu0 0.0
        %4651 = vmatpush1.msra.mxu0 0.0
        %4652 = vmatprep.subr.mxu0 0.0
        %4653 = vmatpush1.msra.mxu0 0.0
        %4654 = vmatprep.subr.mxu0 0.0
        %4655 = vmatpush1.msra.mxu0 0.0
        %4656 = vmatprep.subr.mxu0 0.0
        %4657 = vmatpush1.msra.mxu0 0.0
        %4658 = vmatprep.subr.mxu0 0.0
        %4659 = vmatpush1.msra.mxu0 0.0
        %4660 = vmatprep.subr.mxu0 0.0
        %4661 = vmatpush1.msra.mxu0 0.0
        %4662 = vmatprep.subr.mxu0 0.0
        %4663 = vmatpush1.msra.mxu0 0.0
        %4664 = vmatprep.subr.mxu0 0.0
        %4665 = vmatpush1.msra.mxu0 0.0
        %4666 = vmatprep.subr.mxu0 0.0
        %4667 = vmatpush1.msra.mxu0 0.0
        %4668 = vmatprep.subr.mxu0 0.0
        %4669 = vmatpush1.msra.mxu0 0.0
        %4670 = vmatprep.subr.mxu0 0.0
        %4671 = vmatpush1.msra.mxu0 0.0
        %4672 = vmatprep.subr.mxu0 0.0
        %4673 = vmatpush1.msra.mxu0 0.0
        %4674 = vmatprep.subr.mxu0 0.0
        %4675 = vmatpush1.msra.mxu0 0.0
        %4676 = vmatprep.subr.mxu0 0.0
        %4677 = vmatpush1.msra.mxu0 0.0
        %4678 = vmatprep.subr.mxu0 0.0
        %4679 = vmatpush1.msra.mxu0 0.0
        %4680 = vmatprep.mubr.f32.mxu0 0.0
        %v4681 = vand.u32 %v2295, 4294901760
        %v4682 = vsub.f32 %v2295, %v4681
        %4683 = vmatmul.mubr.f32.gmra.mrb[0].mxu0 %v4682
        %v4684 = vpop.f32.mrb[0].mxu0
        %v4685 = vadd.f32 %v4609, %v4684
        %v4686 = vpop.f32.mrb[0].mxu0
        %4687 = vdwg.mxu0
        %4688 = vmatprep.subr.mxu0 0.0
        %v4689 = vand.u32 %v4450, 4294901760
        %4690 = vmatpush1.msra.mxu0 %v4689
        %4691 = vmatprep.subr.mxu0 0.0
        %v4692 = vand.u32 %v4453, 4294901760
        %4693 = vmatpush1.msra.mxu0 %v4692
        %4694 = vmatprep.subr.mxu0 0.0
        %4695 = vmatpush1.msra.mxu0 0.0
        %4696 = vmatprep.subr.mxu0 0.0
        %4697 = vmatpush1.msra.mxu0 0.0
        %4698 = vmatprep.subr.mxu0 0.0
        %4699 = vmatpush1.msra.mxu0 0.0
        %4700 = vmatprep.subr.mxu0 0.0
        %4701 = vmatpush1.msra.mxu0 0.0
        %4702 = vmatprep.subr.mxu0 0.0
        %4703 = vmatpush1.msra.mxu0 0.0
        %4704 = vmatprep.subr.mxu0 0.0
        %4705 = vmatpush1.msra.mxu0 0.0
        %4706 = vmatprep.subr.mxu0 0.0
        %4707 = vmatpush1.msra.mxu0 0.0
        %4708 = vmatprep.subr.mxu0 0.0
        %4709 = vmatpush1.msra.mxu0 0.0
        %4710 = vmatprep.subr.mxu0 0.0
        %4711 = vmatpush1.msra.mxu0 0.0
        %4712 = vmatprep.subr.mxu0 0.0
        %4713 = vmatpush1.msra.mxu0 0.0
        %4714 = vmatprep.subr.mxu0 0.0
        %4715 = vmatpush1.msra.mxu0 0.0
        %4716 = vmatprep.subr.mxu0 0.0
        %4717 = vmatpush1.msra.mxu0 0.0
        %4718 = vmatprep.subr.mxu0 0.0
        %4719 = vmatpush1.msra.mxu0 0.0
        %4720 = vmatprep.subr.mxu0 0.0
        %4721 = vmatpush1.msra.mxu0 0.0
        %4722 = vmatprep.subr.mxu0 0.0
        %4723 = vmatpush1.msra.mxu0 0.0
        %4724 = vmatprep.subr.mxu0 0.0
        %4725 = vmatpush1.msra.mxu0 0.0
        %4726 = vmatprep.subr.mxu0 0.0
        %4727 = vmatpush1.msra.mxu0 0.0
        %4728 = vmatprep.subr.mxu0 0.0
        %4729 = vmatpush1.msra.mxu0 0.0
        %4730 = vmatprep.subr.mxu0 0.0
        %4731 = vmatpush1.msra.mxu0 0.0
        %4732 = vmatprep.subr.mxu0 0.0
        %4733 = vmatpush1.msra.mxu0 0.0
        %4734 = vmatprep.subr.mxu0 0.0
        %4735 = vmatpush1.msra.mxu0 0.0
        %4736 = vmatprep.subr.mxu0 0.0
        %4737 = vmatpush1.msra.mxu0 0.0
        %4738 = vmatprep.subr.mxu0 0.0
        %4739 = vmatpush1.msra.mxu0 0.0
        %4740 = vmatprep.subr.mxu0 0.0
        %4741 = vmatpush1.msra.mxu0 0.0
        %4742 = vmatprep.subr.mxu0 0.0
        %4743 = vmatpush1.msra.mxu0 0.0
        %4744 = vmatprep.subr.mxu0 0.0
        %4745 = vmatpush1.msra.mxu0 0.0
        %4746 = vmatprep.subr.mxu0 0.0
        %4747 = vmatpush1.msra.mxu0 0.0
        %4748 = vmatprep.subr.mxu0 0.0
        %4749 = vmatpush1.msra.mxu0 0.0
        %4750 = vmatprep.subr.mxu0 0.0
        %4751 = vmatpush1.msra.mxu0 0.0
        %4752 = vmatprep.subr.mxu0 0.0
        %4753 = vmatpush1.msra.mxu0 0.0
        %4754 = vmatprep.mubr.f32.mxu0 0.0
        %v4755 = vand.u32 %v2295, 4294901760
        %v4756 = vsub.f32 %v2295, %v4755
        %v4757 = vand.u32 %v4756, 4294901760
        %4758 = vmatmul.mubr.f32.gmra.mrb[0].mxu0 %v4757
        %v4759 = vpop.f32.mrb[0].mxu0
        %v4760 = vadd.f32 %v4685, %v4759
        %v4761 = vpop.f32.mrb[0].mxu0
        %4762 = vdwg.mxu0
        %4763 = vmatprep.subr.mxu0 0.0
        %v4764 = vand.u32 %v4450, 4294901760
        %v4765 = vsub.f32 %v4450, %v4764
        %v4766 = vand.u32 %v4765, 4294901760
        %4767 = vmatpush1.msra.mxu0 %v4766
        %4768 = vmatprep.subr.mxu0 0.0
        %v4769 = vand.u32 %v4453, 4294901760
        %v4770 = vsub.f32 %v4453, %v4769
        %v4771 = vand.u32 %v4770, 4294901760
        %4772 = vmatpush1.msra.mxu0 %v4771
        %4773 = vmatprep.subr.mxu0 0.0
        %4774 = vmatpush1.msra.mxu0 0.0
        %4775 = vmatprep.subr.mxu0 0.0
        %4776 = vmatpush1.msra.mxu0 0.0
        %4777 = vmatprep.subr.mxu0 0.0
        %4778 = vmatpush1.msra.mxu0 0.0
        %4779 = vmatprep.subr.mxu0 0.0
        %4780 = vmatpush1.msra.mxu0 0.0
        %4781 = vmatprep.subr.mxu0 0.0
        %4782 = vmatpush1.msra.mxu0 0.0
        %4783 = vmatprep.subr.mxu0 0.0
        %4784 = vmatpush1.msra.mxu0 0.0
        %4785 = vmatprep.subr.mxu0 0.0
        %4786 = vmatpush1.msra.mxu0 0.0
        %4787 = vmatprep.subr.mxu0 0.0
        %4788 = vmatpush1.msra.mxu0 0.0
        %4789 = vmatprep.subr.mxu0 0.0
        %4790 = vmatpush1.msra.mxu0 0.0
        %4791 = vmatprep.subr.mxu0 0.0
        %4792 = vmatpush1.msra.mxu0 0.0
        %4793 = vmatprep.subr.mxu0 0.0
        %4794 = vmatpush1.msra.mxu0 0.0
        %4795 = vmatprep.subr.mxu0 0.0
        %4796 = vmatpush1.msra.mxu0 0.0
        %4797 = vmatprep.subr.mxu0 0.0
        %4798 = vmatpush1.msra.mxu0 0.0
        %4799 = vmatprep.subr.mxu0 0.0
        %4800 = vmatpush1.msra.mxu0 0.0
        %4801 = vmatprep.subr.mxu0 0.0
        %4802 = vmatpush1.msra.mxu0 0.0
        %4803 = vmatprep.subr.mxu0 0.0
        %4804 = vmatpush1.msra.mxu0 0.0
        %4805 = vmatprep.subr.mxu0 0.0
        %4806 = vmatpush1.msra.mxu0 0.0
        %4807 = vmatprep.subr.mxu0 0.0
        %4808 = vmatpush1.msra.mxu0 0.0
        %4809 = vmatprep.subr.mxu0 0.0
        %4810 = vmatpush1.msra.mxu0 0.0
        %4811 = vmatprep.subr.mxu0 0.0
        %4812 = vmatpush1.msra.mxu0 0.0
        %4813 = vmatprep.subr.mxu0 0.0
        %4814 = vmatpush1.msra.mxu0 0.0
        %4815 = vmatprep.subr.mxu0 0.0
        %4816 = vmatpush1.msra.mxu0 0.0
        %4817 = vmatprep.subr.mxu0 0.0
        %4818 = vmatpush1.msra.mxu0 0.0
        %4819 = vmatprep.subr.mxu0 0.0
        %4820 = vmatpush1.msra.mxu0 0.0
        %4821 = vmatprep.subr.mxu0 0.0
        %4822 = vmatpush1.msra.mxu0 0.0
        %4823 = vmatprep.subr.mxu0 0.0
        %4824 = vmatpush1.msra.mxu0 0.0
        %4825 = vmatprep.subr.mxu0 0.0
        %4826 = vmatpush1.msra.mxu0 0.0
        %4827 = vmatprep.subr.mxu0 0.0
        %4828 = vmatpush1.msra.mxu0 0.0
        %4829 = vmatprep.subr.mxu0 0.0
        %4830 = vmatpush1.msra.mxu0 0.0
        %4831 = vmatprep.subr.mxu0 0.0
        %4832 = vmatpush1.msra.mxu0 0.0
        %4833 = vmatprep.mubr.f32.mxu0 0.0
        %v4834 = vand.u32 %v2295, 4294901760
        %4835 = vmatmul.mubr.f32.gmra.mrb[0].mxu0 %v4834
        %v4836 = vpop.f32.mrb[0].mxu0
        %v4837 = vadd.f32 %v4760, %v4836
        %v4838 = vpop.f32.mrb[0].mxu0
        %4839 = vdwg.mxu0
        %4840 = vmatprep.subr.mxu0 0.0
        %v4841 = vand.u32 %v4450, 4294901760
        %4842 = vmatpush1.msra.mxu0 %v4841
        %4843 = vmatprep.subr.mxu0 0.0
        %v4844 = vand.u32 %v4453, 4294901760
        %4845 = vmatpush1.msra.mxu0 %v4844
        %4846 = vmatprep.subr.mxu0 0.0
        %4847 = vmatpush1.msra.mxu0 0.0
        %4848 = vmatprep.subr.mxu0 0.0
        %4849 = vmatpush1.msra.mxu0 0.0
        %4850 = vmatprep.subr.mxu0 0.0
        %4851 = vmatpush1.msra.mxu0 0.0
        %4852 = vmatprep.subr.mxu0 0.0
        %4853 = vmatpush1.msra.mxu0 0.0
        %4854 = vmatprep.subr.mxu0 0.0
        %4855 = vmatpush1.msra.mxu0 0.0
        %4856 = vmatprep.subr.mxu0 0.0
        %4857 = vmatpush1.msra.mxu0 0.0
        %4858 = vmatprep.subr.mxu0 0.0
        %4859 = vmatpush1.msra.mxu0 0.0
        %4860 = vmatprep.subr.mxu0 0.0
        %4861 = vmatpush1.msra.mxu0 0.0
        %4862 = vmatprep.subr.mxu0 0.0
        %4863 = vmatpush1.msra.mxu0 0.0
        %4864 = vmatprep.subr.mxu0 0.0
        %4865 = vmatpush1.msra.mxu0 0.0
        %4866 = vmatprep.subr.mxu0 0.0
        %4867 = vmatpush1.msra.mxu0 0.0
        %4868 = vmatprep.subr.mxu0 0.0
        %4869 = vmatpush1.msra.mxu0 0.0
        %4870 = vmatprep.subr.mxu0 0.0
        %4871 = vmatpush1.msra.mxu0 0.0
        %4872 = vmatprep.subr.mxu0 0.0
        %4873 = vmatpush1.msra.mxu0 0.0
        %4874 = vmatprep.subr.mxu0 0.0
        %4875 = vmatpush1.msra.mxu0 0.0
        %4876 = vmatprep.subr.mxu0 0.0
        %4877 = vmatpush1.msra.mxu0 0.0
        %4878 = vmatprep.subr.mxu0 0.0
        %4879 = vmatpush1.msra.mxu0 0.0
        %4880 = vmatprep.subr.mxu0 0.0
        %4881 = vmatpush1.msra.mxu0 0.0
        %4882 = vmatprep.subr.mxu0 0.0
        %4883 = vmatpush1.msra.mxu0 0.0
        %4884 = vmatprep.subr.mxu0 0.0
        %4885 = vmatpush1.msra.mxu0 0.0
        %4886 = vmatprep.subr.mxu0 0.0
        %4887 = vmatpush1.msra.mxu0 0.0
        %4888 = vmatprep.subr.mxu0 0.0
        %4889 = vmatpush1.msra.mxu0 0.0
        %4890 = vmatprep.subr.mxu0 0.0
        %4891 = vmatpush1.msra.mxu0 0.0
        %4892 = vmatprep.subr.mxu0 0.0
        %4893 = vmatpush1.msra.mxu0 0.0
        %4894 = vmatprep.subr.mxu0 0.0
        %4895 = vmatpush1.msra.mxu0 0.0
        %4896 = vmatprep.subr.mxu0 0.0
        %4897 = vmatpush1.msra.mxu0 0.0
        %4898 = vmatprep.subr.mxu0 0.0
        %4899 = vmatpush1.msra.mxu0 0.0
        %4900 = vmatprep.subr.mxu0 0.0
        %4901 = vmatpush1.msra.mxu0 0.0
        %4902 = vmatprep.subr.mxu0 0.0
        %4903 = vmatpush1.msra.mxu0 0.0
        %4904 = vmatprep.subr.mxu0 0.0
        %4905 = vmatpush1.msra.mxu0 0.0
        %4906 = vmatprep.mubr.f32.mxu0 0.0
        %v4907 = vand.u32 %v2295, 4294901760
        %4908 = vmatmul.mubr.f32.gmra.mrb[0].mxu0 %v4907
        %v4909 = vpop.f32.mrb[0].mxu0
        %v4910 = vadd.f32 %v4837, %v4909
        %v4911 = vpop.f32.mrb[0].mxu0
        %4912 = vdwg.mxu0
        %v4913 = vmax.f32 %v4910, 0.0
        %v4915 = vsel %vm2766, %v4913, 0
        %4917 = vmatprep.subr.mxu0 0.0
        %v4918 = vand.u32 %v4915, 4294901760
        %4919 = vmatpush1.msra.mxu0 %v4918
        %4920 = vmatprep.subr.mxu0 0.0
        %4921 = vmatpush1.msra.mxu0 0.0
        %4922 = vmatprep.subr.mxu0 0.0
        %4923 = vmatpush1.msra.mxu0 0.0
        %4924 = vmatprep.subr.mxu0 0.0
        %4925 = vmatpush1.msra.mxu0 0.0
        %4926 = vmatprep.subr.mxu0 0.0
        %4927 = vmatpush1.msra.mxu0 0.0
        %4928 = vmatprep.subr.mxu0 0.0
        %4929 = vmatpush1.msra.mxu0 0.0
        %4930 = vmatprep.subr.mxu0 0.0
        %4931 = vmatpush1.msra.mxu0 0.0
        %4932 = vmatprep.subr.mxu0 0.0
        %4933 = vmatpush1.msra.mxu0 0.0
        %4934 = vmatprep.subr.mxu0 0.0
        %4935 = vmatpush1.msra.mxu0 0.0
        %4936 = vmatprep.subr.mxu0 0.0
        %4937 = vmatpush1.msra.mxu0 0.0
        %4938 = vmatprep.subr.mxu0 0.0
        %4939 = vmatpush1.msra.mxu0 0.0
        %4940 = vmatprep.subr.mxu0 0.0
        %4941 = vmatpush1.msra.mxu0 0.0
        %4942 = vmatprep.subr.mxu0 0.0
        %4943 = vmatpush1.msra.mxu0 0.0
        %4944 = vmatprep.subr.mxu0 0.0
        %4945 = vmatpush1.msra.mxu0 0.0
        %4946 = vmatprep.subr.mxu0 0.0
        %4947 = vmatpush1.msra.mxu0 0.0
        %4948 = vmatprep.subr.mxu0 0.0
        %4949 = vmatpush1.msra.mxu0 0.0
        %4950 = vmatprep.subr.mxu0 0.0
        %4951 = vmatpush1.msra.mxu0 0.0
        %4952 = vmatprep.subr.mxu0 0.0
        %4953 = vmatpush1.msra.mxu0 0.0
        %4954 = vmatprep.subr.mxu0 0.0
        %4955 = vmatpush1.msra.mxu0 0.0
        %4956 = vmatprep.subr.mxu0 0.0
        %4957 = vmatpush1.msra.mxu0 0.0
        %4958 = vmatprep.subr.mxu0 0.0
        %4959 = vmatpush1.msra.mxu0 0.0
        %4960 = vmatprep.subr.mxu0 0.0
        %4961 = vmatpush1.msra.mxu0 0.0
        %4962 = vmatprep.subr.mxu0 0.0
        %4963 = vmatpush1.msra.mxu0 0.0
        %4964 = vmatprep.subr.mxu0 0.0
        %4965 = vmatpush1.msra.mxu0 0.0
        %4966 = vmatprep.subr.mxu0 0.0
        %4967 = vmatpush1.msra.mxu0 0.0
        %4968 = vmatprep.subr.mxu0 0.0
        %4969 = vmatpush1.msra.mxu0 0.0
        %4970 = vmatprep.subr.mxu0 0.0
        %4971 = vmatpush1.msra.mxu0 0.0
        %4972 = vmatprep.subr.mxu0 0.0
        %4973 = vmatpush1.msra.mxu0 0.0
        %4974 = vmatprep.subr.mxu0 0.0
        %4975 = vmatpush1.msra.mxu0 0.0
        %4976 = vmatprep.subr.mxu0 0.0
        %4977 = vmatpush1.msra.mxu0 0.0
        %4978 = vmatprep.subr.mxu0 0.0
        %4979 = vmatpush1.msra.mxu0 0.0
        %4980 = vmatprep.subr.mxu0 0.0
        %4981 = vmatpush1.msra.mxu0 0.0
        %4982 = vmatprep.mubr.f32.mxu0 0.0
        %v4983 = vand.u32 %v2761, 4294901760
        %v4984 = vsub.f32 %v2761, %v4983
        %v4985 = vand.u32 %v4984, 4294901760
        %v4986 = vsub.f32 %v4984, %v4985
        %v4987 = vand.u32 %v4986, 4294901760
        %4988 = vmatmul.mubr.f32.gmra.mrb[0].mxu0 %v4987
        %v4989 = vpop.f32.mrb[0].mxu0
        %v4990 = vadd.f32 0.0, %v4989
        %v4991 = vpop.f32.mrb[0].mxu0
        %4992 = vmatprep.mubr.f32.mxu0 0.0
        %v4993 = vand.u32 %v2764, 4294901760
        %v4994 = vsub.f32 %v2764, %v4993
        %v4995 = vand.u32 %v4994, 4294901760
        %v4996 = vsub.f32 %v4994, %v4995
        %v4997 = vand.u32 %v4996, 4294901760
        %4998 = vmatmul.mubr.f32.gmra.mrb[0].mxu0 %v4997
        %v4999 = vpop.f32.mrb[0].mxu0
        %v5000 = vadd.f32 0.0, %v4999
        %v5001 = vpop.f32.mrb[0].mxu0
        %5002 = vdwg.mxu0
        %5003 = vmatprep.subr.mxu0 0.0
        %v5004 = vand.u32 %v4915, 4294901760
        %v5005 = vsub.f32 %v4915, %v5004
        %v5006 = vand.u32 %v5005, 4294901760
        %v5007 = vsub.f32 %v5005, %v5006
        %v5008 = vand.u32 %v5007, 4294901760
        %5009 = vmatpush1.msra.mxu0 %v5008
        %5010 = vmatprep.subr.mxu0 0.0
        %5011 = vmatpush1.msra.mxu0 0.0
        %5012 = vmatprep.subr.mxu0 0.0
        %5013 = vmatpush1.msra.mxu0 0.0
        %5014 = vmatprep.subr.mxu0 0.0
        %5015 = vmatpush1.msra.mxu0 0.0
        %5016 = vmatprep.subr.mxu0 0.0
        %5017 = vmatpush1.msra.mxu0 0.0
        %5018 = vmatprep.subr.mxu0 0.0
        %5019 = vmatpush1.msra.mxu0 0.0
        %5020 = vmatprep.subr.mxu0 0.0
        %5021 = vmatpush1.msra.mxu0 0.0
        %5022 = vmatprep.subr.mxu0 0.0
        %5023 = vmatpush1.msra.mxu0 0.0
        %5024 = vmatprep.subr.mxu0 0.0
        %5025 = vmatpush1.msra.mxu0 0.0
        %5026 = vmatprep.subr.mxu0 0.0
        %5027 = vmatpush1.msra.mxu0 0.0
        %5028 = vmatprep.subr.mxu0 0.0
        %5029 = vmatpush1.msra.mxu0 0.0
        %5030 = vmatprep.subr.mxu0 0.0
        %5031 = vmatpush1.msra.mxu0 0.0
        %5032 = vmatprep.subr.mxu0 0.0
        %5033 = vmatpush1.msra.mxu0 0.0
        %5034 = vmatprep.subr.mxu0 0.0
        %5035 = vmatpush1.msra.mxu0 0.0
        %5036 = vmatprep.subr.mxu0 0.0
        %5037 = vmatpush1.msra.mxu0 0.0
        %5038 = vmatprep.subr.mxu0 0.0
        %5039 = vmatpush1.msra.mxu0 0.0
        %5040 = vmatprep.subr.mxu0 0.0
        %5041 = vmatpush1.msra.mxu0 0.0
        %5042 = vmatprep.subr.mxu0 0.0
        %5043 = vmatpush1.msra.mxu0 0.0
        %5044 = vmatprep.subr.mxu0 0.0
        %5045 = vmatpush1.msra.mxu0 0.0
        %5046 = vmatprep.subr.mxu0 0.0
        %5047 = vmatpush1.msra.mxu0 0.0
        %5048 = vmatprep.subr.mxu0 0.0
        %5049 = vmatpush1.msra.mxu0 0.0
        %5050 = vmatprep.subr.mxu0 0.0
        %5051 = vmatpush1.msra.mxu0 0.0
        %5052 = vmatprep.subr.mxu0 0.0
        %5053 = vmatpush1.msra.mxu0 0.0
        %5054 = vmatprep.subr.mxu0 0.0
        %5055 = vmatpush1.msra.mxu0 0.0
        %5056 = vmatprep.subr.mxu0 0.0
        %5057 = vmatpush1.msra.mxu0 0.0
        %5058 = vmatprep.subr.mxu0 0.0
        %5059 = vmatpush1.msra.mxu0 0.0
        %5060 = vmatprep.subr.mxu0 0.0
        %5061 = vmatpush1.msra.mxu0 0.0
        %5062 = vmatprep.subr.mxu0 0.0
        %5063 = vmatpush1.msra.mxu0 0.0
        %5064 = vmatprep.subr.mxu0 0.0
        %5065 = vmatpush1.msra.mxu0 0.0
        %5066 = vmatprep.subr.mxu0 0.0
        %5067 = vmatpush1.msra.mxu0 0.0
        %5068 = vmatprep.subr.mxu0 0.0
        %5069 = vmatpush1.msra.mxu0 0.0
        %5070 = vmatprep.subr.mxu0 0.0
        %5071 = vmatpush1.msra.mxu0 0.0
        %5072 = vmatprep.mubr.f32.mxu0 0.0
        %v5073 = vand.u32 %v2761, 4294901760
        %5074 = vmatmul.mubr.f32.gmra.mrb[0].mxu0 %v5073
        %v5075 = vpop.f32.mrb[0].mxu0
        %v5076 = vadd.f32 %v4990, %v5075
        %v5077 = vpop.f32.mrb[0].mxu0
        %5078 = vmatprep.mubr.f32.mxu0 0.0
        %v5079 = vand.u32 %v2764, 4294901760
        %5080 = vmatmul.mubr.f32.gmra.mrb[0].mxu0 %v5079
        %v5081 = vpop.f32.mrb[0].mxu0
        %v5082 = vadd.f32 %v5000, %v5081
        %v5083 = vpop.f32.mrb[0].mxu0
        %5084 = vdwg.mxu0
        %5085 = vmatprep.subr.mxu0 0.0
        %v5086 = vand.u32 %v4915, 4294901760
        %v5087 = vsub.f32 %v4915, %v5086
        %5088 = vmatpush1.msra.mxu0 %v5087
        %5089 = vmatprep.subr.mxu0 0.0
        %5090 = vmatpush1.msra.mxu0 0.0
        %5091 = vmatprep.subr.mxu0 0.0
        %5092 = vmatpush1.msra.mxu0 0.0
        %5093 = vmatprep.subr.mxu0 0.0
        %5094 = vmatpush1.msra.mxu0 0.0
        %5095 = vmatprep.subr.mxu0 0.0
        %5096 = vmatpush1.msra.mxu0 0.0
        %5097 = vmatprep.subr.mxu0 0.0
        %5098 = vmatpush1.msra.mxu0 0.0
        %5099 = vmatprep.subr.mxu0 0.0
        %5100 = vmatpush1.msra.mxu0 0.0
        %5101 = vmatprep.subr.mxu0 0.0
        %5102 = vmatpush1.msra.mxu0 0.0
        %5103 = vmatprep.subr.mxu0 0.0
        %5104 = vmatpush1.msra.mxu0 0.0
        %5105 = vmatprep.subr.mxu0 0.0
        %5106 = vmatpush1.msra.mxu0 0.0
        %5107 = vmatprep.subr.mxu0 0.0
        %5108 = vmatpush1.msra.mxu0 0.0
        %5109 = vmatprep.subr.mxu0 0.0
        %5110 = vmatpush1.msra.mxu0 0.0
        %5111 = vmatprep.subr.mxu0 0.0
        %5112 = vmatpush1.msra.mxu0 0.0
        %5113 = vmatprep.subr.mxu0 0.0
        %5114 = vmatpush1.msra.mxu0 0.0
        %5115 = vmatprep.subr.mxu0 0.0
        %5116 = vmatpush1.msra.mxu0 0.0
        %5117 = vmatprep.subr.mxu0 0.0
        %5118 = vmatpush1.msra.mxu0 0.0
        %5119 = vmatprep.subr.mxu0 0.0
        %5120 = vmatpush1.msra.mxu0 0.0
        %5121 = vmatprep.subr.mxu0 0.0
        %5122 = vmatpush1.msra.mxu0 0.0
        %5123 = vmatprep.subr.mxu0 0.0
        %5124 = vmatpush1.msra.mxu0 0.0
        %5125 = vmatprep.subr.mxu0 0.0
        %5126 = vmatpush1.msra.mxu0 0.0
        %5127 = vmatprep.subr.mxu0 0.0
        %5128 = vmatpush1.msra.mxu0 0.0
        %5129 = vmatprep.subr.mxu0 0.0
        %5130 = vmatpush1.msra.mxu0 0.0
        %5131 = vmatprep.subr.mxu0 0.0
        %5132 = vmatpush1.msra.mxu0 0.0
        %5133 = vmatprep.subr.mxu0 0.0
        %5134 = vmatpush1.msra.mxu0 0.0
        %5135 = vmatprep.subr.mxu0 0.0
        %5136 = vmatpush1.msra.mxu0 0.0
        %5137 = vmatprep.subr.mxu0 0.0
        %5138 = vmatpush1.msra.mxu0 0.0
        %5139 = vmatprep.subr.mxu0 0.0
        %5140 = vmatpush1.msra.mxu0 0.0
        %5141 = vmatprep.subr.mxu0 0.0
        %5142 = vmatpush1.msra.mxu0 0.0
        %5143 = vmatprep.subr.mxu0 0.0
        %5144 = vmatpush1.msra.mxu0 0.0
        %5145 = vmatprep.subr.mxu0 0.0
        %5146 = vmatpush1.msra.mxu0 0.0
        %5147 = vmatprep.subr.mxu0 0.0
        %5148 = vmatpush1.msra.mxu0 0.0
        %5149 = vmatprep.subr.mxu0 0.0
        %5150 = vmatpush1.msra.mxu0 0.0
        %5151 = vmatprep.mubr.f32.mxu0 0.0
        %v5152 = vand.u32 %v2761, 4294901760
        %v5153 = vsub.f32 %v2761, %v5152
        %5154 = vmatmul.mubr.f32.gmra.mrb[0].mxu0 %v5153
        %v5155 = vpop.f32.mrb[0].mxu0
        %v5156 = vadd.f32 %v5076, %v5155
        %v5157 = vpop.f32.mrb[0].mxu0
        %5158 = vmatprep.mubr.f32.mxu0 0.0
        %v5159 = vand.u32 %v2764, 4294901760
        %v5160 = vsub.f32 %v2764, %v5159
        %5161 = vmatmul.mubr.f32.gmra.mrb[0].mxu0 %v5160
        %v5162 = vpop.f32.mrb[0].mxu0
        %v5163 = vadd.f32 %v5082, %v5162
        %v5164 = vpop.f32.mrb[0].mxu0
        %5165 = vdwg.mxu0
        %5166 = vmatprep.subr.mxu0 0.0
        %v5167 = vand.u32 %v4915, 4294901760
        %5168 = vmatpush1.msra.mxu0 %v5167
        %5169 = vmatprep.subr.mxu0 0.0
        %5170 = vmatpush1.msra.mxu0 0.0
        %5171 = vmatprep.subr.mxu0 0.0
        %5172 = vmatpush1.msra.mxu0 0.0
        %5173 = vmatprep.subr.mxu0 0.0
        %5174 = vmatpush1.msra.mxu0 0.0
        %5175 = vmatprep.subr.mxu0 0.0
        %5176 = vmatpush1.msra.mxu0 0.0
        %5177 = vmatprep.subr.mxu0 0.0
        %5178 = vmatpush1.msra.mxu0 0.0
        %5179 = vmatprep.subr.mxu0 0.0
        %5180 = vmatpush1.msra.mxu0 0.0
        %5181 = vmatprep.subr.mxu0 0.0
        %5182 = vmatpush1.msra.mxu0 0.0
        %5183 = vmatprep.subr.mxu0 0.0
        %5184 = vmatpush1.msra.mxu0 0.0
        %5185 = vmatprep.subr.mxu0 0.0
        %5186 = vmatpush1.msra.mxu0 0.0
        %5187 = vmatprep.subr.mxu0 0.0
        %5188 = vmatpush1.msra.mxu0 0.0
        %5189 = vmatprep.subr.mxu0 0.0
        %5190 = vmatpush1.msra.mxu0 0.0
        %5191 = vmatprep.subr.mxu0 0.0
        %5192 = vmatpush1.msra.mxu0 0.0
        %5193 = vmatprep.subr.mxu0 0.0
        %5194 = vmatpush1.msra.mxu0 0.0
        %5195 = vmatprep.subr.mxu0 0.0
        %5196 = vmatpush1.msra.mxu0 0.0
        %5197 = vmatprep.subr.mxu0 0.0
        %5198 = vmatpush1.msra.mxu0 0.0
        %5199 = vmatprep.subr.mxu0 0.0
        %5200 = vmatpush1.msra.mxu0 0.0
        %5201 = vmatprep.subr.mxu0 0.0
        %5202 = vmatpush1.msra.mxu0 0.0
        %5203 = vmatprep.subr.mxu0 0.0
        %5204 = vmatpush1.msra.mxu0 0.0
        %5205 = vmatprep.subr.mxu0 0.0
        %5206 = vmatpush1.msra.mxu0 0.0
        %5207 = vmatprep.subr.mxu0 0.0
        %5208 = vmatpush1.msra.mxu0 0.0
        %5209 = vmatprep.subr.mxu0 0.0
        %5210 = vmatpush1.msra.mxu0 0.0
        %5211 = vmatprep.subr.mxu0 0.0
        %5212 = vmatpush1.msra.mxu0 0.0
        %5213 = vmatprep.subr.mxu0 0.0
        %5214 = vmatpush1.msra.mxu0 0.0
        %5215 = vmatprep.subr.mxu0 0.0
        %5216 = vmatpush1.msra.mxu0 0.0
        %5217 = vmatprep.subr.mxu0 0.0
        %5218 = vmatpush1.msra.mxu0 0.0
        %5219 = vmatprep.subr.mxu0 0.0
        %5220 = vmatpush1.msra.mxu0 0.0
        %5221 = vmatprep.subr.mxu0 0.0
        %5222 = vmatpush1.msra.mxu0 0.0
        %5223 = vmatprep.subr.mxu0 0.0
        %5224 = vmatpush1.msra.mxu0 0.0
        %5225 = vmatprep.subr.mxu0 0.0
        %5226 = vmatpush1.msra.mxu0 0.0
        %5227 = vmatprep.subr.mxu0 0.0
        %5228 = vmatpush1.msra.mxu0 0.0
        %5229 = vmatprep.subr.mxu0 0.0
        %5230 = vmatpush1.msra.mxu0 0.0
        %5231 = vmatprep.mubr.f32.mxu0 0.0
        %v5232 = vand.u32 %v2761, 4294901760
        %v5233 = vsub.f32 %v2761, %v5232
        %v5234 = vand.u32 %v5233, 4294901760
        %5235 = vmatmul.mubr.f32.gmra.mrb[0].mxu0 %v5234
        %v5236 = vpop.f32.mrb[0].mxu0
        %v5237 = vadd.f32 %v5156, %v5236
        %v5238 = vpop.f32.mrb[0].mxu0
        %5239 = vmatprep.mubr.f32.mxu0 0.0
        %v5240 = vand.u32 %v2764, 4294901760
        %v5241 = vsub.f32 %v2764, %v5240
        %v5242 = vand.u32 %v5241, 4294901760
        %5243 = vmatmul.mubr.f32.gmra.mrb[0].mxu0 %v5242
        %v5244 = vpop.f32.mrb[0].mxu0
        %v5245 = vadd.f32 %v5163, %v5244
        %v5246 = vpop.f32.mrb[0].mxu0
        %5247 = vdwg.mxu0
        %5248 = vmatprep.subr.mxu0 0.0
        %v5249 = vand.u32 %v4915, 4294901760
        %v5250 = vsub.f32 %v4915, %v5249
        %v5251 = vand.u32 %v5250, 4294901760
        %5252 = vmatpush1.msra.mxu0 %v5251
        %5253 = vmatprep.subr.mxu0 0.0
        %5254 = vmatpush1.msra.mxu0 0.0
        %5255 = vmatprep.subr.mxu0 0.0
        %5256 = vmatpush1.msra.mxu0 0.0
        %5257 = vmatprep.subr.mxu0 0.0
        %5258 = vmatpush1.msra.mxu0 0.0
        %5259 = vmatprep.subr.mxu0 0.0
        %5260 = vmatpush1.msra.mxu0 0.0
        %5261 = vmatprep.subr.mxu0 0.0
        %5262 = vmatpush1.msra.mxu0 0.0
        %5263 = vmatprep.subr.mxu0 0.0
        %5264 = vmatpush1.msra.mxu0 0.0
        %5265 = vmatprep.subr.mxu0 0.0
        %5266 = vmatpush1.msra.mxu0 0.0
        %5267 = vmatprep.subr.mxu0 0.0
        %5268 = vmatpush1.msra.mxu0 0.0
        %5269 = vmatprep.subr.mxu0 0.0
        %5270 = vmatpush1.msra.mxu0 0.0
        %5271 = vmatprep.subr.mxu0 0.0
        %5272 = vmatpush1.msra.mxu0 0.0
        %5273 = vmatprep.subr.mxu0 0.0
        %5274 = vmatpush1.msra.mxu0 0.0
        %5275 = vmatprep.subr.mxu0 0.0
        %5276 = vmatpush1.msra.mxu0 0.0
        %5277 = vmatprep.subr.mxu0 0.0
        %5278 = vmatpush1.msra.mxu0 0.0
        %5279 = vmatprep.subr.mxu0 0.0
        %5280 = vmatpush1.msra.mxu0 0.0
        %5281 = vmatprep.subr.mxu0 0.0
        %5282 = vmatpush1.msra.mxu0 0.0
        %5283 = vmatprep.subr.mxu0 0.0
        %5284 = vmatpush1.msra.mxu0 0.0
        %5285 = vmatprep.subr.mxu0 0.0
        %5286 = vmatpush1.msra.mxu0 0.0
        %5287 = vmatprep.subr.mxu0 0.0
        %5288 = vmatpush1.msra.mxu0 0.0
        %5289 = vmatprep.subr.mxu0 0.0
        %5290 = vmatpush1.msra.mxu0 0.0
        %5291 = vmatprep.subr.mxu0 0.0
        %5292 = vmatpush1.msra.mxu0 0.0
        %5293 = vmatprep.subr.mxu0 0.0
        %5294 = vmatpush1.msra.mxu0 0.0
        %5295 = vmatprep.subr.mxu0 0.0
        %5296 = vmatpush1.msra.mxu0 0.0
        %5297 = vmatprep.subr.mxu0 0.0
        %5298 = vmatpush1.msra.mxu0 0.0
        %5299 = vmatprep.subr.mxu0 0.0
        %5300 = vmatpush1.msra.mxu0 0.0
        %5301 = vmatprep.subr.mxu0 0.0
        %5302 = vmatpush1.msra.mxu0 0.0
        %5303 = vmatprep.subr.mxu0 0.0
        %5304 = vmatpush1.msra.mxu0 0.0
        %5305 = vmatprep.subr.mxu0 0.0
        %5306 = vmatpush1.msra.mxu0 0.0
        %5307 = vmatprep.subr.mxu0 0.0
        %5308 = vmatpush1.msra.mxu0 0.0
        %5309 = vmatprep.subr.mxu0 0.0
        %5310 = vmatpush1.msra.mxu0 0.0
        %5311 = vmatprep.subr.mxu0 0.0
        %5312 = vmatpush1.msra.mxu0 0.0
        %5313 = vmatprep.subr.mxu0 0.0
        %5314 = vmatpush1.msra.mxu0 0.0
        %5315 = vmatprep.mubr.f32.mxu0 0.0
        %v5316 = vand.u32 %v2761, 4294901760
        %5317 = vmatmul.mubr.f32.gmra.mrb[0].mxu0 %v5316
        %v5318 = vpop.f32.mrb[0].mxu0
        %v5319 = vadd.f32 %v5237, %v5318
        %v5320 = vpop.f32.mrb[0].mxu0
        %5321 = vmatprep.mubr.f32.mxu0 0.0
        %v5322 = vand.u32 %v2764, 4294901760
        %5323 = vmatmul.mubr.f32.gmra.mrb[0].mxu0 %v5322
        %v5324 = vpop.f32.mrb[0].mxu0
        %v5325 = vadd.f32 %v5245, %v5324
        %v5326 = vpop.f32.mrb[0].mxu0
        %5327 = vdwg.mxu0
        %5328 = vmatprep.subr.mxu0 0.0
        %v5329 = vand.u32 %v4915, 4294901760
        %5330 = vmatpush1.msra.mxu0 %v5329
        %5331 = vmatprep.subr.mxu0 0.0
        %5332 = vmatpush1.msra.mxu0 0.0
        %5333 = vmatprep.subr.mxu0 0.0
        %5334 = vmatpush1.msra.mxu0 0.0
        %5335 = vmatprep.subr.mxu0 0.0
        %5336 = vmatpush1.msra.mxu0 0.0
        %5337 = vmatprep.subr.mxu0 0.0
        %5338 = vmatpush1.msra.mxu0 0.0
        %5339 = vmatprep.subr.mxu0 0.0
        %5340 = vmatpush1.msra.mxu0 0.0
        %5341 = vmatprep.subr.mxu0 0.0
        %5342 = vmatpush1.msra.mxu0 0.0
        %5343 = vmatprep.subr.mxu0 0.0
        %5344 = vmatpush1.msra.mxu0 0.0
        %5345 = vmatprep.subr.mxu0 0.0
        %5346 = vmatpush1.msra.mxu0 0.0
        %5347 = vmatprep.subr.mxu0 0.0
        %5348 = vmatpush1.msra.mxu0 0.0
        %5349 = vmatprep.subr.mxu0 0.0
        %5350 = vmatpush1.msra.mxu0 0.0
        %5351 = vmatprep.subr.mxu0 0.0
        %5352 = vmatpush1.msra.mxu0 0.0
        %5353 = vmatprep.subr.mxu0 0.0
        %5354 = vmatpush1.msra.mxu0 0.0
        %5355 = vmatprep.subr.mxu0 0.0
        %5356 = vmatpush1.msra.mxu0 0.0
        %5357 = vmatprep.subr.mxu0 0.0
        %5358 = vmatpush1.msra.mxu0 0.0
        %5359 = vmatprep.subr.mxu0 0.0
        %5360 = vmatpush1.msra.mxu0 0.0
        %5361 = vmatprep.subr.mxu0 0.0
        %5362 = vmatpush1.msra.mxu0 0.0
        %5363 = vmatprep.subr.mxu0 0.0
        %5364 = vmatpush1.msra.mxu0 0.0
        %5365 = vmatprep.subr.mxu0 0.0
        %5366 = vmatpush1.msra.mxu0 0.0
        %5367 = vmatprep.subr.mxu0 0.0
        %5368 = vmatpush1.msra.mxu0 0.0
        %5369 = vmatprep.subr.mxu0 0.0
        %5370 = vmatpush1.msra.mxu0 0.0
        %5371 = vmatprep.subr.mxu0 0.0
        %5372 = vmatpush1.msra.mxu0 0.0
        %5373 = vmatprep.subr.mxu0 0.0
        %5374 = vmatpush1.msra.mxu0 0.0
        %5375 = vmatprep.subr.mxu0 0.0
        %5376 = vmatpush1.msra.mxu0 0.0
        %5377 = vmatprep.subr.mxu0 0.0
        %5378 = vmatpush1.msra.mxu0 0.0
        %5379 = vmatprep.subr.mxu0 0.0
        %5380 = vmatpush1.msra.mxu0 0.0
        %5381 = vmatprep.subr.mxu0 0.0
        %5382 = vmatpush1.msra.mxu0 0.0
        %5383 = vmatprep.subr.mxu0 0.0
        %5384 = vmatpush1.msra.mxu0 0.0
        %5385 = vmatprep.subr.mxu0 0.0
        %5386 = vmatpush1.msra.mxu0 0.0
        %5387 = vmatprep.subr.mxu0 0.0
        %5388 = vmatpush1.msra.mxu0 0.0
        %5389 = vmatprep.subr.mxu0 0.0
        %5390 = vmatpush1.msra.mxu0 0.0
        %5391 = vmatprep.subr.mxu0 0.0
        %5392 = vmatpush1.msra.mxu0 0.0
        %5393 = vmatprep.mubr.f32.mxu0 0.0
        %v5394 = vand.u32 %v2761, 4294901760
        %5395 = vmatmul.mubr.f32.gmra.mrb[0].mxu0 %v5394
        %v5396 = vpop.f32.mrb[0].mxu0
        %v5397 = vadd.f32 %v5319, %v5396
        %v5398 = vpop.f32.mrb[0].mxu0
        %5399 = vmatprep.mubr.f32.mxu0 0.0
        %v5400 = vand.u32 %v2764, 4294901760
        %5401 = vmatmul.mubr.f32.gmra.mrb[0].mxu0 %v5400
        %v5402 = vpop.f32.mrb[0].mxu0
        %v5403 = vadd.f32 %v5325, %v5402
        %v5404 = vpop.f32.mrb[0].mxu0
        %5405 = vdwg.mxu0
        %v5406 = vxor.u32 %v5397, 2147483648
        %v5407 = vxor.u32 %v5403, 2147483648
        %v5408 = vmul.f32 %v5406, 1.442695
        %v5409 = vpow.pop %v5408
        %v5410 = vmul.f32 %v5407, 1.442695
        %v5411 = vpow.pop %v5410
        %v5412 = vadd.f32 %v5409, 1.0
        %v5413 = vadd.f32 %v5411, 1.0
        %v5414 = vrcp.pop %v5412
        %v5415 = vmul.f32 1.0, %v5414
        %v5416 = vrcp.pop %v5413
        %v5417 = vmul.f32 1.0, %v5416
        %5419 = vset.pattern.permute.xlu0 0
        %5420 = vperm.xlu0 %5419, %v5415
        %v5421 = vpop.permute.xlu0 %5420
        %5424 = vset.pattern.permute.xlu0 0
        %5425 = vperm.xlu0 %5424, %v5417
        %v5426 = vpop.permute.xlu0 %5425
        %v5428 = vmul.f32 %v4439, %v5421
        %v5429 = vmul.f32 %v4445, %v5426
        %v5430 = vadd.f32 %v3283, %v5428
        %v5431 = vadd.f32 %v3284, %v5429
        %v5432 = vsel %vm555, %v5430, 0.0
        %5433 = vadd.xlane.f32.xlu0 %v5432
        %v5434 = vpop.xlane.xlu0 %5433
        %v5435 = vsel %vm555, %v5431, 0.0
        %5436 = vadd.xlane.f32.xlu0 %v5435
        %v5437 = vpop.xlane.xlu0 %5436
        %v5438 = vmul.f32 %v5434, %v1098
        %v5439 = vmul.f32 %v5437, %v1098
        %v5440 = vsub.f32 %v5430, %v5438
        %v5441 = vsub.f32 %v5431, %v5439
        %v5442 = vmul.f32 %v5440, %v5440
        %v5443 = vmul.f32 %v5441, %v5441
        %v5444 = vsel %vm555, %v5442, 0.0
        %5445 = vadd.xlane.f32.xlu0 %v5444
        %v5446 = vpop.xlane.xlu0 %5445
        %v5447 = vsel %vm555, %v5443, 0.0
        %5448 = vadd.xlane.f32.xlu0 %v5447
        %v5449 = vpop.xlane.xlu0 %5448
        %v5450 = vmul.f32 %v5446, %v1098
        %v5451 = vmul.f32 %v5449, %v1098
        %v5452 = vadd.f32 %v5450, 1e-05
        %v5453 = vadd.f32 %v5451, 1e-05
        %v5454 = vrsqrt.pop %v5452
        %v5455 = vrsqrt.pop %v5453
        %v5456 = vmul.f32 %v5440, %v5454
        %v5457 = vmul.f32 %v5441, %v5455
        %v5458 = vmul.f32 %v5456, %v1123
        %v5459 = vmul.f32 %v5457, %v1123
        %v5460 = vadd.f32 %v5458, %v1131
        %v5461 = vadd.f32 %v5459, %v1131
        %v5463 = vsel %vm555, %v5460, 0
        %v5466 = vsel %vm555, %v5461, 0
        %5468 = vmatprep.subr.mxu0 0.0
        %v5469 = vand.u32 %v1135, 4294901760
        %5470 = vmatpush1.msra.mxu0 %v5469
        %5471 = vmatprep.subr.mxu0 0.0
        %v5472 = vand.u32 %v1136, 4294901760
        %5473 = vmatpush1.msra.mxu0 %v5472
        %5474 = vmatprep.subr.mxu0 0.0
        %v5475 = vand.u32 %v1137, 4294901760
        %5476 = vmatpush1.msra.mxu0 %v5475
        %5477 = vmatprep.subr.mxu0 0.0
        %v5478 = vand.u32 %v1138, 4294901760
        %5479 = vmatpush1.msra.mxu0 %v5478
        %5480 = vmatprep.subr.mxu0 0.0
        %5481 = vmatpush1.msra.mxu0 0.0
        %5482 = vmatprep.subr.mxu0 0.0
        %5483 = vmatpush1.msra.mxu0 0.0
        %5484 = vmatprep.subr.mxu0 0.0
        %5485 = vmatpush1.msra.mxu0 0.0
        %5486 = vmatprep.subr.mxu0 0.0
        %5487 = vmatpush1.msra.mxu0 0.0
        %5488 = vmatprep.subr.mxu0 0.0
        %5489 = vmatpush1.msra.mxu0 0.0
        %5490 = vmatprep.subr.mxu0 0.0
        %5491 = vmatpush1.msra.mxu0 0.0
        %5492 = vmatprep.subr.mxu0 0.0
        %5493 = vmatpush1.msra.mxu0 0.0
        %5494 = vmatprep.subr.mxu0 0.0
        %5495 = vmatpush1.msra.mxu0 0.0
        %5496 = vmatprep.subr.mxu0 0.0
        %5497 = vmatpush1.msra.mxu0 0.0
        %5498 = vmatprep.subr.mxu0 0.0
        %5499 = vmatpush1.msra.mxu0 0.0
        %5500 = vmatprep.subr.mxu0 0.0
        %5501 = vmatpush1.msra.mxu0 0.0
        %5502 = vmatprep.subr.mxu0 0.0
        %5503 = vmatpush1.msra.mxu0 0.0
        %5504 = vmatprep.subr.mxu0 0.0
        %5505 = vmatpush1.msra.mxu0 0.0
        %5506 = vmatprep.subr.mxu0 0.0
        %5507 = vmatpush1.msra.mxu0 0.0
        %5508 = vmatprep.subr.mxu0 0.0
        %5509 = vmatpush1.msra.mxu0 0.0
        %5510 = vmatprep.subr.mxu0 0.0
        %5511 = vmatpush1.msra.mxu0 0.0
        %5512 = vmatprep.subr.mxu0 0.0
        %5513 = vmatpush1.msra.mxu0 0.0
        %5514 = vmatprep.subr.mxu0 0.0
        %5515 = vmatpush1.msra.mxu0 0.0
        %5516 = vmatprep.subr.mxu0 0.0
        %5517 = vmatpush1.msra.mxu0 0.0
        %5518 = vmatprep.subr.mxu0 0.0
        %5519 = vmatpush1.msra.mxu0 0.0
        %5520 = vmatprep.subr.mxu0 0.0
        %5521 = vmatpush1.msra.mxu0 0.0
        %5522 = vmatprep.subr.mxu0 0.0
        %5523 = vmatpush1.msra.mxu0 0.0
        %5524 = vmatprep.subr.mxu0 0.0
        %5525 = vmatpush1.msra.mxu0 0.0
        %5526 = vmatprep.subr.mxu0 0.0
        %5527 = vmatpush1.msra.mxu0 0.0
        %5528 = vmatprep.subr.mxu0 0.0
        %5529 = vmatpush1.msra.mxu0 0.0
        %5530 = vmatprep.subr.mxu0 0.0
        %5531 = vmatpush1.msra.mxu0 0.0
        %5532 = vmatprep.subr.mxu0 0.0
        %5533 = vmatpush1.msra.mxu0 0.0
        %5534 = vmatprep.subr.mxu0 0.0
        %5535 = vmatpush1.msra.mxu0 0.0
        %5536 = vmatprep.mubr.f32.mxu0 0.0
        %v5537 = vand.u32 %v5463, 4294901760
        %v5538 = vsub.f32 %v5463, %v5537
        %v5539 = vand.u32 %v5538, 4294901760
        %v5540 = vsub.f32 %v5538, %v5539
        %v5541 = vand.u32 %v5540, 4294901760
        %5542 = vmatmul.mubr.f32.gmra.mrb[0].mxu0 %v5541
        %v5543 = vpop.f32.mrb[0].mxu0
        %v5544 = vadd.f32 %v1144, %v5543
        %v5545 = vpop.f32.mrb[0].mxu0
        %5546 = vmatprep.mubr.f32.mxu0 0.0
        %v5547 = vand.u32 %v5466, 4294901760
        %v5548 = vsub.f32 %v5466, %v5547
        %v5549 = vand.u32 %v5548, 4294901760
        %v5550 = vsub.f32 %v5548, %v5549
        %v5551 = vand.u32 %v5550, 4294901760
        %5552 = vmatmul.mubr.f32.gmra.mrb[0].mxu0 %v5551
        %v5553 = vpop.f32.mrb[0].mxu0
        %v5554 = vadd.f32 %v1144, %v5553
        %v5555 = vpop.f32.mrb[0].mxu0
        %5556 = vdwg.mxu0
        %5557 = vmatprep.subr.mxu0 0.0
        %v5558 = vand.u32 %v1135, 4294901760
        %v5559 = vsub.f32 %v1135, %v5558
        %v5560 = vand.u32 %v5559, 4294901760
        %v5561 = vsub.f32 %v5559, %v5560
        %v5562 = vand.u32 %v5561, 4294901760
        %5563 = vmatpush1.msra.mxu0 %v5562
        %5564 = vmatprep.subr.mxu0 0.0
        %v5565 = vand.u32 %v1136, 4294901760
        %v5566 = vsub.f32 %v1136, %v5565
        %v5567 = vand.u32 %v5566, 4294901760
        %v5568 = vsub.f32 %v5566, %v5567
        %v5569 = vand.u32 %v5568, 4294901760
        %5570 = vmatpush1.msra.mxu0 %v5569
        %5571 = vmatprep.subr.mxu0 0.0
        %v5572 = vand.u32 %v1137, 4294901760
        %v5573 = vsub.f32 %v1137, %v5572
        %v5574 = vand.u32 %v5573, 4294901760
        %v5575 = vsub.f32 %v5573, %v5574
        %v5576 = vand.u32 %v5575, 4294901760
        %5577 = vmatpush1.msra.mxu0 %v5576
        %5578 = vmatprep.subr.mxu0 0.0
        %v5579 = vand.u32 %v1138, 4294901760
        %v5580 = vsub.f32 %v1138, %v5579
        %v5581 = vand.u32 %v5580, 4294901760
        %v5582 = vsub.f32 %v5580, %v5581
        %v5583 = vand.u32 %v5582, 4294901760
        %5584 = vmatpush1.msra.mxu0 %v5583
        %5585 = vmatprep.subr.mxu0 0.0
        %5586 = vmatpush1.msra.mxu0 0.0
        %5587 = vmatprep.subr.mxu0 0.0
        %5588 = vmatpush1.msra.mxu0 0.0
        %5589 = vmatprep.subr.mxu0 0.0
        %5590 = vmatpush1.msra.mxu0 0.0
        %5591 = vmatprep.subr.mxu0 0.0
        %5592 = vmatpush1.msra.mxu0 0.0
        %5593 = vmatprep.subr.mxu0 0.0
        %5594 = vmatpush1.msra.mxu0 0.0
        %5595 = vmatprep.subr.mxu0 0.0
        %5596 = vmatpush1.msra.mxu0 0.0
        %5597 = vmatprep.subr.mxu0 0.0
        %5598 = vmatpush1.msra.mxu0 0.0
        %5599 = vmatprep.subr.mxu0 0.0
        %5600 = vmatpush1.msra.mxu0 0.0
        %5601 = vmatprep.subr.mxu0 0.0
        %5602 = vmatpush1.msra.mxu0 0.0
        %5603 = vmatprep.subr.mxu0 0.0
        %5604 = vmatpush1.msra.mxu0 0.0
        %5605 = vmatprep.subr.mxu0 0.0
        %5606 = vmatpush1.msra.mxu0 0.0
        %5607 = vmatprep.subr.mxu0 0.0
        %5608 = vmatpush1.msra.mxu0 0.0
        %5609 = vmatprep.subr.mxu0 0.0
        %5610 = vmatpush1.msra.mxu0 0.0
        %5611 = vmatprep.subr.mxu0 0.0
        %5612 = vmatpush1.msra.mxu0 0.0
        %5613 = vmatprep.subr.mxu0 0.0
        %5614 = vmatpush1.msra.mxu0 0.0
        %5615 = vmatprep.subr.mxu0 0.0
        %5616 = vmatpush1.msra.mxu0 0.0
        %5617 = vmatprep.subr.mxu0 0.0
        %5618 = vmatpush1.msra.mxu0 0.0
        %5619 = vmatprep.subr.mxu0 0.0
        %5620 = vmatpush1.msra.mxu0 0.0
        %5621 = vmatprep.subr.mxu0 0.0
        %5622 = vmatpush1.msra.mxu0 0.0
        %5623 = vmatprep.subr.mxu0 0.0
        %5624 = vmatpush1.msra.mxu0 0.0
        %5625 = vmatprep.subr.mxu0 0.0
        %5626 = vmatpush1.msra.mxu0 0.0
        %5627 = vmatprep.subr.mxu0 0.0
        %5628 = vmatpush1.msra.mxu0 0.0
        %5629 = vmatprep.subr.mxu0 0.0
        %5630 = vmatpush1.msra.mxu0 0.0
        %5631 = vmatprep.subr.mxu0 0.0
        %5632 = vmatpush1.msra.mxu0 0.0
        %5633 = vmatprep.subr.mxu0 0.0
        %5634 = vmatpush1.msra.mxu0 0.0
        %5635 = vmatprep.subr.mxu0 0.0
        %5636 = vmatpush1.msra.mxu0 0.0
        %5637 = vmatprep.subr.mxu0 0.0
        %5638 = vmatpush1.msra.mxu0 0.0
        %5639 = vmatprep.subr.mxu0 0.0
        %5640 = vmatpush1.msra.mxu0 0.0
        %5641 = vmatprep.mubr.f32.mxu0 0.0
        %v5642 = vand.u32 %v5463, 4294901760
        %5643 = vmatmul.mubr.f32.gmra.mrb[0].mxu0 %v5642
        %v5644 = vpop.f32.mrb[0].mxu0
        %v5645 = vadd.f32 %v5544, %v5644
        %v5646 = vpop.f32.mrb[0].mxu0
        %5647 = vmatprep.mubr.f32.mxu0 0.0
        %v5648 = vand.u32 %v5466, 4294901760
        %5649 = vmatmul.mubr.f32.gmra.mrb[0].mxu0 %v5648
        %v5650 = vpop.f32.mrb[0].mxu0
        %v5651 = vadd.f32 %v5554, %v5650
        %v5652 = vpop.f32.mrb[0].mxu0
        %5653 = vdwg.mxu0
        %5654 = vmatprep.subr.mxu0 0.0
        %v5655 = vand.u32 %v1135, 4294901760
        %v5656 = vsub.f32 %v1135, %v5655
        %5657 = vmatpush1.msra.mxu0 %v5656
        %5658 = vmatprep.subr.mxu0 0.0
        %v5659 = vand.u32 %v1136, 4294901760
        %v5660 = vsub.f32 %v1136, %v5659
        %5661 = vmatpush1.msra.mxu0 %v5660
        %5662 = vmatprep.subr.mxu0 0.0
        %v5663 = vand.u32 %v1137, 4294901760
        %v5664 = vsub.f32 %v1137, %v5663
        %5665 = vmatpush1.msra.mxu0 %v5664
        %5666 = vmatprep.subr.mxu0 0.0
        %v5667 = vand.u32 %v1138, 4294901760
        %v5668 = vsub.f32 %v1138, %v5667
        %5669 = vmatpush1.msra.mxu0 %v5668
        %5670 = vmatprep.subr.mxu0 0.0
        %5671 = vmatpush1.msra.mxu0 0.0
        %5672 = vmatprep.subr.mxu0 0.0
        %5673 = vmatpush1.msra.mxu0 0.0
        %5674 = vmatprep.subr.mxu0 0.0
        %5675 = vmatpush1.msra.mxu0 0.0
        %5676 = vmatprep.subr.mxu0 0.0
        %5677 = vmatpush1.msra.mxu0 0.0
        %5678 = vmatprep.subr.mxu0 0.0
        %5679 = vmatpush1.msra.mxu0 0.0
        %5680 = vmatprep.subr.mxu0 0.0
        %5681 = vmatpush1.msra.mxu0 0.0
        %5682 = vmatprep.subr.mxu0 0.0
        %5683 = vmatpush1.msra.mxu0 0.0
        %5684 = vmatprep.subr.mxu0 0.0
        %5685 = vmatpush1.msra.mxu0 0.0
        %5686 = vmatprep.subr.mxu0 0.0
        %5687 = vmatpush1.msra.mxu0 0.0
        %5688 = vmatprep.subr.mxu0 0.0
        %5689 = vmatpush1.msra.mxu0 0.0
        %5690 = vmatprep.subr.mxu0 0.0
        %5691 = vmatpush1.msra.mxu0 0.0
        %5692 = vmatprep.subr.mxu0 0.0
        %5693 = vmatpush1.msra.mxu0 0.0
        %5694 = vmatprep.subr.mxu0 0.0
        %5695 = vmatpush1.msra.mxu0 0.0
        %5696 = vmatprep.subr.mxu0 0.0
        %5697 = vmatpush1.msra.mxu0 0.0
        %5698 = vmatprep.subr.mxu0 0.0
        %5699 = vmatpush1.msra.mxu0 0.0
        %5700 = vmatprep.subr.mxu0 0.0
        %5701 = vmatpush1.msra.mxu0 0.0
        %5702 = vmatprep.subr.mxu0 0.0
        %5703 = vmatpush1.msra.mxu0 0.0
        %5704 = vmatprep.subr.mxu0 0.0
        %5705 = vmatpush1.msra.mxu0 0.0
        %5706 = vmatprep.subr.mxu0 0.0
        %5707 = vmatpush1.msra.mxu0 0.0
        %5708 = vmatprep.subr.mxu0 0.0
        %5709 = vmatpush1.msra.mxu0 0.0
        %5710 = vmatprep.subr.mxu0 0.0
        %5711 = vmatpush1.msra.mxu0 0.0
        %5712 = vmatprep.subr.mxu0 0.0
        %5713 = vmatpush1.msra.mxu0 0.0
        %5714 = vmatprep.subr.mxu0 0.0
        %5715 = vmatpush1.msra.mxu0 0.0
        %5716 = vmatprep.subr.mxu0 0.0
        %5717 = vmatpush1.msra.mxu0 0.0
        %5718 = vmatprep.subr.mxu0 0.0
        %5719 = vmatpush1.msra.mxu0 0.0
        %5720 = vmatprep.subr.mxu0 0.0
        %5721 = vmatpush1.msra.mxu0 0.0
        %5722 = vmatprep.subr.mxu0 0.0
        %5723 = vmatpush1.msra.mxu0 0.0
        %5724 = vmatprep.subr.mxu0 0.0
        %5725 = vmatpush1.msra.mxu0 0.0
        %5726 = vmatprep.mubr.f32.mxu0 0.0
        %v5727 = vand.u32 %v5463, 4294901760
        %v5728 = vsub.f32 %v5463, %v5727
        %5729 = vmatmul.mubr.f32.gmra.mrb[0].mxu0 %v5728
        %v5730 = vpop.f32.mrb[0].mxu0
        %v5731 = vadd.f32 %v5645, %v5730
        %v5732 = vpop.f32.mrb[0].mxu0
        %5733 = vmatprep.mubr.f32.mxu0 0.0
        %v5734 = vand.u32 %v5466, 4294901760
        %v5735 = vsub.f32 %v5466, %v5734
        %5736 = vmatmul.mubr.f32.gmra.mrb[0].mxu0 %v5735
        %v5737 = vpop.f32.mrb[0].mxu0
        %v5738 = vadd.f32 %v5651, %v5737
        %v5739 = vpop.f32.mrb[0].mxu0
        %5740 = vdwg.mxu0
        %5741 = vmatprep.subr.mxu0 0.0
        %v5742 = vand.u32 %v1135, 4294901760
        %5743 = vmatpush1.msra.mxu0 %v5742
        %5744 = vmatprep.subr.mxu0 0.0
        %v5745 = vand.u32 %v1136, 4294901760
        %5746 = vmatpush1.msra.mxu0 %v5745
        %5747 = vmatprep.subr.mxu0 0.0
        %v5748 = vand.u32 %v1137, 4294901760
        %5749 = vmatpush1.msra.mxu0 %v5748
        %5750 = vmatprep.subr.mxu0 0.0
        %v5751 = vand.u32 %v1138, 4294901760
        %5752 = vmatpush1.msra.mxu0 %v5751
        %5753 = vmatprep.subr.mxu0 0.0
        %5754 = vmatpush1.msra.mxu0 0.0
        %5755 = vmatprep.subr.mxu0 0.0
        %5756 = vmatpush1.msra.mxu0 0.0
        %5757 = vmatprep.subr.mxu0 0.0
        %5758 = vmatpush1.msra.mxu0 0.0
        %5759 = vmatprep.subr.mxu0 0.0
        %5760 = vmatpush1.msra.mxu0 0.0
        %5761 = vmatprep.subr.mxu0 0.0
        %5762 = vmatpush1.msra.mxu0 0.0
        %5763 = vmatprep.subr.mxu0 0.0
        %5764 = vmatpush1.msra.mxu0 0.0
        %5765 = vmatprep.subr.mxu0 0.0
        %5766 = vmatpush1.msra.mxu0 0.0
        %5767 = vmatprep.subr.mxu0 0.0
        %5768 = vmatpush1.msra.mxu0 0.0
        %5769 = vmatprep.subr.mxu0 0.0
        %5770 = vmatpush1.msra.mxu0 0.0
        %5771 = vmatprep.subr.mxu0 0.0
        %5772 = vmatpush1.msra.mxu0 0.0
        %5773 = vmatprep.subr.mxu0 0.0
        %5774 = vmatpush1.msra.mxu0 0.0
        %5775 = vmatprep.subr.mxu0 0.0
        %5776 = vmatpush1.msra.mxu0 0.0
        %5777 = vmatprep.subr.mxu0 0.0
        %5778 = vmatpush1.msra.mxu0 0.0
        %5779 = vmatprep.subr.mxu0 0.0
        %5780 = vmatpush1.msra.mxu0 0.0
        %5781 = vmatprep.subr.mxu0 0.0
        %5782 = vmatpush1.msra.mxu0 0.0
        %5783 = vmatprep.subr.mxu0 0.0
        %5784 = vmatpush1.msra.mxu0 0.0
        %5785 = vmatprep.subr.mxu0 0.0
        %5786 = vmatpush1.msra.mxu0 0.0
        %5787 = vmatprep.subr.mxu0 0.0
        %5788 = vmatpush1.msra.mxu0 0.0
        %5789 = vmatprep.subr.mxu0 0.0
        %5790 = vmatpush1.msra.mxu0 0.0
        %5791 = vmatprep.subr.mxu0 0.0
        %5792 = vmatpush1.msra.mxu0 0.0
        %5793 = vmatprep.subr.mxu0 0.0
        %5794 = vmatpush1.msra.mxu0 0.0
        %5795 = vmatprep.subr.mxu0 0.0
        %5796 = vmatpush1.msra.mxu0 0.0
        %5797 = vmatprep.subr.mxu0 0.0
        %5798 = vmatpush1.msra.mxu0 0.0
        %5799 = vmatprep.subr.mxu0 0.0
        %5800 = vmatpush1.msra.mxu0 0.0
        %5801 = vmatprep.subr.mxu0 0.0
        %5802 = vmatpush1.msra.mxu0 0.0
        %5803 = vmatprep.subr.mxu0 0.0
        %5804 = vmatpush1.msra.mxu0 0.0
        %5805 = vmatprep.subr.mxu0 0.0
        %5806 = vmatpush1.msra.mxu0 0.0
        %5807 = vmatprep.subr.mxu0 0.0
        %5808 = vmatpush1.msra.mxu0 0.0
        %5809 = vmatprep.mubr.f32.mxu0 0.0
        %v5810 = vand.u32 %v5463, 4294901760
        %v5811 = vsub.f32 %v5463, %v5810
        %v5812 = vand.u32 %v5811, 4294901760
        %5813 = vmatmul.mubr.f32.gmra.mrb[0].mxu0 %v5812
        %v5814 = vpop.f32.mrb[0].mxu0
        %v5815 = vadd.f32 %v5731, %v5814
        %v5816 = vpop.f32.mrb[0].mxu0
        %5817 = vmatprep.mubr.f32.mxu0 0.0
        %v5818 = vand.u32 %v5466, 4294901760
        %v5819 = vsub.f32 %v5466, %v5818
        %v5820 = vand.u32 %v5819, 4294901760
        %5821 = vmatmul.mubr.f32.gmra.mrb[0].mxu0 %v5820
        %v5822 = vpop.f32.mrb[0].mxu0
        %v5823 = vadd.f32 %v5738, %v5822
        %v5824 = vpop.f32.mrb[0].mxu0
        %5825 = vdwg.mxu0
        %5826 = vmatprep.subr.mxu0 0.0
        %v5827 = vand.u32 %v1135, 4294901760
        %v5828 = vsub.f32 %v1135, %v5827
        %v5829 = vand.u32 %v5828, 4294901760
        %5830 = vmatpush1.msra.mxu0 %v5829
        %5831 = vmatprep.subr.mxu0 0.0
        %v5832 = vand.u32 %v1136, 4294901760
        %v5833 = vsub.f32 %v1136, %v5832
        %v5834 = vand.u32 %v5833, 4294901760
        %5835 = vmatpush1.msra.mxu0 %v5834
        %5836 = vmatprep.subr.mxu0 0.0
        %v5837 = vand.u32 %v1137, 4294901760
        %v5838 = vsub.f32 %v1137, %v5837
        %v5839 = vand.u32 %v5838, 4294901760
        %5840 = vmatpush1.msra.mxu0 %v5839
        %5841 = vmatprep.subr.mxu0 0.0
        %v5842 = vand.u32 %v1138, 4294901760
        %v5843 = vsub.f32 %v1138, %v5842
        %v5844 = vand.u32 %v5843, 4294901760
        %5845 = vmatpush1.msra.mxu0 %v5844
        %5846 = vmatprep.subr.mxu0 0.0
        %5847 = vmatpush1.msra.mxu0 0.0
        %5848 = vmatprep.subr.mxu0 0.0
        %5849 = vmatpush1.msra.mxu0 0.0
        %5850 = vmatprep.subr.mxu0 0.0
        %5851 = vmatpush1.msra.mxu0 0.0
        %5852 = vmatprep.subr.mxu0 0.0
        %5853 = vmatpush1.msra.mxu0 0.0
        %5854 = vmatprep.subr.mxu0 0.0
        %5855 = vmatpush1.msra.mxu0 0.0
        %5856 = vmatprep.subr.mxu0 0.0
        %5857 = vmatpush1.msra.mxu0 0.0
        %5858 = vmatprep.subr.mxu0 0.0
        %5859 = vmatpush1.msra.mxu0 0.0
        %5860 = vmatprep.subr.mxu0 0.0
        %5861 = vmatpush1.msra.mxu0 0.0
        %5862 = vmatprep.subr.mxu0 0.0
        %5863 = vmatpush1.msra.mxu0 0.0
        %5864 = vmatprep.subr.mxu0 0.0
        %5865 = vmatpush1.msra.mxu0 0.0
        %5866 = vmatprep.subr.mxu0 0.0
        %5867 = vmatpush1.msra.mxu0 0.0
        %5868 = vmatprep.subr.mxu0 0.0
        %5869 = vmatpush1.msra.mxu0 0.0
        %5870 = vmatprep.subr.mxu0 0.0
        %5871 = vmatpush1.msra.mxu0 0.0
        %5872 = vmatprep.subr.mxu0 0.0
        %5873 = vmatpush1.msra.mxu0 0.0
        %5874 = vmatprep.subr.mxu0 0.0
        %5875 = vmatpush1.msra.mxu0 0.0
        %5876 = vmatprep.subr.mxu0 0.0
        %5877 = vmatpush1.msra.mxu0 0.0
        %5878 = vmatprep.subr.mxu0 0.0
        %5879 = vmatpush1.msra.mxu0 0.0
        %5880 = vmatprep.subr.mxu0 0.0
        %5881 = vmatpush1.msra.mxu0 0.0
        %5882 = vmatprep.subr.mxu0 0.0
        %5883 = vmatpush1.msra.mxu0 0.0
        %5884 = vmatprep.subr.mxu0 0.0
        %5885 = vmatpush1.msra.mxu0 0.0
        %5886 = vmatprep.subr.mxu0 0.0
        %5887 = vmatpush1.msra.mxu0 0.0
        %5888 = vmatprep.subr.mxu0 0.0
        %5889 = vmatpush1.msra.mxu0 0.0
        %5890 = vmatprep.subr.mxu0 0.0
        %5891 = vmatpush1.msra.mxu0 0.0
        %5892 = vmatprep.subr.mxu0 0.0
        %5893 = vmatpush1.msra.mxu0 0.0
        %5894 = vmatprep.subr.mxu0 0.0
        %5895 = vmatpush1.msra.mxu0 0.0
        %5896 = vmatprep.subr.mxu0 0.0
        %5897 = vmatpush1.msra.mxu0 0.0
        %5898 = vmatprep.subr.mxu0 0.0
        %5899 = vmatpush1.msra.mxu0 0.0
        %5900 = vmatprep.subr.mxu0 0.0
        %5901 = vmatpush1.msra.mxu0 0.0
        %5902 = vmatprep.mubr.f32.mxu0 0.0
        %v5903 = vand.u32 %v5463, 4294901760
        %5904 = vmatmul.mubr.f32.gmra.mrb[0].mxu0 %v5903
        %v5905 = vpop.f32.mrb[0].mxu0
        %v5906 = vadd.f32 %v5815, %v5905
        %v5907 = vpop.f32.mrb[0].mxu0
        %5908 = vmatprep.mubr.f32.mxu0 0.0
        %v5909 = vand.u32 %v5466, 4294901760
        %5910 = vmatmul.mubr.f32.gmra.mrb[0].mxu0 %v5909
        %v5911 = vpop.f32.mrb[0].mxu0
        %v5912 = vadd.f32 %v5823, %v5911
        %v5913 = vpop.f32.mrb[0].mxu0
        %5914 = vdwg.mxu0
        %5915 = vmatprep.subr.mxu0 0.0
        %v5916 = vand.u32 %v1135, 4294901760
        %5917 = vmatpush1.msra.mxu0 %v5916
        %5918 = vmatprep.subr.mxu0 0.0
        %v5919 = vand.u32 %v1136, 4294901760
        %5920 = vmatpush1.msra.mxu0 %v5919
        %5921 = vmatprep.subr.mxu0 0.0
        %v5922 = vand.u32 %v1137, 4294901760
        %5923 = vmatpush1.msra.mxu0 %v5922
        %5924 = vmatprep.subr.mxu0 0.0
        %v5925 = vand.u32 %v1138, 4294901760
        %5926 = vmatpush1.msra.mxu0 %v5925
        %5927 = vmatprep.subr.mxu0 0.0
        %5928 = vmatpush1.msra.mxu0 0.0
        %5929 = vmatprep.subr.mxu0 0.0
        %5930 = vmatpush1.msra.mxu0 0.0
        %5931 = vmatprep.subr.mxu0 0.0
        %5932 = vmatpush1.msra.mxu0 0.0
        %5933 = vmatprep.subr.mxu0 0.0
        %5934 = vmatpush1.msra.mxu0 0.0
        %5935 = vmatprep.subr.mxu0 0.0
        %5936 = vmatpush1.msra.mxu0 0.0
        %5937 = vmatprep.subr.mxu0 0.0
        %5938 = vmatpush1.msra.mxu0 0.0
        %5939 = vmatprep.subr.mxu0 0.0
        %5940 = vmatpush1.msra.mxu0 0.0
        %5941 = vmatprep.subr.mxu0 0.0
        %5942 = vmatpush1.msra.mxu0 0.0
        %5943 = vmatprep.subr.mxu0 0.0
        %5944 = vmatpush1.msra.mxu0 0.0
        %5945 = vmatprep.subr.mxu0 0.0
        %5946 = vmatpush1.msra.mxu0 0.0
        %5947 = vmatprep.subr.mxu0 0.0
        %5948 = vmatpush1.msra.mxu0 0.0
        %5949 = vmatprep.subr.mxu0 0.0
        %5950 = vmatpush1.msra.mxu0 0.0
        %5951 = vmatprep.subr.mxu0 0.0
        %5952 = vmatpush1.msra.mxu0 0.0
        %5953 = vmatprep.subr.mxu0 0.0
        %5954 = vmatpush1.msra.mxu0 0.0
        %5955 = vmatprep.subr.mxu0 0.0
        %5956 = vmatpush1.msra.mxu0 0.0
        %5957 = vmatprep.subr.mxu0 0.0
        %5958 = vmatpush1.msra.mxu0 0.0
        %5959 = vmatprep.subr.mxu0 0.0
        %5960 = vmatpush1.msra.mxu0 0.0
        %5961 = vmatprep.subr.mxu0 0.0
        %5962 = vmatpush1.msra.mxu0 0.0
        %5963 = vmatprep.subr.mxu0 0.0
        %5964 = vmatpush1.msra.mxu0 0.0
        %5965 = vmatprep.subr.mxu0 0.0
        %5966 = vmatpush1.msra.mxu0 0.0
        %5967 = vmatprep.subr.mxu0 0.0
        %5968 = vmatpush1.msra.mxu0 0.0
        %5969 = vmatprep.subr.mxu0 0.0
        %5970 = vmatpush1.msra.mxu0 0.0
        %5971 = vmatprep.subr.mxu0 0.0
        %5972 = vmatpush1.msra.mxu0 0.0
        %5973 = vmatprep.subr.mxu0 0.0
        %5974 = vmatpush1.msra.mxu0 0.0
        %5975 = vmatprep.subr.mxu0 0.0
        %5976 = vmatpush1.msra.mxu0 0.0
        %5977 = vmatprep.subr.mxu0 0.0
        %5978 = vmatpush1.msra.mxu0 0.0
        %5979 = vmatprep.subr.mxu0 0.0
        %5980 = vmatpush1.msra.mxu0 0.0
        %5981 = vmatprep.subr.mxu0 0.0
        %5982 = vmatpush1.msra.mxu0 0.0
        %5983 = vmatprep.mubr.f32.mxu0 0.0
        %v5984 = vand.u32 %v5463, 4294901760
        %5985 = vmatmul.mubr.f32.gmra.mrb[0].mxu0 %v5984
        %v5986 = vpop.f32.mrb[0].mxu0
        %v5987 = vadd.f32 %v5906, %v5986
        %v5988 = vpop.f32.mrb[0].mxu0
        %5989 = vmatprep.mubr.f32.mxu0 0.0
        %v5990 = vand.u32 %v5466, 4294901760
        %5991 = vmatmul.mubr.f32.gmra.mrb[0].mxu0 %v5990
        %v5992 = vpop.f32.mrb[0].mxu0
        %v5993 = vadd.f32 %v5912, %v5992
        %v5994 = vpop.f32.mrb[0].mxu0
        %5995 = vdwg.mxu0
        %v5996 = vmax.f32 %v5987, 0.0
        %v5997 = vmax.f32 %v5993, 0.0
        %v5999 = vsel %vm1697, %v5996, 0
        %v6002 = vsel %vm1697, %v5997, 0
        %6004 = vmatprep.subr.mxu0 0.0
        %v6005 = vand.u32 %v1682, 4294901760
        %6006 = vmatpush1.msra.mxu0 %v6005
        %6007 = vmatprep.subr.mxu0 0.0
        %v6008 = vand.u32 %v1683, 4294901760
        %6009 = vmatpush1.msra.mxu0 %v6008
        %6010 = vmatprep.subr.mxu0 0.0
        %v6011 = vand.u32 %v1684, 4294901760
        %6012 = vmatpush1.msra.mxu0 %v6011
        %6013 = vmatprep.subr.mxu0 0.0
        %v6014 = vand.u32 %v1685, 4294901760
        %6015 = vmatpush1.msra.mxu0 %v6014
        %6016 = vmatprep.subr.mxu0 0.0
        %v6017 = vand.u32 %v1686, 4294901760
        %6018 = vmatpush1.msra.mxu0 %v6017
        %6019 = vmatprep.subr.mxu0 0.0
        %v6020 = vand.u32 %v1687, 4294901760
        %6021 = vmatpush1.msra.mxu0 %v6020
        %6022 = vmatprep.subr.mxu0 0.0
        %v6023 = vand.u32 %v1688, 4294901760
        %6024 = vmatpush1.msra.mxu0 %v6023
        %6025 = vmatprep.subr.mxu0 0.0
        %v6026 = vand.u32 %v1689, 4294901760
        %6027 = vmatpush1.msra.mxu0 %v6026
        %6028 = vmatprep.subr.mxu0 0.0
        %6029 = vmatpush1.msra.mxu0 0.0
        %6030 = vmatprep.subr.mxu0 0.0
        %6031 = vmatpush1.msra.mxu0 0.0
        %6032 = vmatprep.subr.mxu0 0.0
        %6033 = vmatpush1.msra.mxu0 0.0
        %6034 = vmatprep.subr.mxu0 0.0
        %6035 = vmatpush1.msra.mxu0 0.0
        %6036 = vmatprep.subr.mxu0 0.0
        %6037 = vmatpush1.msra.mxu0 0.0
        %6038 = vmatprep.subr.mxu0 0.0
        %6039 = vmatpush1.msra.mxu0 0.0
        %6040 = vmatprep.subr.mxu0 0.0
        %6041 = vmatpush1.msra.mxu0 0.0
        %6042 = vmatprep.subr.mxu0 0.0
        %6043 = vmatpush1.msra.mxu0 0.0
        %6044 = vmatprep.subr.mxu0 0.0
        %6045 = vmatpush1.msra.mxu0 0.0
        %6046 = vmatprep.subr.mxu0 0.0
        %6047 = vmatpush1.msra.mxu0 0.0
        %6048 = vmatprep.subr.mxu0 0.0
        %6049 = vmatpush1.msra.mxu0 0.0
        %6050 = vmatprep.subr.mxu0 0.0
        %6051 = vmatpush1.msra.mxu0 0.0
        %6052 = vmatprep.subr.mxu0 0.0
        %6053 = vmatpush1.msra.mxu0 0.0
        %6054 = vmatprep.subr.mxu0 0.0
        %6055 = vmatpush1.msra.mxu0 0.0
        %6056 = vmatprep.subr.mxu0 0.0
        %6057 = vmatpush1.msra.mxu0 0.0
        %6058 = vmatprep.subr.mxu0 0.0
        %6059 = vmatpush1.msra.mxu0 0.0
        %6060 = vmatprep.subr.mxu0 0.0
        %6061 = vmatpush1.msra.mxu0 0.0
        %6062 = vmatprep.subr.mxu0 0.0
        %6063 = vmatpush1.msra.mxu0 0.0
        %6064 = vmatprep.subr.mxu0 0.0
        %6065 = vmatpush1.msra.mxu0 0.0
        %6066 = vmatprep.subr.mxu0 0.0
        %6067 = vmatpush1.msra.mxu0 0.0
        %6068 = vmatprep.subr.mxu0 0.0
        %6069 = vmatpush1.msra.mxu0 0.0
        %6070 = vmatprep.subr.mxu0 0.0
        %6071 = vmatpush1.msra.mxu0 0.0
        %6072 = vmatprep.subr.mxu0 0.0
        %6073 = vmatpush1.msra.mxu0 0.0
        %6074 = vmatprep.subr.mxu0 0.0
        %6075 = vmatpush1.msra.mxu0 0.0
        %6076 = vmatprep.mubr.f32.mxu0 0.0
        %v6077 = vand.u32 %v5999, 4294901760
        %v6078 = vsub.f32 %v5999, %v6077
        %v6079 = vand.u32 %v6078, 4294901760
        %v6080 = vsub.f32 %v6078, %v6079
        %v6081 = vand.u32 %v6080, 4294901760
        %6082 = vmatmul.mubr.f32.gmra.mrb[0].mxu0 %v6081
        %v6083 = vpop.f32.mrb[0].mxu0
        %v6084 = vadd.f32 %v1695, %v6083
        %v6085 = vpop.f32.mrb[0].mxu0
        %6086 = vmatprep.mubr.f32.mxu0 0.0
        %v6087 = vand.u32 %v6002, 4294901760
        %v6088 = vsub.f32 %v6002, %v6087
        %v6089 = vand.u32 %v6088, 4294901760
        %v6090 = vsub.f32 %v6088, %v6089
        %v6091 = vand.u32 %v6090, 4294901760
        %6092 = vmatmul.mubr.f32.gmra.mrb[0].mxu0 %v6091
        %v6093 = vpop.f32.mrb[0].mxu0
        %v6094 = vadd.f32 %v1695, %v6093
        %v6095 = vpop.f32.mrb[0].mxu0
        %6096 = vdwg.mxu0
        %6097 = vmatprep.subr.mxu0 0.0
        %v6098 = vand.u32 %v1682, 4294901760
        %v6099 = vsub.f32 %v1682, %v6098
        %v6100 = vand.u32 %v6099, 4294901760
        %v6101 = vsub.f32 %v6099, %v6100
        %v6102 = vand.u32 %v6101, 4294901760
        %6103 = vmatpush1.msra.mxu0 %v6102
        %6104 = vmatprep.subr.mxu0 0.0
        %v6105 = vand.u32 %v1683, 4294901760
        %v6106 = vsub.f32 %v1683, %v6105
        %v6107 = vand.u32 %v6106, 4294901760
        %v6108 = vsub.f32 %v6106, %v6107
        %v6109 = vand.u32 %v6108, 4294901760
        %6110 = vmatpush1.msra.mxu0 %v6109
        %6111 = vmatprep.subr.mxu0 0.0
        %v6112 = vand.u32 %v1684, 4294901760
        %v6113 = vsub.f32 %v1684, %v6112
        %v6114 = vand.u32 %v6113, 4294901760
        %v6115 = vsub.f32 %v6113, %v6114
        %v6116 = vand.u32 %v6115, 4294901760
        %6117 = vmatpush1.msra.mxu0 %v6116
        %6118 = vmatprep.subr.mxu0 0.0
        %v6119 = vand.u32 %v1685, 4294901760
        %v6120 = vsub.f32 %v1685, %v6119
        %v6121 = vand.u32 %v6120, 4294901760
        %v6122 = vsub.f32 %v6120, %v6121
        %v6123 = vand.u32 %v6122, 4294901760
        %6124 = vmatpush1.msra.mxu0 %v6123
        %6125 = vmatprep.subr.mxu0 0.0
        %v6126 = vand.u32 %v1686, 4294901760
        %v6127 = vsub.f32 %v1686, %v6126
        %v6128 = vand.u32 %v6127, 4294901760
        %v6129 = vsub.f32 %v6127, %v6128
        %v6130 = vand.u32 %v6129, 4294901760
        %6131 = vmatpush1.msra.mxu0 %v6130
        %6132 = vmatprep.subr.mxu0 0.0
        %v6133 = vand.u32 %v1687, 4294901760
        %v6134 = vsub.f32 %v1687, %v6133
        %v6135 = vand.u32 %v6134, 4294901760
        %v6136 = vsub.f32 %v6134, %v6135
        %v6137 = vand.u32 %v6136, 4294901760
        %6138 = vmatpush1.msra.mxu0 %v6137
        %6139 = vmatprep.subr.mxu0 0.0
        %v6140 = vand.u32 %v1688, 4294901760
        %v6141 = vsub.f32 %v1688, %v6140
        %v6142 = vand.u32 %v6141, 4294901760
        %v6143 = vsub.f32 %v6141, %v6142
        %v6144 = vand.u32 %v6143, 4294901760
        %6145 = vmatpush1.msra.mxu0 %v6144
        %6146 = vmatprep.subr.mxu0 0.0
        %v6147 = vand.u32 %v1689, 4294901760
        %v6148 = vsub.f32 %v1689, %v6147
        %v6149 = vand.u32 %v6148, 4294901760
        %v6150 = vsub.f32 %v6148, %v6149
        %v6151 = vand.u32 %v6150, 4294901760
        %6152 = vmatpush1.msra.mxu0 %v6151
        %6153 = vmatprep.subr.mxu0 0.0
        %6154 = vmatpush1.msra.mxu0 0.0
        %6155 = vmatprep.subr.mxu0 0.0
        %6156 = vmatpush1.msra.mxu0 0.0
        %6157 = vmatprep.subr.mxu0 0.0
        %6158 = vmatpush1.msra.mxu0 0.0
        %6159 = vmatprep.subr.mxu0 0.0
        %6160 = vmatpush1.msra.mxu0 0.0
        %6161 = vmatprep.subr.mxu0 0.0
        %6162 = vmatpush1.msra.mxu0 0.0
        %6163 = vmatprep.subr.mxu0 0.0
        %6164 = vmatpush1.msra.mxu0 0.0
        %6165 = vmatprep.subr.mxu0 0.0
        %6166 = vmatpush1.msra.mxu0 0.0
        %6167 = vmatprep.subr.mxu0 0.0
        %6168 = vmatpush1.msra.mxu0 0.0
        %6169 = vmatprep.subr.mxu0 0.0
        %6170 = vmatpush1.msra.mxu0 0.0
        %6171 = vmatprep.subr.mxu0 0.0
        %6172 = vmatpush1.msra.mxu0 0.0
        %6173 = vmatprep.subr.mxu0 0.0
        %6174 = vmatpush1.msra.mxu0 0.0
        %6175 = vmatprep.subr.mxu0 0.0
        %6176 = vmatpush1.msra.mxu0 0.0
        %6177 = vmatprep.subr.mxu0 0.0
        %6178 = vmatpush1.msra.mxu0 0.0
        %6179 = vmatprep.subr.mxu0 0.0
        %6180 = vmatpush1.msra.mxu0 0.0
        %6181 = vmatprep.subr.mxu0 0.0
        %6182 = vmatpush1.msra.mxu0 0.0
        %6183 = vmatprep.subr.mxu0 0.0
        %6184 = vmatpush1.msra.mxu0 0.0
        %6185 = vmatprep.subr.mxu0 0.0
        %6186 = vmatpush1.msra.mxu0 0.0
        %6187 = vmatprep.subr.mxu0 0.0
        %6188 = vmatpush1.msra.mxu0 0.0
        %6189 = vmatprep.subr.mxu0 0.0
        %6190 = vmatpush1.msra.mxu0 0.0
        %6191 = vmatprep.subr.mxu0 0.0
        %6192 = vmatpush1.msra.mxu0 0.0
        %6193 = vmatprep.subr.mxu0 0.0
        %6194 = vmatpush1.msra.mxu0 0.0
        %6195 = vmatprep.subr.mxu0 0.0
        %6196 = vmatpush1.msra.mxu0 0.0
        %6197 = vmatprep.subr.mxu0 0.0
        %6198 = vmatpush1.msra.mxu0 0.0
        %6199 = vmatprep.subr.mxu0 0.0
        %6200 = vmatpush1.msra.mxu0 0.0
        %6201 = vmatprep.mubr.f32.mxu0 0.0
        %v6202 = vand.u32 %v5999, 4294901760
        %6203 = vmatmul.mubr.f32.gmra.mrb[0].mxu0 %v6202
        %v6204 = vpop.f32.mrb[0].mxu0
        %v6205 = vadd.f32 %v6084, %v6204
        %v6206 = vpop.f32.mrb[0].mxu0
        %6207 = vmatprep.mubr.f32.mxu0 0.0
        %v6208 = vand.u32 %v6002, 4294901760
        %6209 = vmatmul.mubr.f32.gmra.mrb[0].mxu0 %v6208
        %v6210 = vpop.f32.mrb[0].mxu0
        %v6211 = vadd.f32 %v6094, %v6210
        %v6212 = vpop.f32.mrb[0].mxu0
        %6213 = vdwg.mxu0
        %6214 = vmatprep.subr.mxu0 0.0
        %v6215 = vand.u32 %v1682, 4294901760
        %v6216 = vsub.f32 %v1682, %v6215
        %6217 = vmatpush1.msra.mxu0 %v6216
        %6218 = vmatprep.subr.mxu0 0.0
        %v6219 = vand.u32 %v1683, 4294901760
        %v6220 = vsub.f32 %v1683, %v6219
        %6221 = vmatpush1.msra.mxu0 %v6220
        %6222 = vmatprep.subr.mxu0 0.0
        %v6223 = vand.u32 %v1684, 4294901760
        %v6224 = vsub.f32 %v1684, %v6223
        %6225 = vmatpush1.msra.mxu0 %v6224
        %6226 = vmatprep.subr.mxu0 0.0
        %v6227 = vand.u32 %v1685, 4294901760
        %v6228 = vsub.f32 %v1685, %v6227
        %6229 = vmatpush1.msra.mxu0 %v6228
        %6230 = vmatprep.subr.mxu0 0.0
        %v6231 = vand.u32 %v1686, 4294901760
        %v6232 = vsub.f32 %v1686, %v6231
        %6233 = vmatpush1.msra.mxu0 %v6232
        %6234 = vmatprep.subr.mxu0 0.0
        %v6235 = vand.u32 %v1687, 4294901760
        %v6236 = vsub.f32 %v1687, %v6235
        %6237 = vmatpush1.msra.mxu0 %v6236
        %6238 = vmatprep.subr.mxu0 0.0
        %v6239 = vand.u32 %v1688, 4294901760
        %v6240 = vsub.f32 %v1688, %v6239
        %6241 = vmatpush1.msra.mxu0 %v6240
        %6242 = vmatprep.subr.mxu0 0.0
        %v6243 = vand.u32 %v1689, 4294901760
        %v6244 = vsub.f32 %v1689, %v6243
        %6245 = vmatpush1.msra.mxu0 %v6244
        %6246 = vmatprep.subr.mxu0 0.0
        %6247 = vmatpush1.msra.mxu0 0.0
        %6248 = vmatprep.subr.mxu0 0.0
        %6249 = vmatpush1.msra.mxu0 0.0
        %6250 = vmatprep.subr.mxu0 0.0
        %6251 = vmatpush1.msra.mxu0 0.0
        %6252 = vmatprep.subr.mxu0 0.0
        %6253 = vmatpush1.msra.mxu0 0.0
        %6254 = vmatprep.subr.mxu0 0.0
        %6255 = vmatpush1.msra.mxu0 0.0
        %6256 = vmatprep.subr.mxu0 0.0
        %6257 = vmatpush1.msra.mxu0 0.0
        %6258 = vmatprep.subr.mxu0 0.0
        %6259 = vmatpush1.msra.mxu0 0.0
        %6260 = vmatprep.subr.mxu0 0.0
        %6261 = vmatpush1.msra.mxu0 0.0
        %6262 = vmatprep.subr.mxu0 0.0
        %6263 = vmatpush1.msra.mxu0 0.0
        %6264 = vmatprep.subr.mxu0 0.0
        %6265 = vmatpush1.msra.mxu0 0.0
        %6266 = vmatprep.subr.mxu0 0.0
        %6267 = vmatpush1.msra.mxu0 0.0
        %6268 = vmatprep.subr.mxu0 0.0
        %6269 = vmatpush1.msra.mxu0 0.0
        %6270 = vmatprep.subr.mxu0 0.0
        %6271 = vmatpush1.msra.mxu0 0.0
        %6272 = vmatprep.subr.mxu0 0.0
        %6273 = vmatpush1.msra.mxu0 0.0
        %6274 = vmatprep.subr.mxu0 0.0
        %6275 = vmatpush1.msra.mxu0 0.0
        %6276 = vmatprep.subr.mxu0 0.0
        %6277 = vmatpush1.msra.mxu0 0.0
        %6278 = vmatprep.subr.mxu0 0.0
        %6279 = vmatpush1.msra.mxu0 0.0
        %6280 = vmatprep.subr.mxu0 0.0
        %6281 = vmatpush1.msra.mxu0 0.0
        %6282 = vmatprep.subr.mxu0 0.0
        %6283 = vmatpush1.msra.mxu0 0.0
        %6284 = vmatprep.subr.mxu0 0.0
        %6285 = vmatpush1.msra.mxu0 0.0
        %6286 = vmatprep.subr.mxu0 0.0
        %6287 = vmatpush1.msra.mxu0 0.0
        %6288 = vmatprep.subr.mxu0 0.0
        %6289 = vmatpush1.msra.mxu0 0.0
        %6290 = vmatprep.subr.mxu0 0.0
        %6291 = vmatpush1.msra.mxu0 0.0
        %6292 = vmatprep.subr.mxu0 0.0
        %6293 = vmatpush1.msra.mxu0 0.0
        %6294 = vmatprep.mubr.f32.mxu0 0.0
        %v6295 = vand.u32 %v5999, 4294901760
        %v6296 = vsub.f32 %v5999, %v6295
        %6297 = vmatmul.mubr.f32.gmra.mrb[0].mxu0 %v6296
        %v6298 = vpop.f32.mrb[0].mxu0
        %v6299 = vadd.f32 %v6205, %v6298
        %v6300 = vpop.f32.mrb[0].mxu0
        %6301 = vmatprep.mubr.f32.mxu0 0.0
        %v6302 = vand.u32 %v6002, 4294901760
        %v6303 = vsub.f32 %v6002, %v6302
        %6304 = vmatmul.mubr.f32.gmra.mrb[0].mxu0 %v6303
        %v6305 = vpop.f32.mrb[0].mxu0
        %v6306 = vadd.f32 %v6211, %v6305
        %v6307 = vpop.f32.mrb[0].mxu0
        %6308 = vdwg.mxu0
        %6309 = vmatprep.subr.mxu0 0.0
        %v6310 = vand.u32 %v1682, 4294901760
        %6311 = vmatpush1.msra.mxu0 %v6310
        %6312 = vmatprep.subr.mxu0 0.0
        %v6313 = vand.u32 %v1683, 4294901760
        %6314 = vmatpush1.msra.mxu0 %v6313
        %6315 = vmatprep.subr.mxu0 0.0
        %v6316 = vand.u32 %v1684, 4294901760
        %6317 = vmatpush1.msra.mxu0 %v6316
        %6318 = vmatprep.subr.mxu0 0.0
        %v6319 = vand.u32 %v1685, 4294901760
        %6320 = vmatpush1.msra.mxu0 %v6319
        %6321 = vmatprep.subr.mxu0 0.0
        %v6322 = vand.u32 %v1686, 4294901760
        %6323 = vmatpush1.msra.mxu0 %v6322
        %6324 = vmatprep.subr.mxu0 0.0
        %v6325 = vand.u32 %v1687, 4294901760
        %6326 = vmatpush1.msra.mxu0 %v6325
        %6327 = vmatprep.subr.mxu0 0.0
        %v6328 = vand.u32 %v1688, 4294901760
        %6329 = vmatpush1.msra.mxu0 %v6328
        %6330 = vmatprep.subr.mxu0 0.0
        %v6331 = vand.u32 %v1689, 4294901760
        %6332 = vmatpush1.msra.mxu0 %v6331
        %6333 = vmatprep.subr.mxu0 0.0
        %6334 = vmatpush1.msra.mxu0 0.0
        %6335 = vmatprep.subr.mxu0 0.0
        %6336 = vmatpush1.msra.mxu0 0.0
        %6337 = vmatprep.subr.mxu0 0.0
        %6338 = vmatpush1.msra.mxu0 0.0
        %6339 = vmatprep.subr.mxu0 0.0
        %6340 = vmatpush1.msra.mxu0 0.0
        %6341 = vmatprep.subr.mxu0 0.0
        %6342 = vmatpush1.msra.mxu0 0.0
        %6343 = vmatprep.subr.mxu0 0.0
        %6344 = vmatpush1.msra.mxu0 0.0
        %6345 = vmatprep.subr.mxu0 0.0
        %6346 = vmatpush1.msra.mxu0 0.0
        %6347 = vmatprep.subr.mxu0 0.0
        %6348 = vmatpush1.msra.mxu0 0.0
        %6349 = vmatprep.subr.mxu0 0.0
        %6350 = vmatpush1.msra.mxu0 0.0
        %6351 = vmatprep.subr.mxu0 0.0
        %6352 = vmatpush1.msra.mxu0 0.0
        %6353 = vmatprep.subr.mxu0 0.0
        %6354 = vmatpush1.msra.mxu0 0.0
        %6355 = vmatprep.subr.mxu0 0.0
        %6356 = vmatpush1.msra.mxu0 0.0
        %6357 = vmatprep.subr.mxu0 0.0
        %6358 = vmatpush1.msra.mxu0 0.0
        %6359 = vmatprep.subr.mxu0 0.0
        %6360 = vmatpush1.msra.mxu0 0.0
        %6361 = vmatprep.subr.mxu0 0.0
        %6362 = vmatpush1.msra.mxu0 0.0
        %6363 = vmatprep.subr.mxu0 0.0
        %6364 = vmatpush1.msra.mxu0 0.0
        %6365 = vmatprep.subr.mxu0 0.0
        %6366 = vmatpush1.msra.mxu0 0.0
        %6367 = vmatprep.subr.mxu0 0.0
        %6368 = vmatpush1.msra.mxu0 0.0
        %6369 = vmatprep.subr.mxu0 0.0
        %6370 = vmatpush1.msra.mxu0 0.0
        %6371 = vmatprep.subr.mxu0 0.0
        %6372 = vmatpush1.msra.mxu0 0.0
        %6373 = vmatprep.subr.mxu0 0.0
        %6374 = vmatpush1.msra.mxu0 0.0
        %6375 = vmatprep.subr.mxu0 0.0
        %6376 = vmatpush1.msra.mxu0 0.0
        %6377 = vmatprep.subr.mxu0 0.0
        %6378 = vmatpush1.msra.mxu0 0.0
        %6379 = vmatprep.subr.mxu0 0.0
        %6380 = vmatpush1.msra.mxu0 0.0
        %6381 = vmatprep.mubr.f32.mxu0 0.0
        %v6382 = vand.u32 %v5999, 4294901760
        %v6383 = vsub.f32 %v5999, %v6382
        %v6384 = vand.u32 %v6383, 4294901760
        %6385 = vmatmul.mubr.f32.gmra.mrb[0].mxu0 %v6384
        %v6386 = vpop.f32.mrb[0].mxu0
        %v6387 = vadd.f32 %v6299, %v6386
        %v6388 = vpop.f32.mrb[0].mxu0
        %6389 = vmatprep.mubr.f32.mxu0 0.0
        %v6390 = vand.u32 %v6002, 4294901760
        %v6391 = vsub.f32 %v6002, %v6390
        %v6392 = vand.u32 %v6391, 4294901760
        %6393 = vmatmul.mubr.f32.gmra.mrb[0].mxu0 %v6392
        %v6394 = vpop.f32.mrb[0].mxu0
        %v6395 = vadd.f32 %v6306, %v6394
        %v6396 = vpop.f32.mrb[0].mxu0
        %6397 = vdwg.mxu0
        %6398 = vmatprep.subr.mxu0 0.0
        %v6399 = vand.u32 %v1682, 4294901760
        %v6400 = vsub.f32 %v1682, %v6399
        %v6401 = vand.u32 %v6400, 4294901760
        %6402 = vmatpush1.msra.mxu0 %v6401
        %6403 = vmatprep.subr.mxu0 0.0
        %v6404 = vand.u32 %v1683, 4294901760
        %v6405 = vsub.f32 %v1683, %v6404
        %v6406 = vand.u32 %v6405, 4294901760
        %6407 = vmatpush1.msra.mxu0 %v6406
        %6408 = vmatprep.subr.mxu0 0.0
        %v6409 = vand.u32 %v1684, 4294901760
        %v6410 = vsub.f32 %v1684, %v6409
        %v6411 = vand.u32 %v6410, 4294901760
        %6412 = vmatpush1.msra.mxu0 %v6411
        %6413 = vmatprep.subr.mxu0 0.0
        %v6414 = vand.u32 %v1685, 4294901760
        %v6415 = vsub.f32 %v1685, %v6414
        %v6416 = vand.u32 %v6415, 4294901760
        %6417 = vmatpush1.msra.mxu0 %v6416
        %6418 = vmatprep.subr.mxu0 0.0
        %v6419 = vand.u32 %v1686, 4294901760
        %v6420 = vsub.f32 %v1686, %v6419
        %v6421 = vand.u32 %v6420, 4294901760
        %6422 = vmatpush1.msra.mxu0 %v6421
        %6423 = vmatprep.subr.mxu0 0.0
        %v6424 = vand.u32 %v1687, 4294901760
        %v6425 = vsub.f32 %v1687, %v6424
        %v6426 = vand.u32 %v6425, 4294901760
        %6427 = vmatpush1.msra.mxu0 %v6426
        %6428 = vmatprep.subr.mxu0 0.0
        %v6429 = vand.u32 %v1688, 4294901760
        %v6430 = vsub.f32 %v1688, %v6429
        %v6431 = vand.u32 %v6430, 4294901760
        %6432 = vmatpush1.msra.mxu0 %v6431
        %6433 = vmatprep.subr.mxu0 0.0
        %v6434 = vand.u32 %v1689, 4294901760
        %v6435 = vsub.f32 %v1689, %v6434
        %v6436 = vand.u32 %v6435, 4294901760
        %6437 = vmatpush1.msra.mxu0 %v6436
        %6438 = vmatprep.subr.mxu0 0.0
        %6439 = vmatpush1.msra.mxu0 0.0
        %6440 = vmatprep.subr.mxu0 0.0
        %6441 = vmatpush1.msra.mxu0 0.0
        %6442 = vmatprep.subr.mxu0 0.0
        %6443 = vmatpush1.msra.mxu0 0.0
        %6444 = vmatprep.subr.mxu0 0.0
        %6445 = vmatpush1.msra.mxu0 0.0
        %6446 = vmatprep.subr.mxu0 0.0
        %6447 = vmatpush1.msra.mxu0 0.0
        %6448 = vmatprep.subr.mxu0 0.0
        %6449 = vmatpush1.msra.mxu0 0.0
        %6450 = vmatprep.subr.mxu0 0.0
        %6451 = vmatpush1.msra.mxu0 0.0
        %6452 = vmatprep.subr.mxu0 0.0
        %6453 = vmatpush1.msra.mxu0 0.0
        %6454 = vmatprep.subr.mxu0 0.0
        %6455 = vmatpush1.msra.mxu0 0.0
        %6456 = vmatprep.subr.mxu0 0.0
        %6457 = vmatpush1.msra.mxu0 0.0
        %6458 = vmatprep.subr.mxu0 0.0
        %6459 = vmatpush1.msra.mxu0 0.0
        %6460 = vmatprep.subr.mxu0 0.0
        %6461 = vmatpush1.msra.mxu0 0.0
        %6462 = vmatprep.subr.mxu0 0.0
        %6463 = vmatpush1.msra.mxu0 0.0
        %6464 = vmatprep.subr.mxu0 0.0
        %6465 = vmatpush1.msra.mxu0 0.0
        %6466 = vmatprep.subr.mxu0 0.0
        %6467 = vmatpush1.msra.mxu0 0.0
        %6468 = vmatprep.subr.mxu0 0.0
        %6469 = vmatpush1.msra.mxu0 0.0
        %6470 = vmatprep.subr.mxu0 0.0
        %6471 = vmatpush1.msra.mxu0 0.0
        %6472 = vmatprep.subr.mxu0 0.0
        %6473 = vmatpush1.msra.mxu0 0.0
        %6474 = vmatprep.subr.mxu0 0.0
        %6475 = vmatpush1.msra.mxu0 0.0
        %6476 = vmatprep.subr.mxu0 0.0
        %6477 = vmatpush1.msra.mxu0 0.0
        %6478 = vmatprep.subr.mxu0 0.0
        %6479 = vmatpush1.msra.mxu0 0.0
        %6480 = vmatprep.subr.mxu0 0.0
        %6481 = vmatpush1.msra.mxu0 0.0
        %6482 = vmatprep.subr.mxu0 0.0
        %6483 = vmatpush1.msra.mxu0 0.0
        %6484 = vmatprep.subr.mxu0 0.0
        %6485 = vmatpush1.msra.mxu0 0.0
        %6486 = vmatprep.mubr.f32.mxu0 0.0
        %v6487 = vand.u32 %v5999, 4294901760
        %6488 = vmatmul.mubr.f32.gmra.mrb[0].mxu0 %v6487
        %v6489 = vpop.f32.mrb[0].mxu0
        %v6490 = vadd.f32 %v6387, %v6489
        %v6491 = vpop.f32.mrb[0].mxu0
        %6492 = vmatprep.mubr.f32.mxu0 0.0
        %v6493 = vand.u32 %v6002, 4294901760
        %6494 = vmatmul.mubr.f32.gmra.mrb[0].mxu0 %v6493
        %v6495 = vpop.f32.mrb[0].mxu0
        %v6496 = vadd.f32 %v6395, %v6495
        %v6497 = vpop.f32.mrb[0].mxu0
        %6498 = vdwg.mxu0
        %6499 = vmatprep.subr.mxu0 0.0
        %v6500 = vand.u32 %v1682, 4294901760
        %6501 = vmatpush1.msra.mxu0 %v6500
        %6502 = vmatprep.subr.mxu0 0.0
        %v6503 = vand.u32 %v1683, 4294901760
        %6504 = vmatpush1.msra.mxu0 %v6503
        %6505 = vmatprep.subr.mxu0 0.0
        %v6506 = vand.u32 %v1684, 4294901760
        %6507 = vmatpush1.msra.mxu0 %v6506
        %6508 = vmatprep.subr.mxu0 0.0
        %v6509 = vand.u32 %v1685, 4294901760
        %6510 = vmatpush1.msra.mxu0 %v6509
        %6511 = vmatprep.subr.mxu0 0.0
        %v6512 = vand.u32 %v1686, 4294901760
        %6513 = vmatpush1.msra.mxu0 %v6512
        %6514 = vmatprep.subr.mxu0 0.0
        %v6515 = vand.u32 %v1687, 4294901760
        %6516 = vmatpush1.msra.mxu0 %v6515
        %6517 = vmatprep.subr.mxu0 0.0
        %v6518 = vand.u32 %v1688, 4294901760
        %6519 = vmatpush1.msra.mxu0 %v6518
        %6520 = vmatprep.subr.mxu0 0.0
        %v6521 = vand.u32 %v1689, 4294901760
        %6522 = vmatpush1.msra.mxu0 %v6521
        %6523 = vmatprep.subr.mxu0 0.0
        %6524 = vmatpush1.msra.mxu0 0.0
        %6525 = vmatprep.subr.mxu0 0.0
        %6526 = vmatpush1.msra.mxu0 0.0
        %6527 = vmatprep.subr.mxu0 0.0
        %6528 = vmatpush1.msra.mxu0 0.0
        %6529 = vmatprep.subr.mxu0 0.0
        %6530 = vmatpush1.msra.mxu0 0.0
        %6531 = vmatprep.subr.mxu0 0.0
        %6532 = vmatpush1.msra.mxu0 0.0
        %6533 = vmatprep.subr.mxu0 0.0
        %6534 = vmatpush1.msra.mxu0 0.0
        %6535 = vmatprep.subr.mxu0 0.0
        %6536 = vmatpush1.msra.mxu0 0.0
        %6537 = vmatprep.subr.mxu0 0.0
        %6538 = vmatpush1.msra.mxu0 0.0
        %6539 = vmatprep.subr.mxu0 0.0
        %6540 = vmatpush1.msra.mxu0 0.0
        %6541 = vmatprep.subr.mxu0 0.0
        %6542 = vmatpush1.msra.mxu0 0.0
        %6543 = vmatprep.subr.mxu0 0.0
        %6544 = vmatpush1.msra.mxu0 0.0
        %6545 = vmatprep.subr.mxu0 0.0
        %6546 = vmatpush1.msra.mxu0 0.0
        %6547 = vmatprep.subr.mxu0 0.0
        %6548 = vmatpush1.msra.mxu0 0.0
        %6549 = vmatprep.subr.mxu0 0.0
        %6550 = vmatpush1.msra.mxu0 0.0
        %6551 = vmatprep.subr.mxu0 0.0
        %6552 = vmatpush1.msra.mxu0 0.0
        %6553 = vmatprep.subr.mxu0 0.0
        %6554 = vmatpush1.msra.mxu0 0.0
        %6555 = vmatprep.subr.mxu0 0.0
        %6556 = vmatpush1.msra.mxu0 0.0
        %6557 = vmatprep.subr.mxu0 0.0
        %6558 = vmatpush1.msra.mxu0 0.0
        %6559 = vmatprep.subr.mxu0 0.0
        %6560 = vmatpush1.msra.mxu0 0.0
        %6561 = vmatprep.subr.mxu0 0.0
        %6562 = vmatpush1.msra.mxu0 0.0
        %6563 = vmatprep.subr.mxu0 0.0
        %6564 = vmatpush1.msra.mxu0 0.0
        %6565 = vmatprep.subr.mxu0 0.0
        %6566 = vmatpush1.msra.mxu0 0.0
        %6567 = vmatprep.subr.mxu0 0.0
        %6568 = vmatpush1.msra.mxu0 0.0
        %6569 = vmatprep.subr.mxu0 0.0
        %6570 = vmatpush1.msra.mxu0 0.0
        %6571 = vmatprep.mubr.f32.mxu0 0.0
        %v6572 = vand.u32 %v5999, 4294901760
        %6573 = vmatmul.mubr.f32.gmra.mrb[0].mxu0 %v6572
        %v6574 = vpop.f32.mrb[0].mxu0
        %v6575 = vadd.f32 %v6490, %v6574
        %v6576 = vpop.f32.mrb[0].mxu0
        %6577 = vmatprep.mubr.f32.mxu0 0.0
        %v6578 = vand.u32 %v6002, 4294901760
        %6579 = vmatmul.mubr.f32.gmra.mrb[0].mxu0 %v6578
        %v6580 = vpop.f32.mrb[0].mxu0
        %v6581 = vadd.f32 %v6496, %v6580
        %v6582 = vpop.f32.mrb[0].mxu0
        %6583 = vdwg.mxu0
        %v6584 = vmax.f32 %v6575, 0.0
        %v6585 = vmax.f32 %v6581, 0.0
        %v6586 = vsel %vm555, %v6584, -inf
        %6587 = vmax.xlane.f32.xlu0 %v6586
        %v6588 = vpop.xlane.xlu0 %6587
        %v6589 = vsel %vm555, %v6585, -inf
        %6590 = vmax.xlane.f32.xlu0 %v6589
        %v6591 = vpop.xlane.xlu0 %6590
        %6592 = vmatprep.subr.mxu0 0.0
        %v6593 = vand.u32 %v6588, 4294901760
        %6594 = vmatpush1.msra.mxu0 %v6593
        %6595 = vmatprep.subr.mxu0 0.0
        %v6596 = vand.u32 %v6591, 4294901760
        %6597 = vmatpush1.msra.mxu0 %v6596
        %6598 = vmatprep.subr.mxu0 0.0
        %6599 = vmatpush1.msra.mxu0 0.0
        %6600 = vmatprep.subr.mxu0 0.0
        %6601 = vmatpush1.msra.mxu0 0.0
        %6602 = vmatprep.subr.mxu0 0.0
        %6603 = vmatpush1.msra.mxu0 0.0
        %6604 = vmatprep.subr.mxu0 0.0
        %6605 = vmatpush1.msra.mxu0 0.0
        %6606 = vmatprep.subr.mxu0 0.0
        %6607 = vmatpush1.msra.mxu0 0.0
        %6608 = vmatprep.subr.mxu0 0.0
        %6609 = vmatpush1.msra.mxu0 0.0
        %6610 = vmatprep.subr.mxu0 0.0
        %6611 = vmatpush1.msra.mxu0 0.0
        %6612 = vmatprep.subr.mxu0 0.0
        %6613 = vmatpush1.msra.mxu0 0.0
        %6614 = vmatprep.subr.mxu0 0.0
        %6615 = vmatpush1.msra.mxu0 0.0
        %6616 = vmatprep.subr.mxu0 0.0
        %6617 = vmatpush1.msra.mxu0 0.0
        %6618 = vmatprep.subr.mxu0 0.0
        %6619 = vmatpush1.msra.mxu0 0.0
        %6620 = vmatprep.subr.mxu0 0.0
        %6621 = vmatpush1.msra.mxu0 0.0
        %6622 = vmatprep.subr.mxu0 0.0
        %6623 = vmatpush1.msra.mxu0 0.0
        %6624 = vmatprep.subr.mxu0 0.0
        %6625 = vmatpush1.msra.mxu0 0.0
        %6626 = vmatprep.subr.mxu0 0.0
        %6627 = vmatpush1.msra.mxu0 0.0
        %6628 = vmatprep.subr.mxu0 0.0
        %6629 = vmatpush1.msra.mxu0 0.0
        %6630 = vmatprep.subr.mxu0 0.0
        %6631 = vmatpush1.msra.mxu0 0.0
        %6632 = vmatprep.subr.mxu0 0.0
        %6633 = vmatpush1.msra.mxu0 0.0
        %6634 = vmatprep.subr.mxu0 0.0
        %6635 = vmatpush1.msra.mxu0 0.0
        %6636 = vmatprep.subr.mxu0 0.0
        %6637 = vmatpush1.msra.mxu0 0.0
        %6638 = vmatprep.subr.mxu0 0.0
        %6639 = vmatpush1.msra.mxu0 0.0
        %6640 = vmatprep.subr.mxu0 0.0
        %6641 = vmatpush1.msra.mxu0 0.0
        %6642 = vmatprep.subr.mxu0 0.0
        %6643 = vmatpush1.msra.mxu0 0.0
        %6644 = vmatprep.subr.mxu0 0.0
        %6645 = vmatpush1.msra.mxu0 0.0
        %6646 = vmatprep.subr.mxu0 0.0
        %6647 = vmatpush1.msra.mxu0 0.0
        %6648 = vmatprep.subr.mxu0 0.0
        %6649 = vmatpush1.msra.mxu0 0.0
        %6650 = vmatprep.subr.mxu0 0.0
        %6651 = vmatpush1.msra.mxu0 0.0
        %6652 = vmatprep.subr.mxu0 0.0
        %6653 = vmatpush1.msra.mxu0 0.0
        %6654 = vmatprep.subr.mxu0 0.0
        %6655 = vmatpush1.msra.mxu0 0.0
        %6656 = vmatprep.subr.mxu0 0.0
        %6657 = vmatpush1.msra.mxu0 0.0
        %6658 = vmatprep.mubr.f32.mxu0 0.0
        %v6659 = vand.u32 %v2295, 4294901760
        %v6660 = vsub.f32 %v2295, %v6659
        %v6661 = vand.u32 %v6660, 4294901760
        %v6662 = vsub.f32 %v6660, %v6661
        %v6663 = vand.u32 %v6662, 4294901760
        %6664 = vmatmul.mubr.f32.gmra.mrb[0].mxu0 %v6663
        %v6665 = vpop.f32.mrb[0].mxu0
        %v6666 = vadd.f32 0.0, %v6665
        %v6667 = vpop.f32.mrb[0].mxu0
        %6668 = vdwg.mxu0
        %6669 = vmatprep.subr.mxu0 0.0
        %v6670 = vand.u32 %v6588, 4294901760
        %v6671 = vsub.f32 %v6588, %v6670
        %v6672 = vand.u32 %v6671, 4294901760
        %v6673 = vsub.f32 %v6671, %v6672
        %v6674 = vand.u32 %v6673, 4294901760
        %6675 = vmatpush1.msra.mxu0 %v6674
        %6676 = vmatprep.subr.mxu0 0.0
        %v6677 = vand.u32 %v6591, 4294901760
        %v6678 = vsub.f32 %v6591, %v6677
        %v6679 = vand.u32 %v6678, 4294901760
        %v6680 = vsub.f32 %v6678, %v6679
        %v6681 = vand.u32 %v6680, 4294901760
        %6682 = vmatpush1.msra.mxu0 %v6681
        %6683 = vmatprep.subr.mxu0 0.0
        %6684 = vmatpush1.msra.mxu0 0.0
        %6685 = vmatprep.subr.mxu0 0.0
        %6686 = vmatpush1.msra.mxu0 0.0
        %6687 = vmatprep.subr.mxu0 0.0
        %6688 = vmatpush1.msra.mxu0 0.0
        %6689 = vmatprep.subr.mxu0 0.0
        %6690 = vmatpush1.msra.mxu0 0.0
        %6691 = vmatprep.subr.mxu0 0.0
        %6692 = vmatpush1.msra.mxu0 0.0
        %6693 = vmatprep.subr.mxu0 0.0
        %6694 = vmatpush1.msra.mxu0 0.0
        %6695 = vmatprep.subr.mxu0 0.0
        %6696 = vmatpush1.msra.mxu0 0.0
        %6697 = vmatprep.subr.mxu0 0.0
        %6698 = vmatpush1.msra.mxu0 0.0
        %6699 = vmatprep.subr.mxu0 0.0
        %6700 = vmatpush1.msra.mxu0 0.0
        %6701 = vmatprep.subr.mxu0 0.0
        %6702 = vmatpush1.msra.mxu0 0.0
        %6703 = vmatprep.subr.mxu0 0.0
        %6704 = vmatpush1.msra.mxu0 0.0
        %6705 = vmatprep.subr.mxu0 0.0
        %6706 = vmatpush1.msra.mxu0 0.0
        %6707 = vmatprep.subr.mxu0 0.0
        %6708 = vmatpush1.msra.mxu0 0.0
        %6709 = vmatprep.subr.mxu0 0.0
        %6710 = vmatpush1.msra.mxu0 0.0
        %6711 = vmatprep.subr.mxu0 0.0
        %6712 = vmatpush1.msra.mxu0 0.0
        %6713 = vmatprep.subr.mxu0 0.0
        %6714 = vmatpush1.msra.mxu0 0.0
        %6715 = vmatprep.subr.mxu0 0.0
        %6716 = vmatpush1.msra.mxu0 0.0
        %6717 = vmatprep.subr.mxu0 0.0
        %6718 = vmatpush1.msra.mxu0 0.0
        %6719 = vmatprep.subr.mxu0 0.0
        %6720 = vmatpush1.msra.mxu0 0.0
        %6721 = vmatprep.subr.mxu0 0.0
        %6722 = vmatpush1.msra.mxu0 0.0
        %6723 = vmatprep.subr.mxu0 0.0
        %6724 = vmatpush1.msra.mxu0 0.0
        %6725 = vmatprep.subr.mxu0 0.0
        %6726 = vmatpush1.msra.mxu0 0.0
        %6727 = vmatprep.subr.mxu0 0.0
        %6728 = vmatpush1.msra.mxu0 0.0
        %6729 = vmatprep.subr.mxu0 0.0
        %6730 = vmatpush1.msra.mxu0 0.0
        %6731 = vmatprep.subr.mxu0 0.0
        %6732 = vmatpush1.msra.mxu0 0.0
        %6733 = vmatprep.subr.mxu0 0.0
        %6734 = vmatpush1.msra.mxu0 0.0
        %6735 = vmatprep.subr.mxu0 0.0
        %6736 = vmatpush1.msra.mxu0 0.0
        %6737 = vmatprep.subr.mxu0 0.0
        %6738 = vmatpush1.msra.mxu0 0.0
        %6739 = vmatprep.subr.mxu0 0.0
        %6740 = vmatpush1.msra.mxu0 0.0
        %6741 = vmatprep.subr.mxu0 0.0
        %6742 = vmatpush1.msra.mxu0 0.0
        %6743 = vmatprep.mubr.f32.mxu0 0.0
        %v6744 = vand.u32 %v2295, 4294901760
        %6745 = vmatmul.mubr.f32.gmra.mrb[0].mxu0 %v6744
        %v6746 = vpop.f32.mrb[0].mxu0
        %v6747 = vadd.f32 %v6666, %v6746
        %v6748 = vpop.f32.mrb[0].mxu0
        %6749 = vdwg.mxu0
        %6750 = vmatprep.subr.mxu0 0.0
        %v6751 = vand.u32 %v6588, 4294901760
        %v6752 = vsub.f32 %v6588, %v6751
        %6753 = vmatpush1.msra.mxu0 %v6752
        %6754 = vmatprep.subr.mxu0 0.0
        %v6755 = vand.u32 %v6591, 4294901760
        %v6756 = vsub.f32 %v6591, %v6755
        %6757 = vmatpush1.msra.mxu0 %v6756
        %6758 = vmatprep.subr.mxu0 0.0
        %6759 = vmatpush1.msra.mxu0 0.0
        %6760 = vmatprep.subr.mxu0 0.0
        %6761 = vmatpush1.msra.mxu0 0.0
        %6762 = vmatprep.subr.mxu0 0.0
        %6763 = vmatpush1.msra.mxu0 0.0
        %6764 = vmatprep.subr.mxu0 0.0
        %6765 = vmatpush1.msra.mxu0 0.0
        %6766 = vmatprep.subr.mxu0 0.0
        %6767 = vmatpush1.msra.mxu0 0.0
        %6768 = vmatprep.subr.mxu0 0.0
        %6769 = vmatpush1.msra.mxu0 0.0
        %6770 = vmatprep.subr.mxu0 0.0
        %6771 = vmatpush1.msra.mxu0 0.0
        %6772 = vmatprep.subr.mxu0 0.0
        %6773 = vmatpush1.msra.mxu0 0.0
        %6774 = vmatprep.subr.mxu0 0.0
        %6775 = vmatpush1.msra.mxu0 0.0
        %6776 = vmatprep.subr.mxu0 0.0
        %6777 = vmatpush1.msra.mxu0 0.0
        %6778 = vmatprep.subr.mxu0 0.0
        %6779 = vmatpush1.msra.mxu0 0.0
        %6780 = vmatprep.subr.mxu0 0.0
        %6781 = vmatpush1.msra.mxu0 0.0
        %6782 = vmatprep.subr.mxu0 0.0
        %6783 = vmatpush1.msra.mxu0 0.0
        %6784 = vmatprep.subr.mxu0 0.0
        %6785 = vmatpush1.msra.mxu0 0.0
        %6786 = vmatprep.subr.mxu0 0.0
        %6787 = vmatpush1.msra.mxu0 0.0
        %6788 = vmatprep.subr.mxu0 0.0
        %6789 = vmatpush1.msra.mxu0 0.0
        %6790 = vmatprep.subr.mxu0 0.0
        %6791 = vmatpush1.msra.mxu0 0.0
        %6792 = vmatprep.subr.mxu0 0.0
        %6793 = vmatpush1.msra.mxu0 0.0
        %6794 = vmatprep.subr.mxu0 0.0
        %6795 = vmatpush1.msra.mxu0 0.0
        %6796 = vmatprep.subr.mxu0 0.0
        %6797 = vmatpush1.msra.mxu0 0.0
        %6798 = vmatprep.subr.mxu0 0.0
        %6799 = vmatpush1.msra.mxu0 0.0
        %6800 = vmatprep.subr.mxu0 0.0
        %6801 = vmatpush1.msra.mxu0 0.0
        %6802 = vmatprep.subr.mxu0 0.0
        %6803 = vmatpush1.msra.mxu0 0.0
        %6804 = vmatprep.subr.mxu0 0.0
        %6805 = vmatpush1.msra.mxu0 0.0
        %6806 = vmatprep.subr.mxu0 0.0
        %6807 = vmatpush1.msra.mxu0 0.0
        %6808 = vmatprep.subr.mxu0 0.0
        %6809 = vmatpush1.msra.mxu0 0.0
        %6810 = vmatprep.subr.mxu0 0.0
        %6811 = vmatpush1.msra.mxu0 0.0
        %6812 = vmatprep.subr.mxu0 0.0
        %6813 = vmatpush1.msra.mxu0 0.0
        %6814 = vmatprep.subr.mxu0 0.0
        %6815 = vmatpush1.msra.mxu0 0.0
        %6816 = vmatprep.subr.mxu0 0.0
        %6817 = vmatpush1.msra.mxu0 0.0
        %6818 = vmatprep.mubr.f32.mxu0 0.0
        %v6819 = vand.u32 %v2295, 4294901760
        %v6820 = vsub.f32 %v2295, %v6819
        %6821 = vmatmul.mubr.f32.gmra.mrb[0].mxu0 %v6820
        %v6822 = vpop.f32.mrb[0].mxu0
        %v6823 = vadd.f32 %v6747, %v6822
        %v6824 = vpop.f32.mrb[0].mxu0
        %6825 = vdwg.mxu0
        %6826 = vmatprep.subr.mxu0 0.0
        %v6827 = vand.u32 %v6588, 4294901760
        %6828 = vmatpush1.msra.mxu0 %v6827
        %6829 = vmatprep.subr.mxu0 0.0
        %v6830 = vand.u32 %v6591, 4294901760
        %6831 = vmatpush1.msra.mxu0 %v6830
        %6832 = vmatprep.subr.mxu0 0.0
        %6833 = vmatpush1.msra.mxu0 0.0
        %6834 = vmatprep.subr.mxu0 0.0
        %6835 = vmatpush1.msra.mxu0 0.0
        %6836 = vmatprep.subr.mxu0 0.0
        %6837 = vmatpush1.msra.mxu0 0.0
        %6838 = vmatprep.subr.mxu0 0.0
        %6839 = vmatpush1.msra.mxu0 0.0
        %6840 = vmatprep.subr.mxu0 0.0
        %6841 = vmatpush1.msra.mxu0 0.0
        %6842 = vmatprep.subr.mxu0 0.0
        %6843 = vmatpush1.msra.mxu0 0.0
        %6844 = vmatprep.subr.mxu0 0.0
        %6845 = vmatpush1.msra.mxu0 0.0
        %6846 = vmatprep.subr.mxu0 0.0
        %6847 = vmatpush1.msra.mxu0 0.0
        %6848 = vmatprep.subr.mxu0 0.0
        %6849 = vmatpush1.msra.mxu0 0.0
        %6850 = vmatprep.subr.mxu0 0.0
        %6851 = vmatpush1.msra.mxu0 0.0
        %6852 = vmatprep.subr.mxu0 0.0
        %6853 = vmatpush1.msra.mxu0 0.0
        %6854 = vmatprep.subr.mxu0 0.0
        %6855 = vmatpush1.msra.mxu0 0.0
        %6856 = vmatprep.subr.mxu0 0.0
        %6857 = vmatpush1.msra.mxu0 0.0
        %6858 = vmatprep.subr.mxu0 0.0
        %6859 = vmatpush1.msra.mxu0 0.0
        %6860 = vmatprep.subr.mxu0 0.0
        %6861 = vmatpush1.msra.mxu0 0.0
        %6862 = vmatprep.subr.mxu0 0.0
        %6863 = vmatpush1.msra.mxu0 0.0
        %6864 = vmatprep.subr.mxu0 0.0
        %6865 = vmatpush1.msra.mxu0 0.0
        %6866 = vmatprep.subr.mxu0 0.0
        %6867 = vmatpush1.msra.mxu0 0.0
        %6868 = vmatprep.subr.mxu0 0.0
        %6869 = vmatpush1.msra.mxu0 0.0
        %6870 = vmatprep.subr.mxu0 0.0
        %6871 = vmatpush1.msra.mxu0 0.0
        %6872 = vmatprep.subr.mxu0 0.0
        %6873 = vmatpush1.msra.mxu0 0.0
        %6874 = vmatprep.subr.mxu0 0.0
        %6875 = vmatpush1.msra.mxu0 0.0
        %6876 = vmatprep.subr.mxu0 0.0
        %6877 = vmatpush1.msra.mxu0 0.0
        %6878 = vmatprep.subr.mxu0 0.0
        %6879 = vmatpush1.msra.mxu0 0.0
        %6880 = vmatprep.subr.mxu0 0.0
        %6881 = vmatpush1.msra.mxu0 0.0
        %6882 = vmatprep.subr.mxu0 0.0
        %6883 = vmatpush1.msra.mxu0 0.0
        %6884 = vmatprep.subr.mxu0 0.0
        %6885 = vmatpush1.msra.mxu0 0.0
        %6886 = vmatprep.subr.mxu0 0.0
        %6887 = vmatpush1.msra.mxu0 0.0
        %6888 = vmatprep.subr.mxu0 0.0
        %6889 = vmatpush1.msra.mxu0 0.0
        %6890 = vmatprep.subr.mxu0 0.0
        %6891 = vmatpush1.msra.mxu0 0.0
        %6892 = vmatprep.mubr.f32.mxu0 0.0
        %v6893 = vand.u32 %v2295, 4294901760
        %v6894 = vsub.f32 %v2295, %v6893
        %v6895 = vand.u32 %v6894, 4294901760
        %6896 = vmatmul.mubr.f32.gmra.mrb[0].mxu0 %v6895
        %v6897 = vpop.f32.mrb[0].mxu0
        %v6898 = vadd.f32 %v6823, %v6897
        %v6899 = vpop.f32.mrb[0].mxu0
        %6900 = vdwg.mxu0
        %6901 = vmatprep.subr.mxu0 0.0
        %v6902 = vand.u32 %v6588, 4294901760
        %v6903 = vsub.f32 %v6588, %v6902
        %v6904 = vand.u32 %v6903, 4294901760
        %6905 = vmatpush1.msra.mxu0 %v6904
        %6906 = vmatprep.subr.mxu0 0.0
        %v6907 = vand.u32 %v6591, 4294901760
        %v6908 = vsub.f32 %v6591, %v6907
        %v6909 = vand.u32 %v6908, 4294901760
        %6910 = vmatpush1.msra.mxu0 %v6909
        %6911 = vmatprep.subr.mxu0 0.0
        %6912 = vmatpush1.msra.mxu0 0.0
        %6913 = vmatprep.subr.mxu0 0.0
        %6914 = vmatpush1.msra.mxu0 0.0
        %6915 = vmatprep.subr.mxu0 0.0
        %6916 = vmatpush1.msra.mxu0 0.0
        %6917 = vmatprep.subr.mxu0 0.0
        %6918 = vmatpush1.msra.mxu0 0.0
        %6919 = vmatprep.subr.mxu0 0.0
        %6920 = vmatpush1.msra.mxu0 0.0
        %6921 = vmatprep.subr.mxu0 0.0
        %6922 = vmatpush1.msra.mxu0 0.0
        %6923 = vmatprep.subr.mxu0 0.0
        %6924 = vmatpush1.msra.mxu0 0.0
        %6925 = vmatprep.subr.mxu0 0.0
        %6926 = vmatpush1.msra.mxu0 0.0
        %6927 = vmatprep.subr.mxu0 0.0
        %6928 = vmatpush1.msra.mxu0 0.0
        %6929 = vmatprep.subr.mxu0 0.0
        %6930 = vmatpush1.msra.mxu0 0.0
        %6931 = vmatprep.subr.mxu0 0.0
        %6932 = vmatpush1.msra.mxu0 0.0
        %6933 = vmatprep.subr.mxu0 0.0
        %6934 = vmatpush1.msra.mxu0 0.0
        %6935 = vmatprep.subr.mxu0 0.0
        %6936 = vmatpush1.msra.mxu0 0.0
        %6937 = vmatprep.subr.mxu0 0.0
        %6938 = vmatpush1.msra.mxu0 0.0
        %6939 = vmatprep.subr.mxu0 0.0
        %6940 = vmatpush1.msra.mxu0 0.0
        %6941 = vmatprep.subr.mxu0 0.0
        %6942 = vmatpush1.msra.mxu0 0.0
        %6943 = vmatprep.subr.mxu0 0.0
        %6944 = vmatpush1.msra.mxu0 0.0
        %6945 = vmatprep.subr.mxu0 0.0
        %6946 = vmatpush1.msra.mxu0 0.0
        %6947 = vmatprep.subr.mxu0 0.0
        %6948 = vmatpush1.msra.mxu0 0.0
        %6949 = vmatprep.subr.mxu0 0.0
        %6950 = vmatpush1.msra.mxu0 0.0
        %6951 = vmatprep.subr.mxu0 0.0
        %6952 = vmatpush1.msra.mxu0 0.0
        %6953 = vmatprep.subr.mxu0 0.0
        %6954 = vmatpush1.msra.mxu0 0.0
        %6955 = vmatprep.subr.mxu0 0.0
        %6956 = vmatpush1.msra.mxu0 0.0
        %6957 = vmatprep.subr.mxu0 0.0
        %6958 = vmatpush1.msra.mxu0 0.0
        %6959 = vmatprep.subr.mxu0 0.0
        %6960 = vmatpush1.msra.mxu0 0.0
        %6961 = vmatprep.subr.mxu0 0.0
        %6962 = vmatpush1.msra.mxu0 0.0
        %6963 = vmatprep.subr.mxu0 0.0
        %6964 = vmatpush1.msra.mxu0 0.0
        %6965 = vmatprep.subr.mxu0 0.0
        %6966 = vmatpush1.msra.mxu0 0.0
        %6967 = vmatprep.subr.mxu0 0.0
        %6968 = vmatpush1.msra.mxu0 0.0
        %6969 = vmatprep.subr.mxu0 0.0
        %6970 = vmatpush1.msra.mxu0 0.0
        %6971 = vmatprep.mubr.f32.mxu0 0.0
        %v6972 = vand.u32 %v2295, 4294901760
        %6973 = vmatmul.mubr.f32.gmra.mrb[0].mxu0 %v6972
        %v6974 = vpop.f32.mrb[0].mxu0
        %v6975 = vadd.f32 %v6898, %v6974
        %v6976 = vpop.f32.mrb[0].mxu0
        %6977 = vdwg.mxu0
        %6978 = vmatprep.subr.mxu0 0.0
        %v6979 = vand.u32 %v6588, 4294901760
        %6980 = vmatpush1.msra.mxu0 %v6979
        %6981 = vmatprep.subr.mxu0 0.0
        %v6982 = vand.u32 %v6591, 4294901760
        %6983 = vmatpush1.msra.mxu0 %v6982
        %6984 = vmatprep.subr.mxu0 0.0
        %6985 = vmatpush1.msra.mxu0 0.0
        %6986 = vmatprep.subr.mxu0 0.0
        %6987 = vmatpush1.msra.mxu0 0.0
        %6988 = vmatprep.subr.mxu0 0.0
        %6989 = vmatpush1.msra.mxu0 0.0
        %6990 = vmatprep.subr.mxu0 0.0
        %6991 = vmatpush1.msra.mxu0 0.0
        %6992 = vmatprep.subr.mxu0 0.0
        %6993 = vmatpush1.msra.mxu0 0.0
        %6994 = vmatprep.subr.mxu0 0.0
        %6995 = vmatpush1.msra.mxu0 0.0
        %6996 = vmatprep.subr.mxu0 0.0
        %6997 = vmatpush1.msra.mxu0 0.0
        %6998 = vmatprep.subr.mxu0 0.0
        %6999 = vmatpush1.msra.mxu0 0.0
        %7000 = vmatprep.subr.mxu0 0.0
        %7001 = vmatpush1.msra.mxu0 0.0
        %7002 = vmatprep.subr.mxu0 0.0
        %7003 = vmatpush1.msra.mxu0 0.0
        %7004 = vmatprep.subr.mxu0 0.0
        %7005 = vmatpush1.msra.mxu0 0.0
        %7006 = vmatprep.subr.mxu0 0.0
        %7007 = vmatpush1.msra.mxu0 0.0
        %7008 = vmatprep.subr.mxu0 0.0
        %7009 = vmatpush1.msra.mxu0 0.0
        %7010 = vmatprep.subr.mxu0 0.0
        %7011 = vmatpush1.msra.mxu0 0.0
        %7012 = vmatprep.subr.mxu0 0.0
        %7013 = vmatpush1.msra.mxu0 0.0
        %7014 = vmatprep.subr.mxu0 0.0
        %7015 = vmatpush1.msra.mxu0 0.0
        %7016 = vmatprep.subr.mxu0 0.0
        %7017 = vmatpush1.msra.mxu0 0.0
        %7018 = vmatprep.subr.mxu0 0.0
        %7019 = vmatpush1.msra.mxu0 0.0
        %7020 = vmatprep.subr.mxu0 0.0
        %7021 = vmatpush1.msra.mxu0 0.0
        %7022 = vmatprep.subr.mxu0 0.0
        %7023 = vmatpush1.msra.mxu0 0.0
        %7024 = vmatprep.subr.mxu0 0.0
        %7025 = vmatpush1.msra.mxu0 0.0
        %7026 = vmatprep.subr.mxu0 0.0
        %7027 = vmatpush1.msra.mxu0 0.0
        %7028 = vmatprep.subr.mxu0 0.0
        %7029 = vmatpush1.msra.mxu0 0.0
        %7030 = vmatprep.subr.mxu0 0.0
        %7031 = vmatpush1.msra.mxu0 0.0
        %7032 = vmatprep.subr.mxu0 0.0
        %7033 = vmatpush1.msra.mxu0 0.0
        %7034 = vmatprep.subr.mxu0 0.0
        %7035 = vmatpush1.msra.mxu0 0.0
        %7036 = vmatprep.subr.mxu0 0.0
        %7037 = vmatpush1.msra.mxu0 0.0
        %7038 = vmatprep.subr.mxu0 0.0
        %7039 = vmatpush1.msra.mxu0 0.0
        %7040 = vmatprep.subr.mxu0 0.0
        %7041 = vmatpush1.msra.mxu0 0.0
        %7042 = vmatprep.subr.mxu0 0.0
        %7043 = vmatpush1.msra.mxu0 0.0
        %7044 = vmatprep.mubr.f32.mxu0 0.0
        %v7045 = vand.u32 %v2295, 4294901760
        %7046 = vmatmul.mubr.f32.gmra.mrb[0].mxu0 %v7045
        %v7047 = vpop.f32.mrb[0].mxu0
        %v7048 = vadd.f32 %v6975, %v7047
        %v7049 = vpop.f32.mrb[0].mxu0
        %7050 = vdwg.mxu0
        %v7051 = vmax.f32 %v7048, 0.0
        %v7053 = vsel %vm2766, %v7051, 0
        %7055 = vmatprep.subr.mxu0 0.0
        %v7056 = vand.u32 %v7053, 4294901760
        %7057 = vmatpush1.msra.mxu0 %v7056
        %7058 = vmatprep.subr.mxu0 0.0
        %7059 = vmatpush1.msra.mxu0 0.0
        %7060 = vmatprep.subr.mxu0 0.0
        %7061 = vmatpush1.msra.mxu0 0.0
        %7062 = vmatprep.subr.mxu0 0.0
        %7063 = vmatpush1.msra.mxu0 0.0
        %7064 = vmatprep.subr.mxu0 0.0
        %7065 = vmatpush1.msra.mxu0 0.0
        %7066 = vmatprep.subr.mxu0 0.0
        %7067 = vmatpush1.msra.mxu0 0.0
        %7068 = vmatprep.subr.mxu0 0.0
        %7069 = vmatpush1.msra.mxu0 0.0
        %7070 = vmatprep.subr.mxu0 0.0
        %7071 = vmatpush1.msra.mxu0 0.0
        %7072 = vmatprep.subr.mxu0 0.0
        %7073 = vmatpush1.msra.mxu0 0.0
        %7074 = vmatprep.subr.mxu0 0.0
        %7075 = vmatpush1.msra.mxu0 0.0
        %7076 = vmatprep.subr.mxu0 0.0
        %7077 = vmatpush1.msra.mxu0 0.0
        %7078 = vmatprep.subr.mxu0 0.0
        %7079 = vmatpush1.msra.mxu0 0.0
        %7080 = vmatprep.subr.mxu0 0.0
        %7081 = vmatpush1.msra.mxu0 0.0
        %7082 = vmatprep.subr.mxu0 0.0
        %7083 = vmatpush1.msra.mxu0 0.0
        %7084 = vmatprep.subr.mxu0 0.0
        %7085 = vmatpush1.msra.mxu0 0.0
        %7086 = vmatprep.subr.mxu0 0.0
        %7087 = vmatpush1.msra.mxu0 0.0
        %7088 = vmatprep.subr.mxu0 0.0
        %7089 = vmatpush1.msra.mxu0 0.0
        %7090 = vmatprep.subr.mxu0 0.0
        %7091 = vmatpush1.msra.mxu0 0.0
        %7092 = vmatprep.subr.mxu0 0.0
        %7093 = vmatpush1.msra.mxu0 0.0
        %7094 = vmatprep.subr.mxu0 0.0
        %7095 = vmatpush1.msra.mxu0 0.0
        %7096 = vmatprep.subr.mxu0 0.0
        %7097 = vmatpush1.msra.mxu0 0.0
        %7098 = vmatprep.subr.mxu0 0.0
        %7099 = vmatpush1.msra.mxu0 0.0
        %7100 = vmatprep.subr.mxu0 0.0
        %7101 = vmatpush1.msra.mxu0 0.0
        %7102 = vmatprep.subr.mxu0 0.0
        %7103 = vmatpush1.msra.mxu0 0.0
        %7104 = vmatprep.subr.mxu0 0.0
        %7105 = vmatpush1.msra.mxu0 0.0
        %7106 = vmatprep.subr.mxu0 0.0
        %7107 = vmatpush1.msra.mxu0 0.0
        %7108 = vmatprep.subr.mxu0 0.0
        %7109 = vmatpush1.msra.mxu0 0.0
        %7110 = vmatprep.subr.mxu0 0.0
        %7111 = vmatpush1.msra.mxu0 0.0
        %7112 = vmatprep.subr.mxu0 0.0
        %7113 = vmatpush1.msra.mxu0 0.0
        %7114 = vmatprep.subr.mxu0 0.0
        %7115 = vmatpush1.msra.mxu0 0.0
        %7116 = vmatprep.subr.mxu0 0.0
        %7117 = vmatpush1.msra.mxu0 0.0
        %7118 = vmatprep.subr.mxu0 0.0
        %7119 = vmatpush1.msra.mxu0 0.0
        %7120 = vmatprep.mubr.f32.mxu0 0.0
        %v7121 = vand.u32 %v2761, 4294901760
        %v7122 = vsub.f32 %v2761, %v7121
        %v7123 = vand.u32 %v7122, 4294901760
        %v7124 = vsub.f32 %v7122, %v7123
        %v7125 = vand.u32 %v7124, 4294901760
        %7126 = vmatmul.mubr.f32.gmra.mrb[0].mxu0 %v7125
        %v7127 = vpop.f32.mrb[0].mxu0
        %v7128 = vadd.f32 0.0, %v7127
        %v7129 = vpop.f32.mrb[0].mxu0
        %7130 = vmatprep.mubr.f32.mxu0 0.0
        %v7131 = vand.u32 %v2764, 4294901760
        %v7132 = vsub.f32 %v2764, %v7131
        %v7133 = vand.u32 %v7132, 4294901760
        %v7134 = vsub.f32 %v7132, %v7133
        %v7135 = vand.u32 %v7134, 4294901760
        %7136 = vmatmul.mubr.f32.gmra.mrb[0].mxu0 %v7135
        %v7137 = vpop.f32.mrb[0].mxu0
        %v7138 = vadd.f32 0.0, %v7137
        %v7139 = vpop.f32.mrb[0].mxu0
        %7140 = vdwg.mxu0
        %7141 = vmatprep.subr.mxu0 0.0
        %v7142 = vand.u32 %v7053, 4294901760
        %v7143 = vsub.f32 %v7053, %v7142
        %v7144 = vand.u32 %v7143, 4294901760
        %v7145 = vsub.f32 %v7143, %v7144
        %v7146 = vand.u32 %v7145, 4294901760
        %7147 = vmatpush1.msra.mxu0 %v7146
        %7148 = vmatprep.subr.mxu0 0.0
        %7149 = vmatpush1.msra.mxu0 0.0
        %7150 = vmatprep.subr.mxu0 0.0
        %7151 = vmatpush1.msra.mxu0 0.0
        %7152 = vmatprep.subr.mxu0 0.0
        %7153 = vmatpush1.msra.mxu0 0.0
        %7154 = vmatprep.subr.mxu0 0.0
        %7155 = vmatpush1.msra.mxu0 0.0
        %7156 = vmatprep.subr.mxu0 0.0
        %7157 = vmatpush1.msra.mxu0 0.0
        %7158 = vmatprep.subr.mxu0 0.0
        %7159 = vmatpush1.msra.mxu0 0.0
        %7160 = vmatprep.subr.mxu0 0.0
        %7161 = vmatpush1.msra.mxu0 0.0
        %7162 = vmatprep.subr.mxu0 0.0
        %7163 = vmatpush1.msra.mxu0 0.0
        %7164 = vmatprep.subr.mxu0 0.0
        %7165 = vmatpush1.msra.mxu0 0.0
        %7166 = vmatprep.subr.mxu0 0.0
        %7167 = vmatpush1.msra.mxu0 0.0
        %7168 = vmatprep.subr.mxu0 0.0
        %7169 = vmatpush1.msra.mxu0 0.0
        %7170 = vmatprep.subr.mxu0 0.0
        %7171 = vmatpush1.msra.mxu0 0.0
        %7172 = vmatprep.subr.mxu0 0.0
        %7173 = vmatpush1.msra.mxu0 0.0
        %7174 = vmatprep.subr.mxu0 0.0
        %7175 = vmatpush1.msra.mxu0 0.0
        %7176 = vmatprep.subr.mxu0 0.0
        %7177 = vmatpush1.msra.mxu0 0.0
        %7178 = vmatprep.subr.mxu0 0.0
        %7179 = vmatpush1.msra.mxu0 0.0
        %7180 = vmatprep.subr.mxu0 0.0
        %7181 = vmatpush1.msra.mxu0 0.0
        %7182 = vmatprep.subr.mxu0 0.0
        %7183 = vmatpush1.msra.mxu0 0.0
        %7184 = vmatprep.subr.mxu0 0.0
        %7185 = vmatpush1.msra.mxu0 0.0
        %7186 = vmatprep.subr.mxu0 0.0
        %7187 = vmatpush1.msra.mxu0 0.0
        %7188 = vmatprep.subr.mxu0 0.0
        %7189 = vmatpush1.msra.mxu0 0.0
        %7190 = vmatprep.subr.mxu0 0.0
        %7191 = vmatpush1.msra.mxu0 0.0
        %7192 = vmatprep.subr.mxu0 0.0
        %7193 = vmatpush1.msra.mxu0 0.0
        %7194 = vmatprep.subr.mxu0 0.0
        %7195 = vmatpush1.msra.mxu0 0.0
        %7196 = vmatprep.subr.mxu0 0.0
        %7197 = vmatpush1.msra.mxu0 0.0
        %7198 = vmatprep.subr.mxu0 0.0
        %7199 = vmatpush1.msra.mxu0 0.0
        %7200 = vmatprep.subr.mxu0 0.0
        %7201 = vmatpush1.msra.mxu0 0.0
        %7202 = vmatprep.subr.mxu0 0.0
        %7203 = vmatpush1.msra.mxu0 0.0
        %7204 = vmatprep.subr.mxu0 0.0
        %7205 = vmatpush1.msra.mxu0 0.0
        %7206 = vmatprep.subr.mxu0 0.0
        %7207 = vmatpush1.msra.mxu0 0.0
        %7208 = vmatprep.subr.mxu0 0.0
        %7209 = vmatpush1.msra.mxu0 0.0
        %7210 = vmatprep.mubr.f32.mxu0 0.0
        %v7211 = vand.u32 %v2761, 4294901760
        %7212 = vmatmul.mubr.f32.gmra.mrb[0].mxu0 %v7211
        %v7213 = vpop.f32.mrb[0].mxu0
        %v7214 = vadd.f32 %v7128, %v7213
        %v7215 = vpop.f32.mrb[0].mxu0
        %7216 = vmatprep.mubr.f32.mxu0 0.0
        %v7217 = vand.u32 %v2764, 4294901760
        %7218 = vmatmul.mubr.f32.gmra.mrb[0].mxu0 %v7217
        %v7219 = vpop.f32.mrb[0].mxu0
        %v7220 = vadd.f32 %v7138, %v7219
        %v7221 = vpop.f32.mrb[0].mxu0
        %7222 = vdwg.mxu0
        %7223 = vmatprep.subr.mxu0 0.0
        %v7224 = vand.u32 %v7053, 4294901760
        %v7225 = vsub.f32 %v7053, %v7224
        %7226 = vmatpush1.msra.mxu0 %v7225
        %7227 = vmatprep.subr.mxu0 0.0
        %7228 = vmatpush1.msra.mxu0 0.0
        %7229 = vmatprep.subr.mxu0 0.0
        %7230 = vmatpush1.msra.mxu0 0.0
        %7231 = vmatprep.subr.mxu0 0.0
        %7232 = vmatpush1.msra.mxu0 0.0
        %7233 = vmatprep.subr.mxu0 0.0
        %7234 = vmatpush1.msra.mxu0 0.0
        %7235 = vmatprep.subr.mxu0 0.0
        %7236 = vmatpush1.msra.mxu0 0.0
        %7237 = vmatprep.subr.mxu0 0.0
        %7238 = vmatpush1.msra.mxu0 0.0
        %7239 = vmatprep.subr.mxu0 0.0
        %7240 = vmatpush1.msra.mxu0 0.0
        %7241 = vmatprep.subr.mxu0 0.0
        %7242 = vmatpush1.msra.mxu0 0.0
        %7243 = vmatprep.subr.mxu0 0.0
        %7244 = vmatpush1.msra.mxu0 0.0
        %7245 = vmatprep.subr.mxu0 0.0
        %7246 = vmatpush1.msra.mxu0 0.0
        %7247 = vmatprep.subr.mxu0 0.0
        %7248 = vmatpush1.msra.mxu0 0.0
        %7249 = vmatprep.subr.mxu0 0.0
        %7250 = vmatpush1.msra.mxu0 0.0
        %7251 = vmatprep.subr.mxu0 0.0
        %7252 = vmatpush1.msra.mxu0 0.0
        %7253 = vmatprep.subr.mxu0 0.0
        %7254 = vmatpush1.msra.mxu0 0.0
        %7255 = vmatprep.subr.mxu0 0.0
        %7256 = vmatpush1.msra.mxu0 0.0
        %7257 = vmatprep.subr.mxu0 0.0
        %7258 = vmatpush1.msra.mxu0 0.0
        %7259 = vmatprep.subr.mxu0 0.0
        %7260 = vmatpush1.msra.mxu0 0.0
        %7261 = vmatprep.subr.mxu0 0.0
        %7262 = vmatpush1.msra.mxu0 0.0
        %7263 = vmatprep.subr.mxu0 0.0
        %7264 = vmatpush1.msra.mxu0 0.0
        %7265 = vmatprep.subr.mxu0 0.0
        %7266 = vmatpush1.msra.mxu0 0.0
        %7267 = vmatprep.subr.mxu0 0.0
        %7268 = vmatpush1.msra.mxu0 0.0
        %7269 = vmatprep.subr.mxu0 0.0
        %7270 = vmatpush1.msra.mxu0 0.0
        %7271 = vmatprep.subr.mxu0 0.0
        %7272 = vmatpush1.msra.mxu0 0.0
        %7273 = vmatprep.subr.mxu0 0.0
        %7274 = vmatpush1.msra.mxu0 0.0
        %7275 = vmatprep.subr.mxu0 0.0
        %7276 = vmatpush1.msra.mxu0 0.0
        %7277 = vmatprep.subr.mxu0 0.0
        %7278 = vmatpush1.msra.mxu0 0.0
        %7279 = vmatprep.subr.mxu0 0.0
        %7280 = vmatpush1.msra.mxu0 0.0
        %7281 = vmatprep.subr.mxu0 0.0
        %7282 = vmatpush1.msra.mxu0 0.0
        %7283 = vmatprep.subr.mxu0 0.0
        %7284 = vmatpush1.msra.mxu0 0.0
        %7285 = vmatprep.subr.mxu0 0.0
        %7286 = vmatpush1.msra.mxu0 0.0
        %7287 = vmatprep.subr.mxu0 0.0
        %7288 = vmatpush1.msra.mxu0 0.0
        %7289 = vmatprep.mubr.f32.mxu0 0.0
        %v7290 = vand.u32 %v2761, 4294901760
        %v7291 = vsub.f32 %v2761, %v7290
        %7292 = vmatmul.mubr.f32.gmra.mrb[0].mxu0 %v7291
        %v7293 = vpop.f32.mrb[0].mxu0
        %v7294 = vadd.f32 %v7214, %v7293
        %v7295 = vpop.f32.mrb[0].mxu0
        %7296 = vmatprep.mubr.f32.mxu0 0.0
        %v7297 = vand.u32 %v2764, 4294901760
        %v7298 = vsub.f32 %v2764, %v7297
        %7299 = vmatmul.mubr.f32.gmra.mrb[0].mxu0 %v7298
        %v7300 = vpop.f32.mrb[0].mxu0
        %v7301 = vadd.f32 %v7220, %v7300
        %v7302 = vpop.f32.mrb[0].mxu0
        %7303 = vdwg.mxu0
        %7304 = vmatprep.subr.mxu0 0.0
        %v7305 = vand.u32 %v7053, 4294901760
        %7306 = vmatpush1.msra.mxu0 %v7305
        %7307 = vmatprep.subr.mxu0 0.0
        %7308 = vmatpush1.msra.mxu0 0.0
        %7309 = vmatprep.subr.mxu0 0.0
        %7310 = vmatpush1.msra.mxu0 0.0
        %7311 = vmatprep.subr.mxu0 0.0
        %7312 = vmatpush1.msra.mxu0 0.0
        %7313 = vmatprep.subr.mxu0 0.0
        %7314 = vmatpush1.msra.mxu0 0.0
        %7315 = vmatprep.subr.mxu0 0.0
        %7316 = vmatpush1.msra.mxu0 0.0
        %7317 = vmatprep.subr.mxu0 0.0
        %7318 = vmatpush1.msra.mxu0 0.0
        %7319 = vmatprep.subr.mxu0 0.0
        %7320 = vmatpush1.msra.mxu0 0.0
        %7321 = vmatprep.subr.mxu0 0.0
        %7322 = vmatpush1.msra.mxu0 0.0
        %7323 = vmatprep.subr.mxu0 0.0
        %7324 = vmatpush1.msra.mxu0 0.0
        %7325 = vmatprep.subr.mxu0 0.0
        %7326 = vmatpush1.msra.mxu0 0.0
        %7327 = vmatprep.subr.mxu0 0.0
        %7328 = vmatpush1.msra.mxu0 0.0
        %7329 = vmatprep.subr.mxu0 0.0
        %7330 = vmatpush1.msra.mxu0 0.0
        %7331 = vmatprep.subr.mxu0 0.0
        %7332 = vmatpush1.msra.mxu0 0.0
        %7333 = vmatprep.subr.mxu0 0.0
        %7334 = vmatpush1.msra.mxu0 0.0
        %7335 = vmatprep.subr.mxu0 0.0
        %7336 = vmatpush1.msra.mxu0 0.0
        %7337 = vmatprep.subr.mxu0 0.0
        %7338 = vmatpush1.msra.mxu0 0.0
        %7339 = vmatprep.subr.mxu0 0.0
        %7340 = vmatpush1.msra.mxu0 0.0
        %7341 = vmatprep.subr.mxu0 0.0
        %7342 = vmatpush1.msra.mxu0 0.0
        %7343 = vmatprep.subr.mxu0 0.0
        %7344 = vmatpush1.msra.mxu0 0.0
        %7345 = vmatprep.subr.mxu0 0.0
        %7346 = vmatpush1.msra.mxu0 0.0
        %7347 = vmatprep.subr.mxu0 0.0
        %7348 = vmatpush1.msra.mxu0 0.0
        %7349 = vmatprep.subr.mxu0 0.0
        %7350 = vmatpush1.msra.mxu0 0.0
        %7351 = vmatprep.subr.mxu0 0.0
        %7352 = vmatpush1.msra.mxu0 0.0
        %7353 = vmatprep.subr.mxu0 0.0
        %7354 = vmatpush1.msra.mxu0 0.0
        %7355 = vmatprep.subr.mxu0 0.0
        %7356 = vmatpush1.msra.mxu0 0.0
        %7357 = vmatprep.subr.mxu0 0.0
        %7358 = vmatpush1.msra.mxu0 0.0
        %7359 = vmatprep.subr.mxu0 0.0
        %7360 = vmatpush1.msra.mxu0 0.0
        %7361 = vmatprep.subr.mxu0 0.0
        %7362 = vmatpush1.msra.mxu0 0.0
        %7363 = vmatprep.subr.mxu0 0.0
        %7364 = vmatpush1.msra.mxu0 0.0
        %7365 = vmatprep.subr.mxu0 0.0
        %7366 = vmatpush1.msra.mxu0 0.0
        %7367 = vmatprep.subr.mxu0 0.0
        %7368 = vmatpush1.msra.mxu0 0.0
        %7369 = vmatprep.mubr.f32.mxu0 0.0
        %v7370 = vand.u32 %v2761, 4294901760
        %v7371 = vsub.f32 %v2761, %v7370
        %v7372 = vand.u32 %v7371, 4294901760
        %7373 = vmatmul.mubr.f32.gmra.mrb[0].mxu0 %v7372
        %v7374 = vpop.f32.mrb[0].mxu0
        %v7375 = vadd.f32 %v7294, %v7374
        %v7376 = vpop.f32.mrb[0].mxu0
        %7377 = vmatprep.mubr.f32.mxu0 0.0
        %v7378 = vand.u32 %v2764, 4294901760
        %v7379 = vsub.f32 %v2764, %v7378
        %v7380 = vand.u32 %v7379, 4294901760
        %7381 = vmatmul.mubr.f32.gmra.mrb[0].mxu0 %v7380
        %v7382 = vpop.f32.mrb[0].mxu0
        %v7383 = vadd.f32 %v7301, %v7382
        %v7384 = vpop.f32.mrb[0].mxu0
        %7385 = vdwg.mxu0
        %7386 = vmatprep.subr.mxu0 0.0
        %v7387 = vand.u32 %v7053, 4294901760
        %v7388 = vsub.f32 %v7053, %v7387
        %v7389 = vand.u32 %v7388, 4294901760
        %7390 = vmatpush1.msra.mxu0 %v7389
        %7391 = vmatprep.subr.mxu0 0.0
        %7392 = vmatpush1.msra.mxu0 0.0
        %7393 = vmatprep.subr.mxu0 0.0
        %7394 = vmatpush1.msra.mxu0 0.0
        %7395 = vmatprep.subr.mxu0 0.0
        %7396 = vmatpush1.msra.mxu0 0.0
        %7397 = vmatprep.subr.mxu0 0.0
        %7398 = vmatpush1.msra.mxu0 0.0
        %7399 = vmatprep.subr.mxu0 0.0
        %7400 = vmatpush1.msra.mxu0 0.0
        %7401 = vmatprep.subr.mxu0 0.0
        %7402 = vmatpush1.msra.mxu0 0.0
        %7403 = vmatprep.subr.mxu0 0.0
        %7404 = vmatpush1.msra.mxu0 0.0
        %7405 = vmatprep.subr.mxu0 0.0
        %7406 = vmatpush1.msra.mxu0 0.0
        %7407 = vmatprep.subr.mxu0 0.0
        %7408 = vmatpush1.msra.mxu0 0.0
        %7409 = vmatprep.subr.mxu0 0.0
        %7410 = vmatpush1.msra.mxu0 0.0
        %7411 = vmatprep.subr.mxu0 0.0
        %7412 = vmatpush1.msra.mxu0 0.0
        %7413 = vmatprep.subr.mxu0 0.0
        %7414 = vmatpush1.msra.mxu0 0.0
        %7415 = vmatprep.subr.mxu0 0.0
        %7416 = vmatpush1.msra.mxu0 0.0
        %7417 = vmatprep.subr.mxu0 0.0
        %7418 = vmatpush1.msra.mxu0 0.0
        %7419 = vmatprep.subr.mxu0 0.0
        %7420 = vmatpush1.msra.mxu0 0.0
        %7421 = vmatprep.subr.mxu0 0.0
        %7422 = vmatpush1.msra.mxu0 0.0
        %7423 = vmatprep.subr.mxu0 0.0
        %7424 = vmatpush1.msra.mxu0 0.0
        %7425 = vmatprep.subr.mxu0 0.0
        %7426 = vmatpush1.msra.mxu0 0.0
        %7427 = vmatprep.subr.mxu0 0.0
        %7428 = vmatpush1.msra.mxu0 0.0
        %7429 = vmatprep.subr.mxu0 0.0
        %7430 = vmatpush1.msra.mxu0 0.0
        %7431 = vmatprep.subr.mxu0 0.0
        %7432 = vmatpush1.msra.mxu0 0.0
        %7433 = vmatprep.subr.mxu0 0.0
        %7434 = vmatpush1.msra.mxu0 0.0
        %7435 = vmatprep.subr.mxu0 0.0
        %7436 = vmatpush1.msra.mxu0 0.0
        %7437 = vmatprep.subr.mxu0 0.0
        %7438 = vmatpush1.msra.mxu0 0.0
        %7439 = vmatprep.subr.mxu0 0.0
        %7440 = vmatpush1.msra.mxu0 0.0
        %7441 = vmatprep.subr.mxu0 0.0
        %7442 = vmatpush1.msra.mxu0 0.0
        %7443 = vmatprep.subr.mxu0 0.0
        %7444 = vmatpush1.msra.mxu0 0.0
        %7445 = vmatprep.subr.mxu0 0.0
        %7446 = vmatpush1.msra.mxu0 0.0
        %7447 = vmatprep.subr.mxu0 0.0
        %7448 = vmatpush1.msra.mxu0 0.0
        %7449 = vmatprep.subr.mxu0 0.0
        %7450 = vmatpush1.msra.mxu0 0.0
        %7451 = vmatprep.subr.mxu0 0.0
        %7452 = vmatpush1.msra.mxu0 0.0
        %7453 = vmatprep.mubr.f32.mxu0 0.0
        %v7454 = vand.u32 %v2761, 4294901760
        %7455 = vmatmul.mubr.f32.gmra.mrb[0].mxu0 %v7454
        %v7456 = vpop.f32.mrb[0].mxu0
        %v7457 = vadd.f32 %v7375, %v7456
        %v7458 = vpop.f32.mrb[0].mxu0
        %7459 = vmatprep.mubr.f32.mxu0 0.0
        %v7460 = vand.u32 %v2764, 4294901760
        %7461 = vmatmul.mubr.f32.gmra.mrb[0].mxu0 %v7460
        %v7462 = vpop.f32.mrb[0].mxu0
        %v7463 = vadd.f32 %v7383, %v7462
        %v7464 = vpop.f32.mrb[0].mxu0
        %7465 = vdwg.mxu0
        %7466 = vmatprep.subr.mxu0 0.0
        %v7467 = vand.u32 %v7053, 4294901760
        %7468 = vmatpush1.msra.mxu0 %v7467
        %7469 = vmatprep.subr.mxu0 0.0
        %7470 = vmatpush1.msra.mxu0 0.0
        %7471 = vmatprep.subr.mxu0 0.0
        %7472 = vmatpush1.msra.mxu0 0.0
        %7473 = vmatprep.subr.mxu0 0.0
        %7474 = vmatpush1.msra.mxu0 0.0
        %7475 = vmatprep.subr.mxu0 0.0
        %7476 = vmatpush1.msra.mxu0 0.0
        %7477 = vmatprep.subr.mxu0 0.0
        %7478 = vmatpush1.msra.mxu0 0.0
        %7479 = vmatprep.subr.mxu0 0.0
        %7480 = vmatpush1.msra.mxu0 0.0
        %7481 = vmatprep.subr.mxu0 0.0
        %7482 = vmatpush1.msra.mxu0 0.0
        %7483 = vmatprep.subr.mxu0 0.0
        %7484 = vmatpush1.msra.mxu0 0.0
        %7485 = vmatprep.subr.mxu0 0.0
        %7486 = vmatpush1.msra.mxu0 0.0
        %7487 = vmatprep.subr.mxu0 0.0
        %7488 = vmatpush1.msra.mxu0 0.0
        %7489 = vmatprep.subr.mxu0 0.0
        %7490 = vmatpush1.msra.mxu0 0.0
        %7491 = vmatprep.subr.mxu0 0.0
        %7492 = vmatpush1.msra.mxu0 0.0
        %7493 = vmatprep.subr.mxu0 0.0
        %7494 = vmatpush1.msra.mxu0 0.0
        %7495 = vmatprep.subr.mxu0 0.0
        %7496 = vmatpush1.msra.mxu0 0.0
        %7497 = vmatprep.subr.mxu0 0.0
        %7498 = vmatpush1.msra.mxu0 0.0
        %7499 = vmatprep.subr.mxu0 0.0
        %7500 = vmatpush1.msra.mxu0 0.0
        %7501 = vmatprep.subr.mxu0 0.0
        %7502 = vmatpush1.msra.mxu0 0.0
        %7503 = vmatprep.subr.mxu0 0.0
        %7504 = vmatpush1.msra.mxu0 0.0
        %7505 = vmatprep.subr.mxu0 0.0
        %7506 = vmatpush1.msra.mxu0 0.0
        %7507 = vmatprep.subr.mxu0 0.0
        %7508 = vmatpush1.msra.mxu0 0.0
        %7509 = vmatprep.subr.mxu0 0.0
        %7510 = vmatpush1.msra.mxu0 0.0
        %7511 = vmatprep.subr.mxu0 0.0
        %7512 = vmatpush1.msra.mxu0 0.0
        %7513 = vmatprep.subr.mxu0 0.0
        %7514 = vmatpush1.msra.mxu0 0.0
        %7515 = vmatprep.subr.mxu0 0.0
        %7516 = vmatpush1.msra.mxu0 0.0
        %7517 = vmatprep.subr.mxu0 0.0
        %7518 = vmatpush1.msra.mxu0 0.0
        %7519 = vmatprep.subr.mxu0 0.0
        %7520 = vmatpush1.msra.mxu0 0.0
        %7521 = vmatprep.subr.mxu0 0.0
        %7522 = vmatpush1.msra.mxu0 0.0
        %7523 = vmatprep.subr.mxu0 0.0
        %7524 = vmatpush1.msra.mxu0 0.0
        %7525 = vmatprep.subr.mxu0 0.0
        %7526 = vmatpush1.msra.mxu0 0.0
        %7527 = vmatprep.subr.mxu0 0.0
        %7528 = vmatpush1.msra.mxu0 0.0
        %7529 = vmatprep.subr.mxu0 0.0
        %7530 = vmatpush1.msra.mxu0 0.0
        %7531 = vmatprep.mubr.f32.mxu0 0.0
        %v7532 = vand.u32 %v2761, 4294901760
        %7533 = vmatmul.mubr.f32.gmra.mrb[0].mxu0 %v7532
        %v7534 = vpop.f32.mrb[0].mxu0
        %v7535 = vadd.f32 %v7457, %v7534
        %v7536 = vpop.f32.mrb[0].mxu0
        %7537 = vmatprep.mubr.f32.mxu0 0.0
        %v7538 = vand.u32 %v2764, 4294901760
        %7539 = vmatmul.mubr.f32.gmra.mrb[0].mxu0 %v7538
        %v7540 = vpop.f32.mrb[0].mxu0
        %v7541 = vadd.f32 %v7463, %v7540
        %v7542 = vpop.f32.mrb[0].mxu0
        %7543 = vdwg.mxu0
        %v7544 = vxor.u32 %v7535, 2147483648
        %v7545 = vxor.u32 %v7541, 2147483648
        %v7546 = vmul.f32 %v7544, 1.442695
        %v7547 = vpow.pop %v7546
        %v7548 = vmul.f32 %v7545, 1.442695
        %v7549 = vpow.pop %v7548
        %v7550 = vadd.f32 %v7547, 1.0
        %v7551 = vadd.f32 %v7549, 1.0
        %v7552 = vrcp.pop %v7550
        %v7553 = vmul.f32 1.0, %v7552
        %v7554 = vrcp.pop %v7551
        %v7555 = vmul.f32 1.0, %v7554
        %7557 = vset.pattern.permute.xlu0 0
        %7558 = vperm.xlu0 %7557, %v7553
        %v7559 = vpop.permute.xlu0 %7558
        %7562 = vset.pattern.permute.xlu0 0
        %7563 = vperm.xlu0 %7562, %v7555
        %v7564 = vpop.permute.xlu0 %7563
        %v7566 = vmul.f32 %v6584, %v7559
        %v7567 = vmul.f32 %v6585, %v7564
        %v7568 = vadd.f32 %v5430, %v7566
        %v7569 = vadd.f32 %v5431, %v7567
        %v7570 = vsel %vm555, %v7568, 0.0
        %7571 = vadd.xlane.f32.xlu0 %v7570
        %v7572 = vpop.xlane.xlu0 %7571
        %v7573 = vsel %vm555, %v7569, 0.0
        %7574 = vadd.xlane.f32.xlu0 %v7573
        %v7575 = vpop.xlane.xlu0 %7574
        %v7576 = vmul.f32 %v7572, %v1098
        %v7577 = vmul.f32 %v7575, %v1098
        %v7578 = vsub.f32 %v7568, %v7576
        %v7579 = vsub.f32 %v7569, %v7577
        %v7580 = vmul.f32 %v7578, %v7578
        %v7581 = vmul.f32 %v7579, %v7579
        %v7582 = vsel %vm555, %v7580, 0.0
        %7583 = vadd.xlane.f32.xlu0 %v7582
        %v7584 = vpop.xlane.xlu0 %7583
        %v7585 = vsel %vm555, %v7581, 0.0
        %7586 = vadd.xlane.f32.xlu0 %v7585
        %v7587 = vpop.xlane.xlu0 %7586
        %v7588 = vmul.f32 %v7584, %v1098
        %v7589 = vmul.f32 %v7587, %v1098
        %v7590 = vadd.f32 %v7588, 1e-05
        %v7591 = vadd.f32 %v7589, 1e-05
        %v7592 = vrsqrt.pop %v7590
        %v7593 = vrsqrt.pop %v7591
        %v7594 = vmul.f32 %v7578, %v7592
        %v7595 = vmul.f32 %v7579, %v7593
        %v7596 = vmul.f32 %v7594, %v1123
        %v7597 = vmul.f32 %v7595, %v1123
        %v7598 = vadd.f32 %v7596, %v1131
        %v7599 = vadd.f32 %v7597, %v1131
        %v7601 = vsel %vm555, %v7598, 0
        %v7604 = vsel %vm555, %v7599, 0
        %7606 = vmatprep.subr.mxu0 0.0
        %v7607 = vand.u32 %v3315, 4294901760
        %7608 = vmatpush1.msra.mxu0 %v7607
        %7609 = vmatprep.subr.mxu0 0.0
        %v7610 = vand.u32 %v3316, 4294901760
        %7611 = vmatpush1.msra.mxu0 %v7610
        %7612 = vmatprep.subr.mxu0 0.0
        %v7613 = vand.u32 %v3317, 4294901760
        %7614 = vmatpush1.msra.mxu0 %v7613
        %7615 = vmatprep.subr.mxu0 0.0
        %v7616 = vand.u32 %v3318, 4294901760
        %7617 = vmatpush1.msra.mxu0 %v7616
        %7618 = vmatprep.subr.mxu0 0.0
        %7619 = vmatpush1.msra.mxu0 0.0
        %7620 = vmatprep.subr.mxu0 0.0
        %7621 = vmatpush1.msra.mxu0 0.0
        %7622 = vmatprep.subr.mxu0 0.0
        %7623 = vmatpush1.msra.mxu0 0.0
        %7624 = vmatprep.subr.mxu0 0.0
        %7625 = vmatpush1.msra.mxu0 0.0
        %7626 = vmatprep.subr.mxu0 0.0
        %7627 = vmatpush1.msra.mxu0 0.0
        %7628 = vmatprep.subr.mxu0 0.0
        %7629 = vmatpush1.msra.mxu0 0.0
        %7630 = vmatprep.subr.mxu0 0.0
        %7631 = vmatpush1.msra.mxu0 0.0
        %7632 = vmatprep.subr.mxu0 0.0
        %7633 = vmatpush1.msra.mxu0 0.0
        %7634 = vmatprep.subr.mxu0 0.0
        %7635 = vmatpush1.msra.mxu0 0.0
        %7636 = vmatprep.subr.mxu0 0.0
        %7637 = vmatpush1.msra.mxu0 0.0
        %7638 = vmatprep.subr.mxu0 0.0
        %7639 = vmatpush1.msra.mxu0 0.0
        %7640 = vmatprep.subr.mxu0 0.0
        %7641 = vmatpush1.msra.mxu0 0.0
        %7642 = vmatprep.subr.mxu0 0.0
        %7643 = vmatpush1.msra.mxu0 0.0
        %7644 = vmatprep.subr.mxu0 0.0
        %7645 = vmatpush1.msra.mxu0 0.0
        %7646 = vmatprep.subr.mxu0 0.0
        %7647 = vmatpush1.msra.mxu0 0.0
        %7648 = vmatprep.subr.mxu0 0.0
        %7649 = vmatpush1.msra.mxu0 0.0
        %7650 = vmatprep.subr.mxu0 0.0
        %7651 = vmatpush1.msra.mxu0 0.0
        %7652 = vmatprep.subr.mxu0 0.0
        %7653 = vmatpush1.msra.mxu0 0.0
        %7654 = vmatprep.subr.mxu0 0.0
        %7655 = vmatpush1.msra.mxu0 0.0
        %7656 = vmatprep.subr.mxu0 0.0
        %7657 = vmatpush1.msra.mxu0 0.0
        %7658 = vmatprep.subr.mxu0 0.0
        %7659 = vmatpush1.msra.mxu0 0.0
        %7660 = vmatprep.subr.mxu0 0.0
        %7661 = vmatpush1.msra.mxu0 0.0
        %7662 = vmatprep.subr.mxu0 0.0
        %7663 = vmatpush1.msra.mxu0 0.0
        %7664 = vmatprep.subr.mxu0 0.0
        %7665 = vmatpush1.msra.mxu0 0.0
        %7666 = vmatprep.subr.mxu0 0.0
        %7667 = vmatpush1.msra.mxu0 0.0
        %7668 = vmatprep.subr.mxu0 0.0
        %7669 = vmatpush1.msra.mxu0 0.0
        %7670 = vmatprep.subr.mxu0 0.0
        %7671 = vmatpush1.msra.mxu0 0.0
        %7672 = vmatprep.subr.mxu0 0.0
        %7673 = vmatpush1.msra.mxu0 0.0
        %7674 = vmatprep.mubr.f32.mxu0 0.0
        %v7675 = vand.u32 %v7601, 4294901760
        %v7676 = vsub.f32 %v7601, %v7675
        %v7677 = vand.u32 %v7676, 4294901760
        %v7678 = vsub.f32 %v7676, %v7677
        %v7679 = vand.u32 %v7678, 4294901760
        %7680 = vmatmul.mubr.f32.gmra.mrb[0].mxu0 %v7679
        %v7681 = vpop.f32.mrb[0].mxu0
        %v7682 = vadd.f32 %v3324, %v7681
        %v7683 = vpop.f32.mrb[0].mxu0
        %7684 = vmatprep.mubr.f32.mxu0 0.0
        %v7685 = vand.u32 %v7604, 4294901760
        %v7686 = vsub.f32 %v7604, %v7685
        %v7687 = vand.u32 %v7686, 4294901760
        %v7688 = vsub.f32 %v7686, %v7687
        %v7689 = vand.u32 %v7688, 4294901760
        %7690 = vmatmul.mubr.f32.gmra.mrb[0].mxu0 %v7689
        %v7691 = vpop.f32.mrb[0].mxu0
        %v7692 = vadd.f32 %v3324, %v7691
        %v7693 = vpop.f32.mrb[0].mxu0
        %7694 = vdwg.mxu0
        %7695 = vmatprep.subr.mxu0 0.0
        %v7696 = vand.u32 %v3315, 4294901760
        %v7697 = vsub.f32 %v3315, %v7696
        %v7698 = vand.u32 %v7697, 4294901760
        %v7699 = vsub.f32 %v7697, %v7698
        %v7700 = vand.u32 %v7699, 4294901760
        %7701 = vmatpush1.msra.mxu0 %v7700
        %7702 = vmatprep.subr.mxu0 0.0
        %v7703 = vand.u32 %v3316, 4294901760
        %v7704 = vsub.f32 %v3316, %v7703
        %v7705 = vand.u32 %v7704, 4294901760
        %v7706 = vsub.f32 %v7704, %v7705
        %v7707 = vand.u32 %v7706, 4294901760
        %7708 = vmatpush1.msra.mxu0 %v7707
        %7709 = vmatprep.subr.mxu0 0.0
        %v7710 = vand.u32 %v3317, 4294901760
        %v7711 = vsub.f32 %v3317, %v7710
        %v7712 = vand.u32 %v7711, 4294901760
        %v7713 = vsub.f32 %v7711, %v7712
        %v7714 = vand.u32 %v7713, 4294901760
        %7715 = vmatpush1.msra.mxu0 %v7714
        %7716 = vmatprep.subr.mxu0 0.0
        %v7717 = vand.u32 %v3318, 4294901760
        %v7718 = vsub.f32 %v3318, %v7717
        %v7719 = vand.u32 %v7718, 4294901760
        %v7720 = vsub.f32 %v7718, %v7719
        %v7721 = vand.u32 %v7720, 4294901760
        %7722 = vmatpush1.msra.mxu0 %v7721
        %7723 = vmatprep.subr.mxu0 0.0
        %7724 = vmatpush1.msra.mxu0 0.0
        %7725 = vmatprep.subr.mxu0 0.0
        %7726 = vmatpush1.msra.mxu0 0.0
        %7727 = vmatprep.subr.mxu0 0.0
        %7728 = vmatpush1.msra.mxu0 0.0
        %7729 = vmatprep.subr.mxu0 0.0
        %7730 = vmatpush1.msra.mxu0 0.0
        %7731 = vmatprep.subr.mxu0 0.0
        %7732 = vmatpush1.msra.mxu0 0.0
        %7733 = vmatprep.subr.mxu0 0.0
        %7734 = vmatpush1.msra.mxu0 0.0
        %7735 = vmatprep.subr.mxu0 0.0
        %7736 = vmatpush1.msra.mxu0 0.0
        %7737 = vmatprep.subr.mxu0 0.0
        %7738 = vmatpush1.msra.mxu0 0.0
        %7739 = vmatprep.subr.mxu0 0.0
        %7740 = vmatpush1.msra.mxu0 0.0
        %7741 = vmatprep.subr.mxu0 0.0
        %7742 = vmatpush1.msra.mxu0 0.0
        %7743 = vmatprep.subr.mxu0 0.0
        %7744 = vmatpush1.msra.mxu0 0.0
        %7745 = vmatprep.subr.mxu0 0.0
        %7746 = vmatpush1.msra.mxu0 0.0
        %7747 = vmatprep.subr.mxu0 0.0
        %7748 = vmatpush1.msra.mxu0 0.0
        %7749 = vmatprep.subr.mxu0 0.0
        %7750 = vmatpush1.msra.mxu0 0.0
        %7751 = vmatprep.subr.mxu0 0.0
        %7752 = vmatpush1.msra.mxu0 0.0
        %7753 = vmatprep.subr.mxu0 0.0
        %7754 = vmatpush1.msra.mxu0 0.0
        %7755 = vmatprep.subr.mxu0 0.0
        %7756 = vmatpush1.msra.mxu0 0.0
        %7757 = vmatprep.subr.mxu0 0.0
        %7758 = vmatpush1.msra.mxu0 0.0
        %7759 = vmatprep.subr.mxu0 0.0
        %7760 = vmatpush1.msra.mxu0 0.0
        %7761 = vmatprep.subr.mxu0 0.0
        %7762 = vmatpush1.msra.mxu0 0.0
        %7763 = vmatprep.subr.mxu0 0.0
        %7764 = vmatpush1.msra.mxu0 0.0
        %7765 = vmatprep.subr.mxu0 0.0
        %7766 = vmatpush1.msra.mxu0 0.0
        %7767 = vmatprep.subr.mxu0 0.0
        %7768 = vmatpush1.msra.mxu0 0.0
        %7769 = vmatprep.subr.mxu0 0.0
        %7770 = vmatpush1.msra.mxu0 0.0
        %7771 = vmatprep.subr.mxu0 0.0
        %7772 = vmatpush1.msra.mxu0 0.0
        %7773 = vmatprep.subr.mxu0 0.0
        %7774 = vmatpush1.msra.mxu0 0.0
        %7775 = vmatprep.subr.mxu0 0.0
        %7776 = vmatpush1.msra.mxu0 0.0
        %7777 = vmatprep.subr.mxu0 0.0
        %7778 = vmatpush1.msra.mxu0 0.0
        %7779 = vmatprep.mubr.f32.mxu0 0.0
        %v7780 = vand.u32 %v7601, 4294901760
        %7781 = vmatmul.mubr.f32.gmra.mrb[0].mxu0 %v7780
        %v7782 = vpop.f32.mrb[0].mxu0
        %v7783 = vadd.f32 %v7682, %v7782
        %v7784 = vpop.f32.mrb[0].mxu0
        %7785 = vmatprep.mubr.f32.mxu0 0.0
        %v7786 = vand.u32 %v7604, 4294901760
        %7787 = vmatmul.mubr.f32.gmra.mrb[0].mxu0 %v7786
        %v7788 = vpop.f32.mrb[0].mxu0
        %v7789 = vadd.f32 %v7692, %v7788
        %v7790 = vpop.f32.mrb[0].mxu0
        %7791 = vdwg.mxu0
        %7792 = vmatprep.subr.mxu0 0.0
        %v7793 = vand.u32 %v3315, 4294901760
        %v7794 = vsub.f32 %v3315, %v7793
        %7795 = vmatpush1.msra.mxu0 %v7794
        %7796 = vmatprep.subr.mxu0 0.0
        %v7797 = vand.u32 %v3316, 4294901760
        %v7798 = vsub.f32 %v3316, %v7797
        %7799 = vmatpush1.msra.mxu0 %v7798
        %7800 = vmatprep.subr.mxu0 0.0
        %v7801 = vand.u32 %v3317, 4294901760
        %v7802 = vsub.f32 %v3317, %v7801
        %7803 = vmatpush1.msra.mxu0 %v7802
        %7804 = vmatprep.subr.mxu0 0.0
        %v7805 = vand.u32 %v3318, 4294901760
        %v7806 = vsub.f32 %v3318, %v7805
        %7807 = vmatpush1.msra.mxu0 %v7806
        %7808 = vmatprep.subr.mxu0 0.0
        %7809 = vmatpush1.msra.mxu0 0.0
        %7810 = vmatprep.subr.mxu0 0.0
        %7811 = vmatpush1.msra.mxu0 0.0
        %7812 = vmatprep.subr.mxu0 0.0
        %7813 = vmatpush1.msra.mxu0 0.0
        %7814 = vmatprep.subr.mxu0 0.0
        %7815 = vmatpush1.msra.mxu0 0.0
        %7816 = vmatprep.subr.mxu0 0.0
        %7817 = vmatpush1.msra.mxu0 0.0
        %7818 = vmatprep.subr.mxu0 0.0
        %7819 = vmatpush1.msra.mxu0 0.0
        %7820 = vmatprep.subr.mxu0 0.0
        %7821 = vmatpush1.msra.mxu0 0.0
        %7822 = vmatprep.subr.mxu0 0.0
        %7823 = vmatpush1.msra.mxu0 0.0
        %7824 = vmatprep.subr.mxu0 0.0
        %7825 = vmatpush1.msra.mxu0 0.0
        %7826 = vmatprep.subr.mxu0 0.0
        %7827 = vmatpush1.msra.mxu0 0.0
        %7828 = vmatprep.subr.mxu0 0.0
        %7829 = vmatpush1.msra.mxu0 0.0
        %7830 = vmatprep.subr.mxu0 0.0
        %7831 = vmatpush1.msra.mxu0 0.0
        %7832 = vmatprep.subr.mxu0 0.0
        %7833 = vmatpush1.msra.mxu0 0.0
        %7834 = vmatprep.subr.mxu0 0.0
        %7835 = vmatpush1.msra.mxu0 0.0
        %7836 = vmatprep.subr.mxu0 0.0
        %7837 = vmatpush1.msra.mxu0 0.0
        %7838 = vmatprep.subr.mxu0 0.0
        %7839 = vmatpush1.msra.mxu0 0.0
        %7840 = vmatprep.subr.mxu0 0.0
        %7841 = vmatpush1.msra.mxu0 0.0
        %7842 = vmatprep.subr.mxu0 0.0
        %7843 = vmatpush1.msra.mxu0 0.0
        %7844 = vmatprep.subr.mxu0 0.0
        %7845 = vmatpush1.msra.mxu0 0.0
        %7846 = vmatprep.subr.mxu0 0.0
        %7847 = vmatpush1.msra.mxu0 0.0
        %7848 = vmatprep.subr.mxu0 0.0
        %7849 = vmatpush1.msra.mxu0 0.0
        %7850 = vmatprep.subr.mxu0 0.0
        %7851 = vmatpush1.msra.mxu0 0.0
        %7852 = vmatprep.subr.mxu0 0.0
        %7853 = vmatpush1.msra.mxu0 0.0
        %7854 = vmatprep.subr.mxu0 0.0
        %7855 = vmatpush1.msra.mxu0 0.0
        %7856 = vmatprep.subr.mxu0 0.0
        %7857 = vmatpush1.msra.mxu0 0.0
        %7858 = vmatprep.subr.mxu0 0.0
        %7859 = vmatpush1.msra.mxu0 0.0
        %7860 = vmatprep.subr.mxu0 0.0
        %7861 = vmatpush1.msra.mxu0 0.0
        %7862 = vmatprep.subr.mxu0 0.0
        %7863 = vmatpush1.msra.mxu0 0.0
        %7864 = vmatprep.mubr.f32.mxu0 0.0
        %v7865 = vand.u32 %v7601, 4294901760
        %v7866 = vsub.f32 %v7601, %v7865
        %7867 = vmatmul.mubr.f32.gmra.mrb[0].mxu0 %v7866
        %v7868 = vpop.f32.mrb[0].mxu0
        %v7869 = vadd.f32 %v7783, %v7868
        %v7870 = vpop.f32.mrb[0].mxu0
        %7871 = vmatprep.mubr.f32.mxu0 0.0
        %v7872 = vand.u32 %v7604, 4294901760
        %v7873 = vsub.f32 %v7604, %v7872
        %7874 = vmatmul.mubr.f32.gmra.mrb[0].mxu0 %v7873
        %v7875 = vpop.f32.mrb[0].mxu0
        %v7876 = vadd.f32 %v7789, %v7875
        %v7877 = vpop.f32.mrb[0].mxu0
        %7878 = vdwg.mxu0
        %7879 = vmatprep.subr.mxu0 0.0
        %v7880 = vand.u32 %v3315, 4294901760
        %7881 = vmatpush1.msra.mxu0 %v7880
        %7882 = vmatprep.subr.mxu0 0.0
        %v7883 = vand.u32 %v3316, 4294901760
        %7884 = vmatpush1.msra.mxu0 %v7883
        %7885 = vmatprep.subr.mxu0 0.0
        %v7886 = vand.u32 %v3317, 4294901760
        %7887 = vmatpush1.msra.mxu0 %v7886
        %7888 = vmatprep.subr.mxu0 0.0
        %v7889 = vand.u32 %v3318, 4294901760
        %7890 = vmatpush1.msra.mxu0 %v7889
        %7891 = vmatprep.subr.mxu0 0.0
        %7892 = vmatpush1.msra.mxu0 0.0
        %7893 = vmatprep.subr.mxu0 0.0
        %7894 = vmatpush1.msra.mxu0 0.0
        %7895 = vmatprep.subr.mxu0 0.0
        %7896 = vmatpush1.msra.mxu0 0.0
        %7897 = vmatprep.subr.mxu0 0.0
        %7898 = vmatpush1.msra.mxu0 0.0
        %7899 = vmatprep.subr.mxu0 0.0
        %7900 = vmatpush1.msra.mxu0 0.0
        %7901 = vmatprep.subr.mxu0 0.0
        %7902 = vmatpush1.msra.mxu0 0.0
        %7903 = vmatprep.subr.mxu0 0.0
        %7904 = vmatpush1.msra.mxu0 0.0
        %7905 = vmatprep.subr.mxu0 0.0
        %7906 = vmatpush1.msra.mxu0 0.0
        %7907 = vmatprep.subr.mxu0 0.0
        %7908 = vmatpush1.msra.mxu0 0.0
        %7909 = vmatprep.subr.mxu0 0.0
        %7910 = vmatpush1.msra.mxu0 0.0
        %7911 = vmatprep.subr.mxu0 0.0
        %7912 = vmatpush1.msra.mxu0 0.0
        %7913 = vmatprep.subr.mxu0 0.0
        %7914 = vmatpush1.msra.mxu0 0.0
        %7915 = vmatprep.subr.mxu0 0.0
        %7916 = vmatpush1.msra.mxu0 0.0
        %7917 = vmatprep.subr.mxu0 0.0
        %7918 = vmatpush1.msra.mxu0 0.0
        %7919 = vmatprep.subr.mxu0 0.0
        %7920 = vmatpush1.msra.mxu0 0.0
        %7921 = vmatprep.subr.mxu0 0.0
        %7922 = vmatpush1.msra.mxu0 0.0
        %7923 = vmatprep.subr.mxu0 0.0
        %7924 = vmatpush1.msra.mxu0 0.0
        %7925 = vmatprep.subr.mxu0 0.0
        %7926 = vmatpush1.msra.mxu0 0.0
        %7927 = vmatprep.subr.mxu0 0.0
        %7928 = vmatpush1.msra.mxu0 0.0
        %7929 = vmatprep.subr.mxu0 0.0
        %7930 = vmatpush1.msra.mxu0 0.0
        %7931 = vmatprep.subr.mxu0 0.0
        %7932 = vmatpush1.msra.mxu0 0.0
        %7933 = vmatprep.subr.mxu0 0.0
        %7934 = vmatpush1.msra.mxu0 0.0
        %7935 = vmatprep.subr.mxu0 0.0
        %7936 = vmatpush1.msra.mxu0 0.0
        %7937 = vmatprep.subr.mxu0 0.0
        %7938 = vmatpush1.msra.mxu0 0.0
        %7939 = vmatprep.subr.mxu0 0.0
        %7940 = vmatpush1.msra.mxu0 0.0
        %7941 = vmatprep.subr.mxu0 0.0
        %7942 = vmatpush1.msra.mxu0 0.0
        %7943 = vmatprep.subr.mxu0 0.0
        %7944 = vmatpush1.msra.mxu0 0.0
        %7945 = vmatprep.subr.mxu0 0.0
        %7946 = vmatpush1.msra.mxu0 0.0
        %7947 = vmatprep.mubr.f32.mxu0 0.0
        %v7948 = vand.u32 %v7601, 4294901760
        %v7949 = vsub.f32 %v7601, %v7948
        %v7950 = vand.u32 %v7949, 4294901760
        %7951 = vmatmul.mubr.f32.gmra.mrb[0].mxu0 %v7950
        %v7952 = vpop.f32.mrb[0].mxu0
        %v7953 = vadd.f32 %v7869, %v7952
        %v7954 = vpop.f32.mrb[0].mxu0
        %7955 = vmatprep.mubr.f32.mxu0 0.0
        %v7956 = vand.u32 %v7604, 4294901760
        %v7957 = vsub.f32 %v7604, %v7956
        %v7958 = vand.u32 %v7957, 4294901760
        %7959 = vmatmul.mubr.f32.gmra.mrb[0].mxu0 %v7958
        %v7960 = vpop.f32.mrb[0].mxu0
        %v7961 = vadd.f32 %v7876, %v7960
        %v7962 = vpop.f32.mrb[0].mxu0
        %7963 = vdwg.mxu0
        %7964 = vmatprep.subr.mxu0 0.0
        %v7965 = vand.u32 %v3315, 4294901760
        %v7966 = vsub.f32 %v3315, %v7965
        %v7967 = vand.u32 %v7966, 4294901760
        %7968 = vmatpush1.msra.mxu0 %v7967
        %7969 = vmatprep.subr.mxu0 0.0
        %v7970 = vand.u32 %v3316, 4294901760
        %v7971 = vsub.f32 %v3316, %v7970
        %v7972 = vand.u32 %v7971, 4294901760
        %7973 = vmatpush1.msra.mxu0 %v7972
        %7974 = vmatprep.subr.mxu0 0.0
        %v7975 = vand.u32 %v3317, 4294901760
        %v7976 = vsub.f32 %v3317, %v7975
        %v7977 = vand.u32 %v7976, 4294901760
        %7978 = vmatpush1.msra.mxu0 %v7977
        %7979 = vmatprep.subr.mxu0 0.0
        %v7980 = vand.u32 %v3318, 4294901760
        %v7981 = vsub.f32 %v3318, %v7980
        %v7982 = vand.u32 %v7981, 4294901760
        %7983 = vmatpush1.msra.mxu0 %v7982
        %7984 = vmatprep.subr.mxu0 0.0
        %7985 = vmatpush1.msra.mxu0 0.0
        %7986 = vmatprep.subr.mxu0 0.0
        %7987 = vmatpush1.msra.mxu0 0.0
        %7988 = vmatprep.subr.mxu0 0.0
        %7989 = vmatpush1.msra.mxu0 0.0
        %7990 = vmatprep.subr.mxu0 0.0
        %7991 = vmatpush1.msra.mxu0 0.0
        %7992 = vmatprep.subr.mxu0 0.0
        %7993 = vmatpush1.msra.mxu0 0.0
        %7994 = vmatprep.subr.mxu0 0.0
        %7995 = vmatpush1.msra.mxu0 0.0
        %7996 = vmatprep.subr.mxu0 0.0
        %7997 = vmatpush1.msra.mxu0 0.0
        %7998 = vmatprep.subr.mxu0 0.0
        %7999 = vmatpush1.msra.mxu0 0.0
        %8000 = vmatprep.subr.mxu0 0.0
        %8001 = vmatpush1.msra.mxu0 0.0
        %8002 = vmatprep.subr.mxu0 0.0
        %8003 = vmatpush1.msra.mxu0 0.0
        %8004 = vmatprep.subr.mxu0 0.0
        %8005 = vmatpush1.msra.mxu0 0.0
        %8006 = vmatprep.subr.mxu0 0.0
        %8007 = vmatpush1.msra.mxu0 0.0
        %8008 = vmatprep.subr.mxu0 0.0
        %8009 = vmatpush1.msra.mxu0 0.0
        %8010 = vmatprep.subr.mxu0 0.0
        %8011 = vmatpush1.msra.mxu0 0.0
        %8012 = vmatprep.subr.mxu0 0.0
        %8013 = vmatpush1.msra.mxu0 0.0
        %8014 = vmatprep.subr.mxu0 0.0
        %8015 = vmatpush1.msra.mxu0 0.0
        %8016 = vmatprep.subr.mxu0 0.0
        %8017 = vmatpush1.msra.mxu0 0.0
        %8018 = vmatprep.subr.mxu0 0.0
        %8019 = vmatpush1.msra.mxu0 0.0
        %8020 = vmatprep.subr.mxu0 0.0
        %8021 = vmatpush1.msra.mxu0 0.0
        %8022 = vmatprep.subr.mxu0 0.0
        %8023 = vmatpush1.msra.mxu0 0.0
        %8024 = vmatprep.subr.mxu0 0.0
        %8025 = vmatpush1.msra.mxu0 0.0
        %8026 = vmatprep.subr.mxu0 0.0
        %8027 = vmatpush1.msra.mxu0 0.0
        %8028 = vmatprep.subr.mxu0 0.0
        %8029 = vmatpush1.msra.mxu0 0.0
        %8030 = vmatprep.subr.mxu0 0.0
        %8031 = vmatpush1.msra.mxu0 0.0
        %8032 = vmatprep.subr.mxu0 0.0
        %8033 = vmatpush1.msra.mxu0 0.0
        %8034 = vmatprep.subr.mxu0 0.0
        %8035 = vmatpush1.msra.mxu0 0.0
        %8036 = vmatprep.subr.mxu0 0.0
        %8037 = vmatpush1.msra.mxu0 0.0
        %8038 = vmatprep.subr.mxu0 0.0
        %8039 = vmatpush1.msra.mxu0 0.0
        %8040 = vmatprep.mubr.f32.mxu0 0.0
        %v8041 = vand.u32 %v7601, 4294901760
        %8042 = vmatmul.mubr.f32.gmra.mrb[0].mxu0 %v8041
        %v8043 = vpop.f32.mrb[0].mxu0
        %v8044 = vadd.f32 %v7953, %v8043
        %v8045 = vpop.f32.mrb[0].mxu0
        %8046 = vmatprep.mubr.f32.mxu0 0.0
        %v8047 = vand.u32 %v7604, 4294901760
        %8048 = vmatmul.mubr.f32.gmra.mrb[0].mxu0 %v8047
        %v8049 = vpop.f32.mrb[0].mxu0
        %v8050 = vadd.f32 %v7961, %v8049
        %v8051 = vpop.f32.mrb[0].mxu0
        %8052 = vdwg.mxu0
        %8053 = vmatprep.subr.mxu0 0.0
        %v8054 = vand.u32 %v3315, 4294901760
        %8055 = vmatpush1.msra.mxu0 %v8054
        %8056 = vmatprep.subr.mxu0 0.0
        %v8057 = vand.u32 %v3316, 4294901760
        %8058 = vmatpush1.msra.mxu0 %v8057
        %8059 = vmatprep.subr.mxu0 0.0
        %v8060 = vand.u32 %v3317, 4294901760
        %8061 = vmatpush1.msra.mxu0 %v8060
        %8062 = vmatprep.subr.mxu0 0.0
        %v8063 = vand.u32 %v3318, 4294901760
        %8064 = vmatpush1.msra.mxu0 %v8063
        %8065 = vmatprep.subr.mxu0 0.0
        %8066 = vmatpush1.msra.mxu0 0.0
        %8067 = vmatprep.subr.mxu0 0.0
        %8068 = vmatpush1.msra.mxu0 0.0
        %8069 = vmatprep.subr.mxu0 0.0
        %8070 = vmatpush1.msra.mxu0 0.0
        %8071 = vmatprep.subr.mxu0 0.0
        %8072 = vmatpush1.msra.mxu0 0.0
        %8073 = vmatprep.subr.mxu0 0.0
        %8074 = vmatpush1.msra.mxu0 0.0
        %8075 = vmatprep.subr.mxu0 0.0
        %8076 = vmatpush1.msra.mxu0 0.0
        %8077 = vmatprep.subr.mxu0 0.0
        %8078 = vmatpush1.msra.mxu0 0.0
        %8079 = vmatprep.subr.mxu0 0.0
        %8080 = vmatpush1.msra.mxu0 0.0
        %8081 = vmatprep.subr.mxu0 0.0
        %8082 = vmatpush1.msra.mxu0 0.0
        %8083 = vmatprep.subr.mxu0 0.0
        %8084 = vmatpush1.msra.mxu0 0.0
        %8085 = vmatprep.subr.mxu0 0.0
        %8086 = vmatpush1.msra.mxu0 0.0
        %8087 = vmatprep.subr.mxu0 0.0
        %8088 = vmatpush1.msra.mxu0 0.0
        %8089 = vmatprep.subr.mxu0 0.0
        %8090 = vmatpush1.msra.mxu0 0.0
        %8091 = vmatprep.subr.mxu0 0.0
        %8092 = vmatpush1.msra.mxu0 0.0
        %8093 = vmatprep.subr.mxu0 0.0
        %8094 = vmatpush1.msra.mxu0 0.0
        %8095 = vmatprep.subr.mxu0 0.0
        %8096 = vmatpush1.msra.mxu0 0.0
        %8097 = vmatprep.subr.mxu0 0.0
        %8098 = vmatpush1.msra.mxu0 0.0
        %8099 = vmatprep.subr.mxu0 0.0
        %8100 = vmatpush1.msra.mxu0 0.0
        %8101 = vmatprep.subr.mxu0 0.0
        %8102 = vmatpush1.msra.mxu0 0.0
        %8103 = vmatprep.subr.mxu0 0.0
        %8104 = vmatpush1.msra.mxu0 0.0
        %8105 = vmatprep.subr.mxu0 0.0
        %8106 = vmatpush1.msra.mxu0 0.0
        %8107 = vmatprep.subr.mxu0 0.0
        %8108 = vmatpush1.msra.mxu0 0.0
        %8109 = vmatprep.subr.mxu0 0.0
        %8110 = vmatpush1.msra.mxu0 0.0
        %8111 = vmatprep.subr.mxu0 0.0
        %8112 = vmatpush1.msra.mxu0 0.0
        %8113 = vmatprep.subr.mxu0 0.0
        %8114 = vmatpush1.msra.mxu0 0.0
        %8115 = vmatprep.subr.mxu0 0.0
        %8116 = vmatpush1.msra.mxu0 0.0
        %8117 = vmatprep.subr.mxu0 0.0
        %8118 = vmatpush1.msra.mxu0 0.0
        %8119 = vmatprep.subr.mxu0 0.0
        %8120 = vmatpush1.msra.mxu0 0.0
        %8121 = vmatprep.mubr.f32.mxu0 0.0
        %v8122 = vand.u32 %v7601, 4294901760
        %8123 = vmatmul.mubr.f32.gmra.mrb[0].mxu0 %v8122
        %v8124 = vpop.f32.mrb[0].mxu0
        %v8125 = vadd.f32 %v8044, %v8124
        %v8126 = vpop.f32.mrb[0].mxu0
        %8127 = vmatprep.mubr.f32.mxu0 0.0
        %v8128 = vand.u32 %v7604, 4294901760
        %8129 = vmatmul.mubr.f32.gmra.mrb[0].mxu0 %v8128
        %v8130 = vpop.f32.mrb[0].mxu0
        %v8131 = vadd.f32 %v8050, %v8130
        %v8132 = vpop.f32.mrb[0].mxu0
        %8133 = vdwg.mxu0
        %v8134 = vmax.f32 %v8125, 0.0
        %v8135 = vmax.f32 %v8131, 0.0
        %v8137 = vsel %vm1697, %v8134, 0
        %v8140 = vsel %vm1697, %v8135, 0
        %8142 = vmatprep.subr.mxu0 0.0
        %v8143 = vand.u32 %v1682, 4294901760
        %8144 = vmatpush1.msra.mxu0 %v8143
        %8145 = vmatprep.subr.mxu0 0.0
        %v8146 = vand.u32 %v1683, 4294901760
        %8147 = vmatpush1.msra.mxu0 %v8146
        %8148 = vmatprep.subr.mxu0 0.0
        %v8149 = vand.u32 %v1684, 4294901760
        %8150 = vmatpush1.msra.mxu0 %v8149
        %8151 = vmatprep.subr.mxu0 0.0
        %v8152 = vand.u32 %v1685, 4294901760
        %8153 = vmatpush1.msra.mxu0 %v8152
        %8154 = vmatprep.subr.mxu0 0.0
        %v8155 = vand.u32 %v1686, 4294901760
        %8156 = vmatpush1.msra.mxu0 %v8155
        %8157 = vmatprep.subr.mxu0 0.0
        %v8158 = vand.u32 %v1687, 4294901760
        %8159 = vmatpush1.msra.mxu0 %v8158
        %8160 = vmatprep.subr.mxu0 0.0
        %v8161 = vand.u32 %v1688, 4294901760
        %8162 = vmatpush1.msra.mxu0 %v8161
        %8163 = vmatprep.subr.mxu0 0.0
        %v8164 = vand.u32 %v1689, 4294901760
        %8165 = vmatpush1.msra.mxu0 %v8164
        %8166 = vmatprep.subr.mxu0 0.0
        %8167 = vmatpush1.msra.mxu0 0.0
        %8168 = vmatprep.subr.mxu0 0.0
        %8169 = vmatpush1.msra.mxu0 0.0
        %8170 = vmatprep.subr.mxu0 0.0
        %8171 = vmatpush1.msra.mxu0 0.0
        %8172 = vmatprep.subr.mxu0 0.0
        %8173 = vmatpush1.msra.mxu0 0.0
        %8174 = vmatprep.subr.mxu0 0.0
        %8175 = vmatpush1.msra.mxu0 0.0
        %8176 = vmatprep.subr.mxu0 0.0
        %8177 = vmatpush1.msra.mxu0 0.0
        %8178 = vmatprep.subr.mxu0 0.0
        %8179 = vmatpush1.msra.mxu0 0.0
        %8180 = vmatprep.subr.mxu0 0.0
        %8181 = vmatpush1.msra.mxu0 0.0
        %8182 = vmatprep.subr.mxu0 0.0
        %8183 = vmatpush1.msra.mxu0 0.0
        %8184 = vmatprep.subr.mxu0 0.0
        %8185 = vmatpush1.msra.mxu0 0.0
        %8186 = vmatprep.subr.mxu0 0.0
        %8187 = vmatpush1.msra.mxu0 0.0
        %8188 = vmatprep.subr.mxu0 0.0
        %8189 = vmatpush1.msra.mxu0 0.0
        %8190 = vmatprep.subr.mxu0 0.0
        %8191 = vmatpush1.msra.mxu0 0.0
        %8192 = vmatprep.subr.mxu0 0.0
        %8193 = vmatpush1.msra.mxu0 0.0
        %8194 = vmatprep.subr.mxu0 0.0
        %8195 = vmatpush1.msra.mxu0 0.0
        %8196 = vmatprep.subr.mxu0 0.0
        %8197 = vmatpush1.msra.mxu0 0.0
        %8198 = vmatprep.subr.mxu0 0.0
        %8199 = vmatpush1.msra.mxu0 0.0
        %8200 = vmatprep.subr.mxu0 0.0
        %8201 = vmatpush1.msra.mxu0 0.0
        %8202 = vmatprep.subr.mxu0 0.0
        %8203 = vmatpush1.msra.mxu0 0.0
        %8204 = vmatprep.subr.mxu0 0.0
        %8205 = vmatpush1.msra.mxu0 0.0
        %8206 = vmatprep.subr.mxu0 0.0
        %8207 = vmatpush1.msra.mxu0 0.0
        %8208 = vmatprep.subr.mxu0 0.0
        %8209 = vmatpush1.msra.mxu0 0.0
        %8210 = vmatprep.subr.mxu0 0.0
        %8211 = vmatpush1.msra.mxu0 0.0
        %8212 = vmatprep.subr.mxu0 0.0
        %8213 = vmatpush1.msra.mxu0 0.0
        %8214 = vmatprep.mubr.f32.mxu0 0.0
        %v8215 = vand.u32 %v8137, 4294901760
        %v8216 = vsub.f32 %v8137, %v8215
        %v8217 = vand.u32 %v8216, 4294901760
        %v8218 = vsub.f32 %v8216, %v8217
        %v8219 = vand.u32 %v8218, 4294901760
        %8220 = vmatmul.mubr.f32.gmra.mrb[0].mxu0 %v8219
        %v8221 = vpop.f32.mrb[0].mxu0
        %v8222 = vadd.f32 %v1695, %v8221
        %v8223 = vpop.f32.mrb[0].mxu0
        %8224 = vmatprep.mubr.f32.mxu0 0.0
        %v8225 = vand.u32 %v8140, 4294901760
        %v8226 = vsub.f32 %v8140, %v8225
        %v8227 = vand.u32 %v8226, 4294901760
        %v8228 = vsub.f32 %v8226, %v8227
        %v8229 = vand.u32 %v8228, 4294901760
        %8230 = vmatmul.mubr.f32.gmra.mrb[0].mxu0 %v8229
        %v8231 = vpop.f32.mrb[0].mxu0
        %v8232 = vadd.f32 %v1695, %v8231
        %v8233 = vpop.f32.mrb[0].mxu0
        %8234 = vdwg.mxu0
        %8235 = vmatprep.subr.mxu0 0.0
        %v8236 = vand.u32 %v1682, 4294901760
        %v8237 = vsub.f32 %v1682, %v8236
        %v8238 = vand.u32 %v8237, 4294901760
        %v8239 = vsub.f32 %v8237, %v8238
        %v8240 = vand.u32 %v8239, 4294901760
        %8241 = vmatpush1.msra.mxu0 %v8240
        %8242 = vmatprep.subr.mxu0 0.0
        %v8243 = vand.u32 %v1683, 4294901760
        %v8244 = vsub.f32 %v1683, %v8243
        %v8245 = vand.u32 %v8244, 4294901760
        %v8246 = vsub.f32 %v8244, %v8245
        %v8247 = vand.u32 %v8246, 4294901760
        %8248 = vmatpush1.msra.mxu0 %v8247
        %8249 = vmatprep.subr.mxu0 0.0
        %v8250 = vand.u32 %v1684, 4294901760
        %v8251 = vsub.f32 %v1684, %v8250
        %v8252 = vand.u32 %v8251, 4294901760
        %v8253 = vsub.f32 %v8251, %v8252
        %v8254 = vand.u32 %v8253, 4294901760
        %8255 = vmatpush1.msra.mxu0 %v8254
        %8256 = vmatprep.subr.mxu0 0.0
        %v8257 = vand.u32 %v1685, 4294901760
        %v8258 = vsub.f32 %v1685, %v8257
        %v8259 = vand.u32 %v8258, 4294901760
        %v8260 = vsub.f32 %v8258, %v8259
        %v8261 = vand.u32 %v8260, 4294901760
        %8262 = vmatpush1.msra.mxu0 %v8261
        %8263 = vmatprep.subr.mxu0 0.0
        %v8264 = vand.u32 %v1686, 4294901760
        %v8265 = vsub.f32 %v1686, %v8264
        %v8266 = vand.u32 %v8265, 4294901760
        %v8267 = vsub.f32 %v8265, %v8266
        %v8268 = vand.u32 %v8267, 4294901760
        %8269 = vmatpush1.msra.mxu0 %v8268
        %8270 = vmatprep.subr.mxu0 0.0
        %v8271 = vand.u32 %v1687, 4294901760
        %v8272 = vsub.f32 %v1687, %v8271
        %v8273 = vand.u32 %v8272, 4294901760
        %v8274 = vsub.f32 %v8272, %v8273
        %v8275 = vand.u32 %v8274, 4294901760
        %8276 = vmatpush1.msra.mxu0 %v8275
        %8277 = vmatprep.subr.mxu0 0.0
        %v8278 = vand.u32 %v1688, 4294901760
        %v8279 = vsub.f32 %v1688, %v8278
        %v8280 = vand.u32 %v8279, 4294901760
        %v8281 = vsub.f32 %v8279, %v8280
        %v8282 = vand.u32 %v8281, 4294901760
        %8283 = vmatpush1.msra.mxu0 %v8282
        %8284 = vmatprep.subr.mxu0 0.0
        %v8285 = vand.u32 %v1689, 4294901760
        %v8286 = vsub.f32 %v1689, %v8285
        %v8287 = vand.u32 %v8286, 4294901760
        %v8288 = vsub.f32 %v8286, %v8287
        %v8289 = vand.u32 %v8288, 4294901760
        %8290 = vmatpush1.msra.mxu0 %v8289
        %8291 = vmatprep.subr.mxu0 0.0
        %8292 = vmatpush1.msra.mxu0 0.0
        %8293 = vmatprep.subr.mxu0 0.0
        %8294 = vmatpush1.msra.mxu0 0.0
        %8295 = vmatprep.subr.mxu0 0.0
        %8296 = vmatpush1.msra.mxu0 0.0
        %8297 = vmatprep.subr.mxu0 0.0
        %8298 = vmatpush1.msra.mxu0 0.0
        %8299 = vmatprep.subr.mxu0 0.0
        %8300 = vmatpush1.msra.mxu0 0.0
        %8301 = vmatprep.subr.mxu0 0.0
        %8302 = vmatpush1.msra.mxu0 0.0
        %8303 = vmatprep.subr.mxu0 0.0
        %8304 = vmatpush1.msra.mxu0 0.0
        %8305 = vmatprep.subr.mxu0 0.0
        %8306 = vmatpush1.msra.mxu0 0.0
        %8307 = vmatprep.subr.mxu0 0.0
        %8308 = vmatpush1.msra.mxu0 0.0
        %8309 = vmatprep.subr.mxu0 0.0
        %8310 = vmatpush1.msra.mxu0 0.0
        %8311 = vmatprep.subr.mxu0 0.0
        %8312 = vmatpush1.msra.mxu0 0.0
        %8313 = vmatprep.subr.mxu0 0.0
        %8314 = vmatpush1.msra.mxu0 0.0
        %8315 = vmatprep.subr.mxu0 0.0
        %8316 = vmatpush1.msra.mxu0 0.0
        %8317 = vmatprep.subr.mxu0 0.0
        %8318 = vmatpush1.msra.mxu0 0.0
        %8319 = vmatprep.subr.mxu0 0.0
        %8320 = vmatpush1.msra.mxu0 0.0
        %8321 = vmatprep.subr.mxu0 0.0
        %8322 = vmatpush1.msra.mxu0 0.0
        %8323 = vmatprep.subr.mxu0 0.0
        %8324 = vmatpush1.msra.mxu0 0.0
        %8325 = vmatprep.subr.mxu0 0.0
        %8326 = vmatpush1.msra.mxu0 0.0
        %8327 = vmatprep.subr.mxu0 0.0
        %8328 = vmatpush1.msra.mxu0 0.0
        %8329 = vmatprep.subr.mxu0 0.0
        %8330 = vmatpush1.msra.mxu0 0.0
        %8331 = vmatprep.subr.mxu0 0.0
        %8332 = vmatpush1.msra.mxu0 0.0
        %8333 = vmatprep.subr.mxu0 0.0
        %8334 = vmatpush1.msra.mxu0 0.0
        %8335 = vmatprep.subr.mxu0 0.0
        %8336 = vmatpush1.msra.mxu0 0.0
        %8337 = vmatprep.subr.mxu0 0.0
        %8338 = vmatpush1.msra.mxu0 0.0
        %8339 = vmatprep.mubr.f32.mxu0 0.0
        %v8340 = vand.u32 %v8137, 4294901760
        %8341 = vmatmul.mubr.f32.gmra.mrb[0].mxu0 %v8340
        %v8342 = vpop.f32.mrb[0].mxu0
        %v8343 = vadd.f32 %v8222, %v8342
        %v8344 = vpop.f32.mrb[0].mxu0
        %8345 = vmatprep.mubr.f32.mxu0 0.0
        %v8346 = vand.u32 %v8140, 4294901760
        %8347 = vmatmul.mubr.f32.gmra.mrb[0].mxu0 %v8346
        %v8348 = vpop.f32.mrb[0].mxu0
        %v8349 = vadd.f32 %v8232, %v8348
        %v8350 = vpop.f32.mrb[0].mxu0
        %8351 = vdwg.mxu0
        %8352 = vmatprep.subr.mxu0 0.0
        %v8353 = vand.u32 %v1682, 4294901760
        %v8354 = vsub.f32 %v1682, %v8353
        %8355 = vmatpush1.msra.mxu0 %v8354
        %8356 = vmatprep.subr.mxu0 0.0
        %v8357 = vand.u32 %v1683, 4294901760
        %v8358 = vsub.f32 %v1683, %v8357
        %8359 = vmatpush1.msra.mxu0 %v8358
        %8360 = vmatprep.subr.mxu0 0.0
        %v8361 = vand.u32 %v1684, 4294901760
        %v8362 = vsub.f32 %v1684, %v8361
        %8363 = vmatpush1.msra.mxu0 %v8362
        %8364 = vmatprep.subr.mxu0 0.0
        %v8365 = vand.u32 %v1685, 4294901760
        %v8366 = vsub.f32 %v1685, %v8365
        %8367 = vmatpush1.msra.mxu0 %v8366
        %8368 = vmatprep.subr.mxu0 0.0
        %v8369 = vand.u32 %v1686, 4294901760
        %v8370 = vsub.f32 %v1686, %v8369
        %8371 = vmatpush1.msra.mxu0 %v8370
        %8372 = vmatprep.subr.mxu0 0.0
        %v8373 = vand.u32 %v1687, 4294901760
        %v8374 = vsub.f32 %v1687, %v8373
        %8375 = vmatpush1.msra.mxu0 %v8374
        %8376 = vmatprep.subr.mxu0 0.0
        %v8377 = vand.u32 %v1688, 4294901760
        %v8378 = vsub.f32 %v1688, %v8377
        %8379 = vmatpush1.msra.mxu0 %v8378
        %8380 = vmatprep.subr.mxu0 0.0
        %v8381 = vand.u32 %v1689, 4294901760
        %v8382 = vsub.f32 %v1689, %v8381
        %8383 = vmatpush1.msra.mxu0 %v8382
        %8384 = vmatprep.subr.mxu0 0.0
        %8385 = vmatpush1.msra.mxu0 0.0
        %8386 = vmatprep.subr.mxu0 0.0
        %8387 = vmatpush1.msra.mxu0 0.0
        %8388 = vmatprep.subr.mxu0 0.0
        %8389 = vmatpush1.msra.mxu0 0.0
        %8390 = vmatprep.subr.mxu0 0.0
        %8391 = vmatpush1.msra.mxu0 0.0
        %8392 = vmatprep.subr.mxu0 0.0
        %8393 = vmatpush1.msra.mxu0 0.0
        %8394 = vmatprep.subr.mxu0 0.0
        %8395 = vmatpush1.msra.mxu0 0.0
        %8396 = vmatprep.subr.mxu0 0.0
        %8397 = vmatpush1.msra.mxu0 0.0
        %8398 = vmatprep.subr.mxu0 0.0
        %8399 = vmatpush1.msra.mxu0 0.0
        %8400 = vmatprep.subr.mxu0 0.0
        %8401 = vmatpush1.msra.mxu0 0.0
        %8402 = vmatprep.subr.mxu0 0.0
        %8403 = vmatpush1.msra.mxu0 0.0
        %8404 = vmatprep.subr.mxu0 0.0
        %8405 = vmatpush1.msra.mxu0 0.0
        %8406 = vmatprep.subr.mxu0 0.0
        %8407 = vmatpush1.msra.mxu0 0.0
        %8408 = vmatprep.subr.mxu0 0.0
        %8409 = vmatpush1.msra.mxu0 0.0
        %8410 = vmatprep.subr.mxu0 0.0
        %8411 = vmatpush1.msra.mxu0 0.0
        %8412 = vmatprep.subr.mxu0 0.0
        %8413 = vmatpush1.msra.mxu0 0.0
        %8414 = vmatprep.subr.mxu0 0.0
        %8415 = vmatpush1.msra.mxu0 0.0
        %8416 = vmatprep.subr.mxu0 0.0
        %8417 = vmatpush1.msra.mxu0 0.0
        %8418 = vmatprep.subr.mxu0 0.0
        %8419 = vmatpush1.msra.mxu0 0.0
        %8420 = vmatprep.subr.mxu0 0.0
        %8421 = vmatpush1.msra.mxu0 0.0
        %8422 = vmatprep.subr.mxu0 0.0
        %8423 = vmatpush1.msra.mxu0 0.0
        %8424 = vmatprep.subr.mxu0 0.0
        %8425 = vmatpush1.msra.mxu0 0.0
        %8426 = vmatprep.subr.mxu0 0.0
        %8427 = vmatpush1.msra.mxu0 0.0
        %8428 = vmatprep.subr.mxu0 0.0
        %8429 = vmatpush1.msra.mxu0 0.0
        %8430 = vmatprep.subr.mxu0 0.0
        %8431 = vmatpush1.msra.mxu0 0.0
        %8432 = vmatprep.mubr.f32.mxu0 0.0
        %v8433 = vand.u32 %v8137, 4294901760
        %v8434 = vsub.f32 %v8137, %v8433
        %8435 = vmatmul.mubr.f32.gmra.mrb[0].mxu0 %v8434
        %v8436 = vpop.f32.mrb[0].mxu0
        %v8437 = vadd.f32 %v8343, %v8436
        %v8438 = vpop.f32.mrb[0].mxu0
        %8439 = vmatprep.mubr.f32.mxu0 0.0
        %v8440 = vand.u32 %v8140, 4294901760
        %v8441 = vsub.f32 %v8140, %v8440
        %8442 = vmatmul.mubr.f32.gmra.mrb[0].mxu0 %v8441
        %v8443 = vpop.f32.mrb[0].mxu0
        %v8444 = vadd.f32 %v8349, %v8443
        %v8445 = vpop.f32.mrb[0].mxu0
        %8446 = vdwg.mxu0
        %8447 = vmatprep.subr.mxu0 0.0
        %v8448 = vand.u32 %v1682, 4294901760
        %8449 = vmatpush1.msra.mxu0 %v8448
        %8450 = vmatprep.subr.mxu0 0.0
        %v8451 = vand.u32 %v1683, 4294901760
        %8452 = vmatpush1.msra.mxu0 %v8451
        %8453 = vmatprep.subr.mxu0 0.0
        %v8454 = vand.u32 %v1684, 4294901760
        %8455 = vmatpush1.msra.mxu0 %v8454
        %8456 = vmatprep.subr.mxu0 0.0
        %v8457 = vand.u32 %v1685, 4294901760
        %8458 = vmatpush1.msra.mxu0 %v8457
        %8459 = vmatprep.subr.mxu0 0.0
        %v8460 = vand.u32 %v1686, 4294901760
        %8461 = vmatpush1.msra.mxu0 %v8460
        %8462 = vmatprep.subr.mxu0 0.0
        %v8463 = vand.u32 %v1687, 4294901760
        %8464 = vmatpush1.msra.mxu0 %v8463
        %8465 = vmatprep.subr.mxu0 0.0
        %v8466 = vand.u32 %v1688, 4294901760
        %8467 = vmatpush1.msra.mxu0 %v8466
        %8468 = vmatprep.subr.mxu0 0.0
        %v8469 = vand.u32 %v1689, 4294901760
        %8470 = vmatpush1.msra.mxu0 %v8469
        %8471 = vmatprep.subr.mxu0 0.0
        %8472 = vmatpush1.msra.mxu0 0.0
        %8473 = vmatprep.subr.mxu0 0.0
        %8474 = vmatpush1.msra.mxu0 0.0
        %8475 = vmatprep.subr.mxu0 0.0
        %8476 = vmatpush1.msra.mxu0 0.0
        %8477 = vmatprep.subr.mxu0 0.0
        %8478 = vmatpush1.msra.mxu0 0.0
        %8479 = vmatprep.subr.mxu0 0.0
        %8480 = vmatpush1.msra.mxu0 0.0
        %8481 = vmatprep.subr.mxu0 0.0
        %8482 = vmatpush1.msra.mxu0 0.0
        %8483 = vmatprep.subr.mxu0 0.0
        %8484 = vmatpush1.msra.mxu0 0.0
        %8485 = vmatprep.subr.mxu0 0.0
        %8486 = vmatpush1.msra.mxu0 0.0
        %8487 = vmatprep.subr.mxu0 0.0
        %8488 = vmatpush1.msra.mxu0 0.0
        %8489 = vmatprep.subr.mxu0 0.0
        %8490 = vmatpush1.msra.mxu0 0.0
        %8491 = vmatprep.subr.mxu0 0.0
        %8492 = vmatpush1.msra.mxu0 0.0
        %8493 = vmatprep.subr.mxu0 0.0
        %8494 = vmatpush1.msra.mxu0 0.0
        %8495 = vmatprep.subr.mxu0 0.0
        %8496 = vmatpush1.msra.mxu0 0.0
        %8497 = vmatprep.subr.mxu0 0.0
        %8498 = vmatpush1.msra.mxu0 0.0
        %8499 = vmatprep.subr.mxu0 0.0
        %8500 = vmatpush1.msra.mxu0 0.0
        %8501 = vmatprep.subr.mxu0 0.0
        %8502 = vmatpush1.msra.mxu0 0.0
        %8503 = vmatprep.subr.mxu0 0.0
        %8504 = vmatpush1.msra.mxu0 0.0
        %8505 = vmatprep.subr.mxu0 0.0
        %8506 = vmatpush1.msra.mxu0 0.0
        %8507 = vmatprep.subr.mxu0 0.0
        %8508 = vmatpush1.msra.mxu0 0.0
        %8509 = vmatprep.subr.mxu0 0.0
        %8510 = vmatpush1.msra.mxu0 0.0
        %8511 = vmatprep.subr.mxu0 0.0
        %8512 = vmatpush1.msra.mxu0 0.0
        %8513 = vmatprep.subr.mxu0 0.0
        %8514 = vmatpush1.msra.mxu0 0.0
        %8515 = vmatprep.subr.mxu0 0.0
        %8516 = vmatpush1.msra.mxu0 0.0
        %8517 = vmatprep.subr.mxu0 0.0
        %8518 = vmatpush1.msra.mxu0 0.0
        %8519 = vmatprep.mubr.f32.mxu0 0.0
        %v8520 = vand.u32 %v8137, 4294901760
        %v8521 = vsub.f32 %v8137, %v8520
        %v8522 = vand.u32 %v8521, 4294901760
        %8523 = vmatmul.mubr.f32.gmra.mrb[0].mxu0 %v8522
        %v8524 = vpop.f32.mrb[0].mxu0
        %v8525 = vadd.f32 %v8437, %v8524
        %v8526 = vpop.f32.mrb[0].mxu0
        %8527 = vmatprep.mubr.f32.mxu0 0.0
        %v8528 = vand.u32 %v8140, 4294901760
        %v8529 = vsub.f32 %v8140, %v8528
        %v8530 = vand.u32 %v8529, 4294901760
        %8531 = vmatmul.mubr.f32.gmra.mrb[0].mxu0 %v8530
        %v8532 = vpop.f32.mrb[0].mxu0
        %v8533 = vadd.f32 %v8444, %v8532
        %v8534 = vpop.f32.mrb[0].mxu0
        %8535 = vdwg.mxu0
        %8536 = vmatprep.subr.mxu0 0.0
        %v8537 = vand.u32 %v1682, 4294901760
        %v8538 = vsub.f32 %v1682, %v8537
        %v8539 = vand.u32 %v8538, 4294901760
        %8540 = vmatpush1.msra.mxu0 %v8539
        %8541 = vmatprep.subr.mxu0 0.0
        %v8542 = vand.u32 %v1683, 4294901760
        %v8543 = vsub.f32 %v1683, %v8542
        %v8544 = vand.u32 %v8543, 4294901760
        %8545 = vmatpush1.msra.mxu0 %v8544
        %8546 = vmatprep.subr.mxu0 0.0
        %v8547 = vand.u32 %v1684, 4294901760
        %v8548 = vsub.f32 %v1684, %v8547
        %v8549 = vand.u32 %v8548, 4294901760
        %8550 = vmatpush1.msra.mxu0 %v8549
        %8551 = vmatprep.subr.mxu0 0.0
        %v8552 = vand.u32 %v1685, 4294901760
        %v8553 = vsub.f32 %v1685, %v8552
        %v8554 = vand.u32 %v8553, 4294901760
        %8555 = vmatpush1.msra.mxu0 %v8554
        %8556 = vmatprep.subr.mxu0 0.0
        %v8557 = vand.u32 %v1686, 4294901760
        %v8558 = vsub.f32 %v1686, %v8557
        %v8559 = vand.u32 %v8558, 4294901760
        %8560 = vmatpush1.msra.mxu0 %v8559
        %8561 = vmatprep.subr.mxu0 0.0
        %v8562 = vand.u32 %v1687, 4294901760
        %v8563 = vsub.f32 %v1687, %v8562
        %v8564 = vand.u32 %v8563, 4294901760
        %8565 = vmatpush1.msra.mxu0 %v8564
        %8566 = vmatprep.subr.mxu0 0.0
        %v8567 = vand.u32 %v1688, 4294901760
        %v8568 = vsub.f32 %v1688, %v8567
        %v8569 = vand.u32 %v8568, 4294901760
        %8570 = vmatpush1.msra.mxu0 %v8569
        %8571 = vmatprep.subr.mxu0 0.0
        %v8572 = vand.u32 %v1689, 4294901760
        %v8573 = vsub.f32 %v1689, %v8572
        %v8574 = vand.u32 %v8573, 4294901760
        %8575 = vmatpush1.msra.mxu0 %v8574
        %8576 = vmatprep.subr.mxu0 0.0
        %8577 = vmatpush1.msra.mxu0 0.0
        %8578 = vmatprep.subr.mxu0 0.0
        %8579 = vmatpush1.msra.mxu0 0.0
        %8580 = vmatprep.subr.mxu0 0.0
        %8581 = vmatpush1.msra.mxu0 0.0
        %8582 = vmatprep.subr.mxu0 0.0
        %8583 = vmatpush1.msra.mxu0 0.0
        %8584 = vmatprep.subr.mxu0 0.0
        %8585 = vmatpush1.msra.mxu0 0.0
        %8586 = vmatprep.subr.mxu0 0.0
        %8587 = vmatpush1.msra.mxu0 0.0
        %8588 = vmatprep.subr.mxu0 0.0
        %8589 = vmatpush1.msra.mxu0 0.0
        %8590 = vmatprep.subr.mxu0 0.0
        %8591 = vmatpush1.msra.mxu0 0.0
        %8592 = vmatprep.subr.mxu0 0.0
        %8593 = vmatpush1.msra.mxu0 0.0
        %8594 = vmatprep.subr.mxu0 0.0
        %8595 = vmatpush1.msra.mxu0 0.0
        %8596 = vmatprep.subr.mxu0 0.0
        %8597 = vmatpush1.msra.mxu0 0.0
        %8598 = vmatprep.subr.mxu0 0.0
        %8599 = vmatpush1.msra.mxu0 0.0
        %8600 = vmatprep.subr.mxu0 0.0
        %8601 = vmatpush1.msra.mxu0 0.0
        %8602 = vmatprep.subr.mxu0 0.0
        %8603 = vmatpush1.msra.mxu0 0.0
        %8604 = vmatprep.subr.mxu0 0.0
        %8605 = vmatpush1.msra.mxu0 0.0
        %8606 = vmatprep.subr.mxu0 0.0
        %8607 = vmatpush1.msra.mxu0 0.0
        %8608 = vmatprep.subr.mxu0 0.0
        %8609 = vmatpush1.msra.mxu0 0.0
        %8610 = vmatprep.subr.mxu0 0.0
        %8611 = vmatpush1.msra.mxu0 0.0
        %8612 = vmatprep.subr.mxu0 0.0
        %8613 = vmatpush1.msra.mxu0 0.0
        %8614 = vmatprep.subr.mxu0 0.0
        %8615 = vmatpush1.msra.mxu0 0.0
        %8616 = vmatprep.subr.mxu0 0.0
        %8617 = vmatpush1.msra.mxu0 0.0
        %8618 = vmatprep.subr.mxu0 0.0
        %8619 = vmatpush1.msra.mxu0 0.0
        %8620 = vmatprep.subr.mxu0 0.0
        %8621 = vmatpush1.msra.mxu0 0.0
        %8622 = vmatprep.subr.mxu0 0.0
        %8623 = vmatpush1.msra.mxu0 0.0
        %8624 = vmatprep.mubr.f32.mxu0 0.0
        %v8625 = vand.u32 %v8137, 4294901760
        %8626 = vmatmul.mubr.f32.gmra.mrb[0].mxu0 %v8625
        %v8627 = vpop.f32.mrb[0].mxu0
        %v8628 = vadd.f32 %v8525, %v8627
        %v8629 = vpop.f32.mrb[0].mxu0
        %8630 = vmatprep.mubr.f32.mxu0 0.0
        %v8631 = vand.u32 %v8140, 4294901760
        %8632 = vmatmul.mubr.f32.gmra.mrb[0].mxu0 %v8631
        %v8633 = vpop.f32.mrb[0].mxu0
        %v8634 = vadd.f32 %v8533, %v8633
        %v8635 = vpop.f32.mrb[0].mxu0
        %8636 = vdwg.mxu0
        %8637 = vmatprep.subr.mxu0 0.0
        %v8638 = vand.u32 %v1682, 4294901760
        %8639 = vmatpush1.msra.mxu0 %v8638
        %8640 = vmatprep.subr.mxu0 0.0
        %v8641 = vand.u32 %v1683, 4294901760
        %8642 = vmatpush1.msra.mxu0 %v8641
        %8643 = vmatprep.subr.mxu0 0.0
        %v8644 = vand.u32 %v1684, 4294901760
        %8645 = vmatpush1.msra.mxu0 %v8644
        %8646 = vmatprep.subr.mxu0 0.0
        %v8647 = vand.u32 %v1685, 4294901760
        %8648 = vmatpush1.msra.mxu0 %v8647
        %8649 = vmatprep.subr.mxu0 0.0
        %v8650 = vand.u32 %v1686, 4294901760
        %8651 = vmatpush1.msra.mxu0 %v8650
        %8652 = vmatprep.subr.mxu0 0.0
        %v8653 = vand.u32 %v1687, 4294901760
        %8654 = vmatpush1.msra.mxu0 %v8653
        %8655 = vmatprep.subr.mxu0 0.0
        %v8656 = vand.u32 %v1688, 4294901760
        %8657 = vmatpush1.msra.mxu0 %v8656
        %8658 = vmatprep.subr.mxu0 0.0
        %v8659 = vand.u32 %v1689, 4294901760
        %8660 = vmatpush1.msra.mxu0 %v8659
        %8661 = vmatprep.subr.mxu0 0.0
        %8662 = vmatpush1.msra.mxu0 0.0
        %8663 = vmatprep.subr.mxu0 0.0
        %8664 = vmatpush1.msra.mxu0 0.0
        %8665 = vmatprep.subr.mxu0 0.0
        %8666 = vmatpush1.msra.mxu0 0.0
        %8667 = vmatprep.subr.mxu0 0.0
        %8668 = vmatpush1.msra.mxu0 0.0
        %8669 = vmatprep.subr.mxu0 0.0
        %8670 = vmatpush1.msra.mxu0 0.0
        %8671 = vmatprep.subr.mxu0 0.0
        %8672 = vmatpush1.msra.mxu0 0.0
        %8673 = vmatprep.subr.mxu0 0.0
        %8674 = vmatpush1.msra.mxu0 0.0
        %8675 = vmatprep.subr.mxu0 0.0
        %8676 = vmatpush1.msra.mxu0 0.0
        %8677 = vmatprep.subr.mxu0 0.0
        %8678 = vmatpush1.msra.mxu0 0.0
        %8679 = vmatprep.subr.mxu0 0.0
        %8680 = vmatpush1.msra.mxu0 0.0
        %8681 = vmatprep.subr.mxu0 0.0
        %8682 = vmatpush1.msra.mxu0 0.0
        %8683 = vmatprep.subr.mxu0 0.0
        %8684 = vmatpush1.msra.mxu0 0.0
        %8685 = vmatprep.subr.mxu0 0.0
        %8686 = vmatpush1.msra.mxu0 0.0
        %8687 = vmatprep.subr.mxu0 0.0
        %8688 = vmatpush1.msra.mxu0 0.0
        %8689 = vmatprep.subr.mxu0 0.0
        %8690 = vmatpush1.msra.mxu0 0.0
        %8691 = vmatprep.subr.mxu0 0.0
        %8692 = vmatpush1.msra.mxu0 0.0
        %8693 = vmatprep.subr.mxu0 0.0
        %8694 = vmatpush1.msra.mxu0 0.0
        %8695 = vmatprep.subr.mxu0 0.0
        %8696 = vmatpush1.msra.mxu0 0.0
        %8697 = vmatprep.subr.mxu0 0.0
        %8698 = vmatpush1.msra.mxu0 0.0
        %8699 = vmatprep.subr.mxu0 0.0
        %8700 = vmatpush1.msra.mxu0 0.0
        %8701 = vmatprep.subr.mxu0 0.0
        %8702 = vmatpush1.msra.mxu0 0.0
        %8703 = vmatprep.subr.mxu0 0.0
        %8704 = vmatpush1.msra.mxu0 0.0
        %8705 = vmatprep.subr.mxu0 0.0
        %8706 = vmatpush1.msra.mxu0 0.0
        %8707 = vmatprep.subr.mxu0 0.0
        %8708 = vmatpush1.msra.mxu0 0.0
        %8709 = vmatprep.mubr.f32.mxu0 0.0
        %v8710 = vand.u32 %v8137, 4294901760
        %8711 = vmatmul.mubr.f32.gmra.mrb[0].mxu0 %v8710
        %v8712 = vpop.f32.mrb[0].mxu0
        %v8713 = vadd.f32 %v8628, %v8712
        %v8714 = vpop.f32.mrb[0].mxu0
        %8715 = vmatprep.mubr.f32.mxu0 0.0
        %v8716 = vand.u32 %v8140, 4294901760
        %8717 = vmatmul.mubr.f32.gmra.mrb[0].mxu0 %v8716
        %v8718 = vpop.f32.mrb[0].mxu0
        %v8719 = vadd.f32 %v8634, %v8718
        %v8720 = vpop.f32.mrb[0].mxu0
        %8721 = vdwg.mxu0
        %v8722 = vsel %vm555, %v8713, -inf
        %8723 = vmax.xlane.f32.xlu0 %v8722
        %v8724 = vpop.xlane.xlu0 %8723
        %v8725 = vsel %vm555, %v8719, -inf
        %8726 = vmax.xlane.f32.xlu0 %v8725
        %v8727 = vpop.xlane.xlu0 %8726
        %8728 = vmatprep.subr.mxu0 0.0
        %v8729 = vand.u32 %v8724, 4294901760
        %8730 = vmatpush1.msra.mxu0 %v8729
        %8731 = vmatprep.subr.mxu0 0.0
        %v8732 = vand.u32 %v8727, 4294901760
        %8733 = vmatpush1.msra.mxu0 %v8732
        %8734 = vmatprep.subr.mxu0 0.0
        %8735 = vmatpush1.msra.mxu0 0.0
        %8736 = vmatprep.subr.mxu0 0.0
        %8737 = vmatpush1.msra.mxu0 0.0
        %8738 = vmatprep.subr.mxu0 0.0
        %8739 = vmatpush1.msra.mxu0 0.0
        %8740 = vmatprep.subr.mxu0 0.0
        %8741 = vmatpush1.msra.mxu0 0.0
        %8742 = vmatprep.subr.mxu0 0.0
        %8743 = vmatpush1.msra.mxu0 0.0
        %8744 = vmatprep.subr.mxu0 0.0
        %8745 = vmatpush1.msra.mxu0 0.0
        %8746 = vmatprep.subr.mxu0 0.0
        %8747 = vmatpush1.msra.mxu0 0.0
        %8748 = vmatprep.subr.mxu0 0.0
        %8749 = vmatpush1.msra.mxu0 0.0
        %8750 = vmatprep.subr.mxu0 0.0
        %8751 = vmatpush1.msra.mxu0 0.0
        %8752 = vmatprep.subr.mxu0 0.0
        %8753 = vmatpush1.msra.mxu0 0.0
        %8754 = vmatprep.subr.mxu0 0.0
        %8755 = vmatpush1.msra.mxu0 0.0
        %8756 = vmatprep.subr.mxu0 0.0
        %8757 = vmatpush1.msra.mxu0 0.0
        %8758 = vmatprep.subr.mxu0 0.0
        %8759 = vmatpush1.msra.mxu0 0.0
        %8760 = vmatprep.subr.mxu0 0.0
        %8761 = vmatpush1.msra.mxu0 0.0
        %8762 = vmatprep.subr.mxu0 0.0
        %8763 = vmatpush1.msra.mxu0 0.0
        %8764 = vmatprep.subr.mxu0 0.0
        %8765 = vmatpush1.msra.mxu0 0.0
        %8766 = vmatprep.subr.mxu0 0.0
        %8767 = vmatpush1.msra.mxu0 0.0
        %8768 = vmatprep.subr.mxu0 0.0
        %8769 = vmatpush1.msra.mxu0 0.0
        %8770 = vmatprep.subr.mxu0 0.0
        %8771 = vmatpush1.msra.mxu0 0.0
        %8772 = vmatprep.subr.mxu0 0.0
        %8773 = vmatpush1.msra.mxu0 0.0
        %8774 = vmatprep.subr.mxu0 0.0
        %8775 = vmatpush1.msra.mxu0 0.0
        %8776 = vmatprep.subr.mxu0 0.0
        %8777 = vmatpush1.msra.mxu0 0.0
        %8778 = vmatprep.subr.mxu0 0.0
        %8779 = vmatpush1.msra.mxu0 0.0
        %8780 = vmatprep.subr.mxu0 0.0
        %8781 = vmatpush1.msra.mxu0 0.0
        %8782 = vmatprep.subr.mxu0 0.0
        %8783 = vmatpush1.msra.mxu0 0.0
        %8784 = vmatprep.subr.mxu0 0.0
        %8785 = vmatpush1.msra.mxu0 0.0
        %8786 = vmatprep.subr.mxu0 0.0
        %8787 = vmatpush1.msra.mxu0 0.0
        %8788 = vmatprep.subr.mxu0 0.0
        %8789 = vmatpush1.msra.mxu0 0.0
        %8790 = vmatprep.subr.mxu0 0.0
        %8791 = vmatpush1.msra.mxu0 0.0
        %8792 = vmatprep.subr.mxu0 0.0
        %8793 = vmatpush1.msra.mxu0 0.0
        %8794 = vmatprep.mubr.f32.mxu0 0.0
        %v8795 = vand.u32 %v2295, 4294901760
        %v8796 = vsub.f32 %v2295, %v8795
        %v8797 = vand.u32 %v8796, 4294901760
        %v8798 = vsub.f32 %v8796, %v8797
        %v8799 = vand.u32 %v8798, 4294901760
        %8800 = vmatmul.mubr.f32.gmra.mrb[0].mxu0 %v8799
        %v8801 = vpop.f32.mrb[0].mxu0
        %v8802 = vadd.f32 0.0, %v8801
        %v8803 = vpop.f32.mrb[0].mxu0
        %8804 = vdwg.mxu0
        %8805 = vmatprep.subr.mxu0 0.0
        %v8806 = vand.u32 %v8724, 4294901760
        %v8807 = vsub.f32 %v8724, %v8806
        %v8808 = vand.u32 %v8807, 4294901760
        %v8809 = vsub.f32 %v8807, %v8808
        %v8810 = vand.u32 %v8809, 4294901760
        %8811 = vmatpush1.msra.mxu0 %v8810
        %8812 = vmatprep.subr.mxu0 0.0
        %v8813 = vand.u32 %v8727, 4294901760
        %v8814 = vsub.f32 %v8727, %v8813
        %v8815 = vand.u32 %v8814, 4294901760
        %v8816 = vsub.f32 %v8814, %v8815
        %v8817 = vand.u32 %v8816, 4294901760
        %8818 = vmatpush1.msra.mxu0 %v8817
        %8819 = vmatprep.subr.mxu0 0.0
        %8820 = vmatpush1.msra.mxu0 0.0
        %8821 = vmatprep.subr.mxu0 0.0
        %8822 = vmatpush1.msra.mxu0 0.0
        %8823 = vmatprep.subr.mxu0 0.0
        %8824 = vmatpush1.msra.mxu0 0.0
        %8825 = vmatprep.subr.mxu0 0.0
        %8826 = vmatpush1.msra.mxu0 0.0
        %8827 = vmatprep.subr.mxu0 0.0
        %8828 = vmatpush1.msra.mxu0 0.0
        %8829 = vmatprep.subr.mxu0 0.0
        %8830 = vmatpush1.msra.mxu0 0.0
        %8831 = vmatprep.subr.mxu0 0.0
        %8832 = vmatpush1.msra.mxu0 0.0
        %8833 = vmatprep.subr.mxu0 0.0
        %8834 = vmatpush1.msra.mxu0 0.0
        %8835 = vmatprep.subr.mxu0 0.0
        %8836 = vmatpush1.msra.mxu0 0.0
        %8837 = vmatprep.subr.mxu0 0.0
        %8838 = vmatpush1.msra.mxu0 0.0
        %8839 = vmatprep.subr.mxu0 0.0
        %8840 = vmatpush1.msra.mxu0 0.0
        %8841 = vmatprep.subr.mxu0 0.0
        %8842 = vmatpush1.msra.mxu0 0.0
        %8843 = vmatprep.subr.mxu0 0.0
        %8844 = vmatpush1.msra.mxu0 0.0
        %8845 = vmatprep.subr.mxu0 0.0
        %8846 = vmatpush1.msra.mxu0 0.0
        %8847 = vmatprep.subr.mxu0 0.0
        %8848 = vmatpush1.msra.mxu0 0.0
        %8849 = vmatprep.subr.mxu0 0.0
        %8850 = vmatpush1.msra.mxu0 0.0
        %8851 = vmatprep.subr.mxu0 0.0
        %8852 = vmatpush1.msra.mxu0 0.0
        %8853 = vmatprep.subr.mxu0 0.0
        %8854 = vmatpush1.msra.mxu0 0.0
        %8855 = vmatprep.subr.mxu0 0.0
        %8856 = vmatpush1.msra.mxu0 0.0
        %8857 = vmatprep.subr.mxu0 0.0
        %8858 = vmatpush1.msra.mxu0 0.0
        %8859 = vmatprep.subr.mxu0 0.0
        %8860 = vmatpush1.msra.mxu0 0.0
        %8861 = vmatprep.subr.mxu0 0.0
        %8862 = vmatpush1.msra.mxu0 0.0
        %8863 = vmatprep.subr.mxu0 0.0
        %8864 = vmatpush1.msra.mxu0 0.0
        %8865 = vmatprep.subr.mxu0 0.0
        %8866 = vmatpush1.msra.mxu0 0.0
        %8867 = vmatprep.subr.mxu0 0.0
        %8868 = vmatpush1.msra.mxu0 0.0
        %8869 = vmatprep.subr.mxu0 0.0
        %8870 = vmatpush1.msra.mxu0 0.0
        %8871 = vmatprep.subr.mxu0 0.0
        %8872 = vmatpush1.msra.mxu0 0.0
        %8873 = vmatprep.subr.mxu0 0.0
        %8874 = vmatpush1.msra.mxu0 0.0
        %8875 = vmatprep.subr.mxu0 0.0
        %8876 = vmatpush1.msra.mxu0 0.0
        %8877 = vmatprep.subr.mxu0 0.0
        %8878 = vmatpush1.msra.mxu0 0.0
        %8879 = vmatprep.mubr.f32.mxu0 0.0
        %v8880 = vand.u32 %v2295, 4294901760
        %8881 = vmatmul.mubr.f32.gmra.mrb[0].mxu0 %v8880
        %v8882 = vpop.f32.mrb[0].mxu0
        %v8883 = vadd.f32 %v8802, %v8882
        %v8884 = vpop.f32.mrb[0].mxu0
        %8885 = vdwg.mxu0
        %8886 = vmatprep.subr.mxu0 0.0
        %v8887 = vand.u32 %v8724, 4294901760
        %v8888 = vsub.f32 %v8724, %v8887
        %8889 = vmatpush1.msra.mxu0 %v8888
        %8890 = vmatprep.subr.mxu0 0.0
        %v8891 = vand.u32 %v8727, 4294901760
        %v8892 = vsub.f32 %v8727, %v8891
        %8893 = vmatpush1.msra.mxu0 %v8892
        %8894 = vmatprep.subr.mxu0 0.0
        %8895 = vmatpush1.msra.mxu0 0.0
        %8896 = vmatprep.subr.mxu0 0.0
        %8897 = vmatpush1.msra.mxu0 0.0
        %8898 = vmatprep.subr.mxu0 0.0
        %8899 = vmatpush1.msra.mxu0 0.0
        %8900 = vmatprep.subr.mxu0 0.0
        %8901 = vmatpush1.msra.mxu0 0.0
        %8902 = vmatprep.subr.mxu0 0.0
        %8903 = vmatpush1.msra.mxu0 0.0
        %8904 = vmatprep.subr.mxu0 0.0
        %8905 = vmatpush1.msra.mxu0 0.0
        %8906 = vmatprep.subr.mxu0 0.0
        %8907 = vmatpush1.msra.mxu0 0.0
        %8908 = vmatprep.subr.mxu0 0.0
        %8909 = vmatpush1.msra.mxu0 0.0
        %8910 = vmatprep.subr.mxu0 0.0
        %8911 = vmatpush1.msra.mxu0 0.0
        %8912 = vmatprep.subr.mxu0 0.0
        %8913 = vmatpush1.msra.mxu0 0.0
        %8914 = vmatprep.subr.mxu0 0.0
        %8915 = vmatpush1.msra.mxu0 0.0
        %8916 = vmatprep.subr.mxu0 0.0
        %8917 = vmatpush1.msra.mxu0 0.0
        %8918 = vmatprep.subr.mxu0 0.0
        %8919 = vmatpush1.msra.mxu0 0.0
        %8920 = vmatprep.subr.mxu0 0.0
        %8921 = vmatpush1.msra.mxu0 0.0
        %8922 = vmatprep.subr.mxu0 0.0
        %8923 = vmatpush1.msra.mxu0 0.0
        %8924 = vmatprep.subr.mxu0 0.0
        %8925 = vmatpush1.msra.mxu0 0.0
        %8926 = vmatprep.subr.mxu0 0.0
        %8927 = vmatpush1.msra.mxu0 0.0
        %8928 = vmatprep.subr.mxu0 0.0
        %8929 = vmatpush1.msra.mxu0 0.0
        %8930 = vmatprep.subr.mxu0 0.0
        %8931 = vmatpush1.msra.mxu0 0.0
        %8932 = vmatprep.subr.mxu0 0.0
        %8933 = vmatpush1.msra.mxu0 0.0
        %8934 = vmatprep.subr.mxu0 0.0
        %8935 = vmatpush1.msra.mxu0 0.0
        %8936 = vmatprep.subr.mxu0 0.0
        %8937 = vmatpush1.msra.mxu0 0.0
        %8938 = vmatprep.subr.mxu0 0.0
        %8939 = vmatpush1.msra.mxu0 0.0
        %8940 = vmatprep.subr.mxu0 0.0
        %8941 = vmatpush1.msra.mxu0 0.0
        %8942 = vmatprep.subr.mxu0 0.0
        %8943 = vmatpush1.msra.mxu0 0.0
        %8944 = vmatprep.subr.mxu0 0.0
        %8945 = vmatpush1.msra.mxu0 0.0
        %8946 = vmatprep.subr.mxu0 0.0
        %8947 = vmatpush1.msra.mxu0 0.0
        %8948 = vmatprep.subr.mxu0 0.0
        %8949 = vmatpush1.msra.mxu0 0.0
        %8950 = vmatprep.subr.mxu0 0.0
        %8951 = vmatpush1.msra.mxu0 0.0
        %8952 = vmatprep.subr.mxu0 0.0
        %8953 = vmatpush1.msra.mxu0 0.0
        %8954 = vmatprep.mubr.f32.mxu0 0.0
        %v8955 = vand.u32 %v2295, 4294901760
        %v8956 = vsub.f32 %v2295, %v8955
        %8957 = vmatmul.mubr.f32.gmra.mrb[0].mxu0 %v8956
        %v8958 = vpop.f32.mrb[0].mxu0
        %v8959 = vadd.f32 %v8883, %v8958
        %v8960 = vpop.f32.mrb[0].mxu0
        %8961 = vdwg.mxu0
        %8962 = vmatprep.subr.mxu0 0.0
        %v8963 = vand.u32 %v8724, 4294901760
        %8964 = vmatpush1.msra.mxu0 %v8963
        %8965 = vmatprep.subr.mxu0 0.0
        %v8966 = vand.u32 %v8727, 4294901760
        %8967 = vmatpush1.msra.mxu0 %v8966
        %8968 = vmatprep.subr.mxu0 0.0
        %8969 = vmatpush1.msra.mxu0 0.0
        %8970 = vmatprep.subr.mxu0 0.0
        %8971 = vmatpush1.msra.mxu0 0.0
        %8972 = vmatprep.subr.mxu0 0.0
        %8973 = vmatpush1.msra.mxu0 0.0
        %8974 = vmatprep.subr.mxu0 0.0
        %8975 = vmatpush1.msra.mxu0 0.0
        %8976 = vmatprep.subr.mxu0 0.0
        %8977 = vmatpush1.msra.mxu0 0.0
        %8978 = vmatprep.subr.mxu0 0.0
        %8979 = vmatpush1.msra.mxu0 0.0
        %8980 = vmatprep.subr.mxu0 0.0
        %8981 = vmatpush1.msra.mxu0 0.0
        %8982 = vmatprep.subr.mxu0 0.0
        %8983 = vmatpush1.msra.mxu0 0.0
        %8984 = vmatprep.subr.mxu0 0.0
        %8985 = vmatpush1.msra.mxu0 0.0
        %8986 = vmatprep.subr.mxu0 0.0
        %8987 = vmatpush1.msra.mxu0 0.0
        %8988 = vmatprep.subr.mxu0 0.0
        %8989 = vmatpush1.msra.mxu0 0.0
        %8990 = vmatprep.subr.mxu0 0.0
        %8991 = vmatpush1.msra.mxu0 0.0
        %8992 = vmatprep.subr.mxu0 0.0
        %8993 = vmatpush1.msra.mxu0 0.0
        %8994 = vmatprep.subr.mxu0 0.0
        %8995 = vmatpush1.msra.mxu0 0.0
        %8996 = vmatprep.subr.mxu0 0.0
        %8997 = vmatpush1.msra.mxu0 0.0
        %8998 = vmatprep.subr.mxu0 0.0
        %8999 = vmatpush1.msra.mxu0 0.0
        %9000 = vmatprep.subr.mxu0 0.0
        %9001 = vmatpush1.msra.mxu0 0.0
        %9002 = vmatprep.subr.mxu0 0.0
        %9003 = vmatpush1.msra.mxu0 0.0
        %9004 = vmatprep.subr.mxu0 0.0
        %9005 = vmatpush1.msra.mxu0 0.0
        %9006 = vmatprep.subr.mxu0 0.0
        %9007 = vmatpush1.msra.mxu0 0.0
        %9008 = vmatprep.subr.mxu0 0.0
        %9009 = vmatpush1.msra.mxu0 0.0
        %9010 = vmatprep.subr.mxu0 0.0
        %9011 = vmatpush1.msra.mxu0 0.0
        %9012 = vmatprep.subr.mxu0 0.0
        %9013 = vmatpush1.msra.mxu0 0.0
        %9014 = vmatprep.subr.mxu0 0.0
        %9015 = vmatpush1.msra.mxu0 0.0
        %9016 = vmatprep.subr.mxu0 0.0
        %9017 = vmatpush1.msra.mxu0 0.0
        %9018 = vmatprep.subr.mxu0 0.0
        %9019 = vmatpush1.msra.mxu0 0.0
        %9020 = vmatprep.subr.mxu0 0.0
        %9021 = vmatpush1.msra.mxu0 0.0
        %9022 = vmatprep.subr.mxu0 0.0
        %9023 = vmatpush1.msra.mxu0 0.0
        %9024 = vmatprep.subr.mxu0 0.0
        %9025 = vmatpush1.msra.mxu0 0.0
        %9026 = vmatprep.subr.mxu0 0.0
        %9027 = vmatpush1.msra.mxu0 0.0
        %9028 = vmatprep.mubr.f32.mxu0 0.0
        %v9029 = vand.u32 %v2295, 4294901760
        %v9030 = vsub.f32 %v2295, %v9029
        %v9031 = vand.u32 %v9030, 4294901760
        %9032 = vmatmul.mubr.f32.gmra.mrb[0].mxu0 %v9031
        %v9033 = vpop.f32.mrb[0].mxu0
        %v9034 = vadd.f32 %v8959, %v9033
        %v9035 = vpop.f32.mrb[0].mxu0
        %9036 = vdwg.mxu0
        %9037 = vmatprep.subr.mxu0 0.0
        %v9038 = vand.u32 %v8724, 4294901760
        %v9039 = vsub.f32 %v8724, %v9038
        %v9040 = vand.u32 %v9039, 4294901760
        %9041 = vmatpush1.msra.mxu0 %v9040
        %9042 = vmatprep.subr.mxu0 0.0
        %v9043 = vand.u32 %v8727, 4294901760
        %v9044 = vsub.f32 %v8727, %v9043
        %v9045 = vand.u32 %v9044, 4294901760
        %9046 = vmatpush1.msra.mxu0 %v9045
        %9047 = vmatprep.subr.mxu0 0.0
        %9048 = vmatpush1.msra.mxu0 0.0
        %9049 = vmatprep.subr.mxu0 0.0
        %9050 = vmatpush1.msra.mxu0 0.0
        %9051 = vmatprep.subr.mxu0 0.0
        %9052 = vmatpush1.msra.mxu0 0.0
        %9053 = vmatprep.subr.mxu0 0.0
        %9054 = vmatpush1.msra.mxu0 0.0
        %9055 = vmatprep.subr.mxu0 0.0
        %9056 = vmatpush1.msra.mxu0 0.0
        %9057 = vmatprep.subr.mxu0 0.0
        %9058 = vmatpush1.msra.mxu0 0.0
        %9059 = vmatprep.subr.mxu0 0.0
        %9060 = vmatpush1.msra.mxu0 0.0
        %9061 = vmatprep.subr.mxu0 0.0
        %9062 = vmatpush1.msra.mxu0 0.0
        %9063 = vmatprep.subr.mxu0 0.0
        %9064 = vmatpush1.msra.mxu0 0.0
        %9065 = vmatprep.subr.mxu0 0.0
        %9066 = vmatpush1.msra.mxu0 0.0
        %9067 = vmatprep.subr.mxu0 0.0
        %9068 = vmatpush1.msra.mxu0 0.0
        %9069 = vmatprep.subr.mxu0 0.0
        %9070 = vmatpush1.msra.mxu0 0.0
        %9071 = vmatprep.subr.mxu0 0.0
        %9072 = vmatpush1.msra.mxu0 0.0
        %9073 = vmatprep.subr.mxu0 0.0
        %9074 = vmatpush1.msra.mxu0 0.0
        %9075 = vmatprep.subr.mxu0 0.0
        %9076 = vmatpush1.msra.mxu0 0.0
        %9077 = vmatprep.subr.mxu0 0.0
        %9078 = vmatpush1.msra.mxu0 0.0
        %9079 = vmatprep.subr.mxu0 0.0
        %9080 = vmatpush1.msra.mxu0 0.0
        %9081 = vmatprep.subr.mxu0 0.0
        %9082 = vmatpush1.msra.mxu0 0.0
        %9083 = vmatprep.subr.mxu0 0.0
        %9084 = vmatpush1.msra.mxu0 0.0
        %9085 = vmatprep.subr.mxu0 0.0
        %9086 = vmatpush1.msra.mxu0 0.0
        %9087 = vmatprep.subr.mxu0 0.0
        %9088 = vmatpush1.msra.mxu0 0.0
        %9089 = vmatprep.subr.mxu0 0.0
        %9090 = vmatpush1.msra.mxu0 0.0
        %9091 = vmatprep.subr.mxu0 0.0
        %9092 = vmatpush1.msra.mxu0 0.0
        %9093 = vmatprep.subr.mxu0 0.0
        %9094 = vmatpush1.msra.mxu0 0.0
        %9095 = vmatprep.subr.mxu0 0.0
        %9096 = vmatpush1.msra.mxu0 0.0
        %9097 = vmatprep.subr.mxu0 0.0
        %9098 = vmatpush1.msra.mxu0 0.0
        %9099 = vmatprep.subr.mxu0 0.0
        %9100 = vmatpush1.msra.mxu0 0.0
        %9101 = vmatprep.subr.mxu0 0.0
        %9102 = vmatpush1.msra.mxu0 0.0
        %9103 = vmatprep.subr.mxu0 0.0
        %9104 = vmatpush1.msra.mxu0 0.0
        %9105 = vmatprep.subr.mxu0 0.0
        %9106 = vmatpush1.msra.mxu0 0.0
        %9107 = vmatprep.mubr.f32.mxu0 0.0
        %v9108 = vand.u32 %v2295, 4294901760
        %9109 = vmatmul.mubr.f32.gmra.mrb[0].mxu0 %v9108
        %v9110 = vpop.f32.mrb[0].mxu0
        %v9111 = vadd.f32 %v9034, %v9110
        %v9112 = vpop.f32.mrb[0].mxu0
        %9113 = vdwg.mxu0
        %9114 = vmatprep.subr.mxu0 0.0
        %v9115 = vand.u32 %v8724, 4294901760
        %9116 = vmatpush1.msra.mxu0 %v9115
        %9117 = vmatprep.subr.mxu0 0.0
        %v9118 = vand.u32 %v8727, 4294901760
        %9119 = vmatpush1.msra.mxu0 %v9118
        %9120 = vmatprep.subr.mxu0 0.0
        %9121 = vmatpush1.msra.mxu0 0.0
        %9122 = vmatprep.subr.mxu0 0.0
        %9123 = vmatpush1.msra.mxu0 0.0
        %9124 = vmatprep.subr.mxu0 0.0
        %9125 = vmatpush1.msra.mxu0 0.0
        %9126 = vmatprep.subr.mxu0 0.0
        %9127 = vmatpush1.msra.mxu0 0.0
        %9128 = vmatprep.subr.mxu0 0.0
        %9129 = vmatpush1.msra.mxu0 0.0
        %9130 = vmatprep.subr.mxu0 0.0
        %9131 = vmatpush1.msra.mxu0 0.0
        %9132 = vmatprep.subr.mxu0 0.0
        %9133 = vmatpush1.msra.mxu0 0.0
        %9134 = vmatprep.subr.mxu0 0.0
        %9135 = vmatpush1.msra.mxu0 0.0
        %9136 = vmatprep.subr.mxu0 0.0
        %9137 = vmatpush1.msra.mxu0 0.0
        %9138 = vmatprep.subr.mxu0 0.0
        %9139 = vmatpush1.msra.mxu0 0.0
        %9140 = vmatprep.subr.mxu0 0.0
        %9141 = vmatpush1.msra.mxu0 0.0
        %9142 = vmatprep.subr.mxu0 0.0
        %9143 = vmatpush1.msra.mxu0 0.0
        %9144 = vmatprep.subr.mxu0 0.0
        %9145 = vmatpush1.msra.mxu0 0.0
        %9146 = vmatprep.subr.mxu0 0.0
        %9147 = vmatpush1.msra.mxu0 0.0
        %9148 = vmatprep.subr.mxu0 0.0
        %9149 = vmatpush1.msra.mxu0 0.0
        %9150 = vmatprep.subr.mxu0 0.0
        %9151 = vmatpush1.msra.mxu0 0.0
        %9152 = vmatprep.subr.mxu0 0.0
        %9153 = vmatpush1.msra.mxu0 0.0
        %9154 = vmatprep.subr.mxu0 0.0
        %9155 = vmatpush1.msra.mxu0 0.0
        %9156 = vmatprep.subr.mxu0 0.0
        %9157 = vmatpush1.msra.mxu0 0.0
        %9158 = vmatprep.subr.mxu0 0.0
        %9159 = vmatpush1.msra.mxu0 0.0
        %9160 = vmatprep.subr.mxu0 0.0
        %9161 = vmatpush1.msra.mxu0 0.0
        %9162 = vmatprep.subr.mxu0 0.0
        %9163 = vmatpush1.msra.mxu0 0.0
        %9164 = vmatprep.subr.mxu0 0.0
        %9165 = vmatpush1.msra.mxu0 0.0
        %9166 = vmatprep.subr.mxu0 0.0
        %9167 = vmatpush1.msra.mxu0 0.0
        %9168 = vmatprep.subr.mxu0 0.0
        %9169 = vmatpush1.msra.mxu0 0.0
        %9170 = vmatprep.subr.mxu0 0.0
        %9171 = vmatpush1.msra.mxu0 0.0
        %9172 = vmatprep.subr.mxu0 0.0
        %9173 = vmatpush1.msra.mxu0 0.0
        %9174 = vmatprep.subr.mxu0 0.0
        %9175 = vmatpush1.msra.mxu0 0.0
        %9176 = vmatprep.subr.mxu0 0.0
        %9177 = vmatpush1.msra.mxu0 0.0
        %9178 = vmatprep.subr.mxu0 0.0
        %9179 = vmatpush1.msra.mxu0 0.0
        %9180 = vmatprep.mubr.f32.mxu0 0.0
        %v9181 = vand.u32 %v2295, 4294901760
        %9182 = vmatmul.mubr.f32.gmra.mrb[0].mxu0 %v9181
        %v9183 = vpop.f32.mrb[0].mxu0
        %v9184 = vadd.f32 %v9111, %v9183
        %v9185 = vpop.f32.mrb[0].mxu0
        %9186 = vdwg.mxu0
        %v9187 = vmax.f32 %v9184, 0.0
        %v9189 = vsel %vm2766, %v9187, 0
        %9191 = vmatprep.subr.mxu0 0.0
        %v9192 = vand.u32 %v9189, 4294901760
        %9193 = vmatpush1.msra.mxu0 %v9192
        %9194 = vmatprep.subr.mxu0 0.0
        %9195 = vmatpush1.msra.mxu0 0.0
        %9196 = vmatprep.subr.mxu0 0.0
        %9197 = vmatpush1.msra.mxu0 0.0
        %9198 = vmatprep.subr.mxu0 0.0
        %9199 = vmatpush1.msra.mxu0 0.0
        %9200 = vmatprep.subr.mxu0 0.0
        %9201 = vmatpush1.msra.mxu0 0.0
        %9202 = vmatprep.subr.mxu0 0.0
        %9203 = vmatpush1.msra.mxu0 0.0
        %9204 = vmatprep.subr.mxu0 0.0
        %9205 = vmatpush1.msra.mxu0 0.0
        %9206 = vmatprep.subr.mxu0 0.0
        %9207 = vmatpush1.msra.mxu0 0.0
        %9208 = vmatprep.subr.mxu0 0.0
        %9209 = vmatpush1.msra.mxu0 0.0
        %9210 = vmatprep.subr.mxu0 0.0
        %9211 = vmatpush1.msra.mxu0 0.0
        %9212 = vmatprep.subr.mxu0 0.0
        %9213 = vmatpush1.msra.mxu0 0.0
        %9214 = vmatprep.subr.mxu0 0.0
        %9215 = vmatpush1.msra.mxu0 0.0
        %9216 = vmatprep.subr.mxu0 0.0
        %9217 = vmatpush1.msra.mxu0 0.0
        %9218 = vmatprep.subr.mxu0 0.0
        %9219 = vmatpush1.msra.mxu0 0.0
        %9220 = vmatprep.subr.mxu0 0.0
        %9221 = vmatpush1.msra.mxu0 0.0
        %9222 = vmatprep.subr.mxu0 0.0
        %9223 = vmatpush1.msra.mxu0 0.0
        %9224 = vmatprep.subr.mxu0 0.0
        %9225 = vmatpush1.msra.mxu0 0.0
        %9226 = vmatprep.subr.mxu0 0.0
        %9227 = vmatpush1.msra.mxu0 0.0
        %9228 = vmatprep.subr.mxu0 0.0
        %9229 = vmatpush1.msra.mxu0 0.0
        %9230 = vmatprep.subr.mxu0 0.0
        %9231 = vmatpush1.msra.mxu0 0.0
        %9232 = vmatprep.subr.mxu0 0.0
        %9233 = vmatpush1.msra.mxu0 0.0
        %9234 = vmatprep.subr.mxu0 0.0
        %9235 = vmatpush1.msra.mxu0 0.0
        %9236 = vmatprep.subr.mxu0 0.0
        %9237 = vmatpush1.msra.mxu0 0.0
        %9238 = vmatprep.subr.mxu0 0.0
        %9239 = vmatpush1.msra.mxu0 0.0
        %9240 = vmatprep.subr.mxu0 0.0
        %9241 = vmatpush1.msra.mxu0 0.0
        %9242 = vmatprep.subr.mxu0 0.0
        %9243 = vmatpush1.msra.mxu0 0.0
        %9244 = vmatprep.subr.mxu0 0.0
        %9245 = vmatpush1.msra.mxu0 0.0
        %9246 = vmatprep.subr.mxu0 0.0
        %9247 = vmatpush1.msra.mxu0 0.0
        %9248 = vmatprep.subr.mxu0 0.0
        %9249 = vmatpush1.msra.mxu0 0.0
        %9250 = vmatprep.subr.mxu0 0.0
        %9251 = vmatpush1.msra.mxu0 0.0
        %9252 = vmatprep.subr.mxu0 0.0
        %9253 = vmatpush1.msra.mxu0 0.0
        %9254 = vmatprep.subr.mxu0 0.0
        %9255 = vmatpush1.msra.mxu0 0.0
        %9256 = vmatprep.mubr.f32.mxu0 0.0
        %v9257 = vand.u32 %v2761, 4294901760
        %v9258 = vsub.f32 %v2761, %v9257
        %v9259 = vand.u32 %v9258, 4294901760
        %v9260 = vsub.f32 %v9258, %v9259
        %v9261 = vand.u32 %v9260, 4294901760
        %9262 = vmatmul.mubr.f32.gmra.mrb[0].mxu0 %v9261
        %v9263 = vpop.f32.mrb[0].mxu0
        %v9264 = vpop.f32.mrb[0].mxu0
        %9265 = vmatprep.mubr.f32.mxu0 0.0
        %v9266 = vand.u32 %v2764, 4294901760
        %v9267 = vsub.f32 %v2764, %v9266
        %v9268 = vand.u32 %v9267, 4294901760
        %v9269 = vsub.f32 %v9267, %v9268
        %v9270 = vand.u32 %v9269, 4294901760
        %9271 = vmatmul.mubr.f32.gmra.mrb[0].mxu0 %v9270
        %v9272 = vpop.f32.mrb[0].mxu0
        %v9273 = vadd.f32 0.0, %v9272
        %v9274 = vpop.f32.mrb[0].mxu0
        %9275 = vdwg.mxu0
        %9276 = vmatprep.subr.mxu0 0.0
        %v9277 = vand.u32 %v9189, 4294901760
        %v9278 = vsub.f32 %v9189, %v9277
        %v9279 = vand.u32 %v9278, 4294901760
        %v9280 = vsub.f32 %v9278, %v9279
        %v9281 = vand.u32 %v9280, 4294901760
        %9282 = vmatpush1.msra.mxu0 %v9281
        %9283 = vmatprep.subr.mxu0 0.0
        %9284 = vmatpush1.msra.mxu0 0.0
        %9285 = vmatprep.subr.mxu0 0.0
        %9286 = vmatpush1.msra.mxu0 0.0
        %9287 = vmatprep.subr.mxu0 0.0
        %9288 = vmatpush1.msra.mxu0 0.0
        %9289 = vmatprep.subr.mxu0 0.0
        %9290 = vmatpush1.msra.mxu0 0.0
        %9291 = vmatprep.subr.mxu0 0.0
        %9292 = vmatpush1.msra.mxu0 0.0
        %9293 = vmatprep.subr.mxu0 0.0
        %9294 = vmatpush1.msra.mxu0 0.0
        %9295 = vmatprep.subr.mxu0 0.0
        %9296 = vmatpush1.msra.mxu0 0.0
        %9297 = vmatprep.subr.mxu0 0.0
        %9298 = vmatpush1.msra.mxu0 0.0
        %9299 = vmatprep.subr.mxu0 0.0
        %9300 = vmatpush1.msra.mxu0 0.0
        %9301 = vmatprep.subr.mxu0 0.0
        %9302 = vmatpush1.msra.mxu0 0.0
        %9303 = vmatprep.subr.mxu0 0.0
        %9304 = vmatpush1.msra.mxu0 0.0
        %9305 = vmatprep.subr.mxu0 0.0
        %9306 = vmatpush1.msra.mxu0 0.0
        %9307 = vmatprep.subr.mxu0 0.0
        %9308 = vmatpush1.msra.mxu0 0.0
        %9309 = vmatprep.subr.mxu0 0.0
        %9310 = vmatpush1.msra.mxu0 0.0
        %9311 = vmatprep.subr.mxu0 0.0
        %9312 = vmatpush1.msra.mxu0 0.0
        %9313 = vmatprep.subr.mxu0 0.0
        %9314 = vmatpush1.msra.mxu0 0.0
        %9315 = vmatprep.subr.mxu0 0.0
        %9316 = vmatpush1.msra.mxu0 0.0
        %9317 = vmatprep.subr.mxu0 0.0
        %9318 = vmatpush1.msra.mxu0 0.0
        %9319 = vmatprep.subr.mxu0 0.0
        %9320 = vmatpush1.msra.mxu0 0.0
        %9321 = vmatprep.subr.mxu0 0.0
        %9322 = vmatpush1.msra.mxu0 0.0
        %9323 = vmatprep.subr.mxu0 0.0
        %9324 = vmatpush1.msra.mxu0 0.0
        %9325 = vmatprep.subr.mxu0 0.0
        %9326 = vmatpush1.msra.mxu0 0.0
        %9327 = vmatprep.subr.mxu0 0.0
        %9328 = vmatpush1.msra.mxu0 0.0
        %9329 = vmatprep.subr.mxu0 0.0
        %9330 = vmatpush1.msra.mxu0 0.0
        %9331 = vmatprep.subr.mxu0 0.0
        %9332 = vmatpush1.msra.mxu0 0.0
        %9333 = vmatprep.subr.mxu0 0.0
        %9334 = vmatpush1.msra.mxu0 0.0
        %9335 = vmatprep.subr.mxu0 0.0
        %9336 = vmatpush1.msra.mxu0 0.0
        %9337 = vmatprep.subr.mxu0 0.0
        %9338 = vmatpush1.msra.mxu0 0.0
        %9339 = vmatprep.subr.mxu0 0.0
        %9340 = vmatpush1.msra.mxu0 0.0
        %9341 = vmatprep.subr.mxu0 0.0
        %9342 = vmatpush1.msra.mxu0 0.0
        %9343 = vmatprep.subr.mxu0 0.0
        %9344 = vmatpush1.msra.mxu0 0.0
        %9345 = vmatprep.mubr.f32.mxu0 0.0
        %v9346 = vand.u32 %v2761, 4294901760
        %9347 = vmatmul.mubr.f32.gmra.mrb[0].mxu0 %v9346
        %v9348 = vpop.f32.mrb[0].mxu0
        %v9349 = vpop.f32.mrb[0].mxu0
        %9350 = vmatprep.mubr.f32.mxu0 0.0
        %v9351 = vand.u32 %v2764, 4294901760
        %9352 = vmatmul.mubr.f32.gmra.mrb[0].mxu0 %v9351
        %v9353 = vpop.f32.mrb[0].mxu0
        %v9354 = vadd.f32 %v9273, %v9353
        %v9355 = vpop.f32.mrb[0].mxu0
        %9356 = vdwg.mxu0
        %9357 = vmatprep.subr.mxu0 0.0
        %v9358 = vand.u32 %v9189, 4294901760
        %v9359 = vsub.f32 %v9189, %v9358
        %9360 = vmatpush1.msra.mxu0 %v9359
        %9361 = vmatprep.subr.mxu0 0.0
        %9362 = vmatpush1.msra.mxu0 0.0
        %9363 = vmatprep.subr.mxu0 0.0
        %9364 = vmatpush1.msra.mxu0 0.0
        %9365 = vmatprep.subr.mxu0 0.0
        %9366 = vmatpush1.msra.mxu0 0.0
        %9367 = vmatprep.subr.mxu0 0.0
        %9368 = vmatpush1.msra.mxu0 0.0
        %9369 = vmatprep.subr.mxu0 0.0
        %9370 = vmatpush1.msra.mxu0 0.0
        %9371 = vmatprep.subr.mxu0 0.0
        %9372 = vmatpush1.msra.mxu0 0.0
        %9373 = vmatprep.subr.mxu0 0.0
        %9374 = vmatpush1.msra.mxu0 0.0
        %9375 = vmatprep.subr.mxu0 0.0
        %9376 = vmatpush1.msra.mxu0 0.0
        %9377 = vmatprep.subr.mxu0 0.0
        %9378 = vmatpush1.msra.mxu0 0.0
        %9379 = vmatprep.subr.mxu0 0.0
        %9380 = vmatpush1.msra.mxu0 0.0
        %9381 = vmatprep.subr.mxu0 0.0
        %9382 = vmatpush1.msra.mxu0 0.0
        %9383 = vmatprep.subr.mxu0 0.0
        %9384 = vmatpush1.msra.mxu0 0.0
        %9385 = vmatprep.subr.mxu0 0.0
        %9386 = vmatpush1.msra.mxu0 0.0
        %9387 = vmatprep.subr.mxu0 0.0
        %9388 = vmatpush1.msra.mxu0 0.0
        %9389 = vmatprep.subr.mxu0 0.0
        %9390 = vmatpush1.msra.mxu0 0.0
        %9391 = vmatprep.subr.mxu0 0.0
        %9392 = vmatpush1.msra.mxu0 0.0
        %9393 = vmatprep.subr.mxu0 0.0
        %9394 = vmatpush1.msra.mxu0 0.0
        %9395 = vmatprep.subr.mxu0 0.0
        %9396 = vmatpush1.msra.mxu0 0.0
        %9397 = vmatprep.subr.mxu0 0.0
        %9398 = vmatpush1.msra.mxu0 0.0
        %9399 = vmatprep.subr.mxu0 0.0
        %9400 = vmatpush1.msra.mxu0 0.0
        %9401 = vmatprep.subr.mxu0 0.0
        %9402 = vmatpush1.msra.mxu0 0.0
        %9403 = vmatprep.subr.mxu0 0.0
        %9404 = vmatpush1.msra.mxu0 0.0
        %9405 = vmatprep.subr.mxu0 0.0
        %9406 = vmatpush1.msra.mxu0 0.0
        %9407 = vmatprep.subr.mxu0 0.0
        %9408 = vmatpush1.msra.mxu0 0.0
        %9409 = vmatprep.subr.mxu0 0.0
        %9410 = vmatpush1.msra.mxu0 0.0
        %9411 = vmatprep.subr.mxu0 0.0
        %9412 = vmatpush1.msra.mxu0 0.0
        %9413 = vmatprep.subr.mxu0 0.0
        %9414 = vmatpush1.msra.mxu0 0.0
        %9415 = vmatprep.subr.mxu0 0.0
        %9416 = vmatpush1.msra.mxu0 0.0
        %9417 = vmatprep.subr.mxu0 0.0
        %9418 = vmatpush1.msra.mxu0 0.0
        %9419 = vmatprep.subr.mxu0 0.0
        %9420 = vmatpush1.msra.mxu0 0.0
        %9421 = vmatprep.subr.mxu0 0.0
        %9422 = vmatpush1.msra.mxu0 0.0
        %9423 = vmatprep.mubr.f32.mxu0 0.0
        %v9424 = vand.u32 %v2761, 4294901760
        %v9425 = vsub.f32 %v2761, %v9424
        %9426 = vmatmul.mubr.f32.gmra.mrb[0].mxu0 %v9425
        %v9427 = vpop.f32.mrb[0].mxu0
        %v9428 = vpop.f32.mrb[0].mxu0
        %9429 = vmatprep.mubr.f32.mxu0 0.0
        %v9430 = vand.u32 %v2764, 4294901760
        %v9431 = vsub.f32 %v2764, %v9430
        %9432 = vmatmul.mubr.f32.gmra.mrb[0].mxu0 %v9431
        %v9433 = vpop.f32.mrb[0].mxu0
        %v9434 = vadd.f32 %v9354, %v9433
        %v9435 = vpop.f32.mrb[0].mxu0
        %9436 = vdwg.mxu0
        %9437 = vmatprep.subr.mxu0 0.0
        %v9438 = vand.u32 %v9189, 4294901760
        %9439 = vmatpush1.msra.mxu0 %v9438
        %9440 = vmatprep.subr.mxu0 0.0
        %9441 = vmatpush1.msra.mxu0 0.0
        %9442 = vmatprep.subr.mxu0 0.0
        %9443 = vmatpush1.msra.mxu0 0.0
        %9444 = vmatprep.subr.mxu0 0.0
        %9445 = vmatpush1.msra.mxu0 0.0
        %9446 = vmatprep.subr.mxu0 0.0
        %9447 = vmatpush1.msra.mxu0 0.0
        %9448 = vmatprep.subr.mxu0 0.0
        %9449 = vmatpush1.msra.mxu0 0.0
        %9450 = vmatprep.subr.mxu0 0.0
        %9451 = vmatpush1.msra.mxu0 0.0
        %9452 = vmatprep.subr.mxu0 0.0
        %9453 = vmatpush1.msra.mxu0 0.0
        %9454 = vmatprep.subr.mxu0 0.0
        %9455 = vmatpush1.msra.mxu0 0.0
        %9456 = vmatprep.subr.mxu0 0.0
        %9457 = vmatpush1.msra.mxu0 0.0
        %9458 = vmatprep.subr.mxu0 0.0
        %9459 = vmatpush1.msra.mxu0 0.0
        %9460 = vmatprep.subr.mxu0 0.0
        %9461 = vmatpush1.msra.mxu0 0.0
        %9462 = vmatprep.subr.mxu0 0.0
        %9463 = vmatpush1.msra.mxu0 0.0
        %9464 = vmatprep.subr.mxu0 0.0
        %9465 = vmatpush1.msra.mxu0 0.0
        %9466 = vmatprep.subr.mxu0 0.0
        %9467 = vmatpush1.msra.mxu0 0.0
        %9468 = vmatprep.subr.mxu0 0.0
        %9469 = vmatpush1.msra.mxu0 0.0
        %9470 = vmatprep.subr.mxu0 0.0
        %9471 = vmatpush1.msra.mxu0 0.0
        %9472 = vmatprep.subr.mxu0 0.0
        %9473 = vmatpush1.msra.mxu0 0.0
        %9474 = vmatprep.subr.mxu0 0.0
        %9475 = vmatpush1.msra.mxu0 0.0
        %9476 = vmatprep.subr.mxu0 0.0
        %9477 = vmatpush1.msra.mxu0 0.0
        %9478 = vmatprep.subr.mxu0 0.0
        %9479 = vmatpush1.msra.mxu0 0.0
        %9480 = vmatprep.subr.mxu0 0.0
        %9481 = vmatpush1.msra.mxu0 0.0
        %9482 = vmatprep.subr.mxu0 0.0
        %9483 = vmatpush1.msra.mxu0 0.0
        %9484 = vmatprep.subr.mxu0 0.0
        %9485 = vmatpush1.msra.mxu0 0.0
        %9486 = vmatprep.subr.mxu0 0.0
        %9487 = vmatpush1.msra.mxu0 0.0
        %9488 = vmatprep.subr.mxu0 0.0
        %9489 = vmatpush1.msra.mxu0 0.0
        %9490 = vmatprep.subr.mxu0 0.0
        %9491 = vmatpush1.msra.mxu0 0.0
        %9492 = vmatprep.subr.mxu0 0.0
        %9493 = vmatpush1.msra.mxu0 0.0
        %9494 = vmatprep.subr.mxu0 0.0
        %9495 = vmatpush1.msra.mxu0 0.0
        %9496 = vmatprep.subr.mxu0 0.0
        %9497 = vmatpush1.msra.mxu0 0.0
        %9498 = vmatprep.subr.mxu0 0.0
        %9499 = vmatpush1.msra.mxu0 0.0
        %9500 = vmatprep.subr.mxu0 0.0
        %9501 = vmatpush1.msra.mxu0 0.0
        %9502 = vmatprep.mubr.f32.mxu0 0.0
        %v9503 = vand.u32 %v2761, 4294901760
        %v9504 = vsub.f32 %v2761, %v9503
        %v9505 = vand.u32 %v9504, 4294901760
        %9506 = vmatmul.mubr.f32.gmra.mrb[0].mxu0 %v9505
        %v9507 = vpop.f32.mrb[0].mxu0
        %v9508 = vpop.f32.mrb[0].mxu0
        %9509 = vmatprep.mubr.f32.mxu0 0.0
        %v9510 = vand.u32 %v2764, 4294901760
        %v9511 = vsub.f32 %v2764, %v9510
        %v9512 = vand.u32 %v9511, 4294901760
        %9513 = vmatmul.mubr.f32.gmra.mrb[0].mxu0 %v9512
        %v9514 = vpop.f32.mrb[0].mxu0
        %v9515 = vadd.f32 %v9434, %v9514
        %v9516 = vpop.f32.mrb[0].mxu0
        %9517 = vdwg.mxu0
        %9518 = vmatprep.subr.mxu0 0.0
        %v9519 = vand.u32 %v9189, 4294901760
        %v9520 = vsub.f32 %v9189, %v9519
        %v9521 = vand.u32 %v9520, 4294901760
        %9522 = vmatpush1.msra.mxu0 %v9521
        %9523 = vmatprep.subr.mxu0 0.0
        %9524 = vmatpush1.msra.mxu0 0.0
        %9525 = vmatprep.subr.mxu0 0.0
        %9526 = vmatpush1.msra.mxu0 0.0
        %9527 = vmatprep.subr.mxu0 0.0
        %9528 = vmatpush1.msra.mxu0 0.0
        %9529 = vmatprep.subr.mxu0 0.0
        %9530 = vmatpush1.msra.mxu0 0.0
        %9531 = vmatprep.subr.mxu0 0.0
        %9532 = vmatpush1.msra.mxu0 0.0
        %9533 = vmatprep.subr.mxu0 0.0
        %9534 = vmatpush1.msra.mxu0 0.0
        %9535 = vmatprep.subr.mxu0 0.0
        %9536 = vmatpush1.msra.mxu0 0.0
        %9537 = vmatprep.subr.mxu0 0.0
        %9538 = vmatpush1.msra.mxu0 0.0
        %9539 = vmatprep.subr.mxu0 0.0
        %9540 = vmatpush1.msra.mxu0 0.0
        %9541 = vmatprep.subr.mxu0 0.0
        %9542 = vmatpush1.msra.mxu0 0.0
        %9543 = vmatprep.subr.mxu0 0.0
        %9544 = vmatpush1.msra.mxu0 0.0
        %9545 = vmatprep.subr.mxu0 0.0
        %9546 = vmatpush1.msra.mxu0 0.0
        %9547 = vmatprep.subr.mxu0 0.0
        %9548 = vmatpush1.msra.mxu0 0.0
        %9549 = vmatprep.subr.mxu0 0.0
        %9550 = vmatpush1.msra.mxu0 0.0
        %9551 = vmatprep.subr.mxu0 0.0
        %9552 = vmatpush1.msra.mxu0 0.0
        %9553 = vmatprep.subr.mxu0 0.0
        %9554 = vmatpush1.msra.mxu0 0.0
        %9555 = vmatprep.subr.mxu0 0.0
        %9556 = vmatpush1.msra.mxu0 0.0
        %9557 = vmatprep.subr.mxu0 0.0
        %9558 = vmatpush1.msra.mxu0 0.0
        %9559 = vmatprep.subr.mxu0 0.0
        %9560 = vmatpush1.msra.mxu0 0.0
        %9561 = vmatprep.subr.mxu0 0.0
        %9562 = vmatpush1.msra.mxu0 0.0
        %9563 = vmatprep.subr.mxu0 0.0
        %9564 = vmatpush1.msra.mxu0 0.0
        %9565 = vmatprep.subr.mxu0 0.0
        %9566 = vmatpush1.msra.mxu0 0.0
        %9567 = vmatprep.subr.mxu0 0.0
        %9568 = vmatpush1.msra.mxu0 0.0
        %9569 = vmatprep.subr.mxu0 0.0
        %9570 = vmatpush1.msra.mxu0 0.0
        %9571 = vmatprep.subr.mxu0 0.0
        %9572 = vmatpush1.msra.mxu0 0.0
        %9573 = vmatprep.subr.mxu0 0.0
        %9574 = vmatpush1.msra.mxu0 0.0
        %9575 = vmatprep.subr.mxu0 0.0
        %9576 = vmatpush1.msra.mxu0 0.0
        %9577 = vmatprep.subr.mxu0 0.0
        %9578 = vmatpush1.msra.mxu0 0.0
        %9579 = vmatprep.subr.mxu0 0.0
        %9580 = vmatpush1.msra.mxu0 0.0
        %9581 = vmatprep.subr.mxu0 0.0
        %9582 = vmatpush1.msra.mxu0 0.0
        %9583 = vmatprep.subr.mxu0 0.0
        %9584 = vmatpush1.msra.mxu0 0.0
        %9585 = vmatprep.mubr.f32.mxu0 0.0
        %v9586 = vand.u32 %v2761, 4294901760
        %9587 = vmatmul.mubr.f32.gmra.mrb[0].mxu0 %v9586
        %v9588 = vpop.f32.mrb[0].mxu0
        %v9589 = vpop.f32.mrb[0].mxu0
        %9590 = vmatprep.mubr.f32.mxu0 0.0
        %v9591 = vand.u32 %v2764, 4294901760
        %9592 = vmatmul.mubr.f32.gmra.mrb[0].mxu0 %v9591
        %v9593 = vpop.f32.mrb[0].mxu0
        %v9594 = vadd.f32 %v9515, %v9593
        %v9595 = vpop.f32.mrb[0].mxu0
        %9596 = vdwg.mxu0
        %9597 = vmatprep.subr.mxu0 0.0
        %v9598 = vand.u32 %v9189, 4294901760
        %9599 = vmatpush1.msra.mxu0 %v9598
        %9600 = vmatprep.subr.mxu0 0.0
        %9601 = vmatpush1.msra.mxu0 0.0
        %9602 = vmatprep.subr.mxu0 0.0
        %9603 = vmatpush1.msra.mxu0 0.0
        %9604 = vmatprep.subr.mxu0 0.0
        %9605 = vmatpush1.msra.mxu0 0.0
        %9606 = vmatprep.subr.mxu0 0.0
        %9607 = vmatpush1.msra.mxu0 0.0
        %9608 = vmatprep.subr.mxu0 0.0
        %9609 = vmatpush1.msra.mxu0 0.0
        %9610 = vmatprep.subr.mxu0 0.0
        %9611 = vmatpush1.msra.mxu0 0.0
        %9612 = vmatprep.subr.mxu0 0.0
        %9613 = vmatpush1.msra.mxu0 0.0
        %9614 = vmatprep.subr.mxu0 0.0
        %9615 = vmatpush1.msra.mxu0 0.0
        %9616 = vmatprep.subr.mxu0 0.0
        %9617 = vmatpush1.msra.mxu0 0.0
        %9618 = vmatprep.subr.mxu0 0.0
        %9619 = vmatpush1.msra.mxu0 0.0
        %9620 = vmatprep.subr.mxu0 0.0
        %9621 = vmatpush1.msra.mxu0 0.0
        %9622 = vmatprep.subr.mxu0 0.0
        %9623 = vmatpush1.msra.mxu0 0.0
        %9624 = vmatprep.subr.mxu0 0.0
        %9625 = vmatpush1.msra.mxu0 0.0
        %9626 = vmatprep.subr.mxu0 0.0
        %9627 = vmatpush1.msra.mxu0 0.0
        %9628 = vmatprep.subr.mxu0 0.0
        %9629 = vmatpush1.msra.mxu0 0.0
        %9630 = vmatprep.subr.mxu0 0.0
        %9631 = vmatpush1.msra.mxu0 0.0
        %9632 = vmatprep.subr.mxu0 0.0
        %9633 = vmatpush1.msra.mxu0 0.0
        %9634 = vmatprep.subr.mxu0 0.0
        %9635 = vmatpush1.msra.mxu0 0.0
        %9636 = vmatprep.subr.mxu0 0.0
        %9637 = vmatpush1.msra.mxu0 0.0
        %9638 = vmatprep.subr.mxu0 0.0
        %9639 = vmatpush1.msra.mxu0 0.0
        %9640 = vmatprep.subr.mxu0 0.0
        %9641 = vmatpush1.msra.mxu0 0.0
        %9642 = vmatprep.subr.mxu0 0.0
        %9643 = vmatpush1.msra.mxu0 0.0
        %9644 = vmatprep.subr.mxu0 0.0
        %9645 = vmatpush1.msra.mxu0 0.0
        %9646 = vmatprep.subr.mxu0 0.0
        %9647 = vmatpush1.msra.mxu0 0.0
        %9648 = vmatprep.subr.mxu0 0.0
        %9649 = vmatpush1.msra.mxu0 0.0
        %9650 = vmatprep.subr.mxu0 0.0
        %9651 = vmatpush1.msra.mxu0 0.0
        %9652 = vmatprep.subr.mxu0 0.0
        %9653 = vmatpush1.msra.mxu0 0.0
        %9654 = vmatprep.subr.mxu0 0.0
        %9655 = vmatpush1.msra.mxu0 0.0
        %9656 = vmatprep.subr.mxu0 0.0
        %9657 = vmatpush1.msra.mxu0 0.0
        %9658 = vmatprep.subr.mxu0 0.0
        %9659 = vmatpush1.msra.mxu0 0.0
        %9660 = vmatprep.subr.mxu0 0.0
        %9661 = vmatpush1.msra.mxu0 0.0
        %9662 = vmatprep.mubr.f32.mxu0 0.0
        %v9663 = vand.u32 %v2761, 4294901760
        %9664 = vmatmul.mubr.f32.gmra.mrb[0].mxu0 %v9663
        %v9665 = vpop.f32.mrb[0].mxu0
        %v9666 = vpop.f32.mrb[0].mxu0
        %9667 = vmatprep.mubr.f32.mxu0 0.0
        %v9668 = vand.u32 %v2764, 4294901760
        %9669 = vmatmul.mubr.f32.gmra.mrb[0].mxu0 %v9668
        %v9670 = vpop.f32.mrb[0].mxu0
        %v9671 = vadd.f32 %v9594, %v9670
        %v9672 = vpop.f32.mrb[0].mxu0
        %9673 = vdwg.mxu0
        %v9674 = vxor.u32 %v9671, 2147483648
        %v9675 = vmul.f32 %v9674, 1.442695
        %v9676 = vpow.pop %v9675
        %v9677 = vadd.f32 %v9676, 1.0
        %v9678 = vrcp.pop %v9677
        %v9679 = vmul.f32 1.0, %v9678
        %9681 = vset.pattern.permute.xlu0 0
        %9682 = vperm.xlu0 %9681, %v9679
        %v9683 = vpop.permute.xlu0 %9682
        %v9685 = vmul.f32 %v8719, %v9683
        %v9686 = vadd.f32 %v7569, %v9685
        %v9687 = vld [vmem:[%s14] sm:$0xff]
        %v9688 = vld [vmem:[%s14 + $0x8] sm:$0xff]
        %v9689 = vld [vmem:[%s14 + $0x10] sm:$0xff]
        %v9690 = vld [vmem:[%s14 + $0x18] sm:$0xff]
        %v9691 = vld [vmem:[%s15] sm:$0x1]
        %v9693 = vrot.slane %v9686, 7
        %v9694 = vsel %vm555, %v9693, 0
        %9696 = vmatprep.subr.mxu0 0.0
        %v9697 = vand.u32 %v9687, 4294901760
        %9698 = vmatpush1.msra.mxu0 %v9697
        %9699 = vmatprep.subr.mxu0 0.0
        %v9700 = vand.u32 %v9688, 4294901760
        %9701 = vmatpush1.msra.mxu0 %v9700
        %9702 = vmatprep.subr.mxu0 0.0
        %v9703 = vand.u32 %v9689, 4294901760
        %9704 = vmatpush1.msra.mxu0 %v9703
        %9705 = vmatprep.subr.mxu0 0.0
        %v9706 = vand.u32 %v9690, 4294901760
        %9707 = vmatpush1.msra.mxu0 %v9706
        %9708 = vmatprep.subr.mxu0 0.0
        %9709 = vmatpush1.msra.mxu0 0.0
        %9710 = vmatprep.subr.mxu0 0.0
        %9711 = vmatpush1.msra.mxu0 0.0
        %9712 = vmatprep.subr.mxu0 0.0
        %9713 = vmatpush1.msra.mxu0 0.0
        %9714 = vmatprep.subr.mxu0 0.0
        %9715 = vmatpush1.msra.mxu0 0.0
        %9716 = vmatprep.subr.mxu0 0.0
        %9717 = vmatpush1.msra.mxu0 0.0
        %9718 = vmatprep.subr.mxu0 0.0
        %9719 = vmatpush1.msra.mxu0 0.0
        %9720 = vmatprep.subr.mxu0 0.0
        %9721 = vmatpush1.msra.mxu0 0.0
        %9722 = vmatprep.subr.mxu0 0.0
        %9723 = vmatpush1.msra.mxu0 0.0
        %9724 = vmatprep.subr.mxu0 0.0
        %9725 = vmatpush1.msra.mxu0 0.0
        %9726 = vmatprep.subr.mxu0 0.0
        %9727 = vmatpush1.msra.mxu0 0.0
        %9728 = vmatprep.subr.mxu0 0.0
        %9729 = vmatpush1.msra.mxu0 0.0
        %9730 = vmatprep.subr.mxu0 0.0
        %9731 = vmatpush1.msra.mxu0 0.0
        %9732 = vmatprep.subr.mxu0 0.0
        %9733 = vmatpush1.msra.mxu0 0.0
        %9734 = vmatprep.subr.mxu0 0.0
        %9735 = vmatpush1.msra.mxu0 0.0
        %9736 = vmatprep.subr.mxu0 0.0
        %9737 = vmatpush1.msra.mxu0 0.0
        %9738 = vmatprep.subr.mxu0 0.0
        %9739 = vmatpush1.msra.mxu0 0.0
        %9740 = vmatprep.subr.mxu0 0.0
        %9741 = vmatpush1.msra.mxu0 0.0
        %9742 = vmatprep.subr.mxu0 0.0
        %9743 = vmatpush1.msra.mxu0 0.0
        %9744 = vmatprep.subr.mxu0 0.0
        %9745 = vmatpush1.msra.mxu0 0.0
        %9746 = vmatprep.subr.mxu0 0.0
        %9747 = vmatpush1.msra.mxu0 0.0
        %9748 = vmatprep.subr.mxu0 0.0
        %9749 = vmatpush1.msra.mxu0 0.0
        %9750 = vmatprep.subr.mxu0 0.0
        %9751 = vmatpush1.msra.mxu0 0.0
        %9752 = vmatprep.subr.mxu0 0.0
        %9753 = vmatpush1.msra.mxu0 0.0
        %9754 = vmatprep.subr.mxu0 0.0
        %9755 = vmatpush1.msra.mxu0 0.0
        %9756 = vmatprep.subr.mxu0 0.0
        %9757 = vmatpush1.msra.mxu0 0.0
        %9758 = vmatprep.subr.mxu0 0.0
        %9759 = vmatpush1.msra.mxu0 0.0
        %9760 = vmatprep.subr.mxu0 0.0
        %9761 = vmatpush1.msra.mxu0 0.0
        %9762 = vmatprep.subr.mxu0 0.0
        %9763 = vmatpush1.msra.mxu0 0.0
        %9764 = vmatprep.mubr.f32.mxu0 0.0
        %v9765 = vand.u32 %v9694, 4294901760
        %v9766 = vsub.f32 %v9694, %v9765
        %v9767 = vand.u32 %v9766, 4294901760
        %v9768 = vsub.f32 %v9766, %v9767
        %v9769 = vand.u32 %v9768, 4294901760
        %9770 = vmatmul.mubr.f32.gmra.mrb[0].mxu0 %v9769
        %v9771 = vpop.f32.mrb[0].mxu0
        %v9772 = vadd.f32 %v9691, %v9771
        %v9773 = vpop.f32.mrb[0].mxu0
        %9774 = vdwg.mxu0
        %9775 = vmatprep.subr.mxu0 0.0
        %v9776 = vand.u32 %v9687, 4294901760
        %v9777 = vsub.f32 %v9687, %v9776
        %v9778 = vand.u32 %v9777, 4294901760
        %v9779 = vsub.f32 %v9777, %v9778
        %v9780 = vand.u32 %v9779, 4294901760
        %9781 = vmatpush1.msra.mxu0 %v9780
        %9782 = vmatprep.subr.mxu0 0.0
        %v9783 = vand.u32 %v9688, 4294901760
        %v9784 = vsub.f32 %v9688, %v9783
        %v9785 = vand.u32 %v9784, 4294901760
        %v9786 = vsub.f32 %v9784, %v9785
        %v9787 = vand.u32 %v9786, 4294901760
        %9788 = vmatpush1.msra.mxu0 %v9787
        %9789 = vmatprep.subr.mxu0 0.0
        %v9790 = vand.u32 %v9689, 4294901760
        %v9791 = vsub.f32 %v9689, %v9790
        %v9792 = vand.u32 %v9791, 4294901760
        %v9793 = vsub.f32 %v9791, %v9792
        %v9794 = vand.u32 %v9793, 4294901760
        %9795 = vmatpush1.msra.mxu0 %v9794
        %9796 = vmatprep.subr.mxu0 0.0
        %v9797 = vand.u32 %v9690, 4294901760
        %v9798 = vsub.f32 %v9690, %v9797
        %v9799 = vand.u32 %v9798, 4294901760
        %v9800 = vsub.f32 %v9798, %v9799
        %v9801 = vand.u32 %v9800, 4294901760
        %9802 = vmatpush1.msra.mxu0 %v9801
        %9803 = vmatprep.subr.mxu0 0.0
        %9804 = vmatpush1.msra.mxu0 0.0
        %9805 = vmatprep.subr.mxu0 0.0
        %9806 = vmatpush1.msra.mxu0 0.0
        %9807 = vmatprep.subr.mxu0 0.0
        %9808 = vmatpush1.msra.mxu0 0.0
        %9809 = vmatprep.subr.mxu0 0.0
        %9810 = vmatpush1.msra.mxu0 0.0
        %9811 = vmatprep.subr.mxu0 0.0
        %9812 = vmatpush1.msra.mxu0 0.0
        %9813 = vmatprep.subr.mxu0 0.0
        %9814 = vmatpush1.msra.mxu0 0.0
        %9815 = vmatprep.subr.mxu0 0.0
        %9816 = vmatpush1.msra.mxu0 0.0
        %9817 = vmatprep.subr.mxu0 0.0
        %9818 = vmatpush1.msra.mxu0 0.0
        %9819 = vmatprep.subr.mxu0 0.0
        %9820 = vmatpush1.msra.mxu0 0.0
        %9821 = vmatprep.subr.mxu0 0.0
        %9822 = vmatpush1.msra.mxu0 0.0
        %9823 = vmatprep.subr.mxu0 0.0
        %9824 = vmatpush1.msra.mxu0 0.0
        %9825 = vmatprep.subr.mxu0 0.0
        %9826 = vmatpush1.msra.mxu0 0.0
        %9827 = vmatprep.subr.mxu0 0.0
        %9828 = vmatpush1.msra.mxu0 0.0
        %9829 = vmatprep.subr.mxu0 0.0
        %9830 = vmatpush1.msra.mxu0 0.0
        %9831 = vmatprep.subr.mxu0 0.0
        %9832 = vmatpush1.msra.mxu0 0.0
        %9833 = vmatprep.subr.mxu0 0.0
        %9834 = vmatpush1.msra.mxu0 0.0
        %9835 = vmatprep.subr.mxu0 0.0
        %9836 = vmatpush1.msra.mxu0 0.0
        %9837 = vmatprep.subr.mxu0 0.0
        %9838 = vmatpush1.msra.mxu0 0.0
        %9839 = vmatprep.subr.mxu0 0.0
        %9840 = vmatpush1.msra.mxu0 0.0
        %9841 = vmatprep.subr.mxu0 0.0
        %9842 = vmatpush1.msra.mxu0 0.0
        %9843 = vmatprep.subr.mxu0 0.0
        %9844 = vmatpush1.msra.mxu0 0.0
        %9845 = vmatprep.subr.mxu0 0.0
        %9846 = vmatpush1.msra.mxu0 0.0
        %9847 = vmatprep.subr.mxu0 0.0
        %9848 = vmatpush1.msra.mxu0 0.0
        %9849 = vmatprep.subr.mxu0 0.0
        %9850 = vmatpush1.msra.mxu0 0.0
        %9851 = vmatprep.subr.mxu0 0.0
        %9852 = vmatpush1.msra.mxu0 0.0
        %9853 = vmatprep.subr.mxu0 0.0
        %9854 = vmatpush1.msra.mxu0 0.0
        %9855 = vmatprep.subr.mxu0 0.0
        %9856 = vmatpush1.msra.mxu0 0.0
        %9857 = vmatprep.subr.mxu0 0.0
        %9858 = vmatpush1.msra.mxu0 0.0
        %9859 = vmatprep.mubr.f32.mxu0 0.0
        %v9860 = vand.u32 %v9694, 4294901760
        %9861 = vmatmul.mubr.f32.gmra.mrb[0].mxu0 %v9860
        %v9862 = vpop.f32.mrb[0].mxu0
        %v9863 = vadd.f32 %v9772, %v9862
        %v9864 = vpop.f32.mrb[0].mxu0
        %9865 = vdwg.mxu0
        %9866 = vmatprep.subr.mxu0 0.0
        %v9867 = vand.u32 %v9687, 4294901760
        %v9868 = vsub.f32 %v9687, %v9867
        %9869 = vmatpush1.msra.mxu0 %v9868
        %9870 = vmatprep.subr.mxu0 0.0
        %v9871 = vand.u32 %v9688, 4294901760
        %v9872 = vsub.f32 %v9688, %v9871
        %9873 = vmatpush1.msra.mxu0 %v9872
        %9874 = vmatprep.subr.mxu0 0.0
        %v9875 = vand.u32 %v9689, 4294901760
        %v9876 = vsub.f32 %v9689, %v9875
        %9877 = vmatpush1.msra.mxu0 %v9876
        %9878 = vmatprep.subr.mxu0 0.0
        %v9879 = vand.u32 %v9690, 4294901760
        %v9880 = vsub.f32 %v9690, %v9879
        %9881 = vmatpush1.msra.mxu0 %v9880
        %9882 = vmatprep.subr.mxu0 0.0
        %9883 = vmatpush1.msra.mxu0 0.0
        %9884 = vmatprep.subr.mxu0 0.0
        %9885 = vmatpush1.msra.mxu0 0.0
        %9886 = vmatprep.subr.mxu0 0.0
        %9887 = vmatpush1.msra.mxu0 0.0
        %9888 = vmatprep.subr.mxu0 0.0
        %9889 = vmatpush1.msra.mxu0 0.0
        %9890 = vmatprep.subr.mxu0 0.0
        %9891 = vmatpush1.msra.mxu0 0.0
        %9892 = vmatprep.subr.mxu0 0.0
        %9893 = vmatpush1.msra.mxu0 0.0
        %9894 = vmatprep.subr.mxu0 0.0
        %9895 = vmatpush1.msra.mxu0 0.0
        %9896 = vmatprep.subr.mxu0 0.0
        %9897 = vmatpush1.msra.mxu0 0.0
        %9898 = vmatprep.subr.mxu0 0.0
        %9899 = vmatpush1.msra.mxu0 0.0
        %9900 = vmatprep.subr.mxu0 0.0
        %9901 = vmatpush1.msra.mxu0 0.0
        %9902 = vmatprep.subr.mxu0 0.0
        %9903 = vmatpush1.msra.mxu0 0.0
        %9904 = vmatprep.subr.mxu0 0.0
        %9905 = vmatpush1.msra.mxu0 0.0
        %9906 = vmatprep.subr.mxu0 0.0
        %9907 = vmatpush1.msra.mxu0 0.0
        %9908 = vmatprep.subr.mxu0 0.0
        %9909 = vmatpush1.msra.mxu0 0.0
        %9910 = vmatprep.subr.mxu0 0.0
        %9911 = vmatpush1.msra.mxu0 0.0
        %9912 = vmatprep.subr.mxu0 0.0
        %9913 = vmatpush1.msra.mxu0 0.0
        %9914 = vmatprep.subr.mxu0 0.0
        %9915 = vmatpush1.msra.mxu0 0.0
        %9916 = vmatprep.subr.mxu0 0.0
        %9917 = vmatpush1.msra.mxu0 0.0
        %9918 = vmatprep.subr.mxu0 0.0
        %9919 = vmatpush1.msra.mxu0 0.0
        %9920 = vmatprep.subr.mxu0 0.0
        %9921 = vmatpush1.msra.mxu0 0.0
        %9922 = vmatprep.subr.mxu0 0.0
        %9923 = vmatpush1.msra.mxu0 0.0
        %9924 = vmatprep.subr.mxu0 0.0
        %9925 = vmatpush1.msra.mxu0 0.0
        %9926 = vmatprep.subr.mxu0 0.0
        %9927 = vmatpush1.msra.mxu0 0.0
        %9928 = vmatprep.subr.mxu0 0.0
        %9929 = vmatpush1.msra.mxu0 0.0
        %9930 = vmatprep.subr.mxu0 0.0
        %9931 = vmatpush1.msra.mxu0 0.0
        %9932 = vmatprep.subr.mxu0 0.0
        %9933 = vmatpush1.msra.mxu0 0.0
        %9934 = vmatprep.subr.mxu0 0.0
        %9935 = vmatpush1.msra.mxu0 0.0
        %9936 = vmatprep.subr.mxu0 0.0
        %9937 = vmatpush1.msra.mxu0 0.0
        %9938 = vmatprep.mubr.f32.mxu0 0.0
        %v9939 = vand.u32 %v9694, 4294901760
        %v9940 = vsub.f32 %v9694, %v9939
        %9941 = vmatmul.mubr.f32.gmra.mrb[0].mxu0 %v9940
        %v9942 = vpop.f32.mrb[0].mxu0
        %v9943 = vadd.f32 %v9863, %v9942
        %v9944 = vpop.f32.mrb[0].mxu0
        %9945 = vdwg.mxu0
        %9946 = vmatprep.subr.mxu0 0.0
        %v9947 = vand.u32 %v9687, 4294901760
        %9948 = vmatpush1.msra.mxu0 %v9947
        %9949 = vmatprep.subr.mxu0 0.0
        %v9950 = vand.u32 %v9688, 4294901760
        %9951 = vmatpush1.msra.mxu0 %v9950
        %9952 = vmatprep.subr.mxu0 0.0
        %v9953 = vand.u32 %v9689, 4294901760
        %9954 = vmatpush1.msra.mxu0 %v9953
        %9955 = vmatprep.subr.mxu0 0.0
        %v9956 = vand.u32 %v9690, 4294901760
        %9957 = vmatpush1.msra.mxu0 %v9956
        %9958 = vmatprep.subr.mxu0 0.0
        %9959 = vmatpush1.msra.mxu0 0.0
        %9960 = vmatprep.subr.mxu0 0.0
        %9961 = vmatpush1.msra.mxu0 0.0
        %9962 = vmatprep.subr.mxu0 0.0
        %9963 = vmatpush1.msra.mxu0 0.0
        %9964 = vmatprep.subr.mxu0 0.0
        %9965 = vmatpush1.msra.mxu0 0.0
        %9966 = vmatprep.subr.mxu0 0.0
        %9967 = vmatpush1.msra.mxu0 0.0
        %9968 = vmatprep.subr.mxu0 0.0
        %9969 = vmatpush1.msra.mxu0 0.0
        %9970 = vmatprep.subr.mxu0 0.0
        %9971 = vmatpush1.msra.mxu0 0.0
        %9972 = vmatprep.subr.mxu0 0.0
        %9973 = vmatpush1.msra.mxu0 0.0
        %9974 = vmatprep.subr.mxu0 0.0
        %9975 = vmatpush1.msra.mxu0 0.0
        %9976 = vmatprep.subr.mxu0 0.0
        %9977 = vmatpush1.msra.mxu0 0.0
        %9978 = vmatprep.subr.mxu0 0.0
        %9979 = vmatpush1.msra.mxu0 0.0
        %9980 = vmatprep.subr.mxu0 0.0
        %9981 = vmatpush1.msra.mxu0 0.0
        %9982 = vmatprep.subr.mxu0 0.0
        %9983 = vmatpush1.msra.mxu0 0.0
        %9984 = vmatprep.subr.mxu0 0.0
        %9985 = vmatpush1.msra.mxu0 0.0
        %9986 = vmatprep.subr.mxu0 0.0
        %9987 = vmatpush1.msra.mxu0 0.0
        %9988 = vmatprep.subr.mxu0 0.0
        %9989 = vmatpush1.msra.mxu0 0.0
        %9990 = vmatprep.subr.mxu0 0.0
        %9991 = vmatpush1.msra.mxu0 0.0
        %9992 = vmatprep.subr.mxu0 0.0
        %9993 = vmatpush1.msra.mxu0 0.0
        %9994 = vmatprep.subr.mxu0 0.0
        %9995 = vmatpush1.msra.mxu0 0.0
        %9996 = vmatprep.subr.mxu0 0.0
        %9997 = vmatpush1.msra.mxu0 0.0
        %9998 = vmatprep.subr.mxu0 0.0
        %9999 = vmatpush1.msra.mxu0 0.0
        %10000 = vmatprep.subr.mxu0 0.0
        %10001 = vmatpush1.msra.mxu0 0.0
        %10002 = vmatprep.subr.mxu0 0.0
        %10003 = vmatpush1.msra.mxu0 0.0
        %10004 = vmatprep.subr.mxu0 0.0
        %10005 = vmatpush1.msra.mxu0 0.0
        %10006 = vmatprep.subr.mxu0 0.0
        %10007 = vmatpush1.msra.mxu0 0.0
        %10008 = vmatprep.subr.mxu0 0.0
        %10009 = vmatpush1.msra.mxu0 0.0
        %10010 = vmatprep.subr.mxu0 0.0
        %10011 = vmatpush1.msra.mxu0 0.0
        %10012 = vmatprep.subr.mxu0 0.0
        %10013 = vmatpush1.msra.mxu0 0.0
        %10014 = vmatprep.mubr.f32.mxu0 0.0
        %v10015 = vand.u32 %v9694, 4294901760
        %v10016 = vsub.f32 %v9694, %v10015
        %v10017 = vand.u32 %v10016, 4294901760
        %10018 = vmatmul.mubr.f32.gmra.mrb[0].mxu0 %v10017
        %v10019 = vpop.f32.mrb[0].mxu0
        %v10020 = vadd.f32 %v9943, %v10019
        %v10021 = vpop.f32.mrb[0].mxu0
        %10022 = vdwg.mxu0
        %10023 = vmatprep.subr.mxu0 0.0
        %v10024 = vand.u32 %v9687, 4294901760
        %v10025 = vsub.f32 %v9687, %v10024
        %v10026 = vand.u32 %v10025, 4294901760
        %10027 = vmatpush1.msra.mxu0 %v10026
        %10028 = vmatprep.subr.mxu0 0.0
        %v10029 = vand.u32 %v9688, 4294901760
        %v10030 = vsub.f32 %v9688, %v10029
        %v10031 = vand.u32 %v10030, 4294901760
        %10032 = vmatpush1.msra.mxu0 %v10031
        %10033 = vmatprep.subr.mxu0 0.0
        %v10034 = vand.u32 %v9689, 4294901760
        %v10035 = vsub.f32 %v9689, %v10034
        %v10036 = vand.u32 %v10035, 4294901760
        %10037 = vmatpush1.msra.mxu0 %v10036
        %10038 = vmatprep.subr.mxu0 0.0
        %v10039 = vand.u32 %v9690, 4294901760
        %v10040 = vsub.f32 %v9690, %v10039
        %v10041 = vand.u32 %v10040, 4294901760
        %10042 = vmatpush1.msra.mxu0 %v10041
        %10043 = vmatprep.subr.mxu0 0.0
        %10044 = vmatpush1.msra.mxu0 0.0
        %10045 = vmatprep.subr.mxu0 0.0
        %10046 = vmatpush1.msra.mxu0 0.0
        %10047 = vmatprep.subr.mxu0 0.0
        %10048 = vmatpush1.msra.mxu0 0.0
        %10049 = vmatprep.subr.mxu0 0.0
        %10050 = vmatpush1.msra.mxu0 0.0
        %10051 = vmatprep.subr.mxu0 0.0
        %10052 = vmatpush1.msra.mxu0 0.0
        %10053 = vmatprep.subr.mxu0 0.0
        %10054 = vmatpush1.msra.mxu0 0.0
        %10055 = vmatprep.subr.mxu0 0.0
        %10056 = vmatpush1.msra.mxu0 0.0
        %10057 = vmatprep.subr.mxu0 0.0
        %10058 = vmatpush1.msra.mxu0 0.0
        %10059 = vmatprep.subr.mxu0 0.0
        %10060 = vmatpush1.msra.mxu0 0.0
        %10061 = vmatprep.subr.mxu0 0.0
        %10062 = vmatpush1.msra.mxu0 0.0
        %10063 = vmatprep.subr.mxu0 0.0
        %10064 = vmatpush1.msra.mxu0 0.0
        %10065 = vmatprep.subr.mxu0 0.0
        %10066 = vmatpush1.msra.mxu0 0.0
        %10067 = vmatprep.subr.mxu0 0.0
        %10068 = vmatpush1.msra.mxu0 0.0
        %10069 = vmatprep.subr.mxu0 0.0
        %10070 = vmatpush1.msra.mxu0 0.0
        %10071 = vmatprep.subr.mxu0 0.0
        %10072 = vmatpush1.msra.mxu0 0.0
        %10073 = vmatprep.subr.mxu0 0.0
        %10074 = vmatpush1.msra.mxu0 0.0
        %10075 = vmatprep.subr.mxu0 0.0
        %10076 = vmatpush1.msra.mxu0 0.0
        %10077 = vmatprep.subr.mxu0 0.0
        %10078 = vmatpush1.msra.mxu0 0.0
        %10079 = vmatprep.subr.mxu0 0.0
        %10080 = vmatpush1.msra.mxu0 0.0
        %10081 = vmatprep.subr.mxu0 0.0
        %10082 = vmatpush1.msra.mxu0 0.0
        %10083 = vmatprep.subr.mxu0 0.0
        %10084 = vmatpush1.msra.mxu0 0.0
        %10085 = vmatprep.subr.mxu0 0.0
        %10086 = vmatpush1.msra.mxu0 0.0
        %10087 = vmatprep.subr.mxu0 0.0
        %10088 = vmatpush1.msra.mxu0 0.0
        %10089 = vmatprep.subr.mxu0 0.0
        %10090 = vmatpush1.msra.mxu0 0.0
        %10091 = vmatprep.subr.mxu0 0.0
        %10092 = vmatpush1.msra.mxu0 0.0
        %10093 = vmatprep.subr.mxu0 0.0
        %10094 = vmatpush1.msra.mxu0 0.0
        %10095 = vmatprep.subr.mxu0 0.0
        %10096 = vmatpush1.msra.mxu0 0.0
        %10097 = vmatprep.subr.mxu0 0.0
        %10098 = vmatpush1.msra.mxu0 0.0
        %10099 = vmatprep.mubr.f32.mxu0 0.0
        %v10100 = vand.u32 %v9694, 4294901760
        %10101 = vmatmul.mubr.f32.gmra.mrb[0].mxu0 %v10100
        %v10102 = vpop.f32.mrb[0].mxu0
        %v10103 = vadd.f32 %v10020, %v10102
        %v10104 = vpop.f32.mrb[0].mxu0
        %10105 = vdwg.mxu0
        %10106 = vmatprep.subr.mxu0 0.0
        %v10107 = vand.u32 %v9687, 4294901760
        %10108 = vmatpush1.msra.mxu0 %v10107
        %10109 = vmatprep.subr.mxu0 0.0
        %v10110 = vand.u32 %v9688, 4294901760
        %10111 = vmatpush1.msra.mxu0 %v10110
        %10112 = vmatprep.subr.mxu0 0.0
        %v10113 = vand.u32 %v9689, 4294901760
        %10114 = vmatpush1.msra.mxu0 %v10113
        %10115 = vmatprep.subr.mxu0 0.0
        %v10116 = vand.u32 %v9690, 4294901760
        %10117 = vmatpush1.msra.mxu0 %v10116
        %10118 = vmatprep.subr.mxu0 0.0
        %10119 = vmatpush1.msra.mxu0 0.0
        %10120 = vmatprep.subr.mxu0 0.0
        %10121 = vmatpush1.msra.mxu0 0.0
        %10122 = vmatprep.subr.mxu0 0.0
        %10123 = vmatpush1.msra.mxu0 0.0
        %10124 = vmatprep.subr.mxu0 0.0
        %10125 = vmatpush1.msra.mxu0 0.0
        %10126 = vmatprep.subr.mxu0 0.0
        %10127 = vmatpush1.msra.mxu0 0.0
        %10128 = vmatprep.subr.mxu0 0.0
        %10129 = vmatpush1.msra.mxu0 0.0
        %10130 = vmatprep.subr.mxu0 0.0
        %10131 = vmatpush1.msra.mxu0 0.0
        %10132 = vmatprep.subr.mxu0 0.0
        %10133 = vmatpush1.msra.mxu0 0.0
        %10134 = vmatprep.subr.mxu0 0.0
        %10135 = vmatpush1.msra.mxu0 0.0
        %10136 = vmatprep.subr.mxu0 0.0
        %10137 = vmatpush1.msra.mxu0 0.0
        %10138 = vmatprep.subr.mxu0 0.0
        %10139 = vmatpush1.msra.mxu0 0.0
        %10140 = vmatprep.subr.mxu0 0.0
        %10141 = vmatpush1.msra.mxu0 0.0
        %10142 = vmatprep.subr.mxu0 0.0
        %10143 = vmatpush1.msra.mxu0 0.0
        %10144 = vmatprep.subr.mxu0 0.0
        %10145 = vmatpush1.msra.mxu0 0.0
        %10146 = vmatprep.subr.mxu0 0.0
        %10147 = vmatpush1.msra.mxu0 0.0
        %10148 = vmatprep.subr.mxu0 0.0
        %10149 = vmatpush1.msra.mxu0 0.0
        %10150 = vmatprep.subr.mxu0 0.0
        %10151 = vmatpush1.msra.mxu0 0.0
        %10152 = vmatprep.subr.mxu0 0.0
        %10153 = vmatpush1.msra.mxu0 0.0
        %10154 = vmatprep.subr.mxu0 0.0
        %10155 = vmatpush1.msra.mxu0 0.0
        %10156 = vmatprep.subr.mxu0 0.0
        %10157 = vmatpush1.msra.mxu0 0.0
        %10158 = vmatprep.subr.mxu0 0.0
        %10159 = vmatpush1.msra.mxu0 0.0
        %10160 = vmatprep.subr.mxu0 0.0
        %10161 = vmatpush1.msra.mxu0 0.0
        %10162 = vmatprep.subr.mxu0 0.0
        %10163 = vmatpush1.msra.mxu0 0.0
        %10164 = vmatprep.subr.mxu0 0.0
        %10165 = vmatpush1.msra.mxu0 0.0
        %10166 = vmatprep.subr.mxu0 0.0
        %10167 = vmatpush1.msra.mxu0 0.0
        %10168 = vmatprep.subr.mxu0 0.0
        %10169 = vmatpush1.msra.mxu0 0.0
        %10170 = vmatprep.subr.mxu0 0.0
        %10171 = vmatpush1.msra.mxu0 0.0
        %10172 = vmatprep.subr.mxu0 0.0
        %10173 = vmatpush1.msra.mxu0 0.0
        %10174 = vmatprep.mubr.f32.mxu0 0.0
        %v10175 = vand.u32 %v9694, 4294901760
        %10176 = vmatmul.mubr.f32.gmra.mrb[0].mxu0 %v10175
        %v10177 = vpop.f32.mrb[0].mxu0
        %v10178 = vadd.f32 %v10103, %v10177
        %v10179 = vpop.f32.mrb[0].mxu0
        %10180 = vdwg.mxu0
        %vm10181 = vcmask 8192
        %v10182 = vsel %vm10181, %v10178, -inf
        %10183 = vmax.xlane.f32.xlu0 %v10182
        %v10184 = vpop.xlane.xlu0 %10183
        %v10185 = vsub.f32 %v10178, %v10184
        %v10186 = vmul.f32 %v10185, 1.442695
        %v10187 = vpow.pop %v10186
        %v10188 = vsel %vm10181, %v10187, 0.0
        %10189 = vadd.xlane.f32.xlu0 %v10188
        %v10190 = vpop.xlane.xlu0 %10189
        %v10191 = vrcp.pop %v10190
        %v10192 = vmul.f32 %v10187, %v10191
        %10193 = vst.msk [vmem:[%s524] sm:$0x1] %vm10181, %v10192
        %s10194 = sand.u32 %s384, 1
        %s10195 = scalar_lea.sflag [#allocation3], %s10194
        %s10196 = sand.u32 %s384, 1
        %s10197 = scalar_lea.vmem [#allocation2], %s10196
        // Predicated region
        $region85: #{mlp_mixer_forward.1} parent=83 // pred_check
          %p10198 = pneg %p394
        $region86: #{mlp_mixer_forward.1} parent=83 // pred_check_branch
          %10200 = sbr.rel (%p10198) target = $region88
        $region87: #{mlp_mixer_forward.1} parent=83 // pred_region
          %s10202 = ssub.s32 16, 16
          %10203 = vsyncadd %s10195, %s10202
          %s10204 = smul.addr %s30, 16
          %s10205 = scalar_lea.hbm %s16, %s10204
          %s10207 = sshll.u32 %s10197, 4
          %s10208 = int_to_ptr.vmem [resolvable:$true] %s10207
          %10210 = dma.vmem_to_hbm [thread:$0]  %s10208, 16, %s10205, %s10195
        $region88: #{mlp_mixer_forward.1} parent=83 // pred_fallthru
          _
      $region84: #{mlp_mixer_forward.1} parent=5 // pred_fallthru
        _
      %p10211 = scmp.le.s32.totalorder 2, %s25
      // Predicated region
      $region89: #{mlp_mixer_forward.1} parent=5 // pred_check
        %p10212 = pneg %p10211
      $region90: #{mlp_mixer_forward.1} parent=5 // pred_check_branch
        %10214 = sbr.rel (%p10212) target = $region92
      $region91: #{mlp_mixer_forward.1} parent=5 // pred_region
        %s10215 = ssub.s32 %s25, 2
        // Predicated region
        $region93: #{mlp_mixer_forward.1} parent=91 // pred_check
          %p10216 = pneg %p400
        $region94: #{mlp_mixer_forward.1} parent=91 // pred_check_branch
          %10218 = sbr.rel (%p10216) target = $region96
        $region95: #{mlp_mixer_forward.1} parent=91 // pred_region
          %s10219 = sand.u32 %s385, 1
          %s10220 = scalar_lea.sflag [#allocation3], %s10219
          %s10221 = sand.u32 %s385, 1
          %s10222 = scalar_lea.vmem [#allocation2], %s10221
          %10223 = dma.done %s10220, 16
        $region96: #{mlp_mixer_forward.1} parent=91 // pred_fallthru
          _
      $region92: #{mlp_mixer_forward.1} parent=5 // pred_fallthru
        _
    $region6: #{mlp_mixer_forward.1} parent=1 // loop_footer
      %s29 = sadd.s32 1, %s25
    $region7: #{mlp_mixer_forward.1} parent=1 // loop_footer_branch
      %24 = sbr.rel target = $region3
    $region8: #{mlp_mixer_forward.1} parent=1 // loop_exit
      _
    %10224 = vsyncpa [#allocation3], 1
    %s10225 = scalar_lea.sflag [#allocation3], 1
    %10226 = vsyncpa %s10225, 1

</llo_original>
